<compile_context>
chip_gen: v7x
topology: tpu7x:2x2x1
jax: 0.10.0
libtpu: 0.0.40
codegen_flags: <defaults>
</compile_context>

<pallas_src>
import math
import jax
import jax.numpy as jnp
from jax import lax
from jax.experimental import pallas as pl
from jax.experimental.pallas import tpu as pltpu

D_MODEL = 46          # self.d_model
VOCAB = 32            # nn.Embedding(32, d_model)
SEQ_IN = 32           # token sequence length implied by mask.reshape(bs, 32)
SEQ = SEQ_IN + 1      # + CLS token
FFN = 2048            # dim_feedforward
OUT = 4               # clsdecoder output
LN_EPS = 1e-5
NEG_INF = -1e30
B_TILE = 8            # sequences per grid step (multiple of 8 -> aligned output block)
BS = B_TILE * SEQ     # flattened rows per grid step (264)


def _layer_norm(x, w, b):
    mu = jnp.mean(x, axis=-1, keepdims=True)
    xc = x - mu
    var = jnp.mean(xc * xc, axis=-1, keepdims=True)
    return xc * lax.rsqrt(var + LN_EPS) * w + b


def encoder_kernel(x_ref, kb_ref, rid_ref, cid_ref, sel_ref,
                   wqkv_ref, bqkv_ref, wo_ref, bo_ref,
                   ln1w_ref, ln1b_ref,
                   w1_ref, b1_ref, w2_ref, b2_ref,
                   ln2w_ref, ln2b_ref,
                   wd_ref, bd_ref,
                   out_ref):
    x = x_ref[...]                                  # (BS, D) f32, B_TILE seqs flattened
    kb = kb_ref[0]                                  # (1, BS) additive key-padding bias
    same_seq = rid_ref[...] == cid_ref[...]         # (BS,1)==(1,BS) -> (BS,BS) block-diag

    # --- fused QKV projection (bf16 weights, f32 accumulation) ---
    qkv = jnp.dot(x.astype(jnp.bfloat16), wqkv_ref[...],
                  preferred_element_type=jnp.float32) + bqkv_ref[...]
    q = qkv[:, 0 * D_MODEL:1 * D_MODEL]
    k = qkv[:, 1 * D_MODEL:2 * D_MODEL]
    v = qkv[:, 2 * D_MODEL:3 * D_MODEL]

    # --- single-head self-attention over the whole tile ---
    # contract the feature dim of both operands (no explicit transpose of K)
    scores = lax.dot_general(q.astype(jnp.bfloat16), k.astype(jnp.bfloat16),
                             (((1,), (1,)), ((), ())),
                             preferred_element_type=jnp.float32)
    bias = jnp.where(same_seq, kb, NEG_INF)          # cross-sequence + padded keys -> -inf
    scores = scores * (1.0 / math.sqrt(D_MODEL)) + bias

    m = jnp.max(scores, axis=-1, keepdims=True)
    p = jnp.exp(scores - m)
    p = p * pl.reciprocal(jnp.sum(p, axis=-1, keepdims=True), approx=True)

    attn = jnp.dot(p.astype(jnp.bfloat16), v.astype(jnp.bfloat16),
                   preferred_element_type=jnp.float32)
    attn = jnp.dot(attn.astype(jnp.bfloat16), wo_ref[...],
                   preferred_element_type=jnp.float32) + bo_ref[...]

    # --- residual + LayerNorm (post-norm, PyTorch default norm_first=False) ---
    x1 = _layer_norm(x + attn, ln1w_ref[...], ln1b_ref[...])

    # --- feed-forward: relu(x W1 + b1) W2 + b2 ---
    h = jnp.dot(x1.astype(jnp.bfloat16), w1_ref[...],
                preferred_element_type=jnp.float32) + b1_ref[...]
    h = jnp.maximum(h, 0.0)
    ff = jnp.dot(h.astype(jnp.bfloat16), w2_ref[...],
                 preferred_element_type=jnp.float32) + b2_ref[...]

    x2 = _layer_norm(x1 + ff, ln2w_ref[...], ln2b_ref[...])

    # --- CLS decoder on token 0 of every sequence (one-hot matmul gather) ---
    cls = jnp.dot(sel_ref[...], x2, preferred_element_type=jnp.float32)   # (B_TILE, D)
    out_ref[...] = jnp.dot(cls, wd_ref[...],
                           preferred_element_type=jnp.float32) + bd_ref[...]


def eyeformer_forward(tokens, src_padding_mask, params):
    """tokens: (bs, 32) int32 indices; src_padding_mask: (bs, 32) bool (True=pad)."""
    bs = tokens.shape[0]
    p = params

    # pad batch to a multiple of B_TILE (dummy rows are fully padded, sliced off later)
    bs_pad = ((bs + B_TILE - 1) // B_TILE) * B_TILE
    n_pad = bs_pad - bs
    if n_pad:
        tokens = jnp.concatenate(
            [tokens, jnp.zeros((n_pad, SEQ_IN), tokens.dtype)], axis=0)
        src_padding_mask = jnp.concatenate(
            [src_padding_mask, jnp.ones((n_pad, SEQ_IN), dtype=bool)], axis=0)
    nb = bs_pad // B_TILE

    # ---------- JAX glue: embedding, CLS concat, positional encoding, masks ----------
    emb = p["emb_w"][tokens] * math.sqrt(D_MODEL)                     # (bs_pad, 32, 46)
    cls = jnp.broadcast_to(p["cls_token"], (bs_pad, 1, D_MODEL))      # zeros CLS
    x = jnp.concatenate([cls, emb], axis=1) + p["pe"][None, :SEQ, :]  # (bs_pad, 33, 46)
    x = x.astype(jnp.float32).reshape(bs_pad * SEQ, D_MODEL)          # flattened rows

    clsmask = jnp.zeros((bs_pad, 1), dtype=bool)
    mask = jnp.concatenate([clsmask, src_padding_mask.reshape(bs_pad, SEQ_IN)], axis=1)
    key_bias = jnp.where(mask, NEG_INF, 0.0).astype(jnp.float32)      # (bs_pad, 33)
    kb = key_bias.reshape(nb, 1, BS)                                  # per grid step

    # static helper tensors (identical for every grid step -> replicated specs)
    local_seq = (jnp.arange(BS, dtype=jnp.int32) // SEQ)
    rid = local_seq.reshape(BS, 1)
    cid = local_seq.reshape(1, BS)
    sel = (jnp.arange(BS, dtype=jnp.int32)[None, :]
           == (jnp.arange(B_TILE, dtype=jnp.int32) * SEQ)[:, None]).astype(jnp.float32)

    weight_args = [
        p["wqkv"], p["bqkv"], p["wo"], p["bo"],
        p["ln1_w"], p["ln1_b"],
        p["w1"], p["b1"], p["w2"], p["b2"],
        p["ln2_w"], p["ln2_b"],
        p["wd"], p["bd"],
    ]

    def rep_spec(arr):
        nd = arr.ndim
        return pl.BlockSpec(arr.shape, lambda b, nd=nd: (0,) * nd)

    in_specs = [
        pl.BlockSpec((BS, D_MODEL), lambda b: (b, 0)),     # x rows of this tile
        pl.BlockSpec((1, 1, BS), lambda b: (b, 0, 0)),     # key-padding bias
        rep_spec(rid), rep_spec(cid), rep_spec(sel),
    ] + [rep_spec(w) for w in weight_args]

    out = pl.pallas_call(
        encoder_kernel,
        out_shape=jax.ShapeDtypeStruct((bs_pad, OUT), jnp.float32),
        grid_spec=pltpu.PrefetchScalarGridSpec(
            num_scalar_prefetch=0,
            grid=(nb,),
            in_specs=in_specs,
            out_specs=pl.BlockSpec((B_TILE, OUT), lambda b: (b, 0)),
        ),
        compiler_params=pltpu.CompilerParams(
            dimension_semantics=("parallel",),
            vmem_limit_bytes=32 * 1024 * 1024,
        ),
    )(x, kb, rid, cid, sel, *weight_args)

    return out[:bs]


def make_params(key):
    ks = jax.random.split(key, 12)

    def init(k, shape, scale=0.05):
        return (scale * jax.random.normal(k, shape)).astype(jnp.float32)

    # sinusoidal positional-encoding buffer (max_len=33, d_model=46)
    position = jnp.arange(SEQ, dtype=jnp.float32)[:, None]
    div_term = jnp.exp(jnp.arange(0, D_MODEL, 2, dtype=jnp.float32)
                       * (-math.log(10000.0) / D_MODEL))
    pe = jnp.zeros((SEQ, D_MODEL), dtype=jnp.float32)
    pe = pe.at[:, 0::2].set(jnp.sin(position * div_term))
    pe = pe.at[:, 1::2].set(jnp.cos(position * div_term))

    wq = init(ks[1], (D_MODEL, D_MODEL))
    wk = init(ks[2], (D_MODEL, D_MODEL))
    wv = init(ks[3], (D_MODEL, D_MODEL))

    params = {
        "emb_w": init(ks[0], (VOCAB, D_MODEL)),
        "cls_token": jnp.zeros((1, 1, D_MODEL), jnp.float32),   # zeros, as in module
        "pe": pe,
        # fused in-projection, stored (in, 3*d_model); matmul weights kept in bf16
        "wqkv": jnp.concatenate([wq, wk, wv], axis=1).astype(jnp.bfloat16),
        "bqkv": jnp.zeros((1, 3 * D_MODEL), jnp.float32),
        "wo": init(ks[4], (D_MODEL, D_MODEL)).astype(jnp.bfloat16),
        "bo": init(ks[5], (1, D_MODEL)),
        "ln1_w": jnp.ones((1, D_MODEL), jnp.float32),
        "ln1_b": jnp.zeros((1, D_MODEL), jnp.float32),
        "w1": init(ks[6], (D_MODEL, FFN)).astype(jnp.bfloat16),
        "b1": init(ks[7], (1, FFN)),
        "w2": init(ks[8], (FFN, D_MODEL)).astype(jnp.bfloat16),
        "b2": init(ks[9], (1, D_MODEL)),
        "ln2_w": jnp.ones((1, D_MODEL), jnp.float32),
        "ln2_b": jnp.zeros((1, D_MODEL), jnp.float32),
        "wd": init(ks[10], (D_MODEL, OUT)),
        "bd": init(ks[11], (1, OUT)),
    }
    return params


if __name__ == "__main__":
    key = jax.random.PRNGKey(0)
    pkey, xkey = jax.random.split(key)

    params = make_params(pkey)

    bs = 12   # not a multiple of B_TILE on purpose: exercises batch padding, grid = 2
    tokens = jax.random.randint(xkey, (bs, SEQ_IN), 0, VOCAB, dtype=jnp.int32)
    # deterministic padding mask: positions past the sequence length are padded
    lengths = (jnp.arange(bs, dtype=jnp.int32) % 28) + 4
    src_padding_mask = jnp.arange(SEQ_IN)[None, :] >= lengths[:, None]   # (bs, 32) bool

    out = eyeformer_forward(tokens, src_padding_mask, params)
    out = jax.block_until_ready(out)

    assert out.shape == (bs, OUT), out.shape
    assert bool(jnp.all(jnp.isfinite(out)))
    print("KERNEL_OK")
</pallas_src>

<mosaic_0001>
module attributes {stable_mosaic.version = 11 : i64} {
  func.func @encoder_kernel(%arg0: i32, %arg1: memref<264x46xf32, #tpu.memory_space<vmem>>, %arg2: memref<1x1x264xf32, #tpu.memory_space<vmem>>, %arg3: memref<264x1xi32, #tpu.memory_space<vmem>>, %arg4: memref<1x264xi32, #tpu.memory_space<vmem>>, %arg5: memref<8x264xf32, #tpu.memory_space<vmem>>, %arg6: memref<46x138xbf16, #tpu.memory_space<vmem>>, %arg7: memref<1x138xf32, #tpu.memory_space<vmem>>, %arg8: memref<46x46xbf16, #tpu.memory_space<vmem>>, %arg9: memref<1x46xf32, #tpu.memory_space<vmem>>, %arg10: memref<1x46xf32, #tpu.memory_space<vmem>>, %arg11: memref<1x46xf32, #tpu.memory_space<vmem>>, %arg12: memref<46x2048xbf16, #tpu.memory_space<vmem>>, %arg13: memref<1x2048xf32, #tpu.memory_space<vmem>>, %arg14: memref<2048x46xbf16, #tpu.memory_space<vmem>>, %arg15: memref<1x46xf32, #tpu.memory_space<vmem>>, %arg16: memref<1x46xf32, #tpu.memory_space<vmem>>, %arg17: memref<1x46xf32, #tpu.memory_space<vmem>>, %arg18: memref<46x4xf32, #tpu.memory_space<vmem>>, %arg19: memref<1x4xf32, #tpu.memory_space<vmem>>, %arg20: memref<8x4xf32, #tpu.memory_space<vmem>>) attributes {dimension_semantics = [#tpu.dimension_semantics<parallel>], iteration_bounds = array<i64: 2>, scalar_prefetch = 0 : i64, scratch_operands = 0 : i64, tpu.core_type = #tpu.core_type<tc>, window_params = [{transform_indices = @transform_0, window_bounds = array<i64: 264, 46>}, {transform_indices = @transform_1, window_bounds = array<i64: 1, 1, 264>}, {pipeline_mode = #tpu.pipeline_mode<synchronous>, transform_indices = @transform_2, window_bounds = array<i64: 264, 1>}, {pipeline_mode = #tpu.pipeline_mode<synchronous>, transform_indices = @transform_3, window_bounds = array<i64: 1, 264>}, {pipeline_mode = #tpu.pipeline_mode<synchronous>, transform_indices = @transform_4, window_bounds = array<i64: 8, 264>}, {pipeline_mode = #tpu.pipeline_mode<synchronous>, transform_indices = @transform_5, window_bounds = array<i64: 46, 138>}, {pipeline_mode = #tpu.pipeline_mode<synchronous>, transform_indices = @transform_6, window_bounds = array<i64: 1, 138>}, {pipeline_mode = #tpu.pipeline_mode<synchronous>, transform_indices = @transform_7, window_bounds = array<i64: 46, 46>}, {pipeline_mode = #tpu.pipeline_mode<synchronous>, transform_indices = @transform_8, window_bounds = array<i64: 1, 46>}, {pipeline_mode = #tpu.pipeline_mode<synchronous>, transform_indices = @transform_9, window_bounds = array<i64: 1, 46>}, {pipeline_mode = #tpu.pipeline_mode<synchronous>, transform_indices = @transform_10, window_bounds = array<i64: 1, 46>}, {pipeline_mode = #tpu.pipeline_mode<synchronous>, transform_indices = @transform_11, window_bounds = array<i64: 46, 2048>}, {pipeline_mode = #tpu.pipeline_mode<synchronous>, transform_indices = @transform_12, window_bounds = array<i64: 1, 2048>}, {pipeline_mode = #tpu.pipeline_mode<synchronous>, transform_indices = @transform_13, window_bounds = array<i64: 2048, 46>}, {pipeline_mode = #tpu.pipeline_mode<synchronous>, transform_indices = @transform_14, window_bounds = array<i64: 1, 46>}, {pipeline_mode = #tpu.pipeline_mode<synchronous>, transform_indices = @transform_15, window_bounds = array<i64: 1, 46>}, {pipeline_mode = #tpu.pipeline_mode<synchronous>, transform_indices = @transform_16, window_bounds = array<i64: 1, 46>}, {pipeline_mode = #tpu.pipeline_mode<synchronous>, transform_indices = @transform_17, window_bounds = array<i64: 46, 4>}, {pipeline_mode = #tpu.pipeline_mode<synchronous>, transform_indices = @transform_18, window_bounds = array<i64: 1, 4>}, {transform_indices = @transform_19, window_bounds = array<i64: 8, 4>}]} {
    %c0 = arith.constant 0 : index
    %c0_0 = arith.constant 0 : index
    %0 = vector.load %arg1[%c0, %c0_0] : memref<264x46xf32, #tpu.memory_space<vmem>>, vector<264x46xf32>
    %c0_1 = arith.constant 0 : index
    %c0_2 = arith.constant 0 : index
    %c0_3 = arith.constant 0 : index
    %1 = vector.load %arg2[%c0_1, %c0_2, %c0_3] : memref<1x1x264xf32, #tpu.memory_space<vmem>>, vector<1x1x264xf32>
    %2 = vector.shape_cast %1 : vector<1x1x264xf32> to vector<1x264xf32>
    %c0_4 = arith.constant 0 : index
    %c0_5 = arith.constant 0 : index
    %3 = vector.load %arg3[%c0_4, %c0_5] : memref<264x1xi32, #tpu.memory_space<vmem>>, vector<264x1xi32>
    %c0_6 = arith.constant 0 : index
    %c0_7 = arith.constant 0 : index
    %4 = vector.load %arg4[%c0_6, %c0_7] : memref<1x264xi32, #tpu.memory_space<vmem>>, vector<1x264xi32>
    %5 = vector.broadcast %3 : vector<264x1xi32> to vector<264x264xi32>
    %6 = vector.broadcast %4 : vector<1x264xi32> to vector<264x264xi32>
    %7 = arith.cmpi eq, %5, %6 : vector<264x264xi32>
    %8 = arith.truncf %0 : vector<264x46xf32> to vector<264x46xbf16>
    %c0_8 = arith.constant 0 : index
    %c0_9 = arith.constant 0 : index
    %9 = vector.load %arg6[%c0_8, %c0_9] : memref<46x138xbf16, #tpu.memory_space<vmem>>, vector<46x138xbf16>
    %cst = arith.constant dense<0.000000e+00> : vector<264x138xf32>
    %10 = tpu.matmul %8, %9, %cst {dimension_numbers = #tpu.dot_dimension_numbers<[1], [0], [0], [1], [0, 0, 1, 1], [], []>} : vector<264x46xbf16>, vector<46x138xbf16>, vector<264x138xf32> -> vector<264x138xf32>
    %c0_10 = arith.constant 0 : index
    %c0_11 = arith.constant 0 : index
    %11 = vector.load %arg7[%c0_10, %c0_11] : memref<1x138xf32, #tpu.memory_space<vmem>>, vector<1x138xf32>
    %12 = vector.broadcast %11 : vector<1x138xf32> to vector<264x138xf32>
    %13 = arith.addf %10, %12 : vector<264x138xf32>
    %14 = vector.extract_strided_slice %13 {offsets = [0, 0], sizes = [264, 46], strides = [1, 1]} : vector<264x138xf32> to vector<264x46xf32>
    %15 = vector.extract_strided_slice %13 {offsets = [0, 46], sizes = [264, 46], strides = [1, 1]} : vector<264x138xf32> to vector<264x46xf32>
    %16 = vector.extract_strided_slice %13 {offsets = [0, 92], sizes = [264, 46], strides = [1, 1]} : vector<264x138xf32> to vector<264x46xf32>
    %17 = arith.truncf %14 : vector<264x46xf32> to vector<264x46xbf16>
    %18 = arith.truncf %15 : vector<264x46xf32> to vector<264x46xbf16>
    %cst_12 = arith.constant dense<0.000000e+00> : vector<264x264xf32>
    %19 = tpu.matmul %17, %18, %cst_12 {dimension_numbers = #tpu.dot_dimension_numbers<[1], [1], [0], [0], [0, 0, 1, 0], [], []>} : vector<264x46xbf16>, vector<264x46xbf16>, vector<264x264xf32> -> vector<264x264xf32>
    %cst_13 = arith.constant -1.000000e+30 : f32
    %20 = vector.shape_cast %2 : vector<1x264xf32> to vector<1x264xf32>
    %21 = vector.broadcast %20 : vector<1x264xf32> to vector<264x264xf32>
    %22 = vector.broadcast %cst_13 : f32 to vector<264x264xf32>
    %23 = arith.select %7, %21, %22 : vector<264x264xi1>, vector<264x264xf32>
    %cst_14 = arith.constant 0.147441953 : f32
    %24 = vector.broadcast %cst_14 : f32 to vector<264x264xf32>
    %25 = arith.mulf %19, %24 : vector<264x264xf32>
    %26 = arith.addf %25, %23 : vector<264x264xf32>
    %cst_15 = arith.constant dense<0xFF800000> : vector<264xf32>
    %27 = vector.multi_reduction <maximumf>, %26, %cst_15 [1] : vector<264x264xf32> to vector<264xf32>
    %28 = vector.shape_cast %27 : vector<264xf32> to vector<264x1xf32>
    %29 = vector.broadcast %28 : vector<264x1xf32> to vector<264x264xf32>
    %30 = arith.subf %26, %29 : vector<264x264xf32>
    %31 = math.exp %30 : vector<264x264xf32>
    %cst_16 = arith.constant dense<0.000000e+00> : vector<264xf32>
    %32 = vector.multi_reduction <add>, %31, %cst_16 [1] : vector<264x264xf32> to vector<264xf32>
    %33 = vector.shape_cast %32 : vector<264xf32> to vector<264x1xf32>
    %34 = tpu.reciprocal %33 {approx = true} : vector<264x1xf32> -> vector<264x1xf32>
    %35 = vector.broadcast %34 : vector<264x1xf32> to vector<264x264xf32>
    %36 = arith.mulf %31, %35 : vector<264x264xf32>
    %37 = arith.truncf %36 : vector<264x264xf32> to vector<264x264xbf16>
    %38 = arith.truncf %16 : vector<264x46xf32> to vector<264x46xbf16>
    %cst_17 = arith.constant dense<0.000000e+00> : vector<264x46xf32>
    %39 = tpu.matmul %37, %38, %cst_17 {dimension_numbers = #tpu.dot_dimension_numbers<[1], [0], [0], [1], [0, 0, 1, 1], [], []>} : vector<264x264xbf16>, vector<264x46xbf16>, vector<264x46xf32> -> vector<264x46xf32>
    %40 = arith.truncf %39 : vector<264x46xf32> to vector<264x46xbf16>
    %c0_18 = arith.constant 0 : index
    %c0_19 = arith.constant 0 : index
    %41 = vector.load %arg8[%c0_18, %c0_19] : memref<46x46xbf16, #tpu.memory_space<vmem>>, vector<46x46xbf16>
    %cst_20 = arith.constant dense<0.000000e+00> : vector<264x46xf32>
    %42 = tpu.matmul %40, %41, %cst_20 {dimension_numbers = #tpu.dot_dimension_numbers<[1], [0], [0], [1], [0, 0, 1, 1], [], []>} : vector<264x46xbf16>, vector<46x46xbf16>, vector<264x46xf32> -> vector<264x46xf32>
    %c0_21 = arith.constant 0 : index
    %c0_22 = arith.constant 0 : index
    %43 = vector.load %arg9[%c0_21, %c0_22] : memref<1x46xf32, #tpu.memory_space<vmem>>, vector<1x46xf32>
    %44 = vector.broadcast %43 : vector<1x46xf32> to vector<264x46xf32>
    %45 = arith.addf %42, %44 : vector<264x46xf32>
    %46 = arith.addf %0, %45 : vector<264x46xf32>
    %c0_23 = arith.constant 0 : index
    %c0_24 = arith.constant 0 : index
    %47 = vector.load %arg10[%c0_23, %c0_24] : memref<1x46xf32, #tpu.memory_space<vmem>>, vector<1x46xf32>
    %c0_25 = arith.constant 0 : index
    %c0_26 = arith.constant 0 : index
    %48 = vector.load %arg11[%c0_25, %c0_26] : memref<1x46xf32, #tpu.memory_space<vmem>>, vector<1x46xf32>
    %cst_27 = arith.constant dense<0.000000e+00> : vector<264xf32>
    %49 = vector.multi_reduction <add>, %46, %cst_27 [1] : vector<264x46xf32> to vector<264xf32>
    %50 = vector.shape_cast %49 : vector<264xf32> to vector<264x1xf32>
    %cst_28 = arith.constant 4.600000e+01 : f32
    %51 = vector.broadcast %cst_28 : f32 to vector<264x1xf32>
    %52 = arith.divf %50, %51 : vector<264x1xf32>
    %53 = vector.broadcast %52 : vector<264x1xf32> to vector<264x46xf32>
    %54 = arith.subf %46, %53 : vector<264x46xf32>
    %55 = arith.mulf %54, %54 : vector<264x46xf32>
    %cst_29 = arith.constant dense<0.000000e+00> : vector<264xf32>
    %56 = vector.multi_reduction <add>, %55, %cst_29 [1] : vector<264x46xf32> to vector<264xf32>
    %57 = vector.shape_cast %56 : vector<264xf32> to vector<264x1xf32>
    %cst_30 = arith.constant 4.600000e+01 : f32
    %58 = vector.broadcast %cst_30 : f32 to vector<264x1xf32>
    %59 = arith.divf %57, %58 : vector<264x1xf32>
    %cst_31 = arith.constant 9.99999974E-6 : f32
    %60 = vector.broadcast %cst_31 : f32 to vector<264x1xf32>
    %61 = arith.addf %59, %60 : vector<264x1xf32>
    %62 = math.rsqrt %61 : vector<264x1xf32>
    %63 = vector.broadcast %62 : vector<264x1xf32> to vector<264x46xf32>
    %64 = arith.mulf %54, %63 : vector<264x46xf32>
    %65 = vector.broadcast %47 : vector<1x46xf32> to vector<264x46xf32>
    %66 = arith.mulf %64, %65 : vector<264x46xf32>
    %67 = vector.broadcast %48 : vector<1x46xf32> to vector<264x46xf32>
    %68 = arith.addf %66, %67 : vector<264x46xf32>
    %69 = arith.truncf %68 : vector<264x46xf32> to vector<264x46xbf16>
    %c0_32 = arith.constant 0 : index
    %c0_33 = arith.constant 0 : index
    %70 = vector.load %arg12[%c0_32, %c0_33] : memref<46x2048xbf16, #tpu.memory_space<vmem>>, vector<46x2048xbf16>
    %cst_34 = arith.constant dense<0.000000e+00> : vector<264x2048xf32>
    %71 = tpu.matmul %69, %70, %cst_34 {dimension_numbers = #tpu.dot_dimension_numbers<[1], [0], [0], [1], [0, 0, 1, 1], [], []>} : vector<264x46xbf16>, vector<46x2048xbf16>, vector<264x2048xf32> -> vector<264x2048xf32>
    %c0_35 = arith.constant 0 : index
    %c0_36 = arith.constant 0 : index
    %72 = vector.load %arg13[%c0_35, %c0_36] : memref<1x2048xf32, #tpu.memory_space<vmem>>, vector<1x2048xf32>
    %73 = vector.broadcast %72 : vector<1x2048xf32> to vector<264x2048xf32>
    %74 = arith.addf %71, %73 : vector<264x2048xf32>
    %cst_37 = arith.constant 0.000000e+00 : f32
    %75 = vector.broadcast %cst_37 : f32 to vector<264x2048xf32>
    %76 = arith.maximumf %74, %75 : vector<264x2048xf32>
    %77 = arith.truncf %76 : vector<264x2048xf32> to vector<264x2048xbf16>
    %c0_38 = arith.constant 0 : index
    %c0_39 = arith.constant 0 : index
    %78 = vector.load %arg14[%c0_38, %c0_39] : memref<2048x46xbf16, #tpu.memory_space<vmem>>, vector<2048x46xbf16>
    %cst_40 = arith.constant dense<0.000000e+00> : vector<264x46xf32>
    %79 = tpu.matmul %77, %78, %cst_40 {dimension_numbers = #tpu.dot_dimension_numbers<[1], [0], [0], [1], [0, 0, 1, 1], [], []>} : vector<264x2048xbf16>, vector<2048x46xbf16>, vector<264x46xf32> -> vector<264x46xf32>
    %c0_41 = arith.constant 0 : index
    %c0_42 = arith.constant 0 : index
    %80 = vector.load %arg15[%c0_41, %c0_42] : memref<1x46xf32, #tpu.memory_space<vmem>>, vector<1x46xf32>
    %81 = vector.broadcast %80 : vector<1x46xf32> to vector<264x46xf32>
    %82 = arith.addf %79, %81 : vector<264x46xf32>
    %83 = arith.addf %68, %82 : vector<264x46xf32>
    %c0_43 = arith.constant 0 : index
    %c0_44 = arith.constant 0 : index
    %84 = vector.load %arg16[%c0_43, %c0_44] : memref<1x46xf32, #tpu.memory_space<vmem>>, vector<1x46xf32>
    %c0_45 = arith.constant 0 : index
    %c0_46 = arith.constant 0 : index
    %85 = vector.load %arg17[%c0_45, %c0_46] : memref<1x46xf32, #tpu.memory_space<vmem>>, vector<1x46xf32>
    %cst_47 = arith.constant dense<0.000000e+00> : vector<264xf32>
    %86 = vector.multi_reduction <add>, %83, %cst_47 [1] : vector<264x46xf32> to vector<264xf32>
    %87 = vector.shape_cast %86 : vector<264xf32> to vector<264x1xf32>
    %cst_48 = arith.constant 4.600000e+01 : f32
    %88 = vector.broadcast %cst_48 : f32 to vector<264x1xf32>
    %89 = arith.divf %87, %88 : vector<264x1xf32>
    %90 = vector.broadcast %89 : vector<264x1xf32> to vector<264x46xf32>
    %91 = arith.subf %83, %90 : vector<264x46xf32>
    %92 = arith.mulf %91, %91 : vector<264x46xf32>
    %cst_49 = arith.constant dense<0.000000e+00> : vector<264xf32>
    %93 = vector.multi_reduction <add>, %92, %cst_49 [1] : vector<264x46xf32> to vector<264xf32>
    %94 = vector.shape_cast %93 : vector<264xf32> to vector<264x1xf32>
    %cst_50 = arith.constant 4.600000e+01 : f32
    %95 = vector.broadcast %cst_50 : f32 to vector<264x1xf32>
    %96 = arith.divf %94, %95 : vector<264x1xf32>
    %cst_51 = arith.constant 9.99999974E-6 : f32
    %97 = vector.broadcast %cst_51 : f32 to vector<264x1xf32>
    %98 = arith.addf %96, %97 : vector<264x1xf32>
    %99 = math.rsqrt %98 : vector<264x1xf32>
    %100 = vector.broadcast %99 : vector<264x1xf32> to vector<264x46xf32>
    %101 = arith.mulf %91, %100 : vector<264x46xf32>
    %102 = vector.broadcast %84 : vector<1x46xf32> to vector<264x46xf32>
    %103 = arith.mulf %101, %102 : vector<264x46xf32>
    %104 = vector.broadcast %85 : vector<1x46xf32> to vector<264x46xf32>
    %105 = arith.addf %103, %104 : vector<264x46xf32>
    %c0_52 = arith.constant 0 : index
    %c0_53 = arith.constant 0 : index
    %106 = vector.load %arg5[%c0_52, %c0_53] : memref<8x264xf32, #tpu.memory_space<vmem>>, vector<8x264xf32>
    %cst_54 = arith.constant dense<0.000000e+00> : vector<8x46xf32>
    %107 = tpu.matmul %106, %105, %cst_54 {dimension_numbers = #tpu.dot_dimension_numbers<[1], [0], [0], [1], [0, 0, 1, 1], [], []>} : vector<8x264xf32>, vector<264x46xf32>, vector<8x46xf32> -> vector<8x46xf32>
    %c0_55 = arith.constant 0 : index
    %c0_56 = arith.constant 0 : index
    %108 = vector.load %arg18[%c0_55, %c0_56] : memref<46x4xf32, #tpu.memory_space<vmem>>, vector<46x4xf32>
    %cst_57 = arith.constant dense<0.000000e+00> : vector<8x4xf32>
    %109 = tpu.matmul %107, %108, %cst_57 {dimension_numbers = #tpu.dot_dimension_numbers<[1], [0], [0], [1], [0, 0, 1, 1], [], []>} : vector<8x46xf32>, vector<46x4xf32>, vector<8x4xf32> -> vector<8x4xf32>
    %c0_58 = arith.constant 0 : index
    %c0_59 = arith.constant 0 : index
    %110 = vector.load %arg19[%c0_58, %c0_59] : memref<1x4xf32, #tpu.memory_space<vmem>>, vector<1x4xf32>
    %111 = vector.broadcast %110 : vector<1x4xf32> to vector<8x4xf32>
    %112 = arith.addf %109, %111 : vector<8x4xf32>
    %c0_60 = arith.constant 0 : index
    %c0_61 = arith.constant 0 : index
    %113 = vector.load %arg20[%c0_60, %c0_61] : memref<8x4xf32, #tpu.memory_space<vmem>>, vector<8x4xf32>
    tpu.vector_store %arg20[%c0_60, %c0_61], %112 {strides = array<i32>} : memref<8x4xf32, #tpu.memory_space<vmem>>, vector<8x4xf32>,
    return
  }
  func.func @transform_0(%arg0: i32) -> (i32, i32) {
    %c0_i32 = arith.constant 0 : i32
    %c0_i32_0 = arith.constant 0 : i32
    return %arg0, %c0_i32 : i32, i32
  }
  func.func @transform_1(%arg0: i32) -> (i32, i32, i32) {
    %c0_i32 = arith.constant 0 : i32
    %c0_i32_0 = arith.constant 0 : i32
    %c0_i32_1 = arith.constant 0 : i32
    return %arg0, %c0_i32, %c0_i32_0 : i32, i32, i32
  }
  func.func @transform_2(%arg0: i32) -> (i32, i32) {
    %c0_i32 = arith.constant 0 : i32
    %c0_i32_0 = arith.constant 0 : i32
    %c0_i32_1 = arith.constant 0 : i32
    return %c0_i32, %c0_i32_0 : i32, i32
  }
  func.func @transform_3(%arg0: i32) -> (i32, i32) {
    %c0_i32 = arith.constant 0 : i32
    %c0_i32_0 = arith.constant 0 : i32
    %c0_i32_1 = arith.constant 0 : i32
    return %c0_i32, %c0_i32_0 : i32, i32
  }
  func.func @transform_4(%arg0: i32) -> (i32, i32) {
    %c0_i32 = arith.constant 0 : i32
    %c0_i32_0 = arith.constant 0 : i32
    %c0_i32_1 = arith.constant 0 : i32
    return %c0_i32, %c0_i32_0 : i32, i32
  }
  func.func @transform_5(%arg0: i32) -> (i32, i32) {
    %c0_i32 = arith.constant 0 : i32
    %c0_i32_0 = arith.constant 0 : i32
    %c0_i32_1 = arith.constant 0 : i32
    return %c0_i32, %c0_i32_0 : i32, i32
  }
  func.func @transform_6(%arg0: i32) -> (i32, i32) {
    %c0_i32 = arith.constant 0 : i32
    %c0_i32_0 = arith.constant 0 : i32
    %c0_i32_1 = arith.constant 0 : i32
    return %c0_i32, %c0_i32_0 : i32, i32
  }
  func.func @transform_7(%arg0: i32) -> (i32, i32) {
    %c0_i32 = arith.constant 0 : i32
    %c0_i32_0 = arith.constant 0 : i32
    %c0_i32_1 = arith.constant 0 : i32
    return %c0_i32, %c0_i32_0 : i32, i32
  }
  func.func @transform_8(%arg0: i32) -> (i32, i32) {
    %c0_i32 = arith.constant 0 : i32
    %c0_i32_0 = arith.constant 0 : i32
    %c0_i32_1 = arith.constant 0 : i32
    return %c0_i32, %c0_i32_0 : i32, i32
  }
  func.func @transform_9(%arg0: i32) -> (i32, i32) {
    %c0_i32 = arith.constant 0 : i32
    %c0_i32_0 = arith.constant 0 : i32
    %c0_i32_1 = arith.constant 0 : i32
    return %c0_i32, %c0_i32_0 : i32, i32
  }
  func.func @transform_10(%arg0: i32) -> (i32, i32) {
    %c0_i32 = arith.constant 0 : i32
    %c0_i32_0 = arith.constant 0 : i32
    %c0_i32_1 = arith.constant 0 : i32
    return %c0_i32, %c0_i32_0 : i32, i32
  }
  func.func @transform_11(%arg0: i32) -> (i32, i32) {
    %c0_i32 = arith.constant 0 : i32
    %c0_i32_0 = arith.constant 0 : i32
    %c0_i32_1 = arith.constant 0 : i32
    return %c0_i32, %c0_i32_0 : i32, i32
  }
  func.func @transform_12(%arg0: i32) -> (i32, i32) {
    %c0_i32 = arith.constant 0 : i32
    %c0_i32_0 = arith.constant 0 : i32
    %c0_i32_1 = arith.constant 0 : i32
    return %c0_i32, %c0_i32_0 : i32, i32
  }
  func.func @transform_13(%arg0: i32) -> (i32, i32) {
    %c0_i32 = arith.constant 0 : i32
    %c0_i32_0 = arith.constant 0 : i32
    %c0_i32_1 = arith.constant 0 : i32
    return %c0_i32, %c0_i32_0 : i32, i32
  }
  func.func @transform_14(%arg0: i32) -> (i32, i32) {
    %c0_i32 = arith.constant 0 : i32
    %c0_i32_0 = arith.constant 0 : i32
    %c0_i32_1 = arith.constant 0 : i32
    return %c0_i32, %c0_i32_0 : i32, i32
  }
  func.func @transform_15(%arg0: i32) -> (i32, i32) {
    %c0_i32 = arith.constant 0 : i32
    %c0_i32_0 = arith.constant 0 : i32
    %c0_i32_1 = arith.constant 0 : i32
    return %c0_i32, %c0_i32_0 : i32, i32
  }
  func.func @transform_16(%arg0: i32) -> (i32, i32) {
    %c0_i32 = arith.constant 0 : i32
    %c0_i32_0 = arith.constant 0 : i32
    %c0_i32_1 = arith.constant 0 : i32
    return %c0_i32, %c0_i32_0 : i32, i32
  }
  func.func @transform_17(%arg0: i32) -> (i32, i32) {
    %c0_i32 = arith.constant 0 : i32
    %c0_i32_0 = arith.constant 0 : i32
    %c0_i32_1 = arith.constant 0 : i32
    return %c0_i32, %c0_i32_0 : i32, i32
  }
  func.func @transform_18(%arg0: i32) -> (i32, i32) {
    %c0_i32 = arith.constant 0 : i32
    %c0_i32_0 = arith.constant 0 : i32
    %c0_i32_1 = arith.constant 0 : i32
    return %c0_i32, %c0_i32_0 : i32, i32
  }
  func.func @transform_19(%arg0: i32) -> (i32, i32) {
    %c0_i32 = arith.constant 0 : i32
    %c0_i32_0 = arith.constant 0 : i32
    return %arg0, %c0_i32 : i32, i32
  }
}

</mosaic_0001>

<llo_original>
// kernel: tpu_custom_call.1
$region0: #{tpu_custom_call.1}
  #allocation0 [shape = 'u32[]', space=smem, size = 0x4, offset = 0x4, fixed_abs, tag = 'smem constant byte address 0x4 - core index']
  #allocation1 [shape = 'u32[144,128]{1,0:T(1,128)}', space=vmem, size = 0x12000, scoped, tag = 'internal scratch']
  %s0 = inlined_call_operand.vmem [shape: f32[528,46], index: 0, kind: input, shape index: {}]
  %s1 = inlined_call_operand.vmem [shape: f32[2,1,264], index: 1, kind: input, shape index: {}]
  %s2 = inlined_call_operand.vmem [shape: s32[264,1], index: 2, kind: input, shape index: {}]
  %s3 = inlined_call_operand.vmem [shape: s32[1,264], index: 3, kind: input, shape index: {}]
  %s4 = inlined_call_operand.vmem [shape: f32[8,264], index: 4, kind: input, shape index: {}]
  %s5 = inlined_call_operand.vmem [shape: bf16[46,138], index: 5, kind: input, shape index: {}]
  %s6 = inlined_call_operand.vmem [shape: f32[1,138], index: 6, kind: input, shape index: {}]
  %s7 = inlined_call_operand.vmem [shape: bf16[46,46], index: 7, kind: input, shape index: {}]
  %s8 = inlined_call_operand.vmem [shape: f32[1,46], index: 8, kind: input, shape index: {}]
  %s9 = inlined_call_operand.vmem [shape: f32[1,46], index: 9, kind: input, shape index: {}]
  %s10 = inlined_call_operand.vmem [shape: f32[1,46], index: 10, kind: input, shape index: {}]
  %s11 = inlined_call_operand.vmem [shape: bf16[46,2048], index: 11, kind: input, shape index: {}]
  %s12 = inlined_call_operand.vmem [shape: f32[1,2048], index: 12, kind: input, shape index: {}]
  %s13 = inlined_call_operand.vmem [shape: bf16[2048,46], index: 13, kind: input, shape index: {}]
  %s14 = inlined_call_operand.vmem [shape: f32[1,46], index: 14, kind: input, shape index: {}]
  %s15 = inlined_call_operand.vmem [shape: f32[1,46], index: 15, kind: input, shape index: {}]
  %s16 = inlined_call_operand.vmem [shape: f32[1,46], index: 16, kind: input, shape index: {}]
  %s17 = inlined_call_operand.vmem [shape: f32[46,4], index: 17, kind: input, shape index: {}]
  %s18 = inlined_call_operand.vmem [shape: f32[1,4], index: 18, kind: input, shape index: {}]
  %s19 = inlined_call_operand.vmem [shape: f32[16,4], index: 19, kind: output, shape index: {}]
  %s20 = sld [smem:[#allocation0]]
  $region109: #{tpu_custom_call.1} parent=0
    _
  %s22 = ssub.s32 1, %s20
  %s23 = scalar_select 0, %s22, %s20
  loop: start=0, step=1, limit=4
  $region2: #{tpu_custom_call.1} parent=0 // loop_pre_header
    _
  $region3: #{tpu_custom_call.1} parent=0 // loop_header
    %s25 = sphi 0, %s29
    %p26 = scmp.ge.s32.totalorder %s25, 4
    %s35 = sphi 0, %s37
    %s38 = sphi 0, %s35
    %s39 = sphi 0, %s38
    %s55 = sphi 0, %s39
    %s61 = sphi 0, %s63
    %s64 = sphi 0, %s61
    %s65 = sphi 0, %s64
    %s81 = sphi 0, %s65
    %s85 = sphi 0, %s85
    %s87 = sphi 0, %s85
    %s88 = sphi 0, %s87
    %s102 = sphi 0, %s88
    %s106 = sphi 0, %s106
    %s108 = sphi 0, %s106
    %s109 = sphi 0, %s108
    %s123 = sphi 0, %s109
    %s127 = sphi 0, %s127
    %s129 = sphi 0, %s127
    %s130 = sphi 0, %s129
    %s144 = sphi 0, %s130
    %s148 = sphi 0, %s148
    %s150 = sphi 0, %s148
    %s151 = sphi 0, %s150
    %s165 = sphi 0, %s151
    %s169 = sphi 0, %s169
    %s171 = sphi 0, %s169
    %s172 = sphi 0, %s171
    %s186 = sphi 0, %s172
    %s190 = sphi 0, %s190
    %s192 = sphi 0, %s190
    %s193 = sphi 0, %s192
    %s207 = sphi 0, %s193
    %s211 = sphi 0, %s211
    %s213 = sphi 0, %s211
    %s214 = sphi 0, %s213
    %s228 = sphi 0, %s214
    %s232 = sphi 0, %s232
    %s234 = sphi 0, %s232
    %s235 = sphi 0, %s234
    %s249 = sphi 0, %s235
    %s253 = sphi 0, %s253
    %s255 = sphi 0, %s253
    %s256 = sphi 0, %s255
    %s270 = sphi 0, %s256
    %s274 = sphi 0, %s274
    %s276 = sphi 0, %s274
    %s277 = sphi 0, %s276
    %s291 = sphi 0, %s277
    %s295 = sphi 0, %s295
    %s297 = sphi 0, %s295
    %s298 = sphi 0, %s297
    %s312 = sphi 0, %s298
    %s316 = sphi 0, %s316
    %s318 = sphi 0, %s316
    %s319 = sphi 0, %s318
    %s333 = sphi 0, %s319
    %s337 = sphi 0, %s337
    %s339 = sphi 0, %s337
    %s340 = sphi 0, %s339
    %s354 = sphi 0, %s340
    %s358 = sphi 0, %s358
    %s360 = sphi 0, %s358
    %s361 = sphi 0, %s360
    %s375 = sphi 0, %s361
    %s379 = sphi 0, %s379
    %s381 = sphi 0, %s379
    %s382 = sphi 0, %s381
    %s396 = sphi 0, %s382
    %s400 = sphi 0, %s400
    %s402 = sphi 0, %s400
    %s403 = sphi 0, %s402
    %s417 = sphi 0, %s403
    %s421 = sphi 0, %s421
    %s423 = sphi 0, %s421
    %s424 = sphi 0, %s423
    %s438 = sphi 0, %s424
    %s444 = sphi 0, %s446
    %s447 = sphi 0, %s444
    %s448 = sphi 0, %s447
    %s464 = sphi 0, %s448
  $region4: #{tpu_custom_call.1} parent=0 // loop_header_branch
    %28 = sbr.rel (%p26) target = $region8
  $region5: #{tpu_custom_call.1} parent=0 // loop_body
    %s30 = ssub.s32 %s25, 1
    %s31 = ssub.s32 %s25, 2
    %s32 = sadd.s32 %s25, 1
    %s33 = ssub.s32 %s25, %s32
    %p34 = scmp.eq.s32.totalorder %s33, 0
    %s36 = sadd.s32 %s35, 1
    %s37 = scalar_select %p34, %s35, %s36
    %p40 = pneg %p34
    %p41 = scmp.eq.s32.totalorder %s25, 1
    %p42 = por %p40, %p41
    %p43 = scmp.ne.s32.totalorder %s35, %s38
    %p44 = scmp.eq.s32.totalorder %s25, 0
    %p45 = por %p43, %p44
    %p46 = scmp.ne.s32.totalorder %s35, %s38
    %p47 = scmp.eq.s32.totalorder %s30, 1
    %p48 = por %p46, %p47
    %p49 = scmp.ne.s32.totalorder %s38, %s39
    %p50 = scmp.eq.s32.totalorder %s30, 0
    %p51 = por %p49, %p50
    %p52 = scmp.ne.s32.totalorder %s38, %s39
    %p53 = scmp.eq.s32.totalorder %s31, 1
    %p54 = por %p52, %p53
    %p56 = scmp.ne.s32.totalorder %s39, %s55
    %p57 = scmp.eq.s32.totalorder %s31, 0
    %p58 = por %p56, %p57
    %s59 = ssub.s32 %s25, %s32
    %p60 = scmp.eq.s32.totalorder %s59, 0
    %s62 = sadd.s32 %s61, 1
    %s63 = scalar_select %p60, %s61, %s62
    %p66 = pneg %p60
    %p67 = scmp.eq.s32.totalorder %s25, 1
    %p68 = por %p66, %p67
    %p69 = scmp.ne.s32.totalorder %s61, %s64
    %p70 = scmp.eq.s32.totalorder %s25, 0
    %p71 = por %p69, %p70
    %p72 = scmp.ne.s32.totalorder %s61, %s64
    %p73 = scmp.eq.s32.totalorder %s30, 1
    %p74 = por %p72, %p73
    %p75 = scmp.ne.s32.totalorder %s64, %s65
    %p76 = scmp.eq.s32.totalorder %s30, 0
    %p77 = por %p75, %p76
    %p78 = scmp.ne.s32.totalorder %s64, %s65
    %p79 = scmp.eq.s32.totalorder %s31, 1
    %p80 = por %p78, %p79
    %p82 = scmp.ne.s32.totalorder %s65, %s81
    %p83 = scmp.eq.s32.totalorder %s31, 0
    %p84 = por %p82, %p83
    %s86 = sadd.s32 %s85, 1
    %p89 = scmp.eq.s32.totalorder %s25, 1
    %p90 = scmp.ne.s32.totalorder %s85, %s87
    %p91 = scmp.eq.s32.totalorder %s25, 0
    %p92 = por %p90, %p91
    %p93 = scmp.ne.s32.totalorder %s85, %s87
    %p94 = scmp.eq.s32.totalorder %s30, 1
    %p95 = por %p93, %p94
    %p96 = scmp.ne.s32.totalorder %s87, %s88
    %p97 = scmp.eq.s32.totalorder %s30, 0
    %p98 = por %p96, %p97
    %p99 = scmp.ne.s32.totalorder %s87, %s88
    %p100 = scmp.eq.s32.totalorder %s31, 1
    %p101 = por %p99, %p100
    %p103 = scmp.ne.s32.totalorder %s88, %s102
    %p104 = scmp.eq.s32.totalorder %s31, 0
    %p105 = por %p103, %p104
    %s107 = sadd.s32 %s106, 1
    %p110 = scmp.eq.s32.totalorder %s25, 1
    %p111 = scmp.ne.s32.totalorder %s106, %s108
    %p112 = scmp.eq.s32.totalorder %s25, 0
    %p113 = por %p111, %p112
    %p114 = scmp.ne.s32.totalorder %s106, %s108
    %p115 = scmp.eq.s32.totalorder %s30, 1
    %p116 = por %p114, %p115
    %p117 = scmp.ne.s32.totalorder %s108, %s109
    %p118 = scmp.eq.s32.totalorder %s30, 0
    %p119 = por %p117, %p118
    %p120 = scmp.ne.s32.totalorder %s108, %s109
    %p121 = scmp.eq.s32.totalorder %s31, 1
    %p122 = por %p120, %p121
    %p124 = scmp.ne.s32.totalorder %s109, %s123
    %p125 = scmp.eq.s32.totalorder %s31, 0
    %p126 = por %p124, %p125
    %s128 = sadd.s32 %s127, 1
    %p131 = scmp.eq.s32.totalorder %s25, 1
    %p132 = scmp.ne.s32.totalorder %s127, %s129
    %p133 = scmp.eq.s32.totalorder %s25, 0
    %p134 = por %p132, %p133
    %p135 = scmp.ne.s32.totalorder %s127, %s129
    %p136 = scmp.eq.s32.totalorder %s30, 1
    %p137 = por %p135, %p136
    %p138 = scmp.ne.s32.totalorder %s129, %s130
    %p139 = scmp.eq.s32.totalorder %s30, 0
    %p140 = por %p138, %p139
    %p141 = scmp.ne.s32.totalorder %s129, %s130
    %p142 = scmp.eq.s32.totalorder %s31, 1
    %p143 = por %p141, %p142
    %p145 = scmp.ne.s32.totalorder %s130, %s144
    %p146 = scmp.eq.s32.totalorder %s31, 0
    %p147 = por %p145, %p146
    %s149 = sadd.s32 %s148, 1
    %p152 = scmp.eq.s32.totalorder %s25, 1
    %p153 = scmp.ne.s32.totalorder %s148, %s150
    %p154 = scmp.eq.s32.totalorder %s25, 0
    %p155 = por %p153, %p154
    %p156 = scmp.ne.s32.totalorder %s148, %s150
    %p157 = scmp.eq.s32.totalorder %s30, 1
    %p158 = por %p156, %p157
    %p159 = scmp.ne.s32.totalorder %s150, %s151
    %p160 = scmp.eq.s32.totalorder %s30, 0
    %p161 = por %p159, %p160
    %p162 = scmp.ne.s32.totalorder %s150, %s151
    %p163 = scmp.eq.s32.totalorder %s31, 1
    %p164 = por %p162, %p163
    %p166 = scmp.ne.s32.totalorder %s151, %s165
    %p167 = scmp.eq.s32.totalorder %s31, 0
    %p168 = por %p166, %p167
    %s170 = sadd.s32 %s169, 1
    %p173 = scmp.eq.s32.totalorder %s25, 1
    %p174 = scmp.ne.s32.totalorder %s169, %s171
    %p175 = scmp.eq.s32.totalorder %s25, 0
    %p176 = por %p174, %p175
    %p177 = scmp.ne.s32.totalorder %s169, %s171
    %p178 = scmp.eq.s32.totalorder %s30, 1
    %p179 = por %p177, %p178
    %p180 = scmp.ne.s32.totalorder %s171, %s172
    %p181 = scmp.eq.s32.totalorder %s30, 0
    %p182 = por %p180, %p181
    %p183 = scmp.ne.s32.totalorder %s171, %s172
    %p184 = scmp.eq.s32.totalorder %s31, 1
    %p185 = por %p183, %p184
    %p187 = scmp.ne.s32.totalorder %s172, %s186
    %p188 = scmp.eq.s32.totalorder %s31, 0
    %p189 = por %p187, %p188
    %s191 = sadd.s32 %s190, 1
    %p194 = scmp.eq.s32.totalorder %s25, 1
    %p195 = scmp.ne.s32.totalorder %s190, %s192
    %p196 = scmp.eq.s32.totalorder %s25, 0
    %p197 = por %p195, %p196
    %p198 = scmp.ne.s32.totalorder %s190, %s192
    %p199 = scmp.eq.s32.totalorder %s30, 1
    %p200 = por %p198, %p199
    %p201 = scmp.ne.s32.totalorder %s192, %s193
    %p202 = scmp.eq.s32.totalorder %s30, 0
    %p203 = por %p201, %p202
    %p204 = scmp.ne.s32.totalorder %s192, %s193
    %p205 = scmp.eq.s32.totalorder %s31, 1
    %p206 = por %p204, %p205
    %p208 = scmp.ne.s32.totalorder %s193, %s207
    %p209 = scmp.eq.s32.totalorder %s31, 0
    %p210 = por %p208, %p209
    %s212 = sadd.s32 %s211, 1
    %p215 = scmp.eq.s32.totalorder %s25, 1
    %p216 = scmp.ne.s32.totalorder %s211, %s213
    %p217 = scmp.eq.s32.totalorder %s25, 0
    %p218 = por %p216, %p217
    %p219 = scmp.ne.s32.totalorder %s211, %s213
    %p220 = scmp.eq.s32.totalorder %s30, 1
    %p221 = por %p219, %p220
    %p222 = scmp.ne.s32.totalorder %s213, %s214
    %p223 = scmp.eq.s32.totalorder %s30, 0
    %p224 = por %p222, %p223
    %p225 = scmp.ne.s32.totalorder %s213, %s214
    %p226 = scmp.eq.s32.totalorder %s31, 1
    %p227 = por %p225, %p226
    %p229 = scmp.ne.s32.totalorder %s214, %s228
    %p230 = scmp.eq.s32.totalorder %s31, 0
    %p231 = por %p229, %p230
    %s233 = sadd.s32 %s232, 1
    %p236 = scmp.eq.s32.totalorder %s25, 1
    %p237 = scmp.ne.s32.totalorder %s232, %s234
    %p238 = scmp.eq.s32.totalorder %s25, 0
    %p239 = por %p237, %p238
    %p240 = scmp.ne.s32.totalorder %s232, %s234
    %p241 = scmp.eq.s32.totalorder %s30, 1
    %p242 = por %p240, %p241
    %p243 = scmp.ne.s32.totalorder %s234, %s235
    %p244 = scmp.eq.s32.totalorder %s30, 0
    %p245 = por %p243, %p244
    %p246 = scmp.ne.s32.totalorder %s234, %s235
    %p247 = scmp.eq.s32.totalorder %s31, 1
    %p248 = por %p246, %p247
    %p250 = scmp.ne.s32.totalorder %s235, %s249
    %p251 = scmp.eq.s32.totalorder %s31, 0
    %p252 = por %p250, %p251
    %s254 = sadd.s32 %s253, 1
    %p257 = scmp.eq.s32.totalorder %s25, 1
    %p258 = scmp.ne.s32.totalorder %s253, %s255
    %p259 = scmp.eq.s32.totalorder %s25, 0
    %p260 = por %p258, %p259
    %p261 = scmp.ne.s32.totalorder %s253, %s255
    %p262 = scmp.eq.s32.totalorder %s30, 1
    %p263 = por %p261, %p262
    %p264 = scmp.ne.s32.totalorder %s255, %s256
    %p265 = scmp.eq.s32.totalorder %s30, 0
    %p266 = por %p264, %p265
    %p267 = scmp.ne.s32.totalorder %s255, %s256
    %p268 = scmp.eq.s32.totalorder %s31, 1
    %p269 = por %p267, %p268
    %p271 = scmp.ne.s32.totalorder %s256, %s270
    %p272 = scmp.eq.s32.totalorder %s31, 0
    %p273 = por %p271, %p272
    %s275 = sadd.s32 %s274, 1
    %p278 = scmp.eq.s32.totalorder %s25, 1
    %p279 = scmp.ne.s32.totalorder %s274, %s276
    %p280 = scmp.eq.s32.totalorder %s25, 0
    %p281 = por %p279, %p280
    %p282 = scmp.ne.s32.totalorder %s274, %s276
    %p283 = scmp.eq.s32.totalorder %s30, 1
    %p284 = por %p282, %p283
    %p285 = scmp.ne.s32.totalorder %s276, %s277
    %p286 = scmp.eq.s32.totalorder %s30, 0
    %p287 = por %p285, %p286
    %p288 = scmp.ne.s32.totalorder %s276, %s277
    %p289 = scmp.eq.s32.totalorder %s31, 1
    %p290 = por %p288, %p289
    %p292 = scmp.ne.s32.totalorder %s277, %s291
    %p293 = scmp.eq.s32.totalorder %s31, 0
    %p294 = por %p292, %p293
    %s296 = sadd.s32 %s295, 1
    %p299 = scmp.eq.s32.totalorder %s25, 1
    %p300 = scmp.ne.s32.totalorder %s295, %s297
    %p301 = scmp.eq.s32.totalorder %s25, 0
    %p302 = por %p300, %p301
    %p303 = scmp.ne.s32.totalorder %s295, %s297
    %p304 = scmp.eq.s32.totalorder %s30, 1
    %p305 = por %p303, %p304
    %p306 = scmp.ne.s32.totalorder %s297, %s298
    %p307 = scmp.eq.s32.totalorder %s30, 0
    %p308 = por %p306, %p307
    %p309 = scmp.ne.s32.totalorder %s297, %s298
    %p310 = scmp.eq.s32.totalorder %s31, 1
    %p311 = por %p309, %p310
    %p313 = scmp.ne.s32.totalorder %s298, %s312
    %p314 = scmp.eq.s32.totalorder %s31, 0
    %p315 = por %p313, %p314
    %s317 = sadd.s32 %s316, 1
    %p320 = scmp.eq.s32.totalorder %s25, 1
    %p321 = scmp.ne.s32.totalorder %s316, %s318
    %p322 = scmp.eq.s32.totalorder %s25, 0
    %p323 = por %p321, %p322
    %p324 = scmp.ne.s32.totalorder %s316, %s318
    %p325 = scmp.eq.s32.totalorder %s30, 1
    %p326 = por %p324, %p325
    %p327 = scmp.ne.s32.totalorder %s318, %s319
    %p328 = scmp.eq.s32.totalorder %s30, 0
    %p329 = por %p327, %p328
    %p330 = scmp.ne.s32.totalorder %s318, %s319
    %p331 = scmp.eq.s32.totalorder %s31, 1
    %p332 = por %p330, %p331
    %p334 = scmp.ne.s32.totalorder %s319, %s333
    %p335 = scmp.eq.s32.totalorder %s31, 0
    %p336 = por %p334, %p335
    %s338 = sadd.s32 %s337, 1
    %p341 = scmp.eq.s32.totalorder %s25, 1
    %p342 = scmp.ne.s32.totalorder %s337, %s339
    %p343 = scmp.eq.s32.totalorder %s25, 0
    %p344 = por %p342, %p343
    %p345 = scmp.ne.s32.totalorder %s337, %s339
    %p346 = scmp.eq.s32.totalorder %s30, 1
    %p347 = por %p345, %p346
    %p348 = scmp.ne.s32.totalorder %s339, %s340
    %p349 = scmp.eq.s32.totalorder %s30, 0
    %p350 = por %p348, %p349
    %p351 = scmp.ne.s32.totalorder %s339, %s340
    %p352 = scmp.eq.s32.totalorder %s31, 1
    %p353 = por %p351, %p352
    %p355 = scmp.ne.s32.totalorder %s340, %s354
    %p356 = scmp.eq.s32.totalorder %s31, 0
    %p357 = por %p355, %p356
    %s359 = sadd.s32 %s358, 1
    %p362 = scmp.eq.s32.totalorder %s25, 1
    %p363 = scmp.ne.s32.totalorder %s358, %s360
    %p364 = scmp.eq.s32.totalorder %s25, 0
    %p365 = por %p363, %p364
    %p366 = scmp.ne.s32.totalorder %s358, %s360
    %p367 = scmp.eq.s32.totalorder %s30, 1
    %p368 = por %p366, %p367
    %p369 = scmp.ne.s32.totalorder %s360, %s361
    %p370 = scmp.eq.s32.totalorder %s30, 0
    %p371 = por %p369, %p370
    %p372 = scmp.ne.s32.totalorder %s360, %s361
    %p373 = scmp.eq.s32.totalorder %s31, 1
    %p374 = por %p372, %p373
    %p376 = scmp.ne.s32.totalorder %s361, %s375
    %p377 = scmp.eq.s32.totalorder %s31, 0
    %p378 = por %p376, %p377
    %s380 = sadd.s32 %s379, 1
    %p383 = scmp.eq.s32.totalorder %s25, 1
    %p384 = scmp.ne.s32.totalorder %s379, %s381
    %p385 = scmp.eq.s32.totalorder %s25, 0
    %p386 = por %p384, %p385
    %p387 = scmp.ne.s32.totalorder %s379, %s381
    %p388 = scmp.eq.s32.totalorder %s30, 1
    %p389 = por %p387, %p388
    %p390 = scmp.ne.s32.totalorder %s381, %s382
    %p391 = scmp.eq.s32.totalorder %s30, 0
    %p392 = por %p390, %p391
    %p393 = scmp.ne.s32.totalorder %s381, %s382
    %p394 = scmp.eq.s32.totalorder %s31, 1
    %p395 = por %p393, %p394
    %p397 = scmp.ne.s32.totalorder %s382, %s396
    %p398 = scmp.eq.s32.totalorder %s31, 0
    %p399 = por %p397, %p398
    %s401 = sadd.s32 %s400, 1
    %p404 = scmp.eq.s32.totalorder %s25, 1
    %p405 = scmp.ne.s32.totalorder %s400, %s402
    %p406 = scmp.eq.s32.totalorder %s25, 0
    %p407 = por %p405, %p406
    %p408 = scmp.ne.s32.totalorder %s400, %s402
    %p409 = scmp.eq.s32.totalorder %s30, 1
    %p410 = por %p408, %p409
    %p411 = scmp.ne.s32.totalorder %s402, %s403
    %p412 = scmp.eq.s32.totalorder %s30, 0
    %p413 = por %p411, %p412
    %p414 = scmp.ne.s32.totalorder %s402, %s403
    %p415 = scmp.eq.s32.totalorder %s31, 1
    %p416 = por %p414, %p415
    %p418 = scmp.ne.s32.totalorder %s403, %s417
    %p419 = scmp.eq.s32.totalorder %s31, 0
    %p420 = por %p418, %p419
    %s422 = sadd.s32 %s421, 1
    %p425 = scmp.eq.s32.totalorder %s25, 1
    %p426 = scmp.ne.s32.totalorder %s421, %s423
    %p427 = scmp.eq.s32.totalorder %s25, 0
    %p428 = por %p426, %p427
    %p429 = scmp.ne.s32.totalorder %s421, %s423
    %p430 = scmp.eq.s32.totalorder %s30, 1
    %p431 = por %p429, %p430
    %p432 = scmp.ne.s32.totalorder %s423, %s424
    %p433 = scmp.eq.s32.totalorder %s30, 0
    %p434 = por %p432, %p433
    %p435 = scmp.ne.s32.totalorder %s423, %s424
    %p436 = scmp.eq.s32.totalorder %s31, 1
    %p437 = por %p435, %p436
    %p439 = scmp.ne.s32.totalorder %s424, %s438
    %p440 = scmp.eq.s32.totalorder %s31, 0
    %p441 = por %p439, %p440
    %s442 = ssub.s32 %s25, %s32
    %p443 = scmp.eq.s32.totalorder %s442, 0
    %s445 = sadd.s32 %s444, 1
    %s446 = scalar_select %p443, %s444, %s445
    %p449 = pneg %p443
    %p450 = scmp.eq.s32.totalorder %s25, 1
    %p451 = por %p449, %p450
    %p452 = scmp.ne.s32.totalorder %s444, %s447
    %p453 = scmp.eq.s32.totalorder %s25, 0
    %p454 = por %p452, %p453
    %p455 = scmp.ne.s32.totalorder %s444, %s447
    %p456 = scmp.eq.s32.totalorder %s30, 1
    %p457 = por %p455, %p456
    %p458 = scmp.ne.s32.totalorder %s447, %s448
    %p459 = scmp.eq.s32.totalorder %s30, 0
    %p460 = por %p458, %p459
    %p461 = scmp.ne.s32.totalorder %s447, %s448
    %p462 = scmp.eq.s32.totalorder %s31, 1
    %p463 = por %p461, %p462
    %p465 = scmp.ne.s32.totalorder %s448, %s464
    %p466 = scmp.eq.s32.totalorder %s31, 0
    %p467 = por %p465, %p466
    %p468 = scmp.le.s32.totalorder 1, %s25
    %p469 = scmp.lt.s32.totalorder %s25, 3
    %p470 = pnand %p468, %p469
    %p471 = pneg %p470
    // Predicated region
    $region9: #{tpu_custom_call.1} parent=5 // pred_check
      _
    $region10: #{tpu_custom_call.1} parent=5 // pred_check_branch
      %473 = sbr.rel (%p470) target = $region12
    $region11: #{tpu_custom_call.1} parent=5 // pred_region
      %s474 = ssub.s32 %s25, 1
      // Predicated region
      $region13: #{tpu_custom_call.1} parent=11 // pred_check
        %p475 = pneg %p98
      $region14: #{tpu_custom_call.1} parent=11 // pred_check_branch
        %477 = sbr.rel (%p475) target = $region16
      $region15: #{tpu_custom_call.1} parent=11 // pred_region
        _
      $region16: #{tpu_custom_call.1} parent=11 // pred_fallthru
        _
      // Predicated region
      $region17: #{tpu_custom_call.1} parent=11 // pred_check
        %p478 = pneg %p119
      $region18: #{tpu_custom_call.1} parent=11 // pred_check_branch
        %480 = sbr.rel (%p478) target = $region20
      $region19: #{tpu_custom_call.1} parent=11 // pred_region
        _
      $region20: #{tpu_custom_call.1} parent=11 // pred_fallthru
        _
      // Predicated region
      $region21: #{tpu_custom_call.1} parent=11 // pred_check
        %p481 = pneg %p140
      $region22: #{tpu_custom_call.1} parent=11 // pred_check_branch
        %483 = sbr.rel (%p481) target = $region24
      $region23: #{tpu_custom_call.1} parent=11 // pred_region
        _
      $region24: #{tpu_custom_call.1} parent=11 // pred_fallthru
        _
      // Predicated region
      $region25: #{tpu_custom_call.1} parent=11 // pred_check
        %p484 = pneg %p161
      $region26: #{tpu_custom_call.1} parent=11 // pred_check_branch
        %486 = sbr.rel (%p484) target = $region28
      $region27: #{tpu_custom_call.1} parent=11 // pred_region
        _
      $region28: #{tpu_custom_call.1} parent=11 // pred_fallthru
        _
      // Predicated region
      $region29: #{tpu_custom_call.1} parent=11 // pred_check
        %p487 = pneg %p182
      $region30: #{tpu_custom_call.1} parent=11 // pred_check_branch
        %489 = sbr.rel (%p487) target = $region32
      $region31: #{tpu_custom_call.1} parent=11 // pred_region
        _
      $region32: #{tpu_custom_call.1} parent=11 // pred_fallthru
        _
      // Predicated region
      $region33: #{tpu_custom_call.1} parent=11 // pred_check
        %p490 = pneg %p203
      $region34: #{tpu_custom_call.1} parent=11 // pred_check_branch
        %492 = sbr.rel (%p490) target = $region36
      $region35: #{tpu_custom_call.1} parent=11 // pred_region
        _
      $region36: #{tpu_custom_call.1} parent=11 // pred_fallthru
        _
      // Predicated region
      $region37: #{tpu_custom_call.1} parent=11 // pred_check
        %p493 = pneg %p224
      $region38: #{tpu_custom_call.1} parent=11 // pred_check_branch
        %495 = sbr.rel (%p493) target = $region40
      $region39: #{tpu_custom_call.1} parent=11 // pred_region
        _
      $region40: #{tpu_custom_call.1} parent=11 // pred_fallthru
        _
      // Predicated region
      $region41: #{tpu_custom_call.1} parent=11 // pred_check
        %p496 = pneg %p245
      $region42: #{tpu_custom_call.1} parent=11 // pred_check_branch
        %498 = sbr.rel (%p496) target = $region44
      $region43: #{tpu_custom_call.1} parent=11 // pred_region
        _
      $region44: #{tpu_custom_call.1} parent=11 // pred_fallthru
        _
      // Predicated region
      $region45: #{tpu_custom_call.1} parent=11 // pred_check
        %p499 = pneg %p266
      $region46: #{tpu_custom_call.1} parent=11 // pred_check_branch
        %501 = sbr.rel (%p499) target = $region48
      $region47: #{tpu_custom_call.1} parent=11 // pred_region
        _
      $region48: #{tpu_custom_call.1} parent=11 // pred_fallthru
        _
      // Predicated region
      $region49: #{tpu_custom_call.1} parent=11 // pred_check
        %p502 = pneg %p287
      $region50: #{tpu_custom_call.1} parent=11 // pred_check_branch
        %504 = sbr.rel (%p502) target = $region52
      $region51: #{tpu_custom_call.1} parent=11 // pred_region
        _
      $region52: #{tpu_custom_call.1} parent=11 // pred_fallthru
        _
      // Predicated region
      $region53: #{tpu_custom_call.1} parent=11 // pred_check
        %p505 = pneg %p308
      $region54: #{tpu_custom_call.1} parent=11 // pred_check_branch
        %507 = sbr.rel (%p505) target = $region56
      $region55: #{tpu_custom_call.1} parent=11 // pred_region
        _
      $region56: #{tpu_custom_call.1} parent=11 // pred_fallthru
        _
      // Predicated region
      $region57: #{tpu_custom_call.1} parent=11 // pred_check
        %p508 = pneg %p329
      $region58: #{tpu_custom_call.1} parent=11 // pred_check_branch
        %510 = sbr.rel (%p508) target = $region60
      $region59: #{tpu_custom_call.1} parent=11 // pred_region
        _
      $region60: #{tpu_custom_call.1} parent=11 // pred_fallthru
        _
      // Predicated region
      $region61: #{tpu_custom_call.1} parent=11 // pred_check
        %p511 = pneg %p350
      $region62: #{tpu_custom_call.1} parent=11 // pred_check_branch
        %513 = sbr.rel (%p511) target = $region64
      $region63: #{tpu_custom_call.1} parent=11 // pred_region
        _
      $region64: #{tpu_custom_call.1} parent=11 // pred_fallthru
        _
      // Predicated region
      $region65: #{tpu_custom_call.1} parent=11 // pred_check
        %p514 = pneg %p371
      $region66: #{tpu_custom_call.1} parent=11 // pred_check_branch
        %516 = sbr.rel (%p514) target = $region68
      $region67: #{tpu_custom_call.1} parent=11 // pred_region
        _
      $region68: #{tpu_custom_call.1} parent=11 // pred_fallthru
        _
      // Predicated region
      $region69: #{tpu_custom_call.1} parent=11 // pred_check
        %p517 = pneg %p392
      $region70: #{tpu_custom_call.1} parent=11 // pred_check_branch
        %519 = sbr.rel (%p517) target = $region72
      $region71: #{tpu_custom_call.1} parent=11 // pred_region
        _
      $region72: #{tpu_custom_call.1} parent=11 // pred_fallthru
        _
      // Predicated region
      $region73: #{tpu_custom_call.1} parent=11 // pred_check
        %p520 = pneg %p413
      $region74: #{tpu_custom_call.1} parent=11 // pred_check_branch
        %522 = sbr.rel (%p520) target = $region76
      $region75: #{tpu_custom_call.1} parent=11 // pred_region
        _
      $region76: #{tpu_custom_call.1} parent=11 // pred_fallthru
        _
      // Predicated region
      $region77: #{tpu_custom_call.1} parent=11 // pred_check
        %p523 = pneg %p434
      $region78: #{tpu_custom_call.1} parent=11 // pred_check_branch
        %525 = sbr.rel (%p523) target = $region80
      $region79: #{tpu_custom_call.1} parent=11 // pred_region
        _
      $region80: #{tpu_custom_call.1} parent=11 // pred_fallthru
        _
    $region12: #{tpu_custom_call.1} parent=5 // pred_fallthru
      _
    %p526 = scmp.lt.s32.totalorder %s25, 2
    // Predicated region
    $region81: #{tpu_custom_call.1} parent=5 // pred_check
      %p527 = pneg %p526
    $region82: #{tpu_custom_call.1} parent=5 // pred_check_branch
      %529 = sbr.rel (%p527) target = $region84
    $region83: #{tpu_custom_call.1} parent=5 // pred_region
      // Predicated region
      $region85: #{tpu_custom_call.1} parent=83 // pred_check
        %p530 = pneg %p45
      $region86: #{tpu_custom_call.1} parent=83 // pred_check_branch
        %532 = sbr.rel (%p530) target = $region88
      $region87: #{tpu_custom_call.1} parent=83 // pred_region
        %s533 = smul.u32 33, %s25
        %p534 = scmp.lt.s32.totalorder %s533, 65
        %s535 = scalar_select %p534, %s533, 65
        %s536 = smul.addr %s535, 8
        %s537 = scalar_lea.vmem %s0, %s536
        %s538 = smul.u32 33, %s25
      $region88: #{tpu_custom_call.1} parent=83 // pred_fallthru
        _
      // Predicated region
      $region89: #{tpu_custom_call.1} parent=83 // pred_check
        %p539 = pneg %p71
      $region90: #{tpu_custom_call.1} parent=83 // pred_check_branch
        %541 = sbr.rel (%p539) target = $region92
      $region91: #{tpu_custom_call.1} parent=83 // pred_region
        %p542 = scmp.lt.s32.totalorder %s25, 1
        %s543 = scalar_select %p542, %s25, 1
        %s544 = smul.addr %s543, 3
        %s545 = scalar_lea.vmem %s1, %s544
      $region92: #{tpu_custom_call.1} parent=83 // pred_fallthru
        _
    $region84: #{tpu_custom_call.1} parent=5 // pred_fallthru
      _
    %p546 = scmp.le.s32.totalorder 1, %s25
    %p547 = scmp.lt.s32.totalorder %s25, 3
    %p548 = pnand %p546, %p547
    %p549 = pneg %p548
    // Predicated region
    $region93: #{tpu_custom_call.1} parent=5 // pred_check
      _
    $region94: #{tpu_custom_call.1} parent=5 // pred_check_branch
      %551 = sbr.rel (%p548) target = $region96
    $region95: #{tpu_custom_call.1} parent=5 // pred_region
      %s552 = ssub.s32 %s25, 1
      %s553 = smul.u32 33, %s30
      %p554 = scmp.lt.s32.totalorder %s553, 65
      %s555 = scalar_select %p554, %s553, 65
      %s556 = smul.addr %s555, 8
      %s557 = scalar_lea.vmem %s0, %s556
      %p558 = pneg %p51
      %p559 = pneg %p48
      %p560 = scmp.lt.s32.totalorder %s30, 1
      %s561 = scalar_select %p560, %s30, 1
      %s562 = smul.addr %s561, 3
      %s563 = scalar_lea.vmem %s1, %s562
      %p564 = pneg %p77
      %p565 = pneg %p74
      %p566 = pneg %p98
      %p567 = pneg %p95
      %p568 = pneg %p119
      %p569 = pneg %p116
      %p570 = pneg %p140
      %p571 = pneg %p137
      %p572 = pneg %p161
      %p573 = pneg %p158
      %p574 = pneg %p182
      %p575 = pneg %p179
      %p576 = pneg %p203
      %p577 = pneg %p200
      %p578 = pneg %p224
      %p579 = pneg %p221
      %p580 = pneg %p245
      %p581 = pneg %p242
      %p582 = pneg %p266
      %p583 = pneg %p263
      %p584 = pneg %p287
      %p585 = pneg %p284
      %p586 = pneg %p308
      %p587 = pneg %p305
      %p588 = pneg %p329
      %p589 = pneg %p326
      %p590 = pneg %p350
      %p591 = pneg %p347
      %p592 = pneg %p371
      %p593 = pneg %p368
      %p594 = pneg %p392
      %p595 = pneg %p389
      %p596 = pneg %p413
      %p597 = pneg %p410
      %p598 = pneg %p434
      %p599 = pneg %p431
      %p600 = pneg %p460
      %p601 = pneg %p457
      %p602 = scmp.lt.s32.totalorder %s30, 1
      %s603 = scalar_select %p602, %s30, 1
      %s604 = smul.addr %s603, 8
      %s605 = scalar_lea.vmem %s19, %s604
      %s606 = smul.u32 33, %s30
      %p607 = scmp.lt.s32.totalorder %s606, 65
      %s608 = scalar_select %p607, %s606, 65
      %s609 = smul.addr %s608, 8
      %s610 = scalar_lea.vmem %s0, %s609
      %s611 = smul.u32 33, %s30
      %p612 = scmp.lt.s32.totalorder %s30, 1
      %s613 = scalar_select %p612, %s30, 1
      %s614 = smul.addr %s613, 3
      %s615 = scalar_lea.vmem %s1, %s614
      %p616 = scmp.lt.s32.totalorder %s30, 1
      %s617 = scalar_select %p616, %s30, 1
      %s618 = smul.addr %s617, 8
      %s619 = scalar_lea.vmem %s19, %s618
      %v621 = vld [vmem:[%s610] sm:$0xff]
      %v622 = vld [vmem:[%s610 + $0x8] sm:$0xff]
      %v623 = vld [vmem:[%s610 + $0x10] sm:$0xff]
      %v624 = vld [vmem:[%s610 + $0x18] sm:$0xff]
      %v625 = vld [vmem:[%s610 + $0x20] sm:$0xff]
      %v626 = vld [vmem:[%s610 + $0x28] sm:$0xff]
      %v627 = vld [vmem:[%s610 + $0x30] sm:$0xff]
      %v628 = vld [vmem:[%s610 + $0x38] sm:$0xff]
      %v629 = vld [vmem:[%s610 + $0x40] sm:$0xff]
      %v630 = vld [vmem:[%s610 + $0x48] sm:$0xff]
      %v631 = vld [vmem:[%s610 + $0x50] sm:$0xff]
      %v632 = vld [vmem:[%s610 + $0x58] sm:$0xff]
      %v633 = vld [vmem:[%s610 + $0x60] sm:$0xff]
      %v634 = vld [vmem:[%s610 + $0x68] sm:$0xff]
      %v635 = vld [vmem:[%s610 + $0x70] sm:$0xff]
      %v636 = vld [vmem:[%s610 + $0x78] sm:$0xff]
      %v637 = vld [vmem:[%s610 + $0x80] sm:$0xff]
      %v638 = vld [vmem:[%s610 + $0x88] sm:$0xff]
      %v639 = vld [vmem:[%s610 + $0x90] sm:$0xff]
      %v640 = vld [vmem:[%s610 + $0x98] sm:$0xff]
      %v641 = vld [vmem:[%s610 + $0xa0] sm:$0xff]
      %v642 = vld [vmem:[%s610 + $0xa8] sm:$0xff]
      %v643 = vld [vmem:[%s610 + $0xb0] sm:$0xff]
      %v644 = vld [vmem:[%s610 + $0xb8] sm:$0xff]
      %v645 = vld [vmem:[%s610 + $0xc0] sm:$0xff]
      %v646 = vld [vmem:[%s610 + $0xc8] sm:$0xff]
      %v647 = vld [vmem:[%s610 + $0xd0] sm:$0xff]
      %v648 = vld [vmem:[%s610 + $0xd8] sm:$0xff]
      %v649 = vld [vmem:[%s610 + $0xe0] sm:$0xff]
      %v650 = vld [vmem:[%s610 + $0xe8] sm:$0xff]
      %v651 = vld [vmem:[%s610 + $0xf0] sm:$0xff]
      %v652 = vld [vmem:[%s610 + $0xf8] sm:$0xff]
      %v653 = vld [vmem:[%s610 + $0x100] sm:$0xff]
      %v654 = vld [vmem:[%s615] sm:$0x7]
      %v655 = vld [vmem:[%s2] sm:$0xff]
      %v656 = vld [vmem:[%s2 + $0x8] sm:$0xff]
      %v657 = vld [vmem:[%s2 + $0x10] sm:$0xff]
      %v658 = vld [vmem:[%s2 + $0x18] sm:$0xff]
      %v659 = vld [vmem:[%s2 + $0x20] sm:$0xff]
      %v660 = vld [vmem:[%s2 + $0x28] sm:$0xff]
      %v661 = vld [vmem:[%s2 + $0x30] sm:$0xff]
      %v662 = vld [vmem:[%s2 + $0x38] sm:$0xff]
      %v663 = vld [vmem:[%s2 + $0x40] sm:$0xff]
      %v664 = vld [vmem:[%s2 + $0x48] sm:$0xff]
      %v665 = vld [vmem:[%s2 + $0x50] sm:$0xff]
      %v666 = vld [vmem:[%s2 + $0x58] sm:$0xff]
      %v667 = vld [vmem:[%s2 + $0x60] sm:$0xff]
      %v668 = vld [vmem:[%s2 + $0x68] sm:$0xff]
      %v669 = vld [vmem:[%s2 + $0x70] sm:$0xff]
      %v670 = vld [vmem:[%s2 + $0x78] sm:$0xff]
      %v671 = vld [vmem:[%s2 + $0x80] sm:$0xff]
      %v672 = vld [vmem:[%s2 + $0x88] sm:$0xff]
      %v673 = vld [vmem:[%s2 + $0x90] sm:$0xff]
      %v674 = vld [vmem:[%s2 + $0x98] sm:$0xff]
      %v675 = vld [vmem:[%s2 + $0xa0] sm:$0xff]
      %v676 = vld [vmem:[%s2 + $0xa8] sm:$0xff]
      %v677 = vld [vmem:[%s2 + $0xb0] sm:$0xff]
      %v678 = vld [vmem:[%s2 + $0xb8] sm:$0xff]
      %v679 = vld [vmem:[%s2 + $0xc0] sm:$0xff]
      %v680 = vld [vmem:[%s2 + $0xc8] sm:$0xff]
      %v681 = vld [vmem:[%s2 + $0xd0] sm:$0xff]
      %v682 = vld [vmem:[%s2 + $0xd8] sm:$0xff]
      %v683 = vld [vmem:[%s2 + $0xe0] sm:$0xff]
      %v684 = vld [vmem:[%s2 + $0xe8] sm:$0xff]
      %v685 = vld [vmem:[%s2 + $0xf0] sm:$0xff]
      %v686 = vld [vmem:[%s2 + $0xf8] sm:$0xff]
      %v687 = vld [vmem:[%s2 + $0x100] sm:$0xff]
      %v688 = vld [vmem:[%s3] sm:$0x7]
      %689 = vset.pattern.permute.xlu0 0
      %690 = vperm.xlu0 %689, %v655
      %v691 = vpop.permute.xlu0 %690
      %692 = vset.pattern.permute.xlu0 0
      %693 = vperm.xlu0 %692, %v656
      %v694 = vpop.permute.xlu0 %693
      %695 = vset.pattern.permute.xlu0 0
      %696 = vperm.xlu0 %695, %v657
      %v697 = vpop.permute.xlu0 %696
      %698 = vset.pattern.permute.xlu0 0
      %699 = vperm.xlu0 %698, %v658
      %v700 = vpop.permute.xlu0 %699
      %701 = vset.pattern.permute.xlu0 0
      %702 = vperm.xlu0 %701, %v659
      %v703 = vpop.permute.xlu0 %702
      %704 = vset.pattern.permute.xlu0 0
      %705 = vperm.xlu0 %704, %v660
      %v706 = vpop.permute.xlu0 %705
      %707 = vset.pattern.permute.xlu0 0
      %708 = vperm.xlu0 %707, %v661
      %v709 = vpop.permute.xlu0 %708
      %710 = vset.pattern.permute.xlu0 0
      %711 = vperm.xlu0 %710, %v662
      %v712 = vpop.permute.xlu0 %711
      %713 = vset.pattern.permute.xlu0 0
      %714 = vperm.xlu0 %713, %v663
      %v715 = vpop.permute.xlu0 %714
      %716 = vset.pattern.permute.xlu0 0
      %717 = vperm.xlu0 %716, %v664
      %v718 = vpop.permute.xlu0 %717
      %719 = vset.pattern.permute.xlu0 0
      %720 = vperm.xlu0 %719, %v665
      %v721 = vpop.permute.xlu0 %720
      %722 = vset.pattern.permute.xlu0 0
      %723 = vperm.xlu0 %722, %v666
      %v724 = vpop.permute.xlu0 %723
      %725 = vset.pattern.permute.xlu0 0
      %726 = vperm.xlu0 %725, %v667
      %v727 = vpop.permute.xlu0 %726
      %728 = vset.pattern.permute.xlu0 0
      %729 = vperm.xlu0 %728, %v668
      %v730 = vpop.permute.xlu0 %729
      %731 = vset.pattern.permute.xlu0 0
      %732 = vperm.xlu0 %731, %v669
      %v733 = vpop.permute.xlu0 %732
      %734 = vset.pattern.permute.xlu0 0
      %735 = vperm.xlu0 %734, %v670
      %v736 = vpop.permute.xlu0 %735
      %737 = vset.pattern.permute.xlu0 0
      %738 = vperm.xlu0 %737, %v671
      %v739 = vpop.permute.xlu0 %738
      %740 = vset.pattern.permute.xlu0 0
      %741 = vperm.xlu0 %740, %v672
      %v742 = vpop.permute.xlu0 %741
      %743 = vset.pattern.permute.xlu0 0
      %744 = vperm.xlu0 %743, %v673
      %v745 = vpop.permute.xlu0 %744
      %746 = vset.pattern.permute.xlu0 0
      %747 = vperm.xlu0 %746, %v674
      %v748 = vpop.permute.xlu0 %747
      %749 = vset.pattern.permute.xlu0 0
      %750 = vperm.xlu0 %749, %v675
      %v751 = vpop.permute.xlu0 %750
      %752 = vset.pattern.permute.xlu0 0
      %753 = vperm.xlu0 %752, %v676
      %v754 = vpop.permute.xlu0 %753
      %755 = vset.pattern.permute.xlu0 0
      %756 = vperm.xlu0 %755, %v677
      %v757 = vpop.permute.xlu0 %756
      %758 = vset.pattern.permute.xlu0 0
      %759 = vperm.xlu0 %758, %v678
      %v760 = vpop.permute.xlu0 %759
      %761 = vset.pattern.permute.xlu0 0
      %762 = vperm.xlu0 %761, %v679
      %v763 = vpop.permute.xlu0 %762
      %764 = vset.pattern.permute.xlu0 0
      %765 = vperm.xlu0 %764, %v680
      %v766 = vpop.permute.xlu0 %765
      %767 = vset.pattern.permute.xlu0 0
      %768 = vperm.xlu0 %767, %v681
      %v769 = vpop.permute.xlu0 %768
      %770 = vset.pattern.permute.xlu0 0
      %771 = vperm.xlu0 %770, %v682
      %v772 = vpop.permute.xlu0 %771
      %773 = vset.pattern.permute.xlu0 0
      %774 = vperm.xlu0 %773, %v683
      %v775 = vpop.permute.xlu0 %774
      %776 = vset.pattern.permute.xlu0 0
      %777 = vperm.xlu0 %776, %v684
      %v778 = vpop.permute.xlu0 %777
      %779 = vset.pattern.permute.xlu0 0
      %780 = vperm.xlu0 %779, %v685
      %v781 = vpop.permute.xlu0 %780
      %782 = vset.pattern.permute.xlu0 0
      %783 = vperm.xlu0 %782, %v686
      %v784 = vpop.permute.xlu0 %783
      %785 = vset.pattern.permute.xlu0 0
      %786 = vperm.xlu0 %785, %v687
      %v787 = vpop.permute.xlu0 %786
      %v788 = vlaneseq
      %v789 = vshrl.u32 %v788, 7
      %v790 = vsub.s32 0, %v789
      %v791 = vrot.slane %v688, %v790
      %v792 = vlaneseq
      %v793 = vshrl.u32 %v792, 7
      %v794 = vsub.s32 1, %v793
      %v795 = vrot.slane %v688, %v794
      %v796 = vlaneseq
      %v797 = vshrl.u32 %v796, 7
      %v798 = vsub.s32 2, %v797
      %v799 = vrot.slane %v688, %v798
      %vm800 = vcmp.eq.s32.totalorder %v691, %v791
      %vm801 = vcmp.eq.s32.totalorder %v691, %v795
      %vm802 = vcmp.eq.s32.totalorder %v691, %v799
      %vm803 = vcmp.eq.s32.totalorder %v694, %v791
      %vm804 = vcmp.eq.s32.totalorder %v694, %v795
      %vm805 = vcmp.eq.s32.totalorder %v694, %v799
      %vm806 = vcmp.eq.s32.totalorder %v697, %v791
      %vm807 = vcmp.eq.s32.totalorder %v697, %v795
      %vm808 = vcmp.eq.s32.totalorder %v697, %v799
      %vm809 = vcmp.eq.s32.totalorder %v700, %v791
      %vm810 = vcmp.eq.s32.totalorder %v700, %v795
      %vm811 = vcmp.eq.s32.totalorder %v700, %v799
      %vm812 = vcmp.eq.s32.totalorder %v703, %v791
      %vm813 = vcmp.eq.s32.totalorder %v703, %v795
      %vm814 = vcmp.eq.s32.totalorder %v703, %v799
      %vm815 = vcmp.eq.s32.totalorder %v706, %v791
      %vm816 = vcmp.eq.s32.totalorder %v706, %v795
      %vm817 = vcmp.eq.s32.totalorder %v706, %v799
      %vm818 = vcmp.eq.s32.totalorder %v709, %v791
      %vm819 = vcmp.eq.s32.totalorder %v709, %v795
      %vm820 = vcmp.eq.s32.totalorder %v709, %v799
      %vm821 = vcmp.eq.s32.totalorder %v712, %v791
      %vm822 = vcmp.eq.s32.totalorder %v712, %v795
      %vm823 = vcmp.eq.s32.totalorder %v712, %v799
      %vm824 = vcmp.eq.s32.totalorder %v715, %v791
      %vm825 = vcmp.eq.s32.totalorder %v715, %v795
      %vm826 = vcmp.eq.s32.totalorder %v715, %v799
      %vm827 = vcmp.eq.s32.totalorder %v718, %v791
      %vm828 = vcmp.eq.s32.totalorder %v718, %v795
      %vm829 = vcmp.eq.s32.totalorder %v718, %v799
      %vm830 = vcmp.eq.s32.totalorder %v721, %v791
      %vm831 = vcmp.eq.s32.totalorder %v721, %v795
      %vm832 = vcmp.eq.s32.totalorder %v721, %v799
      %vm833 = vcmp.eq.s32.totalorder %v724, %v791
      %vm834 = vcmp.eq.s32.totalorder %v724, %v795
      %vm835 = vcmp.eq.s32.totalorder %v724, %v799
      %vm836 = vcmp.eq.s32.totalorder %v727, %v791
      %vm837 = vcmp.eq.s32.totalorder %v727, %v795
      %vm838 = vcmp.eq.s32.totalorder %v727, %v799
      %vm839 = vcmp.eq.s32.totalorder %v730, %v791
      %vm840 = vcmp.eq.s32.totalorder %v730, %v795
      %vm841 = vcmp.eq.s32.totalorder %v730, %v799
      %vm842 = vcmp.eq.s32.totalorder %v733, %v791
      %vm843 = vcmp.eq.s32.totalorder %v733, %v795
      %vm844 = vcmp.eq.s32.totalorder %v733, %v799
      %vm845 = vcmp.eq.s32.totalorder %v736, %v791
      %vm846 = vcmp.eq.s32.totalorder %v736, %v795
      %vm847 = vcmp.eq.s32.totalorder %v736, %v799
      %vm848 = vcmp.eq.s32.totalorder %v739, %v791
      %vm849 = vcmp.eq.s32.totalorder %v739, %v795
      %vm850 = vcmp.eq.s32.totalorder %v739, %v799
      %vm851 = vcmp.eq.s32.totalorder %v742, %v791
      %vm852 = vcmp.eq.s32.totalorder %v742, %v795
      %vm853 = vcmp.eq.s32.totalorder %v742, %v799
      %vm854 = vcmp.eq.s32.totalorder %v745, %v791
      %vm855 = vcmp.eq.s32.totalorder %v745, %v795
      %vm856 = vcmp.eq.s32.totalorder %v745, %v799
      %vm857 = vcmp.eq.s32.totalorder %v748, %v791
      %vm858 = vcmp.eq.s32.totalorder %v748, %v795
      %vm859 = vcmp.eq.s32.totalorder %v748, %v799
      %vm860 = vcmp.eq.s32.totalorder %v751, %v791
      %vm861 = vcmp.eq.s32.totalorder %v751, %v795
      %vm862 = vcmp.eq.s32.totalorder %v751, %v799
      %vm863 = vcmp.eq.s32.totalorder %v754, %v791
      %vm864 = vcmp.eq.s32.totalorder %v754, %v795
      %vm865 = vcmp.eq.s32.totalorder %v754, %v799
      %vm866 = vcmp.eq.s32.totalorder %v757, %v791
      %vm867 = vcmp.eq.s32.totalorder %v757, %v795
      %vm868 = vcmp.eq.s32.totalorder %v757, %v799
      %vm869 = vcmp.eq.s32.totalorder %v760, %v791
      %vm870 = vcmp.eq.s32.totalorder %v760, %v795
      %vm871 = vcmp.eq.s32.totalorder %v760, %v799
      %vm872 = vcmp.eq.s32.totalorder %v763, %v791
      %vm873 = vcmp.eq.s32.totalorder %v763, %v795
      %vm874 = vcmp.eq.s32.totalorder %v763, %v799
      %vm875 = vcmp.eq.s32.totalorder %v766, %v791
      %vm876 = vcmp.eq.s32.totalorder %v766, %v795
      %vm877 = vcmp.eq.s32.totalorder %v766, %v799
      %vm878 = vcmp.eq.s32.totalorder %v769, %v791
      %vm879 = vcmp.eq.s32.totalorder %v769, %v795
      %vm880 = vcmp.eq.s32.totalorder %v769, %v799
      %vm881 = vcmp.eq.s32.totalorder %v772, %v791
      %vm882 = vcmp.eq.s32.totalorder %v772, %v795
      %vm883 = vcmp.eq.s32.totalorder %v772, %v799
      %vm884 = vcmp.eq.s32.totalorder %v775, %v791
      %vm885 = vcmp.eq.s32.totalorder %v775, %v795
      %vm886 = vcmp.eq.s32.totalorder %v775, %v799
      %vm887 = vcmp.eq.s32.totalorder %v778, %v791
      %vm888 = vcmp.eq.s32.totalorder %v778, %v795
      %vm889 = vcmp.eq.s32.totalorder %v778, %v799
      %vm890 = vcmp.eq.s32.totalorder %v781, %v791
      %vm891 = vcmp.eq.s32.totalorder %v781, %v795
      %vm892 = vcmp.eq.s32.totalorder %v781, %v799
      %vm893 = vcmp.eq.s32.totalorder %v784, %v791
      %vm894 = vcmp.eq.s32.totalorder %v784, %v795
      %vm895 = vcmp.eq.s32.totalorder %v784, %v799
      %vm896 = vcmp.eq.s32.totalorder %v787, %v791
      %vm897 = vcmp.eq.s32.totalorder %v787, %v795
      %vm898 = vcmp.eq.s32.totalorder %v787, %v799
      %v899 = vpack.c.bf16 %v622, %v621
      %v900 = vpack.c.bf16 %v624, %v623
      %v901 = vpack.c.bf16 %v626, %v625
      %v902 = vpack.c.bf16 %v628, %v627
      %v903 = vpack.c.bf16 %v630, %v629
      %v904 = vpack.c.bf16 %v632, %v631
      %v905 = vpack.c.bf16 %v634, %v633
      %v906 = vpack.c.bf16 %v636, %v635
      %v907 = vpack.c.bf16 %v638, %v637
      %v908 = vpack.c.bf16 %v640, %v639
      %v909 = vpack.c.bf16 %v642, %v641
      %v910 = vpack.c.bf16 %v644, %v643
      %v911 = vpack.c.bf16 %v646, %v645
      %v912 = vpack.c.bf16 %v648, %v647
      %v913 = vpack.c.bf16 %v650, %v649
      %v914 = vpack.c.bf16 %v652, %v651
      %v915 = vpack.c.bf16 %v653, %v653
      %v916 = vld [vmem:[%s5] sm:$0xff]
      %v917 = vld [vmem:[%s5 + $0x8] sm:$0xff]
      %v918 = vld [vmem:[%s5 + $0x10] sm:$0xff]
      %v919 = vld [vmem:[%s5 + $0x18] sm:$0xff]
      %v920 = vld [vmem:[%s5 + $0x20] sm:$0xff]
      %v921 = vld [vmem:[%s5 + $0x28] sm:$0x77]
      %v922 = vld [vmem:[%s6] sm:$0x3]
      %v924 = vlaneseq
      %v925 = vshrl.u32 %v924, 7
      %v926 = vsub.s32 0, %v925
      %v927 = vrot.slane %v922, %v926
      %v928 = vlaneseq
      %v929 = vshrl.u32 %v928, 7
      %v930 = vsub.s32 1, %v929
      %v931 = vrot.slane %v922, %v930
      %v940 = vunpack.c.l.b16 %v916
      %v941 = vunpack.c.h.b16 %v916
      %v942 = vunpack.c.l.b16 %v917
      %v943 = vunpack.c.h.b16 %v917
      %v944 = vunpack.c.l.b16 %v918
      %v945 = vunpack.c.h.b16 %v918
      %v946 = vunpack.c.l.b16 %v919
      %v947 = vunpack.c.h.b16 %v919
      %v948 = vunpack.c.l.b16 %v920
      %v949 = vunpack.c.h.b16 %v920
      %v950 = vunpack.c.l.b16 %v921
      %v951 = vunpack.c.h.b16 %v921
      %v952 = vpack.c.b16 %v942, %v940
      %v953 = vpack.c.b16 %v943, %v941
      %v954 = vpack.c.b16 %v946, %v944
      %v955 = vpack.c.b16 %v947, %v945
      %v956 = vpack.c.b16 %v950, %v948
      %v957 = vpack.c.b16 %v951, %v949
      %vm962 = vcmask 375808
      %v964 = vsel %vm962, %v899, 0
      %v967 = vsel %vm962, %v900, 0
      %v970 = vsel %vm962, %v901, 0
      %v973 = vsel %vm962, %v902, 0
      %v976 = vsel %vm962, %v903, 0
      %v979 = vsel %vm962, %v904, 0
      %v982 = vsel %vm962, %v905, 0
      %v985 = vsel %vm962, %v906, 0
      %v988 = vsel %vm962, %v907, 0
      %v991 = vsel %vm962, %v908, 0
      %v994 = vsel %vm962, %v909, 0
      %v997 = vsel %vm962, %v910, 0
      %v1000 = vsel %vm962, %v911, 0
      %v1003 = vsel %vm962, %v912, 0
      %v1006 = vsel %vm962, %v913, 0
      %v1009 = vsel %vm962, %v914, 0
      %v1012 = vsel %vm962, %v915, 0
      %vm1014 = vcmask 1046528
      %v1016 = vsel %vm1014, %v956, 0
      %v1019 = vsel %vm1014, %v957, 0
      %1021 = vmatprep.subr.bf16.mxu0 %v953
      %1022 = vmatpush1.bf16.msra.mxu0 %v952
      %1023 = vmatprep.subr.bf16.mxu0 %v955
      %1024 = vmatpush1.bf16.msra.mxu0 %v954
      %1025 = vmatprep.subr.bf16.mxu0 %v1019
      %1026 = vmatpush1.bf16.msra.mxu0 %v1016
      %1027 = vmatprep.subr.bf16.mxu0 0
      %1028 = vmatpush1.bf16.msra.mxu0 0
      %1029 = vmatprep.subr.bf16.mxu0 0
      %1030 = vmatpush1.bf16.msra.mxu0 0
      %1031 = vmatprep.subr.bf16.mxu0 0
      %1032 = vmatpush1.bf16.msra.mxu0 0
      %1033 = vmatprep.subr.bf16.mxu0 0
      %1034 = vmatpush1.bf16.msra.mxu0 0
      %1035 = vmatprep.subr.bf16.mxu0 0
      %1036 = vmatpush1.bf16.msra.mxu0 0
      %1037 = vmatprep.subr.bf16.mxu0 0
      %1038 = vmatpush1.bf16.msra.mxu0 0
      %1039 = vmatprep.subr.bf16.mxu0 0
      %1040 = vmatpush1.bf16.msra.mxu0 0
      %1041 = vmatprep.subr.bf16.mxu0 0
      %1042 = vmatpush1.bf16.msra.mxu0 0
      %1043 = vmatprep.subr.bf16.mxu0 0
      %1044 = vmatpush1.bf16.msra.mxu0 0
      %1045 = vmatprep.subr.bf16.mxu0 0
      %1046 = vmatpush1.bf16.msra.mxu0 0
      %1047 = vmatprep.subr.bf16.mxu0 0
      %1048 = vmatpush1.bf16.msra.mxu0 0
      %1049 = vmatprep.subr.bf16.mxu0 0
      %1050 = vmatpush1.bf16.msra.mxu0 0
      %1051 = vmatprep.subr.bf16.mxu0 0
      %1052 = vmatpush1.bf16.msra.mxu0 0
      %1053 = vmatprep.mubr.bf16.mxu0 0
      %1054 = vmatmul.mubr.bf16.gmra.mrb[0].mxu0 %v964
      %v1055 = vpop.f32.mrb[0].mxu0
      %v1056 = vadd.f32 %v927, %v1055
      %v1057 = vpop.f32.mrb[0].mxu0
      %v1058 = vadd.f32 %v931, %v1057
      %v1059 = vpop.f32.mrb[0].mxu0
      %v1060 = vadd.f32 %v927, %v1059
      %v1061 = vpop.f32.mrb[0].mxu0
      %v1062 = vadd.f32 %v931, %v1061
      %1063 = vmatprep.mubr.bf16.mxu0 0
      %1064 = vmatmul.mubr.bf16.gmra.mrb[0].mxu0 %v967
      %v1065 = vpop.f32.mrb[0].mxu0
      %v1066 = vadd.f32 %v927, %v1065
      %v1067 = vpop.f32.mrb[0].mxu0
      %v1068 = vadd.f32 %v931, %v1067
      %v1069 = vpop.f32.mrb[0].mxu0
      %v1070 = vadd.f32 %v927, %v1069
      %v1071 = vpop.f32.mrb[0].mxu0
      %v1072 = vadd.f32 %v931, %v1071
      %1073 = vmatprep.mubr.bf16.mxu0 0
      %1074 = vmatmul.mubr.bf16.gmra.mrb[0].mxu0 %v970
      %v1075 = vpop.f32.mrb[0].mxu0
      %v1076 = vadd.f32 %v927, %v1075
      %v1077 = vpop.f32.mrb[0].mxu0
      %v1078 = vadd.f32 %v931, %v1077
      %v1079 = vpop.f32.mrb[0].mxu0
      %v1080 = vadd.f32 %v927, %v1079
      %v1081 = vpop.f32.mrb[0].mxu0
      %v1082 = vadd.f32 %v931, %v1081
      %1083 = vmatprep.mubr.bf16.mxu0 0
      %1084 = vmatmul.mubr.bf16.gmra.mrb[0].mxu0 %v973
      %v1085 = vpop.f32.mrb[0].mxu0
      %v1086 = vadd.f32 %v927, %v1085
      %v1087 = vpop.f32.mrb[0].mxu0
      %v1088 = vadd.f32 %v931, %v1087
      %v1089 = vpop.f32.mrb[0].mxu0
      %v1090 = vadd.f32 %v927, %v1089
      %v1091 = vpop.f32.mrb[0].mxu0
      %v1092 = vadd.f32 %v931, %v1091
      %1093 = vmatprep.mubr.bf16.mxu0 0
      %1094 = vmatmul.mubr.bf16.gmra.mrb[0].mxu0 %v976
      %v1095 = vpop.f32.mrb[0].mxu0
      %v1096 = vadd.f32 %v927, %v1095
      %v1097 = vpop.f32.mrb[0].mxu0
      %v1098 = vadd.f32 %v931, %v1097
      %v1099 = vpop.f32.mrb[0].mxu0
      %v1100 = vadd.f32 %v927, %v1099
      %v1101 = vpop.f32.mrb[0].mxu0
      %v1102 = vadd.f32 %v931, %v1101
      %1103 = vmatprep.mubr.bf16.mxu0 0
      %1104 = vmatmul.mubr.bf16.gmra.mrb[0].mxu0 %v979
      %v1105 = vpop.f32.mrb[0].mxu0
      %v1106 = vadd.f32 %v927, %v1105
      %v1107 = vpop.f32.mrb[0].mxu0
      %v1108 = vadd.f32 %v931, %v1107
      %v1109 = vpop.f32.mrb[0].mxu0
      %v1110 = vadd.f32 %v927, %v1109
      %v1111 = vpop.f32.mrb[0].mxu0
      %v1112 = vadd.f32 %v931, %v1111
      %1113 = vmatprep.mubr.bf16.mxu0 0
      %1114 = vmatmul.mubr.bf16.gmra.mrb[0].mxu0 %v982
      %v1115 = vpop.f32.mrb[0].mxu0
      %v1116 = vadd.f32 %v927, %v1115
      %v1117 = vpop.f32.mrb[0].mxu0
      %v1118 = vadd.f32 %v931, %v1117
      %v1119 = vpop.f32.mrb[0].mxu0
      %v1120 = vadd.f32 %v927, %v1119
      %v1121 = vpop.f32.mrb[0].mxu0
      %v1122 = vadd.f32 %v931, %v1121
      %1123 = vmatprep.mubr.bf16.mxu0 0
      %1124 = vmatmul.mubr.bf16.gmra.mrb[0].mxu0 %v985
      %v1125 = vpop.f32.mrb[0].mxu0
      %v1126 = vadd.f32 %v927, %v1125
      %v1127 = vpop.f32.mrb[0].mxu0
      %v1128 = vadd.f32 %v931, %v1127
      %v1129 = vpop.f32.mrb[0].mxu0
      %v1130 = vadd.f32 %v927, %v1129
      %v1131 = vpop.f32.mrb[0].mxu0
      %v1132 = vadd.f32 %v931, %v1131
      %1133 = vmatprep.mubr.bf16.mxu0 0
      %1134 = vmatmul.mubr.bf16.gmra.mrb[0].mxu0 %v988
      %v1135 = vpop.f32.mrb[0].mxu0
      %v1136 = vadd.f32 %v927, %v1135
      %v1137 = vpop.f32.mrb[0].mxu0
      %v1138 = vadd.f32 %v931, %v1137
      %v1139 = vpop.f32.mrb[0].mxu0
      %v1140 = vadd.f32 %v927, %v1139
      %v1141 = vpop.f32.mrb[0].mxu0
      %v1142 = vadd.f32 %v931, %v1141
      %1143 = vmatprep.mubr.bf16.mxu0 0
      %1144 = vmatmul.mubr.bf16.gmra.mrb[0].mxu0 %v991
      %v1145 = vpop.f32.mrb[0].mxu0
      %v1146 = vadd.f32 %v927, %v1145
      %v1147 = vpop.f32.mrb[0].mxu0
      %v1148 = vadd.f32 %v931, %v1147
      %v1149 = vpop.f32.mrb[0].mxu0
      %v1150 = vadd.f32 %v927, %v1149
      %v1151 = vpop.f32.mrb[0].mxu0
      %v1152 = vadd.f32 %v931, %v1151
      %1153 = vmatprep.mubr.bf16.mxu0 0
      %1154 = vmatmul.mubr.bf16.gmra.mrb[0].mxu0 %v994
      %v1155 = vpop.f32.mrb[0].mxu0
      %v1156 = vadd.f32 %v927, %v1155
      %v1157 = vpop.f32.mrb[0].mxu0
      %v1158 = vadd.f32 %v931, %v1157
      %v1159 = vpop.f32.mrb[0].mxu0
      %v1160 = vadd.f32 %v927, %v1159
      %v1161 = vpop.f32.mrb[0].mxu0
      %v1162 = vadd.f32 %v931, %v1161
      %1163 = vmatprep.mubr.bf16.mxu0 0
      %1164 = vmatmul.mubr.bf16.gmra.mrb[0].mxu0 %v997
      %v1165 = vpop.f32.mrb[0].mxu0
      %v1166 = vadd.f32 %v927, %v1165
      %v1167 = vpop.f32.mrb[0].mxu0
      %v1168 = vadd.f32 %v931, %v1167
      %v1169 = vpop.f32.mrb[0].mxu0
      %v1170 = vadd.f32 %v927, %v1169
      %v1171 = vpop.f32.mrb[0].mxu0
      %v1172 = vadd.f32 %v931, %v1171
      %1173 = vmatprep.mubr.bf16.mxu0 0
      %1174 = vmatmul.mubr.bf16.gmra.mrb[0].mxu0 %v1000
      %v1175 = vpop.f32.mrb[0].mxu0
      %v1176 = vadd.f32 %v927, %v1175
      %v1177 = vpop.f32.mrb[0].mxu0
      %v1178 = vadd.f32 %v931, %v1177
      %v1179 = vpop.f32.mrb[0].mxu0
      %v1180 = vadd.f32 %v927, %v1179
      %v1181 = vpop.f32.mrb[0].mxu0
      %v1182 = vadd.f32 %v931, %v1181
      %1183 = vmatprep.mubr.bf16.mxu0 0
      %1184 = vmatmul.mubr.bf16.gmra.mrb[0].mxu0 %v1003
      %v1185 = vpop.f32.mrb[0].mxu0
      %v1186 = vadd.f32 %v927, %v1185
      %v1187 = vpop.f32.mrb[0].mxu0
      %v1188 = vadd.f32 %v931, %v1187
      %v1189 = vpop.f32.mrb[0].mxu0
      %v1190 = vadd.f32 %v927, %v1189
      %v1191 = vpop.f32.mrb[0].mxu0
      %v1192 = vadd.f32 %v931, %v1191
      %1193 = vmatprep.mubr.bf16.mxu0 0
      %1194 = vmatmul.mubr.bf16.gmra.mrb[0].mxu0 %v1006
      %v1195 = vpop.f32.mrb[0].mxu0
      %v1196 = vadd.f32 %v927, %v1195
      %v1197 = vpop.f32.mrb[0].mxu0
      %v1198 = vadd.f32 %v931, %v1197
      %v1199 = vpop.f32.mrb[0].mxu0
      %v1200 = vadd.f32 %v927, %v1199
      %v1201 = vpop.f32.mrb[0].mxu0
      %v1202 = vadd.f32 %v931, %v1201
      %1203 = vmatprep.mubr.bf16.mxu0 0
      %1204 = vmatmul.mubr.bf16.gmra.mrb[0].mxu0 %v1009
      %v1205 = vpop.f32.mrb[0].mxu0
      %v1206 = vadd.f32 %v927, %v1205
      %v1207 = vpop.f32.mrb[0].mxu0
      %v1208 = vadd.f32 %v931, %v1207
      %v1209 = vpop.f32.mrb[0].mxu0
      %v1210 = vadd.f32 %v927, %v1209
      %v1211 = vpop.f32.mrb[0].mxu0
      %v1212 = vadd.f32 %v931, %v1211
      %1213 = vmatprep.mubr.bf16.mxu0 0
      %1214 = vmatmul.mubr.bf16.gmra.mrb[0].mxu0 %v1012
      %v1215 = vpop.f32.mrb[0].mxu0
      %v1216 = vadd.f32 %v927, %v1215
      %v1217 = vpop.f32.mrb[0].mxu0
      %v1218 = vadd.f32 %v931, %v1217
      %v1219 = vpop.f32.mrb[0].mxu0
      %v1220 = vpop.f32.mrb[0].mxu0
      %1221 = vdwg.mxu0
      %v1222 = vpack.c.bf16 %v1060, %v1056
      %v1223 = vpack.c.bf16 %v1070, %v1066
      %v1224 = vpack.c.bf16 %v1080, %v1076
      %v1225 = vpack.c.bf16 %v1090, %v1086
      %v1226 = vpack.c.bf16 %v1100, %v1096
      %v1227 = vpack.c.bf16 %v1110, %v1106
      %v1228 = vpack.c.bf16 %v1120, %v1116
      %v1229 = vpack.c.bf16 %v1130, %v1126
      %v1230 = vpack.c.bf16 %v1140, %v1136
      %v1231 = vpack.c.bf16 %v1150, %v1146
      %v1232 = vpack.c.bf16 %v1160, %v1156
      %v1233 = vpack.c.bf16 %v1170, %v1166
      %v1234 = vpack.c.bf16 %v1180, %v1176
      %v1235 = vpack.c.bf16 %v1190, %v1186
      %v1236 = vpack.c.bf16 %v1200, %v1196
      %v1237 = vpack.c.bf16 %v1210, %v1206
      %v1238 = vpack.c.bf16 %v1216, %v1216
      %1256 = vrot.lane.b32.xlu0 %v1222, 82
      %v1257 = vpop.permute.xlu0 %1256
      %1258 = vrot.lane.b32.xlu0 %v1223, 82
      %v1259 = vpop.permute.xlu0 %1258
      %1260 = vrot.lane.b32.xlu0 %v1224, 82
      %v1261 = vpop.permute.xlu0 %1260
      %1262 = vrot.lane.b32.xlu0 %v1225, 82
      %v1263 = vpop.permute.xlu0 %1262
      %1264 = vrot.lane.b32.xlu0 %v1226, 82
      %v1265 = vpop.permute.xlu0 %1264
      %1266 = vrot.lane.b32.xlu0 %v1227, 82
      %v1267 = vpop.permute.xlu0 %1266
      %1268 = vrot.lane.b32.xlu0 %v1228, 82
      %v1269 = vpop.permute.xlu0 %1268
      %1270 = vrot.lane.b32.xlu0 %v1229, 82
      %v1271 = vpop.permute.xlu0 %1270
      %1272 = vrot.lane.b32.xlu0 %v1230, 82
      %v1273 = vpop.permute.xlu0 %1272
      %1274 = vrot.lane.b32.xlu0 %v1231, 82
      %v1275 = vpop.permute.xlu0 %1274
      %1276 = vrot.lane.b32.xlu0 %v1232, 82
      %v1277 = vpop.permute.xlu0 %1276
      %1278 = vrot.lane.b32.xlu0 %v1233, 82
      %v1279 = vpop.permute.xlu0 %1278
      %1280 = vrot.lane.b32.xlu0 %v1234, 82
      %v1281 = vpop.permute.xlu0 %1280
      %1282 = vrot.lane.b32.xlu0 %v1235, 82
      %v1283 = vpop.permute.xlu0 %1282
      %1284 = vrot.lane.b32.xlu0 %v1236, 82
      %v1285 = vpop.permute.xlu0 %1284
      %1286 = vrot.lane.b32.xlu0 %v1237, 82
      %v1287 = vpop.permute.xlu0 %1286
      %1288 = vrot.lane.b32.xlu0 %v1238, 82
      %v1289 = vpop.permute.xlu0 %1288
      %v1291 = vsel %vm962, %v1222, 0
      %v1294 = vsel %vm962, %v1223, 0
      %v1297 = vsel %vm962, %v1224, 0
      %v1300 = vsel %vm962, %v1225, 0
      %v1303 = vsel %vm962, %v1226, 0
      %v1306 = vsel %vm962, %v1227, 0
      %v1309 = vsel %vm962, %v1228, 0
      %v1312 = vsel %vm962, %v1229, 0
      %v1315 = vsel %vm962, %v1230, 0
      %v1318 = vsel %vm962, %v1231, 0
      %v1321 = vsel %vm962, %v1232, 0
      %v1324 = vsel %vm962, %v1233, 0
      %v1327 = vsel %vm962, %v1234, 0
      %v1330 = vsel %vm962, %v1235, 0
      %v1333 = vsel %vm962, %v1236, 0
      %v1336 = vsel %vm962, %v1237, 0
      %v1339 = vsel %vm962, %v1238, 0
      %v1342 = vsel %vm962, %v1257, 0
      %v1345 = vsel %vm962, %v1259, 0
      %v1348 = vsel %vm962, %v1261, 0
      %v1351 = vsel %vm962, %v1263, 0
      %v1354 = vsel %vm962, %v1265, 0
      %v1357 = vsel %vm962, %v1267, 0
      %v1360 = vsel %vm962, %v1269, 0
      %v1363 = vsel %vm962, %v1271, 0
      %v1366 = vsel %vm962, %v1273, 0
      %v1369 = vsel %vm962, %v1275, 0
      %v1372 = vsel %vm962, %v1277, 0
      %v1375 = vsel %vm962, %v1279, 0
      %v1378 = vsel %vm962, %v1281, 0
      %v1381 = vsel %vm962, %v1283, 0
      %v1384 = vsel %vm962, %v1285, 0
      %v1387 = vsel %vm962, %v1287, 0
      %v1390 = vsel %vm962, %v1289, 0
      %1392 = vmatprep.subr.bf16.mxu0 0
      %1393 = vmatpush1.bf16.xpose.msra.mxu0 %v1342
      %1394 = vmatprep.subr.bf16.mxu0 0
      %1395 = vmatpush1.bf16.xpose.msra.mxu0 %v1345
      %1396 = vmatprep.subr.bf16.mxu0 0
      %1397 = vmatpush1.bf16.xpose.msra.mxu0 %v1348
      %1398 = vmatprep.subr.bf16.mxu0 0
      %1399 = vmatpush1.bf16.xpose.msra.mxu0 %v1351
      %1400 = vmatprep.subr.bf16.mxu0 0
      %1401 = vmatpush1.bf16.xpose.msra.mxu0 %v1354
      %1402 = vmatprep.subr.bf16.mxu0 0
      %1403 = vmatpush1.bf16.xpose.msra.mxu0 %v1357
      %1404 = vmatprep.subr.bf16.mxu0 0
      %1405 = vmatpush1.bf16.xpose.msra.mxu0 %v1360
      %1406 = vmatprep.subr.bf16.mxu0 0
      %1407 = vmatpush1.bf16.xpose.msra.mxu0 %v1363
      %1408 = vmatprep.subr.bf16.mxu0 0
      %1409 = vmatpush1.bf16.xpose.msra.mxu0 %v1366
      %1410 = vmatprep.subr.bf16.mxu0 0
      %1411 = vmatpush1.bf16.xpose.msra.mxu0 %v1369
      %1412 = vmatprep.subr.bf16.mxu0 0
      %1413 = vmatpush1.bf16.xpose.msra.mxu0 %v1372
      %1414 = vmatprep.subr.bf16.mxu0 0
      %1415 = vmatpush1.bf16.xpose.msra.mxu0 %v1375
      %1416 = vmatprep.subr.bf16.mxu0 0
      %1417 = vmatpush1.bf16.xpose.msra.mxu0 %v1378
      %1418 = vmatprep.subr.bf16.mxu0 0
      %1419 = vmatpush1.bf16.xpose.msra.mxu0 %v1381
      %1420 = vmatprep.subr.bf16.mxu0 0
      %1421 = vmatpush1.bf16.xpose.msra.mxu0 %v1384
      %1422 = vmatprep.subr.bf16.mxu0 0
      %1423 = vmatpush1.bf16.xpose.msra.mxu0 %v1387
      %1424 = vmatprep.mubr.bf16.mxu0 0
      %1425 = vmatmul.mubr.bf16.gmra.mrb[0].mxu0 %v1291
      %v1426 = vpop.f32.mrb[0].mxu0
      %v1427 = vadd.f32 0.0, %v1426
      %v1428 = vpop.f32.mrb[0].mxu0
      %v1429 = vadd.f32 0.0, %v1428
      %v1430 = vpop.f32.mrb[0].mxu0
      %v1431 = vadd.f32 0.0, %v1430
      %v1432 = vpop.f32.mrb[0].mxu0
      %v1433 = vadd.f32 0.0, %v1432
      %1434 = vmatprep.mubr.bf16.mxu0 0
      %1435 = vmatmul.mubr.bf16.gmra.mrb[0].mxu0 %v1294
      %v1436 = vpop.f32.mrb[0].mxu0
      %v1437 = vadd.f32 0.0, %v1436
      %v1438 = vpop.f32.mrb[0].mxu0
      %v1439 = vadd.f32 0.0, %v1438
      %v1440 = vpop.f32.mrb[0].mxu0
      %v1441 = vadd.f32 0.0, %v1440
      %v1442 = vpop.f32.mrb[0].mxu0
      %v1443 = vadd.f32 0.0, %v1442
      %1444 = vmatprep.mubr.bf16.mxu0 0
      %1445 = vmatmul.mubr.bf16.gmra.mrb[0].mxu0 %v1297
      %v1446 = vpop.f32.mrb[0].mxu0
      %v1447 = vadd.f32 0.0, %v1446
      %v1448 = vpop.f32.mrb[0].mxu0
      %v1449 = vadd.f32 0.0, %v1448
      %v1450 = vpop.f32.mrb[0].mxu0
      %v1451 = vadd.f32 0.0, %v1450
      %v1452 = vpop.f32.mrb[0].mxu0
      %v1453 = vadd.f32 0.0, %v1452
      %1454 = vmatprep.mubr.bf16.mxu0 0
      %1455 = vmatmul.mubr.bf16.gmra.mrb[0].mxu0 %v1300
      %v1456 = vpop.f32.mrb[0].mxu0
      %v1457 = vadd.f32 0.0, %v1456
      %v1458 = vpop.f32.mrb[0].mxu0
      %v1459 = vadd.f32 0.0, %v1458
      %v1460 = vpop.f32.mrb[0].mxu0
      %v1461 = vadd.f32 0.0, %v1460
      %v1462 = vpop.f32.mrb[0].mxu0
      %v1463 = vadd.f32 0.0, %v1462
      %1464 = vmatprep.mubr.bf16.mxu0 0
      %1465 = vmatmul.mubr.bf16.gmra.mrb[0].mxu0 %v1303
      %v1466 = vpop.f32.mrb[0].mxu0
      %v1467 = vadd.f32 0.0, %v1466
      %v1468 = vpop.f32.mrb[0].mxu0
      %v1469 = vadd.f32 0.0, %v1468
      %v1470 = vpop.f32.mrb[0].mxu0
      %v1471 = vadd.f32 0.0, %v1470
      %v1472 = vpop.f32.mrb[0].mxu0
      %v1473 = vadd.f32 0.0, %v1472
      %1474 = vmatprep.mubr.bf16.mxu0 0
      %1475 = vmatmul.mubr.bf16.gmra.mrb[0].mxu0 %v1306
      %v1476 = vpop.f32.mrb[0].mxu0
      %v1477 = vadd.f32 0.0, %v1476
      %v1478 = vpop.f32.mrb[0].mxu0
      %v1479 = vadd.f32 0.0, %v1478
      %v1480 = vpop.f32.mrb[0].mxu0
      %v1481 = vadd.f32 0.0, %v1480
      %v1482 = vpop.f32.mrb[0].mxu0
      %v1483 = vadd.f32 0.0, %v1482
      %1484 = vmatprep.mubr.bf16.mxu0 0
      %1485 = vmatmul.mubr.bf16.gmra.mrb[0].mxu0 %v1309
      %v1486 = vpop.f32.mrb[0].mxu0
      %v1487 = vadd.f32 0.0, %v1486
      %v1488 = vpop.f32.mrb[0].mxu0
      %v1489 = vadd.f32 0.0, %v1488
      %v1490 = vpop.f32.mrb[0].mxu0
      %v1491 = vadd.f32 0.0, %v1490
      %v1492 = vpop.f32.mrb[0].mxu0
      %v1493 = vadd.f32 0.0, %v1492
      %1494 = vmatprep.mubr.bf16.mxu0 0
      %1495 = vmatmul.mubr.bf16.gmra.mrb[0].mxu0 %v1312
      %v1496 = vpop.f32.mrb[0].mxu0
      %v1497 = vadd.f32 0.0, %v1496
      %v1498 = vpop.f32.mrb[0].mxu0
      %v1499 = vadd.f32 0.0, %v1498
      %v1500 = vpop.f32.mrb[0].mxu0
      %v1501 = vadd.f32 0.0, %v1500
      %v1502 = vpop.f32.mrb[0].mxu0
      %v1503 = vadd.f32 0.0, %v1502
      %1504 = vmatprep.mubr.bf16.mxu0 0
      %1505 = vmatmul.mubr.bf16.gmra.mrb[0].mxu0 %v1315
      %v1506 = vpop.f32.mrb[0].mxu0
      %v1507 = vadd.f32 0.0, %v1506
      %v1508 = vpop.f32.mrb[0].mxu0
      %v1509 = vadd.f32 0.0, %v1508
      %v1510 = vpop.f32.mrb[0].mxu0
      %v1511 = vadd.f32 0.0, %v1510
      %v1512 = vpop.f32.mrb[0].mxu0
      %v1513 = vadd.f32 0.0, %v1512
      %1514 = vmatprep.mubr.bf16.mxu0 0
      %1515 = vmatmul.mubr.bf16.gmra.mrb[0].mxu0 %v1318
      %v1516 = vpop.f32.mrb[0].mxu0
      %v1517 = vadd.f32 0.0, %v1516
      %v1518 = vpop.f32.mrb[0].mxu0
      %v1519 = vadd.f32 0.0, %v1518
      %v1520 = vpop.f32.mrb[0].mxu0
      %v1521 = vadd.f32 0.0, %v1520
      %v1522 = vpop.f32.mrb[0].mxu0
      %v1523 = vadd.f32 0.0, %v1522
      %1524 = vmatprep.mubr.bf16.mxu0 0
      %1525 = vmatmul.mubr.bf16.gmra.mrb[0].mxu0 %v1321
      %v1526 = vpop.f32.mrb[0].mxu0
      %v1527 = vadd.f32 0.0, %v1526
      %v1528 = vpop.f32.mrb[0].mxu0
      %v1529 = vadd.f32 0.0, %v1528
      %v1530 = vpop.f32.mrb[0].mxu0
      %v1531 = vadd.f32 0.0, %v1530
      %v1532 = vpop.f32.mrb[0].mxu0
      %v1533 = vadd.f32 0.0, %v1532
      %1534 = vmatprep.mubr.bf16.mxu0 0
      %1535 = vmatmul.mubr.bf16.gmra.mrb[0].mxu0 %v1324
      %v1536 = vpop.f32.mrb[0].mxu0
      %v1537 = vadd.f32 0.0, %v1536
      %v1538 = vpop.f32.mrb[0].mxu0
      %v1539 = vadd.f32 0.0, %v1538
      %v1540 = vpop.f32.mrb[0].mxu0
      %v1541 = vadd.f32 0.0, %v1540
      %v1542 = vpop.f32.mrb[0].mxu0
      %v1543 = vadd.f32 0.0, %v1542
      %1544 = vmatprep.mubr.bf16.mxu0 0
      %1545 = vmatmul.mubr.bf16.gmra.mrb[0].mxu0 %v1327
      %v1546 = vpop.f32.mrb[0].mxu0
      %v1547 = vadd.f32 0.0, %v1546
      %v1548 = vpop.f32.mrb[0].mxu0
      %v1549 = vadd.f32 0.0, %v1548
      %v1550 = vpop.f32.mrb[0].mxu0
      %v1551 = vadd.f32 0.0, %v1550
      %v1552 = vpop.f32.mrb[0].mxu0
      %v1553 = vadd.f32 0.0, %v1552
      %1554 = vmatprep.mubr.bf16.mxu0 0
      %1555 = vmatmul.mubr.bf16.gmra.mrb[0].mxu0 %v1330
      %v1556 = vpop.f32.mrb[0].mxu0
      %v1557 = vadd.f32 0.0, %v1556
      %v1558 = vpop.f32.mrb[0].mxu0
      %v1559 = vadd.f32 0.0, %v1558
      %v1560 = vpop.f32.mrb[0].mxu0
      %v1561 = vadd.f32 0.0, %v1560
      %v1562 = vpop.f32.mrb[0].mxu0
      %v1563 = vadd.f32 0.0, %v1562
      %1564 = vmatprep.mubr.bf16.mxu0 0
      %1565 = vmatmul.mubr.bf16.gmra.mrb[0].mxu0 %v1333
      %v1566 = vpop.f32.mrb[0].mxu0
      %v1567 = vadd.f32 0.0, %v1566
      %v1568 = vpop.f32.mrb[0].mxu0
      %v1569 = vadd.f32 0.0, %v1568
      %v1570 = vpop.f32.mrb[0].mxu0
      %v1571 = vadd.f32 0.0, %v1570
      %v1572 = vpop.f32.mrb[0].mxu0
      %v1573 = vadd.f32 0.0, %v1572
      %1574 = vmatprep.mubr.bf16.mxu0 0
      %1575 = vmatmul.mubr.bf16.gmra.mrb[0].mxu0 %v1336
      %v1576 = vpop.f32.mrb[0].mxu0
      %v1577 = vadd.f32 0.0, %v1576
      %v1578 = vpop.f32.mrb[0].mxu0
      %v1579 = vadd.f32 0.0, %v1578
      %v1580 = vpop.f32.mrb[0].mxu0
      %v1581 = vadd.f32 0.0, %v1580
      %v1582 = vpop.f32.mrb[0].mxu0
      %v1583 = vadd.f32 0.0, %v1582
      %1584 = vmatprep.mubr.bf16.mxu0 0
      %1585 = vmatmul.mubr.bf16.gmra.mrb[0].mxu0 %v1339
      %v1586 = vpop.f32.mrb[0].mxu0
      %v1587 = vadd.f32 0.0, %v1586
      %v1588 = vpop.f32.mrb[0].mxu0
      %v1589 = vadd.f32 0.0, %v1588
      %v1590 = vpop.f32.mrb[0].mxu0
      %v1591 = vpop.f32.mrb[0].mxu0
      %1592 = vdwg.mxu0
      %1593 = vmatprep.subr.bf16.mxu0 0
      %1594 = vmatpush1.bf16.xpose.msra.mxu0 %v1390
      %1595 = vmatprep.subr.bf16.mxu0 0
      %1596 = vmatpush1.bf16.xpose.msra.mxu0 0
      %1597 = vmatprep.subr.bf16.mxu0 0
      %1598 = vmatpush1.bf16.xpose.msra.mxu0 0
      %1599 = vmatprep.subr.bf16.mxu0 0
      %1600 = vmatpush1.bf16.xpose.msra.mxu0 0
      %1601 = vmatprep.subr.bf16.mxu0 0
      %1602 = vmatpush1.bf16.xpose.msra.mxu0 0
      %1603 = vmatprep.subr.bf16.mxu0 0
      %1604 = vmatpush1.bf16.xpose.msra.mxu0 0
      %1605 = vmatprep.subr.bf16.mxu0 0
      %1606 = vmatpush1.bf16.xpose.msra.mxu0 0
      %1607 = vmatprep.subr.bf16.mxu0 0
      %1608 = vmatpush1.bf16.xpose.msra.mxu0 0
      %1609 = vmatprep.subr.bf16.mxu0 0
      %1610 = vmatpush1.bf16.xpose.msra.mxu0 0
      %1611 = vmatprep.subr.bf16.mxu0 0
      %1612 = vmatpush1.bf16.xpose.msra.mxu0 0
      %1613 = vmatprep.subr.bf16.mxu0 0
      %1614 = vmatpush1.bf16.xpose.msra.mxu0 0
      %1615 = vmatprep.subr.bf16.mxu0 0
      %1616 = vmatpush1.bf16.xpose.msra.mxu0 0
      %1617 = vmatprep.subr.bf16.mxu0 0
      %1618 = vmatpush1.bf16.xpose.msra.mxu0 0
      %1619 = vmatprep.subr.bf16.mxu0 0
      %1620 = vmatpush1.bf16.xpose.msra.mxu0 0
      %1621 = vmatprep.subr.bf16.mxu0 0
      %1622 = vmatpush1.bf16.xpose.msra.mxu0 0
      %1623 = vmatprep.subr.bf16.mxu0 0
      %1624 = vmatpush1.bf16.xpose.msra.mxu0 0
      %1625 = vmatprep.mubr.bf16.mxu0 0
      %1626 = vmatmul.mubr.bf16.gmra.mrb[0].mxu0 %v1291
      %v1627 = vpop.f32.mrb[0].mxu0
      %v1628 = vadd.f32 0.0, %v1627
      %v1629 = vpop.f32.mrb[0].mxu0
      %v1630 = vpop.f32.mrb[0].mxu0
      %v1631 = vadd.f32 0.0, %v1630
      %v1632 = vpop.f32.mrb[0].mxu0
      %1633 = vmatprep.mubr.bf16.mxu0 0
      %1634 = vmatmul.mubr.bf16.gmra.mrb[0].mxu0 %v1294
      %v1635 = vpop.f32.mrb[0].mxu0
      %v1636 = vadd.f32 0.0, %v1635
      %v1637 = vpop.f32.mrb[0].mxu0
      %v1638 = vpop.f32.mrb[0].mxu0
      %v1639 = vadd.f32 0.0, %v1638
      %v1640 = vpop.f32.mrb[0].mxu0
      %1641 = vmatprep.mubr.bf16.mxu0 0
      %1642 = vmatmul.mubr.bf16.gmra.mrb[0].mxu0 %v1297
      %v1643 = vpop.f32.mrb[0].mxu0
      %v1644 = vadd.f32 0.0, %v1643
      %v1645 = vpop.f32.mrb[0].mxu0
      %v1646 = vpop.f32.mrb[0].mxu0
      %v1647 = vadd.f32 0.0, %v1646
      %v1648 = vpop.f32.mrb[0].mxu0
      %1649 = vmatprep.mubr.bf16.mxu0 0
      %1650 = vmatmul.mubr.bf16.gmra.mrb[0].mxu0 %v1300
      %v1651 = vpop.f32.mrb[0].mxu0
      %v1652 = vadd.f32 0.0, %v1651
      %v1653 = vpop.f32.mrb[0].mxu0
      %v1654 = vpop.f32.mrb[0].mxu0
      %v1655 = vadd.f32 0.0, %v1654
      %v1656 = vpop.f32.mrb[0].mxu0
      %1657 = vmatprep.mubr.bf16.mxu0 0
      %1658 = vmatmul.mubr.bf16.gmra.mrb[0].mxu0 %v1303
      %v1659 = vpop.f32.mrb[0].mxu0
      %v1660 = vadd.f32 0.0, %v1659
      %v1661 = vpop.f32.mrb[0].mxu0
      %v1662 = vpop.f32.mrb[0].mxu0
      %v1663 = vadd.f32 0.0, %v1662
      %v1664 = vpop.f32.mrb[0].mxu0
      %1665 = vmatprep.mubr.bf16.mxu0 0
      %1666 = vmatmul.mubr.bf16.gmra.mrb[0].mxu0 %v1306
      %v1667 = vpop.f32.mrb[0].mxu0
      %v1668 = vadd.f32 0.0, %v1667
      %v1669 = vpop.f32.mrb[0].mxu0
      %v1670 = vpop.f32.mrb[0].mxu0
      %v1671 = vadd.f32 0.0, %v1670
      %v1672 = vpop.f32.mrb[0].mxu0
      %1673 = vmatprep.mubr.bf16.mxu0 0
      %1674 = vmatmul.mubr.bf16.gmra.mrb[0].mxu0 %v1309
      %v1675 = vpop.f32.mrb[0].mxu0
      %v1676 = vadd.f32 0.0, %v1675
      %v1677 = vpop.f32.mrb[0].mxu0
      %v1678 = vpop.f32.mrb[0].mxu0
      %v1679 = vadd.f32 0.0, %v1678
      %v1680 = vpop.f32.mrb[0].mxu0
      %1681 = vmatprep.mubr.bf16.mxu0 0
      %1682 = vmatmul.mubr.bf16.gmra.mrb[0].mxu0 %v1312
      %v1683 = vpop.f32.mrb[0].mxu0
      %v1684 = vadd.f32 0.0, %v1683
      %v1685 = vpop.f32.mrb[0].mxu0
      %v1686 = vpop.f32.mrb[0].mxu0
      %v1687 = vadd.f32 0.0, %v1686
      %v1688 = vpop.f32.mrb[0].mxu0
      %1689 = vmatprep.mubr.bf16.mxu0 0
      %1690 = vmatmul.mubr.bf16.gmra.mrb[0].mxu0 %v1315
      %v1691 = vpop.f32.mrb[0].mxu0
      %v1692 = vadd.f32 0.0, %v1691
      %v1693 = vpop.f32.mrb[0].mxu0
      %v1694 = vpop.f32.mrb[0].mxu0
      %v1695 = vadd.f32 0.0, %v1694
      %v1696 = vpop.f32.mrb[0].mxu0
      %1697 = vmatprep.mubr.bf16.mxu0 0
      %1698 = vmatmul.mubr.bf16.gmra.mrb[0].mxu0 %v1318
      %v1699 = vpop.f32.mrb[0].mxu0
      %v1700 = vadd.f32 0.0, %v1699
      %v1701 = vpop.f32.mrb[0].mxu0
      %v1702 = vpop.f32.mrb[0].mxu0
      %v1703 = vadd.f32 0.0, %v1702
      %v1704 = vpop.f32.mrb[0].mxu0
      %1705 = vmatprep.mubr.bf16.mxu0 0
      %1706 = vmatmul.mubr.bf16.gmra.mrb[0].mxu0 %v1321
      %v1707 = vpop.f32.mrb[0].mxu0
      %v1708 = vadd.f32 0.0, %v1707
      %v1709 = vpop.f32.mrb[0].mxu0
      %v1710 = vpop.f32.mrb[0].mxu0
      %v1711 = vadd.f32 0.0, %v1710
      %v1712 = vpop.f32.mrb[0].mxu0
      %1713 = vmatprep.mubr.bf16.mxu0 0
      %1714 = vmatmul.mubr.bf16.gmra.mrb[0].mxu0 %v1324
      %v1715 = vpop.f32.mrb[0].mxu0
      %v1716 = vadd.f32 0.0, %v1715
      %v1717 = vpop.f32.mrb[0].mxu0
      %v1718 = vpop.f32.mrb[0].mxu0
      %v1719 = vadd.f32 0.0, %v1718
      %v1720 = vpop.f32.mrb[0].mxu0
      %1721 = vmatprep.mubr.bf16.mxu0 0
      %1722 = vmatmul.mubr.bf16.gmra.mrb[0].mxu0 %v1327
      %v1723 = vpop.f32.mrb[0].mxu0
      %v1724 = vadd.f32 0.0, %v1723
      %v1725 = vpop.f32.mrb[0].mxu0
      %v1726 = vpop.f32.mrb[0].mxu0
      %v1727 = vadd.f32 0.0, %v1726
      %v1728 = vpop.f32.mrb[0].mxu0
      %1729 = vmatprep.mubr.bf16.mxu0 0
      %1730 = vmatmul.mubr.bf16.gmra.mrb[0].mxu0 %v1330
      %v1731 = vpop.f32.mrb[0].mxu0
      %v1732 = vadd.f32 0.0, %v1731
      %v1733 = vpop.f32.mrb[0].mxu0
      %v1734 = vpop.f32.mrb[0].mxu0
      %v1735 = vadd.f32 0.0, %v1734
      %v1736 = vpop.f32.mrb[0].mxu0
      %1737 = vmatprep.mubr.bf16.mxu0 0
      %1738 = vmatmul.mubr.bf16.gmra.mrb[0].mxu0 %v1333
      %v1739 = vpop.f32.mrb[0].mxu0
      %v1740 = vadd.f32 0.0, %v1739
      %v1741 = vpop.f32.mrb[0].mxu0
      %v1742 = vpop.f32.mrb[0].mxu0
      %v1743 = vadd.f32 0.0, %v1742
      %v1744 = vpop.f32.mrb[0].mxu0
      %1745 = vmatprep.mubr.bf16.mxu0 0
      %1746 = vmatmul.mubr.bf16.gmra.mrb[0].mxu0 %v1336
      %v1747 = vpop.f32.mrb[0].mxu0
      %v1748 = vadd.f32 0.0, %v1747
      %v1749 = vpop.f32.mrb[0].mxu0
      %v1750 = vpop.f32.mrb[0].mxu0
      %v1751 = vadd.f32 0.0, %v1750
      %v1752 = vpop.f32.mrb[0].mxu0
      %1753 = vmatprep.mubr.bf16.mxu0 0
      %1754 = vmatmul.mubr.bf16.gmra.mrb[0].mxu0 %v1339
      %v1755 = vpop.f32.mrb[0].mxu0
      %v1756 = vadd.f32 0.0, %v1755
      %v1757 = vpop.f32.mrb[0].mxu0
      %v1758 = vpop.f32.mrb[0].mxu0
      %v1759 = vpop.f32.mrb[0].mxu0
      %1760 = vdwg.mxu0
      %v1762 = vlaneseq
      %v1763 = vshrl.u32 %v1762, 7
      %v1764 = vsub.s32 0, %v1763
      %v1765 = vrot.slane %v654, %v1764
      %v1766 = vlaneseq
      %v1767 = vshrl.u32 %v1766, 7
      %v1768 = vsub.s32 1, %v1767
      %v1769 = vrot.slane %v654, %v1768
      %v1770 = vlaneseq
      %v1771 = vshrl.u32 %v1770, 7
      %v1772 = vsub.s32 2, %v1771
      %v1773 = vrot.slane %v654, %v1772
      %v1777 = vsel %vm800, %v1765, -1e+30
      %v1778 = vsel %vm801, %v1769, -1e+30
      %v1779 = vsel %vm802, %v1773, -1e+30
      %v1780 = vsel %vm803, %v1765, -1e+30
      %v1781 = vsel %vm804, %v1769, -1e+30
      %v1782 = vsel %vm805, %v1773, -1e+30
      %v1783 = vsel %vm806, %v1765, -1e+30
      %v1784 = vsel %vm807, %v1769, -1e+30
      %v1785 = vsel %vm808, %v1773, -1e+30
      %v1786 = vsel %vm809, %v1765, -1e+30
      %v1787 = vsel %vm810, %v1769, -1e+30
      %v1788 = vsel %vm811, %v1773, -1e+30
      %v1789 = vsel %vm812, %v1765, -1e+30
      %v1790 = vsel %vm813, %v1769, -1e+30
      %v1791 = vsel %vm814, %v1773, -1e+30
      %v1792 = vsel %vm815, %v1765, -1e+30
      %v1793 = vsel %vm816, %v1769, -1e+30
      %v1794 = vsel %vm817, %v1773, -1e+30
      %v1795 = vsel %vm818, %v1765, -1e+30
      %v1796 = vsel %vm819, %v1769, -1e+30
      %v1797 = vsel %vm820, %v1773, -1e+30
      %v1798 = vsel %vm821, %v1765, -1e+30
      %v1799 = vsel %vm822, %v1769, -1e+30
      %v1800 = vsel %vm823, %v1773, -1e+30
      %v1801 = vsel %vm824, %v1765, -1e+30
      %v1802 = vsel %vm825, %v1769, -1e+30
      %v1803 = vsel %vm826, %v1773, -1e+30
      %v1804 = vsel %vm827, %v1765, -1e+30
      %v1805 = vsel %vm828, %v1769, -1e+30
      %v1806 = vsel %vm829, %v1773, -1e+30
      %v1807 = vsel %vm830, %v1765, -1e+30
      %v1808 = vsel %vm831, %v1769, -1e+30
      %v1809 = vsel %vm832, %v1773, -1e+30
      %v1810 = vsel %vm833, %v1765, -1e+30
      %v1811 = vsel %vm834, %v1769, -1e+30
      %v1812 = vsel %vm835, %v1773, -1e+30
      %v1813 = vsel %vm836, %v1765, -1e+30
      %v1814 = vsel %vm837, %v1769, -1e+30
      %v1815 = vsel %vm838, %v1773, -1e+30
      %v1816 = vsel %vm839, %v1765, -1e+30
      %v1817 = vsel %vm840, %v1769, -1e+30
      %v1818 = vsel %vm841, %v1773, -1e+30
      %v1819 = vsel %vm842, %v1765, -1e+30
      %v1820 = vsel %vm843, %v1769, -1e+30
      %v1821 = vsel %vm844, %v1773, -1e+30
      %v1822 = vsel %vm845, %v1765, -1e+30
      %v1823 = vsel %vm846, %v1769, -1e+30
      %v1824 = vsel %vm847, %v1773, -1e+30
      %v1825 = vsel %vm848, %v1765, -1e+30
      %v1826 = vsel %vm849, %v1769, -1e+30
      %v1827 = vsel %vm850, %v1773, -1e+30
      %v1828 = vsel %vm851, %v1765, -1e+30
      %v1829 = vsel %vm852, %v1769, -1e+30
      %v1830 = vsel %vm853, %v1773, -1e+30
      %v1831 = vsel %vm854, %v1765, -1e+30
      %v1832 = vsel %vm855, %v1769, -1e+30
      %v1833 = vsel %vm856, %v1773, -1e+30
      %v1834 = vsel %vm857, %v1765, -1e+30
      %v1835 = vsel %vm858, %v1769, -1e+30
      %v1836 = vsel %vm859, %v1773, -1e+30
      %v1837 = vsel %vm860, %v1765, -1e+30
      %v1838 = vsel %vm861, %v1769, -1e+30
      %v1839 = vsel %vm862, %v1773, -1e+30
      %v1840 = vsel %vm863, %v1765, -1e+30
      %v1841 = vsel %vm864, %v1769, -1e+30
      %v1842 = vsel %vm865, %v1773, -1e+30
      %v1843 = vsel %vm866, %v1765, -1e+30
      %v1844 = vsel %vm867, %v1769, -1e+30
      %v1845 = vsel %vm868, %v1773, -1e+30
      %v1846 = vsel %vm869, %v1765, -1e+30
      %v1847 = vsel %vm870, %v1769, -1e+30
      %v1848 = vsel %vm871, %v1773, -1e+30
      %v1849 = vsel %vm872, %v1765, -1e+30
      %v1850 = vsel %vm873, %v1769, -1e+30
      %v1851 = vsel %vm874, %v1773, -1e+30
      %v1852 = vsel %vm875, %v1765, -1e+30
      %v1853 = vsel %vm876, %v1769, -1e+30
      %v1854 = vsel %vm877, %v1773, -1e+30
      %v1855 = vsel %vm878, %v1765, -1e+30
      %v1856 = vsel %vm879, %v1769, -1e+30
      %v1857 = vsel %vm880, %v1773, -1e+30
      %v1858 = vsel %vm881, %v1765, -1e+30
      %v1859 = vsel %vm882, %v1769, -1e+30
      %v1860 = vsel %vm883, %v1773, -1e+30
      %v1861 = vsel %vm884, %v1765, -1e+30
      %v1862 = vsel %vm885, %v1769, -1e+30
      %v1863 = vsel %vm886, %v1773, -1e+30
      %v1864 = vsel %vm887, %v1765, -1e+30
      %v1865 = vsel %vm888, %v1769, -1e+30
      %v1866 = vsel %vm889, %v1773, -1e+30
      %v1867 = vsel %vm890, %v1765, -1e+30
      %v1868 = vsel %vm891, %v1769, -1e+30
      %v1869 = vsel %vm892, %v1773, -1e+30
      %v1870 = vsel %vm893, %v1765, -1e+30
      %v1871 = vsel %vm894, %v1769, -1e+30
      %v1872 = vsel %vm895, %v1773, -1e+30
      %v1873 = vsel %vm896, %v1765, -1e+30
      %v1874 = vsel %vm897, %v1769, -1e+30
      %v1875 = vsel %vm898, %v1773, -1e+30
      %v1876 = vmul.f32 %v1427, 0.14744195
      %v1877 = vmul.f32 %v1429, 0.14744195
      %v1878 = vmul.f32 %v1628, 0.14744195
      %v1879 = vmul.f32 %v1431, 0.14744195
      %v1880 = vmul.f32 %v1433, 0.14744195
      %v1881 = vmul.f32 %v1631, 0.14744195
      %v1882 = vmul.f32 %v1437, 0.14744195
      %v1883 = vmul.f32 %v1439, 0.14744195
      %v1884 = vmul.f32 %v1636, 0.14744195
      %v1885 = vmul.f32 %v1441, 0.14744195
      %v1886 = vmul.f32 %v1443, 0.14744195
      %v1887 = vmul.f32 %v1639, 0.14744195
      %v1888 = vmul.f32 %v1447, 0.14744195
      %v1889 = vmul.f32 %v1449, 0.14744195
      %v1890 = vmul.f32 %v1644, 0.14744195
      %v1891 = vmul.f32 %v1451, 0.14744195
      %v1892 = vmul.f32 %v1453, 0.14744195
      %v1893 = vmul.f32 %v1647, 0.14744195
      %v1894 = vmul.f32 %v1457, 0.14744195
      %v1895 = vmul.f32 %v1459, 0.14744195
      %v1896 = vmul.f32 %v1652, 0.14744195
      %v1897 = vmul.f32 %v1461, 0.14744195
      %v1898 = vmul.f32 %v1463, 0.14744195
      %v1899 = vmul.f32 %v1655, 0.14744195
      %v1900 = vmul.f32 %v1467, 0.14744195
      %v1901 = vmul.f32 %v1469, 0.14744195
      %v1902 = vmul.f32 %v1660, 0.14744195
      %v1903 = vmul.f32 %v1471, 0.14744195
      %v1904 = vmul.f32 %v1473, 0.14744195
      %v1905 = vmul.f32 %v1663, 0.14744195
      %v1906 = vmul.f32 %v1477, 0.14744195
      %v1907 = vmul.f32 %v1479, 0.14744195
      %v1908 = vmul.f32 %v1668, 0.14744195
      %v1909 = vmul.f32 %v1481, 0.14744195
      %v1910 = vmul.f32 %v1483, 0.14744195
      %v1911 = vmul.f32 %v1671, 0.14744195
      %v1912 = vmul.f32 %v1487, 0.14744195
      %v1913 = vmul.f32 %v1489, 0.14744195
      %v1914 = vmul.f32 %v1676, 0.14744195
      %v1915 = vmul.f32 %v1491, 0.14744195
      %v1916 = vmul.f32 %v1493, 0.14744195
      %v1917 = vmul.f32 %v1679, 0.14744195
      %v1918 = vmul.f32 %v1497, 0.14744195
      %v1919 = vmul.f32 %v1499, 0.14744195
      %v1920 = vmul.f32 %v1684, 0.14744195
      %v1921 = vmul.f32 %v1501, 0.14744195
      %v1922 = vmul.f32 %v1503, 0.14744195
      %v1923 = vmul.f32 %v1687, 0.14744195
      %v1924 = vmul.f32 %v1507, 0.14744195
      %v1925 = vmul.f32 %v1509, 0.14744195
      %v1926 = vmul.f32 %v1692, 0.14744195
      %v1927 = vmul.f32 %v1511, 0.14744195
      %v1928 = vmul.f32 %v1513, 0.14744195
      %v1929 = vmul.f32 %v1695, 0.14744195
      %v1930 = vmul.f32 %v1517, 0.14744195
      %v1931 = vmul.f32 %v1519, 0.14744195
      %v1932 = vmul.f32 %v1700, 0.14744195
      %v1933 = vmul.f32 %v1521, 0.14744195
      %v1934 = vmul.f32 %v1523, 0.14744195
      %v1935 = vmul.f32 %v1703, 0.14744195
      %v1936 = vmul.f32 %v1527, 0.14744195
      %v1937 = vmul.f32 %v1529, 0.14744195
      %v1938 = vmul.f32 %v1708, 0.14744195
      %v1939 = vmul.f32 %v1531, 0.14744195
      %v1940 = vmul.f32 %v1533, 0.14744195
      %v1941 = vmul.f32 %v1711, 0.14744195
      %v1942 = vmul.f32 %v1537, 0.14744195
      %v1943 = vmul.f32 %v1539, 0.14744195
      %v1944 = vmul.f32 %v1716, 0.14744195
      %v1945 = vmul.f32 %v1541, 0.14744195
      %v1946 = vmul.f32 %v1543, 0.14744195
      %v1947 = vmul.f32 %v1719, 0.14744195
      %v1948 = vmul.f32 %v1547, 0.14744195
      %v1949 = vmul.f32 %v1549, 0.14744195
      %v1950 = vmul.f32 %v1724, 0.14744195
      %v1951 = vmul.f32 %v1551, 0.14744195
      %v1952 = vmul.f32 %v1553, 0.14744195
      %v1953 = vmul.f32 %v1727, 0.14744195
      %v1954 = vmul.f32 %v1557, 0.14744195
      %v1955 = vmul.f32 %v1559, 0.14744195
      %v1956 = vmul.f32 %v1732, 0.14744195
      %v1957 = vmul.f32 %v1561, 0.14744195
      %v1958 = vmul.f32 %v1563, 0.14744195
      %v1959 = vmul.f32 %v1735, 0.14744195
      %v1960 = vmul.f32 %v1567, 0.14744195
      %v1961 = vmul.f32 %v1569, 0.14744195
      %v1962 = vmul.f32 %v1740, 0.14744195
      %v1963 = vmul.f32 %v1571, 0.14744195
      %v1964 = vmul.f32 %v1573, 0.14744195
      %v1965 = vmul.f32 %v1743, 0.14744195
      %v1966 = vmul.f32 %v1577, 0.14744195
      %v1967 = vmul.f32 %v1579, 0.14744195
      %v1968 = vmul.f32 %v1748, 0.14744195
      %v1969 = vmul.f32 %v1581, 0.14744195
      %v1970 = vmul.f32 %v1583, 0.14744195
      %v1971 = vmul.f32 %v1751, 0.14744195
      %v1972 = vmul.f32 %v1587, 0.14744195
      %v1973 = vmul.f32 %v1589, 0.14744195
      %v1974 = vmul.f32 %v1756, 0.14744195
      %v1975 = vadd.f32 %v1876, %v1777
      %v1976 = vadd.f32 %v1877, %v1778
      %v1977 = vadd.f32 %v1878, %v1779
      %v1978 = vadd.f32 %v1879, %v1780
      %v1979 = vadd.f32 %v1880, %v1781
      %v1980 = vadd.f32 %v1881, %v1782
      %v1981 = vadd.f32 %v1882, %v1783
      %v1982 = vadd.f32 %v1883, %v1784
      %v1983 = vadd.f32 %v1884, %v1785
      %v1984 = vadd.f32 %v1885, %v1786
      %v1985 = vadd.f32 %v1886, %v1787
      %v1986 = vadd.f32 %v1887, %v1788
      %v1987 = vadd.f32 %v1888, %v1789
      %v1988 = vadd.f32 %v1889, %v1790
      %v1989 = vadd.f32 %v1890, %v1791
      %v1990 = vadd.f32 %v1891, %v1792
      %v1991 = vadd.f32 %v1892, %v1793
      %v1992 = vadd.f32 %v1893, %v1794
      %v1993 = vadd.f32 %v1894, %v1795
      %v1994 = vadd.f32 %v1895, %v1796
      %v1995 = vadd.f32 %v1896, %v1797
      %v1996 = vadd.f32 %v1897, %v1798
      %v1997 = vadd.f32 %v1898, %v1799
      %v1998 = vadd.f32 %v1899, %v1800
      %v1999 = vadd.f32 %v1900, %v1801
      %v2000 = vadd.f32 %v1901, %v1802
      %v2001 = vadd.f32 %v1902, %v1803
      %v2002 = vadd.f32 %v1903, %v1804
      %v2003 = vadd.f32 %v1904, %v1805
      %v2004 = vadd.f32 %v1905, %v1806
      %v2005 = vadd.f32 %v1906, %v1807
      %v2006 = vadd.f32 %v1907, %v1808
      %v2007 = vadd.f32 %v1908, %v1809
      %v2008 = vadd.f32 %v1909, %v1810
      %v2009 = vadd.f32 %v1910, %v1811
      %v2010 = vadd.f32 %v1911, %v1812
      %v2011 = vadd.f32 %v1912, %v1813
      %v2012 = vadd.f32 %v1913, %v1814
      %v2013 = vadd.f32 %v1914, %v1815
      %v2014 = vadd.f32 %v1915, %v1816
      %v2015 = vadd.f32 %v1916, %v1817
      %v2016 = vadd.f32 %v1917, %v1818
      %v2017 = vadd.f32 %v1918, %v1819
      %v2018 = vadd.f32 %v1919, %v1820
      %v2019 = vadd.f32 %v1920, %v1821
      %v2020 = vadd.f32 %v1921, %v1822
      %v2021 = vadd.f32 %v1922, %v1823
      %v2022 = vadd.f32 %v1923, %v1824
      %v2023 = vadd.f32 %v1924, %v1825
      %v2024 = vadd.f32 %v1925, %v1826
      %v2025 = vadd.f32 %v1926, %v1827
      %v2026 = vadd.f32 %v1927, %v1828
      %v2027 = vadd.f32 %v1928, %v1829
      %v2028 = vadd.f32 %v1929, %v1830
      %v2029 = vadd.f32 %v1930, %v1831
      %v2030 = vadd.f32 %v1931, %v1832
      %v2031 = vadd.f32 %v1932, %v1833
      %v2032 = vadd.f32 %v1933, %v1834
      %v2033 = vadd.f32 %v1934, %v1835
      %v2034 = vadd.f32 %v1935, %v1836
      %v2035 = vadd.f32 %v1936, %v1837
      %v2036 = vadd.f32 %v1937, %v1838
      %v2037 = vadd.f32 %v1938, %v1839
      %v2038 = vadd.f32 %v1939, %v1840
      %v2039 = vadd.f32 %v1940, %v1841
      %v2040 = vadd.f32 %v1941, %v1842
      %v2041 = vadd.f32 %v1942, %v1843
      %v2042 = vadd.f32 %v1943, %v1844
      %v2043 = vadd.f32 %v1944, %v1845
      %v2044 = vadd.f32 %v1945, %v1846
      %v2045 = vadd.f32 %v1946, %v1847
      %v2046 = vadd.f32 %v1947, %v1848
      %v2047 = vadd.f32 %v1948, %v1849
      %v2048 = vadd.f32 %v1949, %v1850
      %v2049 = vadd.f32 %v1950, %v1851
      %v2050 = vadd.f32 %v1951, %v1852
      %v2051 = vadd.f32 %v1952, %v1853
      %v2052 = vadd.f32 %v1953, %v1854
      %v2053 = vadd.f32 %v1954, %v1855
      %v2054 = vadd.f32 %v1955, %v1856
      %v2055 = vadd.f32 %v1956, %v1857
      %v2056 = vadd.f32 %v1957, %v1858
      %v2057 = vadd.f32 %v1958, %v1859
      %v2058 = vadd.f32 %v1959, %v1860
      %v2059 = vadd.f32 %v1960, %v1861
      %v2060 = vadd.f32 %v1961, %v1862
      %v2061 = vadd.f32 %v1962, %v1863
      %v2062 = vadd.f32 %v1963, %v1864
      %v2063 = vadd.f32 %v1964, %v1865
      %v2064 = vadd.f32 %v1965, %v1866
      %v2065 = vadd.f32 %v1966, %v1867
      %v2066 = vadd.f32 %v1967, %v1868
      %v2067 = vadd.f32 %v1968, %v1869
      %v2068 = vadd.f32 %v1969, %v1870
      %v2069 = vadd.f32 %v1970, %v1871
      %v2070 = vadd.f32 %v1971, %v1872
      %v2071 = vadd.f32 %v1972, %v1873
      %v2072 = vadd.f32 %v1973, %v1874
      %v2073 = vadd.f32 %v1974, %v1875
      %v2074 = vmax.f32 %v1975, %v1976
      %vm2075 = vcmask 64512
      %v2076 = vsel %vm2075, %v1977, -inf
      %v2077 = vmax.f32 %v2074, %v2076
      %2078 = vmax.xlane.f32.xlu0 %v2077
      %v2079 = vpop.xlane.xlu0 %2078
      %v2080 = vmax.f32 %v1978, %v1979
      %v2081 = vsel %vm2075, %v1980, -inf
      %v2082 = vmax.f32 %v2080, %v2081
      %2083 = vmax.xlane.f32.xlu0 %v2082
      %v2084 = vpop.xlane.xlu0 %2083
      %v2085 = vmax.f32 %v1981, %v1982
      %v2086 = vsel %vm2075, %v1983, -inf
      %v2087 = vmax.f32 %v2085, %v2086
      %2088 = vmax.xlane.f32.xlu0 %v2087
      %v2089 = vpop.xlane.xlu0 %2088
      %v2090 = vmax.f32 %v1984, %v1985
      %v2091 = vsel %vm2075, %v1986, -inf
      %v2092 = vmax.f32 %v2090, %v2091
      %2093 = vmax.xlane.f32.xlu0 %v2092
      %v2094 = vpop.xlane.xlu0 %2093
      %v2095 = vmax.f32 %v1987, %v1988
      %v2096 = vsel %vm2075, %v1989, -inf
      %v2097 = vmax.f32 %v2095, %v2096
      %2098 = vmax.xlane.f32.xlu0 %v2097
      %v2099 = vpop.xlane.xlu0 %2098
      %v2100 = vmax.f32 %v1990, %v1991
      %v2101 = vsel %vm2075, %v1992, -inf
      %v2102 = vmax.f32 %v2100, %v2101
      %2103 = vmax.xlane.f32.xlu0 %v2102
      %v2104 = vpop.xlane.xlu0 %2103
      %v2105 = vmax.f32 %v1993, %v1994
      %v2106 = vsel %vm2075, %v1995, -inf
      %v2107 = vmax.f32 %v2105, %v2106
      %2108 = vmax.xlane.f32.xlu0 %v2107
      %v2109 = vpop.xlane.xlu0 %2108
      %v2110 = vmax.f32 %v1996, %v1997
      %v2111 = vsel %vm2075, %v1998, -inf
      %v2112 = vmax.f32 %v2110, %v2111
      %2113 = vmax.xlane.f32.xlu0 %v2112
      %v2114 = vpop.xlane.xlu0 %2113
      %v2115 = vmax.f32 %v1999, %v2000
      %v2116 = vsel %vm2075, %v2001, -inf
      %v2117 = vmax.f32 %v2115, %v2116
      %2118 = vmax.xlane.f32.xlu0 %v2117
      %v2119 = vpop.xlane.xlu0 %2118
      %v2120 = vmax.f32 %v2002, %v2003
      %v2121 = vsel %vm2075, %v2004, -inf
      %v2122 = vmax.f32 %v2120, %v2121
      %2123 = vmax.xlane.f32.xlu0 %v2122
      %v2124 = vpop.xlane.xlu0 %2123
      %v2125 = vmax.f32 %v2005, %v2006
      %v2126 = vsel %vm2075, %v2007, -inf
      %v2127 = vmax.f32 %v2125, %v2126
      %2128 = vmax.xlane.f32.xlu0 %v2127
      %v2129 = vpop.xlane.xlu0 %2128
      %v2130 = vmax.f32 %v2008, %v2009
      %v2131 = vsel %vm2075, %v2010, -inf
      %v2132 = vmax.f32 %v2130, %v2131
      %2133 = vmax.xlane.f32.xlu0 %v2132
      %v2134 = vpop.xlane.xlu0 %2133
      %v2135 = vmax.f32 %v2011, %v2012
      %v2136 = vsel %vm2075, %v2013, -inf
      %v2137 = vmax.f32 %v2135, %v2136
      %2138 = vmax.xlane.f32.xlu0 %v2137
      %v2139 = vpop.xlane.xlu0 %2138
      %v2140 = vmax.f32 %v2014, %v2015
      %v2141 = vsel %vm2075, %v2016, -inf
      %v2142 = vmax.f32 %v2140, %v2141
      %2143 = vmax.xlane.f32.xlu0 %v2142
      %v2144 = vpop.xlane.xlu0 %2143
      %v2145 = vmax.f32 %v2017, %v2018
      %v2146 = vsel %vm2075, %v2019, -inf
      %v2147 = vmax.f32 %v2145, %v2146
      %2148 = vmax.xlane.f32.xlu0 %v2147
      %v2149 = vpop.xlane.xlu0 %2148
      %v2150 = vmax.f32 %v2020, %v2021
      %v2151 = vsel %vm2075, %v2022, -inf
      %v2152 = vmax.f32 %v2150, %v2151
      %2153 = vmax.xlane.f32.xlu0 %v2152
      %v2154 = vpop.xlane.xlu0 %2153
      %v2155 = vmax.f32 %v2023, %v2024
      %v2156 = vsel %vm2075, %v2025, -inf
      %v2157 = vmax.f32 %v2155, %v2156
      %2158 = vmax.xlane.f32.xlu0 %v2157
      %v2159 = vpop.xlane.xlu0 %2158
      %v2160 = vmax.f32 %v2026, %v2027
      %v2161 = vsel %vm2075, %v2028, -inf
      %v2162 = vmax.f32 %v2160, %v2161
      %2163 = vmax.xlane.f32.xlu0 %v2162
      %v2164 = vpop.xlane.xlu0 %2163
      %v2165 = vmax.f32 %v2029, %v2030
      %v2166 = vsel %vm2075, %v2031, -inf
      %v2167 = vmax.f32 %v2165, %v2166
      %2168 = vmax.xlane.f32.xlu0 %v2167
      %v2169 = vpop.xlane.xlu0 %2168
      %v2170 = vmax.f32 %v2032, %v2033
      %v2171 = vsel %vm2075, %v2034, -inf
      %v2172 = vmax.f32 %v2170, %v2171
      %2173 = vmax.xlane.f32.xlu0 %v2172
      %v2174 = vpop.xlane.xlu0 %2173
      %v2175 = vmax.f32 %v2035, %v2036
      %v2176 = vsel %vm2075, %v2037, -inf
      %v2177 = vmax.f32 %v2175, %v2176
      %2178 = vmax.xlane.f32.xlu0 %v2177
      %v2179 = vpop.xlane.xlu0 %2178
      %v2180 = vmax.f32 %v2038, %v2039
      %v2181 = vsel %vm2075, %v2040, -inf
      %v2182 = vmax.f32 %v2180, %v2181
      %2183 = vmax.xlane.f32.xlu0 %v2182
      %v2184 = vpop.xlane.xlu0 %2183
      %v2185 = vmax.f32 %v2041, %v2042
      %v2186 = vsel %vm2075, %v2043, -inf
      %v2187 = vmax.f32 %v2185, %v2186
      %2188 = vmax.xlane.f32.xlu0 %v2187
      %v2189 = vpop.xlane.xlu0 %2188
      %v2190 = vmax.f32 %v2044, %v2045
      %v2191 = vsel %vm2075, %v2046, -inf
      %v2192 = vmax.f32 %v2190, %v2191
      %2193 = vmax.xlane.f32.xlu0 %v2192
      %v2194 = vpop.xlane.xlu0 %2193
      %v2195 = vmax.f32 %v2047, %v2048
      %v2196 = vsel %vm2075, %v2049, -inf
      %v2197 = vmax.f32 %v2195, %v2196
      %2198 = vmax.xlane.f32.xlu0 %v2197
      %v2199 = vpop.xlane.xlu0 %2198
      %v2200 = vmax.f32 %v2050, %v2051
      %v2201 = vsel %vm2075, %v2052, -inf
      %v2202 = vmax.f32 %v2200, %v2201
      %2203 = vmax.xlane.f32.xlu0 %v2202
      %v2204 = vpop.xlane.xlu0 %2203
      %v2205 = vmax.f32 %v2053, %v2054
      %v2206 = vsel %vm2075, %v2055, -inf
      %v2207 = vmax.f32 %v2205, %v2206
      %2208 = vmax.xlane.f32.xlu0 %v2207
      %v2209 = vpop.xlane.xlu0 %2208
      %v2210 = vmax.f32 %v2056, %v2057
      %v2211 = vsel %vm2075, %v2058, -inf
      %v2212 = vmax.f32 %v2210, %v2211
      %2213 = vmax.xlane.f32.xlu0 %v2212
      %v2214 = vpop.xlane.xlu0 %2213
      %v2215 = vmax.f32 %v2059, %v2060
      %v2216 = vsel %vm2075, %v2061, -inf
      %v2217 = vmax.f32 %v2215, %v2216
      %2218 = vmax.xlane.f32.xlu0 %v2217
      %v2219 = vpop.xlane.xlu0 %2218
      %v2220 = vmax.f32 %v2062, %v2063
      %v2221 = vsel %vm2075, %v2064, -inf
      %v2222 = vmax.f32 %v2220, %v2221
      %2223 = vmax.xlane.f32.xlu0 %v2222
      %v2224 = vpop.xlane.xlu0 %2223
      %v2225 = vmax.f32 %v2065, %v2066
      %v2226 = vsel %vm2075, %v2067, -inf
      %v2227 = vmax.f32 %v2225, %v2226
      %2228 = vmax.xlane.f32.xlu0 %v2227
      %v2229 = vpop.xlane.xlu0 %2228
      %v2230 = vmax.f32 %v2068, %v2069
      %v2231 = vsel %vm2075, %v2070, -inf
      %v2232 = vmax.f32 %v2230, %v2231
      %2233 = vmax.xlane.f32.xlu0 %v2232
      %v2234 = vpop.xlane.xlu0 %2233
      %v2235 = vmax.f32 %v2071, %v2072
      %v2236 = vsel %vm2075, %v2073, -inf
      %v2237 = vmax.f32 %v2235, %v2236
      %2238 = vmax.xlane.f32.xlu0 %v2237
      %v2239 = vpop.xlane.xlu0 %2238
      %v2240 = vsub.f32 %v1975, %v2079
      %v2241 = vsub.f32 %v1976, %v2079
      %v2242 = vsub.f32 %v1977, %v2079
      %v2243 = vsub.f32 %v1978, %v2084
      %v2244 = vsub.f32 %v1979, %v2084
      %v2245 = vsub.f32 %v1980, %v2084
      %v2246 = vsub.f32 %v1981, %v2089
      %v2247 = vsub.f32 %v1982, %v2089
      %v2248 = vsub.f32 %v1983, %v2089
      %v2249 = vsub.f32 %v1984, %v2094
      %v2250 = vsub.f32 %v1985, %v2094
      %v2251 = vsub.f32 %v1986, %v2094
      %v2252 = vsub.f32 %v1987, %v2099
      %v2253 = vsub.f32 %v1988, %v2099
      %v2254 = vsub.f32 %v1989, %v2099
      %v2255 = vsub.f32 %v1990, %v2104
      %v2256 = vsub.f32 %v1991, %v2104
      %v2257 = vsub.f32 %v1992, %v2104
      %v2258 = vsub.f32 %v1993, %v2109
      %v2259 = vsub.f32 %v1994, %v2109
      %v2260 = vsub.f32 %v1995, %v2109
      %v2261 = vsub.f32 %v1996, %v2114
      %v2262 = vsub.f32 %v1997, %v2114
      %v2263 = vsub.f32 %v1998, %v2114
      %v2264 = vsub.f32 %v1999, %v2119
      %v2265 = vsub.f32 %v2000, %v2119
      %v2266 = vsub.f32 %v2001, %v2119
      %v2267 = vsub.f32 %v2002, %v2124
      %v2268 = vsub.f32 %v2003, %v2124
      %v2269 = vsub.f32 %v2004, %v2124
      %v2270 = vsub.f32 %v2005, %v2129
      %v2271 = vsub.f32 %v2006, %v2129
      %v2272 = vsub.f32 %v2007, %v2129
      %v2273 = vsub.f32 %v2008, %v2134
      %v2274 = vsub.f32 %v2009, %v2134
      %v2275 = vsub.f32 %v2010, %v2134
      %v2276 = vsub.f32 %v2011, %v2139
      %v2277 = vsub.f32 %v2012, %v2139
      %v2278 = vsub.f32 %v2013, %v2139
      %v2279 = vsub.f32 %v2014, %v2144
      %v2280 = vsub.f32 %v2015, %v2144
      %v2281 = vsub.f32 %v2016, %v2144
      %v2282 = vsub.f32 %v2017, %v2149
      %v2283 = vsub.f32 %v2018, %v2149
      %v2284 = vsub.f32 %v2019, %v2149
      %v2285 = vsub.f32 %v2020, %v2154
      %v2286 = vsub.f32 %v2021, %v2154
      %v2287 = vsub.f32 %v2022, %v2154
      %v2288 = vsub.f32 %v2023, %v2159
      %v2289 = vsub.f32 %v2024, %v2159
      %v2290 = vsub.f32 %v2025, %v2159
      %v2291 = vsub.f32 %v2026, %v2164
      %v2292 = vsub.f32 %v2027, %v2164
      %v2293 = vsub.f32 %v2028, %v2164
      %v2294 = vsub.f32 %v2029, %v2169
      %v2295 = vsub.f32 %v2030, %v2169
      %v2296 = vsub.f32 %v2031, %v2169
      %v2297 = vsub.f32 %v2032, %v2174
      %v2298 = vsub.f32 %v2033, %v2174
      %v2299 = vsub.f32 %v2034, %v2174
      %v2300 = vsub.f32 %v2035, %v2179
      %v2301 = vsub.f32 %v2036, %v2179
      %v2302 = vsub.f32 %v2037, %v2179
      %v2303 = vsub.f32 %v2038, %v2184
      %v2304 = vsub.f32 %v2039, %v2184
      %v2305 = vsub.f32 %v2040, %v2184
      %v2306 = vsub.f32 %v2041, %v2189
      %v2307 = vsub.f32 %v2042, %v2189
      %v2308 = vsub.f32 %v2043, %v2189
      %v2309 = vsub.f32 %v2044, %v2194
      %v2310 = vsub.f32 %v2045, %v2194
      %v2311 = vsub.f32 %v2046, %v2194
      %v2312 = vsub.f32 %v2047, %v2199
      %v2313 = vsub.f32 %v2048, %v2199
      %v2314 = vsub.f32 %v2049, %v2199
      %v2315 = vsub.f32 %v2050, %v2204
      %v2316 = vsub.f32 %v2051, %v2204
      %v2317 = vsub.f32 %v2052, %v2204
      %v2318 = vsub.f32 %v2053, %v2209
      %v2319 = vsub.f32 %v2054, %v2209
      %v2320 = vsub.f32 %v2055, %v2209
      %v2321 = vsub.f32 %v2056, %v2214
      %v2322 = vsub.f32 %v2057, %v2214
      %v2323 = vsub.f32 %v2058, %v2214
      %v2324 = vsub.f32 %v2059, %v2219
      %v2325 = vsub.f32 %v2060, %v2219
      %v2326 = vsub.f32 %v2061, %v2219
      %v2327 = vsub.f32 %v2062, %v2224
      %v2328 = vsub.f32 %v2063, %v2224
      %v2329 = vsub.f32 %v2064, %v2224
      %v2330 = vsub.f32 %v2065, %v2229
      %v2331 = vsub.f32 %v2066, %v2229
      %v2332 = vsub.f32 %v2067, %v2229
      %v2333 = vsub.f32 %v2068, %v2234
      %v2334 = vsub.f32 %v2069, %v2234
      %v2335 = vsub.f32 %v2070, %v2234
      %v2336 = vsub.f32 %v2071, %v2239
      %v2337 = vsub.f32 %v2072, %v2239
      %v2338 = vsub.f32 %v2073, %v2239
      %v2339 = vmul.f32 %v2240, 1.442695
      %v2340 = vpow.pop %v2339
      %v2341 = vmul.f32 %v2241, 1.442695
      %v2342 = vpow.pop %v2341
      %v2343 = vmul.f32 %v2242, 1.442695
      %v2344 = vpow.pop %v2343
      %v2345 = vmul.f32 %v2243, 1.442695
      %v2346 = vpow.pop %v2345
      %v2347 = vmul.f32 %v2244, 1.442695
      %v2348 = vpow.pop %v2347
      %v2349 = vmul.f32 %v2245, 1.442695
      %v2350 = vpow.pop %v2349
      %v2351 = vmul.f32 %v2246, 1.442695
      %v2352 = vpow.pop %v2351
      %v2353 = vmul.f32 %v2247, 1.442695
      %v2354 = vpow.pop %v2353
      %v2355 = vmul.f32 %v2248, 1.442695
      %v2356 = vpow.pop %v2355
      %v2357 = vmul.f32 %v2249, 1.442695
      %v2358 = vpow.pop %v2357
      %v2359 = vmul.f32 %v2250, 1.442695
      %v2360 = vpow.pop %v2359
      %v2361 = vmul.f32 %v2251, 1.442695
      %v2362 = vpow.pop %v2361
      %v2363 = vmul.f32 %v2252, 1.442695
      %v2364 = vpow.pop %v2363
      %v2365 = vmul.f32 %v2253, 1.442695
      %v2366 = vpow.pop %v2365
      %v2367 = vmul.f32 %v2254, 1.442695
      %v2368 = vpow.pop %v2367
      %v2369 = vmul.f32 %v2255, 1.442695
      %v2370 = vpow.pop %v2369
      %v2371 = vmul.f32 %v2256, 1.442695
      %v2372 = vpow.pop %v2371
      %v2373 = vmul.f32 %v2257, 1.442695
      %v2374 = vpow.pop %v2373
      %v2375 = vmul.f32 %v2258, 1.442695
      %v2376 = vpow.pop %v2375
      %v2377 = vmul.f32 %v2259, 1.442695
      %v2378 = vpow.pop %v2377
      %v2379 = vmul.f32 %v2260, 1.442695
      %v2380 = vpow.pop %v2379
      %v2381 = vmul.f32 %v2261, 1.442695
      %v2382 = vpow.pop %v2381
      %v2383 = vmul.f32 %v2262, 1.442695
      %v2384 = vpow.pop %v2383
      %v2385 = vmul.f32 %v2263, 1.442695
      %v2386 = vpow.pop %v2385
      %v2387 = vmul.f32 %v2264, 1.442695
      %v2388 = vpow.pop %v2387
      %v2389 = vmul.f32 %v2265, 1.442695
      %v2390 = vpow.pop %v2389
      %v2391 = vmul.f32 %v2266, 1.442695
      %v2392 = vpow.pop %v2391
      %v2393 = vmul.f32 %v2267, 1.442695
      %v2394 = vpow.pop %v2393
      %v2395 = vmul.f32 %v2268, 1.442695
      %v2396 = vpow.pop %v2395
      %v2397 = vmul.f32 %v2269, 1.442695
      %v2398 = vpow.pop %v2397
      %v2399 = vmul.f32 %v2270, 1.442695
      %v2400 = vpow.pop %v2399
      %v2401 = vmul.f32 %v2271, 1.442695
      %v2402 = vpow.pop %v2401
      %v2403 = vmul.f32 %v2272, 1.442695
      %v2404 = vpow.pop %v2403
      %v2405 = vmul.f32 %v2273, 1.442695
      %v2406 = vpow.pop %v2405
      %v2407 = vmul.f32 %v2274, 1.442695
      %v2408 = vpow.pop %v2407
      %v2409 = vmul.f32 %v2275, 1.442695
      %v2410 = vpow.pop %v2409
      %v2411 = vmul.f32 %v2276, 1.442695
      %v2412 = vpow.pop %v2411
      %v2413 = vmul.f32 %v2277, 1.442695
      %v2414 = vpow.pop %v2413
      %v2415 = vmul.f32 %v2278, 1.442695
      %v2416 = vpow.pop %v2415
      %v2417 = vmul.f32 %v2279, 1.442695
      %v2418 = vpow.pop %v2417
      %v2419 = vmul.f32 %v2280, 1.442695
      %v2420 = vpow.pop %v2419
      %v2421 = vmul.f32 %v2281, 1.442695
      %v2422 = vpow.pop %v2421
      %v2423 = vmul.f32 %v2282, 1.442695
      %v2424 = vpow.pop %v2423
      %v2425 = vmul.f32 %v2283, 1.442695
      %v2426 = vpow.pop %v2425
      %v2427 = vmul.f32 %v2284, 1.442695
      %v2428 = vpow.pop %v2427
      %v2429 = vmul.f32 %v2285, 1.442695
      %v2430 = vpow.pop %v2429
      %v2431 = vmul.f32 %v2286, 1.442695
      %v2432 = vpow.pop %v2431
      %v2433 = vmul.f32 %v2287, 1.442695
      %v2434 = vpow.pop %v2433
      %v2435 = vmul.f32 %v2288, 1.442695
      %v2436 = vpow.pop %v2435
      %v2437 = vmul.f32 %v2289, 1.442695
      %v2438 = vpow.pop %v2437
      %v2439 = vmul.f32 %v2290, 1.442695
      %v2440 = vpow.pop %v2439
      %v2441 = vmul.f32 %v2291, 1.442695
      %v2442 = vpow.pop %v2441
      %v2443 = vmul.f32 %v2292, 1.442695
      %v2444 = vpow.pop %v2443
      %v2445 = vmul.f32 %v2293, 1.442695
      %v2446 = vpow.pop %v2445
      %v2447 = vmul.f32 %v2294, 1.442695
      %v2448 = vpow.pop %v2447
      %v2449 = vmul.f32 %v2295, 1.442695
      %v2450 = vpow.pop %v2449
      %v2451 = vmul.f32 %v2296, 1.442695
      %v2452 = vpow.pop %v2451
      %v2453 = vmul.f32 %v2297, 1.442695
      %v2454 = vpow.pop %v2453
      %v2455 = vmul.f32 %v2298, 1.442695
      %v2456 = vpow.pop %v2455
      %v2457 = vmul.f32 %v2299, 1.442695
      %v2458 = vpow.pop %v2457
      %v2459 = vmul.f32 %v2300, 1.442695
      %v2460 = vpow.pop %v2459
      %v2461 = vmul.f32 %v2301, 1.442695
      %v2462 = vpow.pop %v2461
      %v2463 = vmul.f32 %v2302, 1.442695
      %v2464 = vpow.pop %v2463
      %v2465 = vmul.f32 %v2303, 1.442695
      %v2466 = vpow.pop %v2465
      %v2467 = vmul.f32 %v2304, 1.442695
      %v2468 = vpow.pop %v2467
      %v2469 = vmul.f32 %v2305, 1.442695
      %v2470 = vpow.pop %v2469
      %v2471 = vmul.f32 %v2306, 1.442695
      %v2472 = vpow.pop %v2471
      %v2473 = vmul.f32 %v2307, 1.442695
      %v2474 = vpow.pop %v2473
      %v2475 = vmul.f32 %v2308, 1.442695
      %v2476 = vpow.pop %v2475
      %v2477 = vmul.f32 %v2309, 1.442695
      %v2478 = vpow.pop %v2477
      %v2479 = vmul.f32 %v2310, 1.442695
      %v2480 = vpow.pop %v2479
      %v2481 = vmul.f32 %v2311, 1.442695
      %v2482 = vpow.pop %v2481
      %v2483 = vmul.f32 %v2312, 1.442695
      %v2484 = vpow.pop %v2483
      %v2485 = vmul.f32 %v2313, 1.442695
      %v2486 = vpow.pop %v2485
      %v2487 = vmul.f32 %v2314, 1.442695
      %v2488 = vpow.pop %v2487
      %v2489 = vmul.f32 %v2315, 1.442695
      %v2490 = vpow.pop %v2489
      %v2491 = vmul.f32 %v2316, 1.442695
      %v2492 = vpow.pop %v2491
      %v2493 = vmul.f32 %v2317, 1.442695
      %v2494 = vpow.pop %v2493
      %v2495 = vmul.f32 %v2318, 1.442695
      %v2496 = vpow.pop %v2495
      %v2497 = vmul.f32 %v2319, 1.442695
      %v2498 = vpow.pop %v2497
      %v2499 = vmul.f32 %v2320, 1.442695
      %v2500 = vpow.pop %v2499
      %v2501 = vmul.f32 %v2321, 1.442695
      %v2502 = vpow.pop %v2501
      %v2503 = vmul.f32 %v2322, 1.442695
      %v2504 = vpow.pop %v2503
      %v2505 = vmul.f32 %v2323, 1.442695
      %v2506 = vpow.pop %v2505
      %v2507 = vmul.f32 %v2324, 1.442695
      %v2508 = vpow.pop %v2507
      %v2509 = vmul.f32 %v2325, 1.442695
      %v2510 = vpow.pop %v2509
      %v2511 = vmul.f32 %v2326, 1.442695
      %v2512 = vpow.pop %v2511
      %v2513 = vmul.f32 %v2327, 1.442695
      %v2514 = vpow.pop %v2513
      %v2515 = vmul.f32 %v2328, 1.442695
      %v2516 = vpow.pop %v2515
      %v2517 = vmul.f32 %v2329, 1.442695
      %v2518 = vpow.pop %v2517
      %v2519 = vmul.f32 %v2330, 1.442695
      %v2520 = vpow.pop %v2519
      %v2521 = vmul.f32 %v2331, 1.442695
      %v2522 = vpow.pop %v2521
      %v2523 = vmul.f32 %v2332, 1.442695
      %v2524 = vpow.pop %v2523
      %v2525 = vmul.f32 %v2333, 1.442695
      %v2526 = vpow.pop %v2525
      %v2527 = vmul.f32 %v2334, 1.442695
      %v2528 = vpow.pop %v2527
      %v2529 = vmul.f32 %v2335, 1.442695
      %v2530 = vpow.pop %v2529
      %v2531 = vmul.f32 %v2336, 1.442695
      %v2532 = vpow.pop %v2531
      %v2533 = vmul.f32 %v2337, 1.442695
      %v2534 = vpow.pop %v2533
      %v2535 = vmul.f32 %v2338, 1.442695
      %v2536 = vpow.pop %v2535
      %v2537 = vadd.f32 %v2340, %v2342
      %v2538 = vsel %vm2075, %v2344, 0.0
      %v2539 = vadd.f32 %v2537, %v2538
      %2540 = vadd.xlane.f32.xlu0 %v2539
      %v2541 = vpop.xlane.xlu0 %2540
      %v2542 = vadd.f32 %v2346, %v2348
      %v2543 = vsel %vm2075, %v2350, 0.0
      %v2544 = vadd.f32 %v2542, %v2543
      %2545 = vadd.xlane.f32.xlu0 %v2544
      %v2546 = vpop.xlane.xlu0 %2545
      %v2547 = vadd.f32 %v2352, %v2354
      %v2548 = vsel %vm2075, %v2356, 0.0
      %v2549 = vadd.f32 %v2547, %v2548
      %2550 = vadd.xlane.f32.xlu0 %v2549
      %v2551 = vpop.xlane.xlu0 %2550
      %v2552 = vadd.f32 %v2358, %v2360
      %v2553 = vsel %vm2075, %v2362, 0.0
      %v2554 = vadd.f32 %v2552, %v2553
      %2555 = vadd.xlane.f32.xlu0 %v2554
      %v2556 = vpop.xlane.xlu0 %2555
      %v2557 = vadd.f32 %v2364, %v2366
      %v2558 = vsel %vm2075, %v2368, 0.0
      %v2559 = vadd.f32 %v2557, %v2558
      %2560 = vadd.xlane.f32.xlu0 %v2559
      %v2561 = vpop.xlane.xlu0 %2560
      %v2562 = vadd.f32 %v2370, %v2372
      %v2563 = vsel %vm2075, %v2374, 0.0
      %v2564 = vadd.f32 %v2562, %v2563
      %2565 = vadd.xlane.f32.xlu0 %v2564
      %v2566 = vpop.xlane.xlu0 %2565
      %v2567 = vadd.f32 %v2376, %v2378
      %v2568 = vsel %vm2075, %v2380, 0.0
      %v2569 = vadd.f32 %v2567, %v2568
      %2570 = vadd.xlane.f32.xlu0 %v2569
      %v2571 = vpop.xlane.xlu0 %2570
      %v2572 = vadd.f32 %v2382, %v2384
      %v2573 = vsel %vm2075, %v2386, 0.0
      %v2574 = vadd.f32 %v2572, %v2573
      %2575 = vadd.xlane.f32.xlu0 %v2574
      %v2576 = vpop.xlane.xlu0 %2575
      %v2577 = vadd.f32 %v2388, %v2390
      %v2578 = vsel %vm2075, %v2392, 0.0
      %v2579 = vadd.f32 %v2577, %v2578
      %2580 = vadd.xlane.f32.xlu0 %v2579
      %v2581 = vpop.xlane.xlu0 %2580
      %v2582 = vadd.f32 %v2394, %v2396
      %v2583 = vsel %vm2075, %v2398, 0.0
      %v2584 = vadd.f32 %v2582, %v2583
      %2585 = vadd.xlane.f32.xlu0 %v2584
      %v2586 = vpop.xlane.xlu0 %2585
      %v2587 = vadd.f32 %v2400, %v2402
      %v2588 = vsel %vm2075, %v2404, 0.0
      %v2589 = vadd.f32 %v2587, %v2588
      %2590 = vadd.xlane.f32.xlu0 %v2589
      %v2591 = vpop.xlane.xlu0 %2590
      %v2592 = vadd.f32 %v2406, %v2408
      %v2593 = vsel %vm2075, %v2410, 0.0
      %v2594 = vadd.f32 %v2592, %v2593
      %2595 = vadd.xlane.f32.xlu0 %v2594
      %v2596 = vpop.xlane.xlu0 %2595
      %v2597 = vadd.f32 %v2412, %v2414
      %v2598 = vsel %vm2075, %v2416, 0.0
      %v2599 = vadd.f32 %v2597, %v2598
      %2600 = vadd.xlane.f32.xlu0 %v2599
      %v2601 = vpop.xlane.xlu0 %2600
      %v2602 = vadd.f32 %v2418, %v2420
      %v2603 = vsel %vm2075, %v2422, 0.0
      %v2604 = vadd.f32 %v2602, %v2603
      %2605 = vadd.xlane.f32.xlu0 %v2604
      %v2606 = vpop.xlane.xlu0 %2605
      %v2607 = vadd.f32 %v2424, %v2426
      %v2608 = vsel %vm2075, %v2428, 0.0
      %v2609 = vadd.f32 %v2607, %v2608
      %2610 = vadd.xlane.f32.xlu0 %v2609
      %v2611 = vpop.xlane.xlu0 %2610
      %v2612 = vadd.f32 %v2430, %v2432
      %v2613 = vsel %vm2075, %v2434, 0.0
      %v2614 = vadd.f32 %v2612, %v2613
      %2615 = vadd.xlane.f32.xlu0 %v2614
      %v2616 = vpop.xlane.xlu0 %2615
      %v2617 = vadd.f32 %v2436, %v2438
      %v2618 = vsel %vm2075, %v2440, 0.0
      %v2619 = vadd.f32 %v2617, %v2618
      %2620 = vadd.xlane.f32.xlu0 %v2619
      %v2621 = vpop.xlane.xlu0 %2620
      %v2622 = vadd.f32 %v2442, %v2444
      %v2623 = vsel %vm2075, %v2446, 0.0
      %v2624 = vadd.f32 %v2622, %v2623
      %2625 = vadd.xlane.f32.xlu0 %v2624
      %v2626 = vpop.xlane.xlu0 %2625
      %v2627 = vadd.f32 %v2448, %v2450
      %v2628 = vsel %vm2075, %v2452, 0.0
      %v2629 = vadd.f32 %v2627, %v2628
      %2630 = vadd.xlane.f32.xlu0 %v2629
      %v2631 = vpop.xlane.xlu0 %2630
      %v2632 = vadd.f32 %v2454, %v2456
      %v2633 = vsel %vm2075, %v2458, 0.0
      %v2634 = vadd.f32 %v2632, %v2633
      %2635 = vadd.xlane.f32.xlu0 %v2634
      %v2636 = vpop.xlane.xlu0 %2635
      %v2637 = vadd.f32 %v2460, %v2462
      %v2638 = vsel %vm2075, %v2464, 0.0
      %v2639 = vadd.f32 %v2637, %v2638
      %2640 = vadd.xlane.f32.xlu0 %v2639
      %v2641 = vpop.xlane.xlu0 %2640
      %v2642 = vadd.f32 %v2466, %v2468
      %v2643 = vsel %vm2075, %v2470, 0.0
      %v2644 = vadd.f32 %v2642, %v2643
      %2645 = vadd.xlane.f32.xlu0 %v2644
      %v2646 = vpop.xlane.xlu0 %2645
      %v2647 = vadd.f32 %v2472, %v2474
      %v2648 = vsel %vm2075, %v2476, 0.0
      %v2649 = vadd.f32 %v2647, %v2648
      %2650 = vadd.xlane.f32.xlu0 %v2649
      %v2651 = vpop.xlane.xlu0 %2650
      %v2652 = vadd.f32 %v2478, %v2480
      %v2653 = vsel %vm2075, %v2482, 0.0
      %v2654 = vadd.f32 %v2652, %v2653
      %2655 = vadd.xlane.f32.xlu0 %v2654
      %v2656 = vpop.xlane.xlu0 %2655
      %v2657 = vadd.f32 %v2484, %v2486
      %v2658 = vsel %vm2075, %v2488, 0.0
      %v2659 = vadd.f32 %v2657, %v2658
      %2660 = vadd.xlane.f32.xlu0 %v2659
      %v2661 = vpop.xlane.xlu0 %2660
      %v2662 = vadd.f32 %v2490, %v2492
      %v2663 = vsel %vm2075, %v2494, 0.0
      %v2664 = vadd.f32 %v2662, %v2663
      %2665 = vadd.xlane.f32.xlu0 %v2664
      %v2666 = vpop.xlane.xlu0 %2665
      %v2667 = vadd.f32 %v2496, %v2498
      %v2668 = vsel %vm2075, %v2500, 0.0
      %v2669 = vadd.f32 %v2667, %v2668
      %2670 = vadd.xlane.f32.xlu0 %v2669
      %v2671 = vpop.xlane.xlu0 %2670
      %v2672 = vadd.f32 %v2502, %v2504
      %v2673 = vsel %vm2075, %v2506, 0.0
      %v2674 = vadd.f32 %v2672, %v2673
      %2675 = vadd.xlane.f32.xlu0 %v2674
      %v2676 = vpop.xlane.xlu0 %2675
      %v2677 = vadd.f32 %v2508, %v2510
      %v2678 = vsel %vm2075, %v2512, 0.0
      %v2679 = vadd.f32 %v2677, %v2678
      %2680 = vadd.xlane.f32.xlu0 %v2679
      %v2681 = vpop.xlane.xlu0 %2680
      %v2682 = vadd.f32 %v2514, %v2516
      %v2683 = vsel %vm2075, %v2518, 0.0
      %v2684 = vadd.f32 %v2682, %v2683
      %2685 = vadd.xlane.f32.xlu0 %v2684
      %v2686 = vpop.xlane.xlu0 %2685
      %v2687 = vadd.f32 %v2520, %v2522
      %v2688 = vsel %vm2075, %v2524, 0.0
      %v2689 = vadd.f32 %v2687, %v2688
      %2690 = vadd.xlane.f32.xlu0 %v2689
      %v2691 = vpop.xlane.xlu0 %2690
      %v2692 = vadd.f32 %v2526, %v2528
      %v2693 = vsel %vm2075, %v2530, 0.0
      %v2694 = vadd.f32 %v2692, %v2693
      %2695 = vadd.xlane.f32.xlu0 %v2694
      %v2696 = vpop.xlane.xlu0 %2695
      %v2697 = vadd.f32 %v2532, %v2534
      %v2698 = vsel %vm2075, %v2536, 0.0
      %v2699 = vadd.f32 %v2697, %v2698
      %2700 = vadd.xlane.f32.xlu0 %v2699
      %v2701 = vpop.xlane.xlu0 %2700
      %v2702 = vrcp.pop %v2541
      %v2703 = vrcp.pop %v2546
      %v2704 = vrcp.pop %v2551
      %v2705 = vrcp.pop %v2556
      %v2706 = vrcp.pop %v2561
      %v2707 = vrcp.pop %v2566
      %v2708 = vrcp.pop %v2571
      %v2709 = vrcp.pop %v2576
      %v2710 = vrcp.pop %v2581
      %v2711 = vrcp.pop %v2586
      %v2712 = vrcp.pop %v2591
      %v2713 = vrcp.pop %v2596
      %v2714 = vrcp.pop %v2601
      %v2715 = vrcp.pop %v2606
      %v2716 = vrcp.pop %v2611
      %v2717 = vrcp.pop %v2616
      %v2718 = vrcp.pop %v2621
      %v2719 = vrcp.pop %v2626
      %v2720 = vrcp.pop %v2631
      %v2721 = vrcp.pop %v2636
      %v2722 = vrcp.pop %v2641
      %v2723 = vrcp.pop %v2646
      %v2724 = vrcp.pop %v2651
      %v2725 = vrcp.pop %v2656
      %v2726 = vrcp.pop %v2661
      %v2727 = vrcp.pop %v2666
      %v2728 = vrcp.pop %v2671
      %v2729 = vrcp.pop %v2676
      %v2730 = vrcp.pop %v2681
      %v2731 = vrcp.pop %v2686
      %v2732 = vrcp.pop %v2691
      %v2733 = vrcp.pop %v2696
      %v2734 = vrcp.pop %v2701
      %v2735 = vmul.f32 %v2340, %v2702
      %v2736 = vmul.f32 %v2342, %v2702
      %v2737 = vmul.f32 %v2344, %v2702
      %v2738 = vmul.f32 %v2346, %v2703
      %v2739 = vmul.f32 %v2348, %v2703
      %v2740 = vmul.f32 %v2350, %v2703
      %v2741 = vmul.f32 %v2352, %v2704
      %v2742 = vmul.f32 %v2354, %v2704
      %v2743 = vmul.f32 %v2356, %v2704
      %v2744 = vmul.f32 %v2358, %v2705
      %v2745 = vmul.f32 %v2360, %v2705
      %v2746 = vmul.f32 %v2362, %v2705
      %v2747 = vmul.f32 %v2364, %v2706
      %v2748 = vmul.f32 %v2366, %v2706
      %v2749 = vmul.f32 %v2368, %v2706
      %v2750 = vmul.f32 %v2370, %v2707
      %v2751 = vmul.f32 %v2372, %v2707
      %v2752 = vmul.f32 %v2374, %v2707
      %v2753 = vmul.f32 %v2376, %v2708
      %v2754 = vmul.f32 %v2378, %v2708
      %v2755 = vmul.f32 %v2380, %v2708
      %v2756 = vmul.f32 %v2382, %v2709
      %v2757 = vmul.f32 %v2384, %v2709
      %v2758 = vmul.f32 %v2386, %v2709
      %v2759 = vmul.f32 %v2388, %v2710
      %v2760 = vmul.f32 %v2390, %v2710
      %v2761 = vmul.f32 %v2392, %v2710
      %v2762 = vmul.f32 %v2394, %v2711
      %v2763 = vmul.f32 %v2396, %v2711
      %v2764 = vmul.f32 %v2398, %v2711
      %v2765 = vmul.f32 %v2400, %v2712
      %v2766 = vmul.f32 %v2402, %v2712
      %v2767 = vmul.f32 %v2404, %v2712
      %v2768 = vmul.f32 %v2406, %v2713
      %v2769 = vmul.f32 %v2408, %v2713
      %v2770 = vmul.f32 %v2410, %v2713
      %v2771 = vmul.f32 %v2412, %v2714
      %v2772 = vmul.f32 %v2414, %v2714
      %v2773 = vmul.f32 %v2416, %v2714
      %v2774 = vmul.f32 %v2418, %v2715
      %v2775 = vmul.f32 %v2420, %v2715
      %v2776 = vmul.f32 %v2422, %v2715
      %v2777 = vmul.f32 %v2424, %v2716
      %v2778 = vmul.f32 %v2426, %v2716
      %v2779 = vmul.f32 %v2428, %v2716
      %v2780 = vmul.f32 %v2430, %v2717
      %v2781 = vmul.f32 %v2432, %v2717
      %v2782 = vmul.f32 %v2434, %v2717
      %v2783 = vmul.f32 %v2436, %v2718
      %v2784 = vmul.f32 %v2438, %v2718
      %v2785 = vmul.f32 %v2440, %v2718
      %v2786 = vmul.f32 %v2442, %v2719
      %v2787 = vmul.f32 %v2444, %v2719
      %v2788 = vmul.f32 %v2446, %v2719
      %v2789 = vmul.f32 %v2448, %v2720
      %v2790 = vmul.f32 %v2450, %v2720
      %v2791 = vmul.f32 %v2452, %v2720
      %v2792 = vmul.f32 %v2454, %v2721
      %v2793 = vmul.f32 %v2456, %v2721
      %v2794 = vmul.f32 %v2458, %v2721
      %v2795 = vmul.f32 %v2460, %v2722
      %v2796 = vmul.f32 %v2462, %v2722
      %v2797 = vmul.f32 %v2464, %v2722
      %v2798 = vmul.f32 %v2466, %v2723
      %v2799 = vmul.f32 %v2468, %v2723
      %v2800 = vmul.f32 %v2470, %v2723
      %v2801 = vmul.f32 %v2472, %v2724
      %v2802 = vmul.f32 %v2474, %v2724
      %v2803 = vmul.f32 %v2476, %v2724
      %v2804 = vmul.f32 %v2478, %v2725
      %v2805 = vmul.f32 %v2480, %v2725
      %v2806 = vmul.f32 %v2482, %v2725
      %v2807 = vmul.f32 %v2484, %v2726
      %v2808 = vmul.f32 %v2486, %v2726
      %v2809 = vmul.f32 %v2488, %v2726
      %v2810 = vmul.f32 %v2490, %v2727
      %v2811 = vmul.f32 %v2492, %v2727
      %v2812 = vmul.f32 %v2494, %v2727
      %v2813 = vmul.f32 %v2496, %v2728
      %v2814 = vmul.f32 %v2498, %v2728
      %v2815 = vmul.f32 %v2500, %v2728
      %v2816 = vmul.f32 %v2502, %v2729
      %v2817 = vmul.f32 %v2504, %v2729
      %v2818 = vmul.f32 %v2506, %v2729
      %v2819 = vmul.f32 %v2508, %v2730
      %v2820 = vmul.f32 %v2510, %v2730
      %v2821 = vmul.f32 %v2512, %v2730
      %v2822 = vmul.f32 %v2514, %v2731
      %v2823 = vmul.f32 %v2516, %v2731
      %v2824 = vmul.f32 %v2518, %v2731
      %v2825 = vmul.f32 %v2520, %v2732
      %v2826 = vmul.f32 %v2522, %v2732
      %v2827 = vmul.f32 %v2524, %v2732
      %v2828 = vmul.f32 %v2526, %v2733
      %v2829 = vmul.f32 %v2528, %v2733
      %v2830 = vmul.f32 %v2530, %v2733
      %v2831 = vmul.f32 %v2532, %v2734
      %v2832 = vmul.f32 %v2534, %v2734
      %v2833 = vmul.f32 %v2536, %v2734
      %v2834 = vpack.c.bf16 %v2738, %v2735
      %v2835 = vpack.c.bf16 %v2739, %v2736
      %v2836 = vpack.c.bf16 %v2740, %v2737
      %v2837 = vpack.c.bf16 %v2744, %v2741
      %v2838 = vpack.c.bf16 %v2745, %v2742
      %v2839 = vpack.c.bf16 %v2746, %v2743
      %v2840 = vpack.c.bf16 %v2750, %v2747
      %v2841 = vpack.c.bf16 %v2751, %v2748
      %v2842 = vpack.c.bf16 %v2752, %v2749
      %v2843 = vpack.c.bf16 %v2756, %v2753
      %v2844 = vpack.c.bf16 %v2757, %v2754
      %v2845 = vpack.c.bf16 %v2758, %v2755
      %v2846 = vpack.c.bf16 %v2762, %v2759
      %v2847 = vpack.c.bf16 %v2763, %v2760
      %v2848 = vpack.c.bf16 %v2764, %v2761
      %v2849 = vpack.c.bf16 %v2768, %v2765
      %v2850 = vpack.c.bf16 %v2769, %v2766
      %v2851 = vpack.c.bf16 %v2770, %v2767
      %v2852 = vpack.c.bf16 %v2774, %v2771
      %v2853 = vpack.c.bf16 %v2775, %v2772
      %v2854 = vpack.c.bf16 %v2776, %v2773
      %v2855 = vpack.c.bf16 %v2780, %v2777
      %v2856 = vpack.c.bf16 %v2781, %v2778
      %v2857 = vpack.c.bf16 %v2782, %v2779
      %v2858 = vpack.c.bf16 %v2786, %v2783
      %v2859 = vpack.c.bf16 %v2787, %v2784
      %v2860 = vpack.c.bf16 %v2788, %v2785
      %v2861 = vpack.c.bf16 %v2792, %v2789
      %v2862 = vpack.c.bf16 %v2793, %v2790
      %v2863 = vpack.c.bf16 %v2794, %v2791
      %v2864 = vpack.c.bf16 %v2798, %v2795
      %v2865 = vpack.c.bf16 %v2799, %v2796
      %v2866 = vpack.c.bf16 %v2800, %v2797
      %v2867 = vpack.c.bf16 %v2804, %v2801
      %v2868 = vpack.c.bf16 %v2805, %v2802
      %v2869 = vpack.c.bf16 %v2806, %v2803
      %v2870 = vpack.c.bf16 %v2810, %v2807
      %v2871 = vpack.c.bf16 %v2811, %v2808
      %v2872 = vpack.c.bf16 %v2812, %v2809
      %v2873 = vpack.c.bf16 %v2816, %v2813
      %v2874 = vpack.c.bf16 %v2817, %v2814
      %v2875 = vpack.c.bf16 %v2818, %v2815
      %v2876 = vpack.c.bf16 %v2822, %v2819
      %v2877 = vpack.c.bf16 %v2823, %v2820
      %v2878 = vpack.c.bf16 %v2824, %v2821
      %v2879 = vpack.c.bf16 %v2828, %v2825
      %v2880 = vpack.c.bf16 %v2829, %v2826
      %v2881 = vpack.c.bf16 %v2830, %v2827
      %v2882 = vpack.c.bf16 %v2831, %v2831
      %v2883 = vpack.c.bf16 %v2832, %v2832
      %v2884 = vpack.c.bf16 %v2833, %v2833
      %v2885 = vpack.c.bf16 %v1062, %v1058
      %v2886 = vpack.c.bf16 %v1072, %v1068
      %v2887 = vpack.c.bf16 %v1082, %v1078
      %v2888 = vpack.c.bf16 %v1092, %v1088
      %v2889 = vpack.c.bf16 %v1102, %v1098
      %v2890 = vpack.c.bf16 %v1112, %v1108
      %v2891 = vpack.c.bf16 %v1122, %v1118
      %v2892 = vpack.c.bf16 %v1132, %v1128
      %v2893 = vpack.c.bf16 %v1142, %v1138
      %v2894 = vpack.c.bf16 %v1152, %v1148
      %v2895 = vpack.c.bf16 %v1162, %v1158
      %v2896 = vpack.c.bf16 %v1172, %v1168
      %v2897 = vpack.c.bf16 %v1182, %v1178
      %v2898 = vpack.c.bf16 %v1192, %v1188
      %v2899 = vpack.c.bf16 %v1202, %v1198
      %v2900 = vpack.c.bf16 %v1212, %v1208
      %v2901 = vpack.c.bf16 %v1218, %v1218
      %2919 = vrot.lane.b32.xlu0 %v1222, 36
      %v2920 = vpop.permute.xlu0 %2919
      %2921 = vrot.lane.b32.xlu0 %v2885, 36
      %v2922 = vpop.permute.xlu0 %2921
      %2923 = vrot.lane.b32.xlu0 %v1223, 36
      %v2924 = vpop.permute.xlu0 %2923
      %2925 = vrot.lane.b32.xlu0 %v2886, 36
      %v2926 = vpop.permute.xlu0 %2925
      %2927 = vrot.lane.b32.xlu0 %v1224, 36
      %v2928 = vpop.permute.xlu0 %2927
      %2929 = vrot.lane.b32.xlu0 %v2887, 36
      %v2930 = vpop.permute.xlu0 %2929
      %2931 = vrot.lane.b32.xlu0 %v1225, 36
      %v2932 = vpop.permute.xlu0 %2931
      %2933 = vrot.lane.b32.xlu0 %v2888, 36
      %v2934 = vpop.permute.xlu0 %2933
      %2935 = vrot.lane.b32.xlu0 %v1226, 36
      %v2936 = vpop.permute.xlu0 %2935
      %2937 = vrot.lane.b32.xlu0 %v2889, 36
      %v2938 = vpop.permute.xlu0 %2937
      %2939 = vrot.lane.b32.xlu0 %v1227, 36
      %v2940 = vpop.permute.xlu0 %2939
      %2941 = vrot.lane.b32.xlu0 %v2890, 36
      %v2942 = vpop.permute.xlu0 %2941
      %2943 = vrot.lane.b32.xlu0 %v1228, 36
      %v2944 = vpop.permute.xlu0 %2943
      %2945 = vrot.lane.b32.xlu0 %v2891, 36
      %v2946 = vpop.permute.xlu0 %2945
      %2947 = vrot.lane.b32.xlu0 %v1229, 36
      %v2948 = vpop.permute.xlu0 %2947
      %2949 = vrot.lane.b32.xlu0 %v2892, 36
      %v2950 = vpop.permute.xlu0 %2949
      %2951 = vrot.lane.b32.xlu0 %v1230, 36
      %v2952 = vpop.permute.xlu0 %2951
      %2953 = vrot.lane.b32.xlu0 %v2893, 36
      %v2954 = vpop.permute.xlu0 %2953
      %2955 = vrot.lane.b32.xlu0 %v1231, 36
      %v2956 = vpop.permute.xlu0 %2955
      %2957 = vrot.lane.b32.xlu0 %v2894, 36
      %v2958 = vpop.permute.xlu0 %2957
      %2959 = vrot.lane.b32.xlu0 %v1232, 36
      %v2960 = vpop.permute.xlu0 %2959
      %2961 = vrot.lane.b32.xlu0 %v2895, 36
      %v2962 = vpop.permute.xlu0 %2961
      %2963 = vrot.lane.b32.xlu0 %v1233, 36
      %v2964 = vpop.permute.xlu0 %2963
      %2965 = vrot.lane.b32.xlu0 %v2896, 36
      %v2966 = vpop.permute.xlu0 %2965
      %2967 = vrot.lane.b32.xlu0 %v1234, 36
      %v2968 = vpop.permute.xlu0 %2967
      %2969 = vrot.lane.b32.xlu0 %v2897, 36
      %v2970 = vpop.permute.xlu0 %2969
      %2971 = vrot.lane.b32.xlu0 %v1235, 36
      %v2972 = vpop.permute.xlu0 %2971
      %2973 = vrot.lane.b32.xlu0 %v2898, 36
      %v2974 = vpop.permute.xlu0 %2973
      %2975 = vrot.lane.b32.xlu0 %v1236, 36
      %v2976 = vpop.permute.xlu0 %2975
      %2977 = vrot.lane.b32.xlu0 %v2899, 36
      %v2978 = vpop.permute.xlu0 %2977
      %2979 = vrot.lane.b32.xlu0 %v1237, 36
      %v2980 = vpop.permute.xlu0 %2979
      %2981 = vrot.lane.b32.xlu0 %v2900, 36
      %v2982 = vpop.permute.xlu0 %2981
      %2983 = vrot.lane.b32.xlu0 %v1238, 36
      %v2984 = vpop.permute.xlu0 %2983
      %2985 = vrot.lane.b32.xlu0 %v2901, 36
      %v2986 = vpop.permute.xlu0 %2985
      %vm2987 = vcmask 293888
      %v2988 = vsel %vm2987, %v2920, %v2922
      %v2989 = vsel %vm2987, %v2924, %v2926
      %v2990 = vsel %vm2987, %v2928, %v2930
      %v2991 = vsel %vm2987, %v2932, %v2934
      %v2992 = vsel %vm2987, %v2936, %v2938
      %v2993 = vsel %vm2987, %v2940, %v2942
      %v2994 = vsel %vm2987, %v2944, %v2946
      %v2995 = vsel %vm2987, %v2948, %v2950
      %v2996 = vsel %vm2987, %v2952, %v2954
      %v2997 = vsel %vm2987, %v2956, %v2958
      %v2998 = vsel %vm2987, %v2960, %v2962
      %v2999 = vsel %vm2987, %v2964, %v2966
      %v3000 = vsel %vm2987, %v2968, %v2970
      %v3001 = vsel %vm2987, %v2972, %v2974
      %v3002 = vsel %vm2987, %v2976, %v2978
      %v3003 = vsel %vm2987, %v2980, %v2982
      %v3004 = vsel %vm2987, %v2984, %v2986
      %v3022 = vsel %vm2075, %v2836, 0
      %v3025 = vsel %vm2075, %v2839, 0
      %v3028 = vsel %vm2075, %v2842, 0
      %v3031 = vsel %vm2075, %v2845, 0
      %v3034 = vsel %vm2075, %v2848, 0
      %v3037 = vsel %vm2075, %v2851, 0
      %v3040 = vsel %vm2075, %v2854, 0
      %v3043 = vsel %vm2075, %v2857, 0
      %v3046 = vsel %vm2075, %v2860, 0
      %v3049 = vsel %vm2075, %v2863, 0
      %v3052 = vsel %vm2075, %v2866, 0
      %v3055 = vsel %vm2075, %v2869, 0
      %v3058 = vsel %vm2075, %v2872, 0
      %v3061 = vsel %vm2075, %v2875, 0
      %v3064 = vsel %vm2075, %v2878, 0
      %v3067 = vsel %vm2075, %v2881, 0
      %v3070 = vsel %vm2075, %v2884, 0
      %vm3072 = vcmask 1043456
      %v3074 = vsel %vm3072, %v3004, 0
      %3076 = vmatprep.subr.bf16.mxu0 0
      %3077 = vmatpush1.bf16.msra.mxu0 %v2988
      %3078 = vmatprep.subr.bf16.mxu0 0
      %3079 = vmatpush1.bf16.msra.mxu0 %v2989
      %3080 = vmatprep.subr.bf16.mxu0 0
      %3081 = vmatpush1.bf16.msra.mxu0 %v2990
      %3082 = vmatprep.subr.bf16.mxu0 0
      %3083 = vmatpush1.bf16.msra.mxu0 %v2991
      %3084 = vmatprep.subr.bf16.mxu0 0
      %3085 = vmatpush1.bf16.msra.mxu0 %v2992
      %3086 = vmatprep.subr.bf16.mxu0 0
      %3087 = vmatpush1.bf16.msra.mxu0 %v2993
      %3088 = vmatprep.subr.bf16.mxu0 0
      %3089 = vmatpush1.bf16.msra.mxu0 %v2994
      %3090 = vmatprep.subr.bf16.mxu0 0
      %3091 = vmatpush1.bf16.msra.mxu0 %v2995
      %3092 = vmatprep.subr.bf16.mxu0 0
      %3093 = vmatpush1.bf16.msra.mxu0 %v2996
      %3094 = vmatprep.subr.bf16.mxu0 0
      %3095 = vmatpush1.bf16.msra.mxu0 %v2997
      %3096 = vmatprep.subr.bf16.mxu0 0
      %3097 = vmatpush1.bf16.msra.mxu0 %v2998
      %3098 = vmatprep.subr.bf16.mxu0 0
      %3099 = vmatpush1.bf16.msra.mxu0 %v2999
      %3100 = vmatprep.subr.bf16.mxu0 0
      %3101 = vmatpush1.bf16.msra.mxu0 %v3000
      %3102 = vmatprep.subr.bf16.mxu0 0
      %3103 = vmatpush1.bf16.msra.mxu0 %v3001
      %3104 = vmatprep.subr.bf16.mxu0 0
      %3105 = vmatpush1.bf16.msra.mxu0 %v3002
      %3106 = vmatprep.subr.bf16.mxu0 0
      %3107 = vmatpush1.bf16.msra.mxu0 %v3003
      %3108 = vmatprep.mubr.bf16.mxu0 %v2835
      %3109 = vmatmul.mubr.bf16.gmra.mrb[0].mxu0 %v2834
      %v3110 = vpop.f32.mrb[0].mxu0
      %v3111 = vadd.f32 0.0, %v3110
      %v3112 = vpop.f32.mrb[0].mxu0
      %v3113 = vpop.f32.mrb[0].mxu0
      %v3114 = vadd.f32 0.0, %v3113
      %v3115 = vpop.f32.mrb[0].mxu0
      %3116 = vmatprep.mubr.bf16.mxu0 %v2838
      %3117 = vmatmul.mubr.bf16.gmra.mrb[0].mxu0 %v2837
      %v3118 = vpop.f32.mrb[0].mxu0
      %v3119 = vadd.f32 0.0, %v3118
      %v3120 = vpop.f32.mrb[0].mxu0
      %v3121 = vpop.f32.mrb[0].mxu0
      %v3122 = vadd.f32 0.0, %v3121
      %v3123 = vpop.f32.mrb[0].mxu0
      %3124 = vmatprep.mubr.bf16.mxu0 %v2841
      %3125 = vmatmul.mubr.bf16.gmra.mrb[0].mxu0 %v2840
      %v3126 = vpop.f32.mrb[0].mxu0
      %v3127 = vadd.f32 0.0, %v3126
      %v3128 = vpop.f32.mrb[0].mxu0
      %v3129 = vpop.f32.mrb[0].mxu0
      %v3130 = vadd.f32 0.0, %v3129
      %v3131 = vpop.f32.mrb[0].mxu0
      %3132 = vmatprep.mubr.bf16.mxu0 %v2844
      %3133 = vmatmul.mubr.bf16.gmra.mrb[0].mxu0 %v2843
      %v3134 = vpop.f32.mrb[0].mxu0
      %v3135 = vadd.f32 0.0, %v3134
      %v3136 = vpop.f32.mrb[0].mxu0
      %v3137 = vpop.f32.mrb[0].mxu0
      %v3138 = vadd.f32 0.0, %v3137
      %v3139 = vpop.f32.mrb[0].mxu0
      %3140 = vmatprep.mubr.bf16.mxu0 %v2847
      %3141 = vmatmul.mubr.bf16.gmra.mrb[0].mxu0 %v2846
      %v3142 = vpop.f32.mrb[0].mxu0
      %v3143 = vadd.f32 0.0, %v3142
      %v3144 = vpop.f32.mrb[0].mxu0
      %v3145 = vpop.f32.mrb[0].mxu0
      %v3146 = vadd.f32 0.0, %v3145
      %v3147 = vpop.f32.mrb[0].mxu0
      %3148 = vmatprep.mubr.bf16.mxu0 %v2850
      %3149 = vmatmul.mubr.bf16.gmra.mrb[0].mxu0 %v2849
      %v3150 = vpop.f32.mrb[0].mxu0
      %v3151 = vadd.f32 0.0, %v3150
      %v3152 = vpop.f32.mrb[0].mxu0
      %v3153 = vpop.f32.mrb[0].mxu0
      %v3154 = vadd.f32 0.0, %v3153
      %v3155 = vpop.f32.mrb[0].mxu0
      %3156 = vmatprep.mubr.bf16.mxu0 %v2853
      %3157 = vmatmul.mubr.bf16.gmra.mrb[0].mxu0 %v2852
      %v3158 = vpop.f32.mrb[0].mxu0
      %v3159 = vadd.f32 0.0, %v3158
      %v3160 = vpop.f32.mrb[0].mxu0
      %v3161 = vpop.f32.mrb[0].mxu0
      %v3162 = vadd.f32 0.0, %v3161
      %v3163 = vpop.f32.mrb[0].mxu0
      %3164 = vmatprep.mubr.bf16.mxu0 %v2856
      %3165 = vmatmul.mubr.bf16.gmra.mrb[0].mxu0 %v2855
      %v3166 = vpop.f32.mrb[0].mxu0
      %v3167 = vadd.f32 0.0, %v3166
      %v3168 = vpop.f32.mrb[0].mxu0
      %v3169 = vpop.f32.mrb[0].mxu0
      %v3170 = vadd.f32 0.0, %v3169
      %v3171 = vpop.f32.mrb[0].mxu0
      %3172 = vmatprep.mubr.bf16.mxu0 %v2859
      %3173 = vmatmul.mubr.bf16.gmra.mrb[0].mxu0 %v2858
      %v3174 = vpop.f32.mrb[0].mxu0
      %v3175 = vadd.f32 0.0, %v3174
      %v3176 = vpop.f32.mrb[0].mxu0
      %v3177 = vpop.f32.mrb[0].mxu0
      %v3178 = vadd.f32 0.0, %v3177
      %v3179 = vpop.f32.mrb[0].mxu0
      %3180 = vmatprep.mubr.bf16.mxu0 %v2862
      %3181 = vmatmul.mubr.bf16.gmra.mrb[0].mxu0 %v2861
      %v3182 = vpop.f32.mrb[0].mxu0
      %v3183 = vadd.f32 0.0, %v3182
      %v3184 = vpop.f32.mrb[0].mxu0
      %v3185 = vpop.f32.mrb[0].mxu0
      %v3186 = vadd.f32 0.0, %v3185
      %v3187 = vpop.f32.mrb[0].mxu0
      %3188 = vmatprep.mubr.bf16.mxu0 %v2865
      %3189 = vmatmul.mubr.bf16.gmra.mrb[0].mxu0 %v2864
      %v3190 = vpop.f32.mrb[0].mxu0
      %v3191 = vadd.f32 0.0, %v3190
      %v3192 = vpop.f32.mrb[0].mxu0
      %v3193 = vpop.f32.mrb[0].mxu0
      %v3194 = vadd.f32 0.0, %v3193
      %v3195 = vpop.f32.mrb[0].mxu0
      %3196 = vmatprep.mubr.bf16.mxu0 %v2868
      %3197 = vmatmul.mubr.bf16.gmra.mrb[0].mxu0 %v2867
      %v3198 = vpop.f32.mrb[0].mxu0
      %v3199 = vadd.f32 0.0, %v3198
      %v3200 = vpop.f32.mrb[0].mxu0
      %v3201 = vpop.f32.mrb[0].mxu0
      %v3202 = vadd.f32 0.0, %v3201
      %v3203 = vpop.f32.mrb[0].mxu0
      %3204 = vmatprep.mubr.bf16.mxu0 %v2871
      %3205 = vmatmul.mubr.bf16.gmra.mrb[0].mxu0 %v2870
      %v3206 = vpop.f32.mrb[0].mxu0
      %v3207 = vadd.f32 0.0, %v3206
      %v3208 = vpop.f32.mrb[0].mxu0
      %v3209 = vpop.f32.mrb[0].mxu0
      %v3210 = vadd.f32 0.0, %v3209
      %v3211 = vpop.f32.mrb[0].mxu0
      %3212 = vmatprep.mubr.bf16.mxu0 %v2874
      %3213 = vmatmul.mubr.bf16.gmra.mrb[0].mxu0 %v2873
      %v3214 = vpop.f32.mrb[0].mxu0
      %v3215 = vadd.f32 0.0, %v3214
      %v3216 = vpop.f32.mrb[0].mxu0
      %v3217 = vpop.f32.mrb[0].mxu0
      %v3218 = vadd.f32 0.0, %v3217
      %v3219 = vpop.f32.mrb[0].mxu0
      %3220 = vmatprep.mubr.bf16.mxu0 %v2877
      %3221 = vmatmul.mubr.bf16.gmra.mrb[0].mxu0 %v2876
      %v3222 = vpop.f32.mrb[0].mxu0
      %v3223 = vadd.f32 0.0, %v3222
      %v3224 = vpop.f32.mrb[0].mxu0
      %v3225 = vpop.f32.mrb[0].mxu0
      %v3226 = vadd.f32 0.0, %v3225
      %v3227 = vpop.f32.mrb[0].mxu0
      %3228 = vmatprep.mubr.bf16.mxu0 %v2880
      %3229 = vmatmul.mubr.bf16.gmra.mrb[0].mxu0 %v2879
      %v3230 = vpop.f32.mrb[0].mxu0
      %v3231 = vadd.f32 0.0, %v3230
      %v3232 = vpop.f32.mrb[0].mxu0
      %v3233 = vpop.f32.mrb[0].mxu0
      %v3234 = vadd.f32 0.0, %v3233
      %v3235 = vpop.f32.mrb[0].mxu0
      %3236 = vmatprep.mubr.bf16.mxu0 %v2883
      %3237 = vmatmul.mubr.bf16.gmra.mrb[0].mxu0 %v2882
      %v3238 = vpop.f32.mrb[0].mxu0
      %v3239 = vadd.f32 0.0, %v3238
      %v3240 = vpop.f32.mrb[0].mxu0
      %v3241 = vpop.f32.mrb[0].mxu0
      %v3242 = vpop.f32.mrb[0].mxu0
      %3243 = vdwg.mxu0
      %3244 = vmatprep.subr.bf16.mxu0 0
      %3245 = vmatpush1.bf16.msra.mxu0 %v3074
      %3246 = vmatprep.subr.bf16.mxu0 0
      %3247 = vmatpush1.bf16.msra.mxu0 0
      %3248 = vmatprep.subr.bf16.mxu0 0
      %3249 = vmatpush1.bf16.msra.mxu0 0
      %3250 = vmatprep.subr.bf16.mxu0 0
      %3251 = vmatpush1.bf16.msra.mxu0 0
      %3252 = vmatprep.subr.bf16.mxu0 0
      %3253 = vmatpush1.bf16.msra.mxu0 0
      %3254 = vmatprep.subr.bf16.mxu0 0
      %3255 = vmatpush1.bf16.msra.mxu0 0
      %3256 = vmatprep.subr.bf16.mxu0 0
      %3257 = vmatpush1.bf16.msra.mxu0 0
      %3258 = vmatprep.subr.bf16.mxu0 0
      %3259 = vmatpush1.bf16.msra.mxu0 0
      %3260 = vmatprep.subr.bf16.mxu0 0
      %3261 = vmatpush1.bf16.msra.mxu0 0
      %3262 = vmatprep.subr.bf16.mxu0 0
      %3263 = vmatpush1.bf16.msra.mxu0 0
      %3264 = vmatprep.subr.bf16.mxu0 0
      %3265 = vmatpush1.bf16.msra.mxu0 0
      %3266 = vmatprep.subr.bf16.mxu0 0
      %3267 = vmatpush1.bf16.msra.mxu0 0
      %3268 = vmatprep.subr.bf16.mxu0 0
      %3269 = vmatpush1.bf16.msra.mxu0 0
      %3270 = vmatprep.subr.bf16.mxu0 0
      %3271 = vmatpush1.bf16.msra.mxu0 0
      %3272 = vmatprep.subr.bf16.mxu0 0
      %3273 = vmatpush1.bf16.msra.mxu0 0
      %3274 = vmatprep.subr.bf16.mxu0 0
      %3275 = vmatpush1.bf16.msra.mxu0 0
      %3276 = vmatprep.mubr.bf16.mxu0 0
      %3277 = vmatmul.mubr.bf16.gmra.mrb[0].mxu0 %v3022
      %v3278 = vpop.f32.mrb[0].mxu0
      %v3279 = vadd.f32 %v3111, %v3278
      %v3280 = vpop.f32.mrb[0].mxu0
      %v3281 = vpop.f32.mrb[0].mxu0
      %v3282 = vadd.f32 %v3114, %v3281
      %v3283 = vpop.f32.mrb[0].mxu0
      %3284 = vmatprep.mubr.bf16.mxu0 0
      %3285 = vmatmul.mubr.bf16.gmra.mrb[0].mxu0 %v3025
      %v3286 = vpop.f32.mrb[0].mxu0
      %v3287 = vadd.f32 %v3119, %v3286
      %v3288 = vpop.f32.mrb[0].mxu0
      %v3289 = vpop.f32.mrb[0].mxu0
      %v3290 = vadd.f32 %v3122, %v3289
      %v3291 = vpop.f32.mrb[0].mxu0
      %3292 = vmatprep.mubr.bf16.mxu0 0
      %3293 = vmatmul.mubr.bf16.gmra.mrb[0].mxu0 %v3028
      %v3294 = vpop.f32.mrb[0].mxu0
      %v3295 = vadd.f32 %v3127, %v3294
      %v3296 = vpop.f32.mrb[0].mxu0
      %v3297 = vpop.f32.mrb[0].mxu0
      %v3298 = vadd.f32 %v3130, %v3297
      %v3299 = vpop.f32.mrb[0].mxu0
      %3300 = vmatprep.mubr.bf16.mxu0 0
      %3301 = vmatmul.mubr.bf16.gmra.mrb[0].mxu0 %v3031
      %v3302 = vpop.f32.mrb[0].mxu0
      %v3303 = vadd.f32 %v3135, %v3302
      %v3304 = vpop.f32.mrb[0].mxu0
      %v3305 = vpop.f32.mrb[0].mxu0
      %v3306 = vadd.f32 %v3138, %v3305
      %v3307 = vpop.f32.mrb[0].mxu0
      %3308 = vmatprep.mubr.bf16.mxu0 0
      %3309 = vmatmul.mubr.bf16.gmra.mrb[0].mxu0 %v3034
      %v3310 = vpop.f32.mrb[0].mxu0
      %v3311 = vadd.f32 %v3143, %v3310
      %v3312 = vpop.f32.mrb[0].mxu0
      %v3313 = vpop.f32.mrb[0].mxu0
      %v3314 = vadd.f32 %v3146, %v3313
      %v3315 = vpop.f32.mrb[0].mxu0
      %3316 = vmatprep.mubr.bf16.mxu0 0
      %3317 = vmatmul.mubr.bf16.gmra.mrb[0].mxu0 %v3037
      %v3318 = vpop.f32.mrb[0].mxu0
      %v3319 = vadd.f32 %v3151, %v3318
      %v3320 = vpop.f32.mrb[0].mxu0
      %v3321 = vpop.f32.mrb[0].mxu0
      %v3322 = vadd.f32 %v3154, %v3321
      %v3323 = vpop.f32.mrb[0].mxu0
      %3324 = vmatprep.mubr.bf16.mxu0 0
      %3325 = vmatmul.mubr.bf16.gmra.mrb[0].mxu0 %v3040
      %v3326 = vpop.f32.mrb[0].mxu0
      %v3327 = vadd.f32 %v3159, %v3326
      %v3328 = vpop.f32.mrb[0].mxu0
      %v3329 = vpop.f32.mrb[0].mxu0
      %v3330 = vadd.f32 %v3162, %v3329
      %v3331 = vpop.f32.mrb[0].mxu0
      %3332 = vmatprep.mubr.bf16.mxu0 0
      %3333 = vmatmul.mubr.bf16.gmra.mrb[0].mxu0 %v3043
      %v3334 = vpop.f32.mrb[0].mxu0
      %v3335 = vadd.f32 %v3167, %v3334
      %v3336 = vpop.f32.mrb[0].mxu0
      %v3337 = vpop.f32.mrb[0].mxu0
      %v3338 = vadd.f32 %v3170, %v3337
      %v3339 = vpop.f32.mrb[0].mxu0
      %3340 = vmatprep.mubr.bf16.mxu0 0
      %3341 = vmatmul.mubr.bf16.gmra.mrb[0].mxu0 %v3046
      %v3342 = vpop.f32.mrb[0].mxu0
      %v3343 = vadd.f32 %v3175, %v3342
      %v3344 = vpop.f32.mrb[0].mxu0
      %v3345 = vpop.f32.mrb[0].mxu0
      %v3346 = vadd.f32 %v3178, %v3345
      %v3347 = vpop.f32.mrb[0].mxu0
      %3348 = vmatprep.mubr.bf16.mxu0 0
      %3349 = vmatmul.mubr.bf16.gmra.mrb[0].mxu0 %v3049
      %v3350 = vpop.f32.mrb[0].mxu0
      %v3351 = vadd.f32 %v3183, %v3350
      %v3352 = vpop.f32.mrb[0].mxu0
      %v3353 = vpop.f32.mrb[0].mxu0
      %v3354 = vadd.f32 %v3186, %v3353
      %v3355 = vpop.f32.mrb[0].mxu0
      %3356 = vmatprep.mubr.bf16.mxu0 0
      %3357 = vmatmul.mubr.bf16.gmra.mrb[0].mxu0 %v3052
      %v3358 = vpop.f32.mrb[0].mxu0
      %v3359 = vadd.f32 %v3191, %v3358
      %v3360 = vpop.f32.mrb[0].mxu0
      %v3361 = vpop.f32.mrb[0].mxu0
      %v3362 = vadd.f32 %v3194, %v3361
      %v3363 = vpop.f32.mrb[0].mxu0
      %3364 = vmatprep.mubr.bf16.mxu0 0
      %3365 = vmatmul.mubr.bf16.gmra.mrb[0].mxu0 %v3055
      %v3366 = vpop.f32.mrb[0].mxu0
      %v3367 = vadd.f32 %v3199, %v3366
      %v3368 = vpop.f32.mrb[0].mxu0
      %v3369 = vpop.f32.mrb[0].mxu0
      %v3370 = vadd.f32 %v3202, %v3369
      %v3371 = vpop.f32.mrb[0].mxu0
      %3372 = vmatprep.mubr.bf16.mxu0 0
      %3373 = vmatmul.mubr.bf16.gmra.mrb[0].mxu0 %v3058
      %v3374 = vpop.f32.mrb[0].mxu0
      %v3375 = vadd.f32 %v3207, %v3374
      %v3376 = vpop.f32.mrb[0].mxu0
      %v3377 = vpop.f32.mrb[0].mxu0
      %v3378 = vadd.f32 %v3210, %v3377
      %v3379 = vpop.f32.mrb[0].mxu0
      %3380 = vmatprep.mubr.bf16.mxu0 0
      %3381 = vmatmul.mubr.bf16.gmra.mrb[0].mxu0 %v3061
      %v3382 = vpop.f32.mrb[0].mxu0
      %v3383 = vadd.f32 %v3215, %v3382
      %v3384 = vpop.f32.mrb[0].mxu0
      %v3385 = vpop.f32.mrb[0].mxu0
      %v3386 = vadd.f32 %v3218, %v3385
      %v3387 = vpop.f32.mrb[0].mxu0
      %3388 = vmatprep.mubr.bf16.mxu0 0
      %3389 = vmatmul.mubr.bf16.gmra.mrb[0].mxu0 %v3064
      %v3390 = vpop.f32.mrb[0].mxu0
      %v3391 = vadd.f32 %v3223, %v3390
      %v3392 = vpop.f32.mrb[0].mxu0
      %v3393 = vpop.f32.mrb[0].mxu0
      %v3394 = vadd.f32 %v3226, %v3393
      %v3395 = vpop.f32.mrb[0].mxu0
      %3396 = vmatprep.mubr.bf16.mxu0 0
      %3397 = vmatmul.mubr.bf16.gmra.mrb[0].mxu0 %v3067
      %v3398 = vpop.f32.mrb[0].mxu0
      %v3399 = vadd.f32 %v3231, %v3398
      %v3400 = vpop.f32.mrb[0].mxu0
      %v3401 = vpop.f32.mrb[0].mxu0
      %v3402 = vadd.f32 %v3234, %v3401
      %v3403 = vpop.f32.mrb[0].mxu0
      %3404 = vmatprep.mubr.bf16.mxu0 0
      %3405 = vmatmul.mubr.bf16.gmra.mrb[0].mxu0 %v3070
      %v3406 = vpop.f32.mrb[0].mxu0
      %v3407 = vadd.f32 %v3239, %v3406
      %v3408 = vpop.f32.mrb[0].mxu0
      %v3409 = vpop.f32.mrb[0].mxu0
      %v3410 = vpop.f32.mrb[0].mxu0
      %3411 = vdwg.mxu0
      %v3412 = vpack.c.bf16 %v3282, %v3279
      %v3413 = vpack.c.bf16 %v3290, %v3287
      %v3414 = vpack.c.bf16 %v3298, %v3295
      %v3415 = vpack.c.bf16 %v3306, %v3303
      %v3416 = vpack.c.bf16 %v3314, %v3311
      %v3417 = vpack.c.bf16 %v3322, %v3319
      %v3418 = vpack.c.bf16 %v3330, %v3327
      %v3419 = vpack.c.bf16 %v3338, %v3335
      %v3420 = vpack.c.bf16 %v3346, %v3343
      %v3421 = vpack.c.bf16 %v3354, %v3351
      %v3422 = vpack.c.bf16 %v3362, %v3359
      %v3423 = vpack.c.bf16 %v3370, %v3367
      %v3424 = vpack.c.bf16 %v3378, %v3375
      %v3425 = vpack.c.bf16 %v3386, %v3383
      %v3426 = vpack.c.bf16 %v3394, %v3391
      %v3427 = vpack.c.bf16 %v3402, %v3399
      %v3428 = vpack.c.bf16 %v3407, %v3407
      %v3429 = vld [vmem:[%s7] sm:$0xf]
      %v3430 = vld [vmem:[%s7 + $0x4] sm:$0xf]
      %v3431 = vld [vmem:[%s7 + $0x8] sm:$0xf]
      %v3432 = vld [vmem:[%s7 + $0xc] sm:$0xf]
      %v3433 = vld [vmem:[%s7 + $0x10] sm:$0xf]
      %v3434 = vld [vmem:[%s7 + $0x14] sm:$0x7]
      %v3435 = vld [vmem:[%s8] sm:$0x1]
      %v3437 = vlaneseq
      %v3438 = vshrl.u32 %v3437, 7
      %v3439 = vsub.s32 0, %v3438
      %v3440 = vrot.slane %v3435, %v3439
      %v3448 = vunpack.c.l.b16 %v3429
      %v3449 = vunpack.c.l.b16 %v3430
      %v3450 = vunpack.c.l.b16 %v3431
      %v3451 = vunpack.c.l.b16 %v3432
      %v3452 = vunpack.c.l.b16 %v3433
      %v3453 = vunpack.c.l.b16 %v3434
      %v3454 = vpack.c.b16 %v3449, %v3448
      %v3455 = vpack.c.b16 %v3451, %v3450
      %v3456 = vpack.c.b16 %v3453, %v3452
      %v3460 = vsel %vm962, %v3412, 0
      %v3463 = vsel %vm962, %v3413, 0
      %v3466 = vsel %vm962, %v3414, 0
      %v3469 = vsel %vm962, %v3415, 0
      %v3472 = vsel %vm962, %v3416, 0
      %v3475 = vsel %vm962, %v3417, 0
      %v3478 = vsel %vm962, %v3418, 0
      %v3481 = vsel %vm962, %v3419, 0
      %v3484 = vsel %vm962, %v3420, 0
      %v3487 = vsel %vm962, %v3421, 0
      %v3490 = vsel %vm962, %v3422, 0
      %v3493 = vsel %vm962, %v3423, 0
      %v3496 = vsel %vm962, %v3424, 0
      %v3499 = vsel %vm962, %v3425, 0
      %v3502 = vsel %vm962, %v3426, 0
      %v3505 = vsel %vm962, %v3427, 0
      %v3508 = vsel %vm962, %v3428, 0
      %v3511 = vsel %vm1014, %v3456, 0
      %3513 = vmatprep.subr.bf16.mxu0 0
      %3514 = vmatpush1.bf16.msra.mxu0 %v3454
      %3515 = vmatprep.subr.bf16.mxu0 0
      %3516 = vmatpush1.bf16.msra.mxu0 %v3455
      %3517 = vmatprep.subr.bf16.mxu0 0
      %3518 = vmatpush1.bf16.msra.mxu0 %v3511
      %3519 = vmatprep.subr.bf16.mxu0 0
      %3520 = vmatpush1.bf16.msra.mxu0 0
      %3521 = vmatprep.subr.bf16.mxu0 0
      %3522 = vmatpush1.bf16.msra.mxu0 0
      %3523 = vmatprep.subr.bf16.mxu0 0
      %3524 = vmatpush1.bf16.msra.mxu0 0
      %3525 = vmatprep.subr.bf16.mxu0 0
      %3526 = vmatpush1.bf16.msra.mxu0 0
      %3527 = vmatprep.subr.bf16.mxu0 0
      %3528 = vmatpush1.bf16.msra.mxu0 0
      %3529 = vmatprep.subr.bf16.mxu0 0
      %3530 = vmatpush1.bf16.msra.mxu0 0
      %3531 = vmatprep.subr.bf16.mxu0 0
      %3532 = vmatpush1.bf16.msra.mxu0 0
      %3533 = vmatprep.subr.bf16.mxu0 0
      %3534 = vmatpush1.bf16.msra.mxu0 0
      %3535 = vmatprep.subr.bf16.mxu0 0
      %3536 = vmatpush1.bf16.msra.mxu0 0
      %3537 = vmatprep.subr.bf16.mxu0 0
      %3538 = vmatpush1.bf16.msra.mxu0 0
      %3539 = vmatprep.subr.bf16.mxu0 0
      %3540 = vmatpush1.bf16.msra.mxu0 0
      %3541 = vmatprep.subr.bf16.mxu0 0
      %3542 = vmatpush1.bf16.msra.mxu0 0
      %3543 = vmatprep.subr.bf16.mxu0 0
      %3544 = vmatpush1.bf16.msra.mxu0 0
      %3545 = vmatprep.mubr.bf16.mxu0 0
      %3546 = vmatmul.mubr.bf16.gmra.mrb[0].mxu0 %v3460
      %v3547 = vpop.f32.mrb[0].mxu0
      %v3548 = vadd.f32 %v3440, %v3547
      %v3549 = vpop.f32.mrb[0].mxu0
      %v3550 = vpop.f32.mrb[0].mxu0
      %v3551 = vadd.f32 %v3440, %v3550
      %v3552 = vpop.f32.mrb[0].mxu0
      %3553 = vmatprep.mubr.bf16.mxu0 0
      %3554 = vmatmul.mubr.bf16.gmra.mrb[0].mxu0 %v3463
      %v3555 = vpop.f32.mrb[0].mxu0
      %v3556 = vadd.f32 %v3440, %v3555
      %v3557 = vpop.f32.mrb[0].mxu0
      %v3558 = vpop.f32.mrb[0].mxu0
      %v3559 = vadd.f32 %v3440, %v3558
      %v3560 = vpop.f32.mrb[0].mxu0
      %3561 = vmatprep.mubr.bf16.mxu0 0
      %3562 = vmatmul.mubr.bf16.gmra.mrb[0].mxu0 %v3466
      %v3563 = vpop.f32.mrb[0].mxu0
      %v3564 = vadd.f32 %v3440, %v3563
      %v3565 = vpop.f32.mrb[0].mxu0
      %v3566 = vpop.f32.mrb[0].mxu0
      %v3567 = vadd.f32 %v3440, %v3566
      %v3568 = vpop.f32.mrb[0].mxu0
      %3569 = vmatprep.mubr.bf16.mxu0 0
      %3570 = vmatmul.mubr.bf16.gmra.mrb[0].mxu0 %v3469
      %v3571 = vpop.f32.mrb[0].mxu0
      %v3572 = vadd.f32 %v3440, %v3571
      %v3573 = vpop.f32.mrb[0].mxu0
      %v3574 = vpop.f32.mrb[0].mxu0
      %v3575 = vadd.f32 %v3440, %v3574
      %v3576 = vpop.f32.mrb[0].mxu0
      %3577 = vmatprep.mubr.bf16.mxu0 0
      %3578 = vmatmul.mubr.bf16.gmra.mrb[0].mxu0 %v3472
      %v3579 = vpop.f32.mrb[0].mxu0
      %v3580 = vadd.f32 %v3440, %v3579
      %v3581 = vpop.f32.mrb[0].mxu0
      %v3582 = vpop.f32.mrb[0].mxu0
      %v3583 = vadd.f32 %v3440, %v3582
      %v3584 = vpop.f32.mrb[0].mxu0
      %3585 = vmatprep.mubr.bf16.mxu0 0
      %3586 = vmatmul.mubr.bf16.gmra.mrb[0].mxu0 %v3475
      %v3587 = vpop.f32.mrb[0].mxu0
      %v3588 = vadd.f32 %v3440, %v3587
      %v3589 = vpop.f32.mrb[0].mxu0
      %v3590 = vpop.f32.mrb[0].mxu0
      %v3591 = vadd.f32 %v3440, %v3590
      %v3592 = vpop.f32.mrb[0].mxu0
      %3593 = vmatprep.mubr.bf16.mxu0 0
      %3594 = vmatmul.mubr.bf16.gmra.mrb[0].mxu0 %v3478
      %v3595 = vpop.f32.mrb[0].mxu0
      %v3596 = vadd.f32 %v3440, %v3595
      %v3597 = vpop.f32.mrb[0].mxu0
      %v3598 = vpop.f32.mrb[0].mxu0
      %v3599 = vadd.f32 %v3440, %v3598
      %v3600 = vpop.f32.mrb[0].mxu0
      %3601 = vmatprep.mubr.bf16.mxu0 0
      %3602 = vmatmul.mubr.bf16.gmra.mrb[0].mxu0 %v3481
      %v3603 = vpop.f32.mrb[0].mxu0
      %v3604 = vadd.f32 %v3440, %v3603
      %v3605 = vpop.f32.mrb[0].mxu0
      %v3606 = vpop.f32.mrb[0].mxu0
      %v3607 = vadd.f32 %v3440, %v3606
      %v3608 = vpop.f32.mrb[0].mxu0
      %3609 = vmatprep.mubr.bf16.mxu0 0
      %3610 = vmatmul.mubr.bf16.gmra.mrb[0].mxu0 %v3484
      %v3611 = vpop.f32.mrb[0].mxu0
      %v3612 = vadd.f32 %v3440, %v3611
      %v3613 = vpop.f32.mrb[0].mxu0
      %v3614 = vpop.f32.mrb[0].mxu0
      %v3615 = vadd.f32 %v3440, %v3614
      %v3616 = vpop.f32.mrb[0].mxu0
      %3617 = vmatprep.mubr.bf16.mxu0 0
      %3618 = vmatmul.mubr.bf16.gmra.mrb[0].mxu0 %v3487
      %v3619 = vpop.f32.mrb[0].mxu0
      %v3620 = vadd.f32 %v3440, %v3619
      %v3621 = vpop.f32.mrb[0].mxu0
      %v3622 = vpop.f32.mrb[0].mxu0
      %v3623 = vadd.f32 %v3440, %v3622
      %v3624 = vpop.f32.mrb[0].mxu0
      %3625 = vmatprep.mubr.bf16.mxu0 0
      %3626 = vmatmul.mubr.bf16.gmra.mrb[0].mxu0 %v3490
      %v3627 = vpop.f32.mrb[0].mxu0
      %v3628 = vadd.f32 %v3440, %v3627
      %v3629 = vpop.f32.mrb[0].mxu0
      %v3630 = vpop.f32.mrb[0].mxu0
      %v3631 = vadd.f32 %v3440, %v3630
      %v3632 = vpop.f32.mrb[0].mxu0
      %3633 = vmatprep.mubr.bf16.mxu0 0
      %3634 = vmatmul.mubr.bf16.gmra.mrb[0].mxu0 %v3493
      %v3635 = vpop.f32.mrb[0].mxu0
      %v3636 = vadd.f32 %v3440, %v3635
      %v3637 = vpop.f32.mrb[0].mxu0
      %v3638 = vpop.f32.mrb[0].mxu0
      %v3639 = vadd.f32 %v3440, %v3638
      %v3640 = vpop.f32.mrb[0].mxu0
      %3641 = vmatprep.mubr.bf16.mxu0 0
      %3642 = vmatmul.mubr.bf16.gmra.mrb[0].mxu0 %v3496
      %v3643 = vpop.f32.mrb[0].mxu0
      %v3644 = vadd.f32 %v3440, %v3643
      %v3645 = vpop.f32.mrb[0].mxu0
      %v3646 = vpop.f32.mrb[0].mxu0
      %v3647 = vadd.f32 %v3440, %v3646
      %v3648 = vpop.f32.mrb[0].mxu0
      %3649 = vmatprep.mubr.bf16.mxu0 0
      %3650 = vmatmul.mubr.bf16.gmra.mrb[0].mxu0 %v3499
      %v3651 = vpop.f32.mrb[0].mxu0
      %v3652 = vadd.f32 %v3440, %v3651
      %v3653 = vpop.f32.mrb[0].mxu0
      %v3654 = vpop.f32.mrb[0].mxu0
      %v3655 = vadd.f32 %v3440, %v3654
      %v3656 = vpop.f32.mrb[0].mxu0
      %3657 = vmatprep.mubr.bf16.mxu0 0
      %3658 = vmatmul.mubr.bf16.gmra.mrb[0].mxu0 %v3502
      %v3659 = vpop.f32.mrb[0].mxu0
      %v3660 = vadd.f32 %v3440, %v3659
      %v3661 = vpop.f32.mrb[0].mxu0
      %v3662 = vpop.f32.mrb[0].mxu0
      %v3663 = vadd.f32 %v3440, %v3662
      %v3664 = vpop.f32.mrb[0].mxu0
      %3665 = vmatprep.mubr.bf16.mxu0 0
      %3666 = vmatmul.mubr.bf16.gmra.mrb[0].mxu0 %v3505
      %v3667 = vpop.f32.mrb[0].mxu0
      %v3668 = vadd.f32 %v3440, %v3667
      %v3669 = vpop.f32.mrb[0].mxu0
      %v3670 = vpop.f32.mrb[0].mxu0
      %v3671 = vadd.f32 %v3440, %v3670
      %v3672 = vpop.f32.mrb[0].mxu0
      %3673 = vmatprep.mubr.bf16.mxu0 0
      %3674 = vmatmul.mubr.bf16.gmra.mrb[0].mxu0 %v3508
      %v3675 = vpop.f32.mrb[0].mxu0
      %v3676 = vadd.f32 %v3440, %v3675
      %v3677 = vpop.f32.mrb[0].mxu0
      %v3678 = vpop.f32.mrb[0].mxu0
      %v3679 = vpop.f32.mrb[0].mxu0
      %3680 = vdwg.mxu0
      %v3681 = vadd.f32 %v621, %v3548
      %v3682 = vadd.f32 %v622, %v3551
      %v3683 = vadd.f32 %v623, %v3556
      %v3684 = vadd.f32 %v624, %v3559
      %v3685 = vadd.f32 %v625, %v3564
      %v3686 = vadd.f32 %v626, %v3567
      %v3687 = vadd.f32 %v627, %v3572
      %v3688 = vadd.f32 %v628, %v3575
      %v3689 = vadd.f32 %v629, %v3580
      %v3690 = vadd.f32 %v630, %v3583
      %v3691 = vadd.f32 %v631, %v3588
      %v3692 = vadd.f32 %v632, %v3591
      %v3693 = vadd.f32 %v633, %v3596
      %v3694 = vadd.f32 %v634, %v3599
      %v3695 = vadd.f32 %v635, %v3604
      %v3696 = vadd.f32 %v636, %v3607
      %v3697 = vadd.f32 %v637, %v3612
      %v3698 = vadd.f32 %v638, %v3615
      %v3699 = vadd.f32 %v639, %v3620
      %v3700 = vadd.f32 %v640, %v3623
      %v3701 = vadd.f32 %v641, %v3628
      %v3702 = vadd.f32 %v642, %v3631
      %v3703 = vadd.f32 %v643, %v3636
      %v3704 = vadd.f32 %v644, %v3639
      %v3705 = vadd.f32 %v645, %v3644
      %v3706 = vadd.f32 %v646, %v3647
      %v3707 = vadd.f32 %v647, %v3652
      %v3708 = vadd.f32 %v648, %v3655
      %v3709 = vadd.f32 %v649, %v3660
      %v3710 = vadd.f32 %v650, %v3663
      %v3711 = vadd.f32 %v651, %v3668
      %v3712 = vadd.f32 %v652, %v3671
      %v3713 = vadd.f32 %v653, %v3676
      %v3714 = vld [vmem:[%s9] sm:$0x1]
      %v3715 = vld [vmem:[%s10] sm:$0x1]
      %v3716 = vsel %vm962, %v3681, 0.0
      %3717 = vadd.xlane.f32.xlu0 %v3716
      %v3718 = vpop.xlane.xlu0 %3717
      %v3719 = vsel %vm962, %v3682, 0.0
      %3720 = vadd.xlane.f32.xlu0 %v3719
      %v3721 = vpop.xlane.xlu0 %3720
      %v3722 = vsel %vm962, %v3683, 0.0
      %3723 = vadd.xlane.f32.xlu0 %v3722
      %v3724 = vpop.xlane.xlu0 %3723
      %v3725 = vsel %vm962, %v3684, 0.0
      %3726 = vadd.xlane.f32.xlu0 %v3725
      %v3727 = vpop.xlane.xlu0 %3726
      %v3728 = vsel %vm962, %v3685, 0.0
      %3729 = vadd.xlane.f32.xlu0 %v3728
      %v3730 = vpop.xlane.xlu0 %3729
      %v3731 = vsel %vm962, %v3686, 0.0
      %3732 = vadd.xlane.f32.xlu0 %v3731
      %v3733 = vpop.xlane.xlu0 %3732
      %v3734 = vsel %vm962, %v3687, 0.0
      %3735 = vadd.xlane.f32.xlu0 %v3734
      %v3736 = vpop.xlane.xlu0 %3735
      %v3737 = vsel %vm962, %v3688, 0.0
      %3738 = vadd.xlane.f32.xlu0 %v3737
      %v3739 = vpop.xlane.xlu0 %3738
      %v3740 = vsel %vm962, %v3689, 0.0
      %3741 = vadd.xlane.f32.xlu0 %v3740
      %v3742 = vpop.xlane.xlu0 %3741
      %v3743 = vsel %vm962, %v3690, 0.0
      %3744 = vadd.xlane.f32.xlu0 %v3743
      %v3745 = vpop.xlane.xlu0 %3744
      %v3746 = vsel %vm962, %v3691, 0.0
      %3747 = vadd.xlane.f32.xlu0 %v3746
      %v3748 = vpop.xlane.xlu0 %3747
      %v3749 = vsel %vm962, %v3692, 0.0
      %3750 = vadd.xlane.f32.xlu0 %v3749
      %v3751 = vpop.xlane.xlu0 %3750
      %v3752 = vsel %vm962, %v3693, 0.0
      %3753 = vadd.xlane.f32.xlu0 %v3752
      %v3754 = vpop.xlane.xlu0 %3753
      %v3755 = vsel %vm962, %v3694, 0.0
      %3756 = vadd.xlane.f32.xlu0 %v3755
      %v3757 = vpop.xlane.xlu0 %3756
      %v3758 = vsel %vm962, %v3695, 0.0
      %3759 = vadd.xlane.f32.xlu0 %v3758
      %v3760 = vpop.xlane.xlu0 %3759
      %v3761 = vsel %vm962, %v3696, 0.0
      %3762 = vadd.xlane.f32.xlu0 %v3761
      %v3763 = vpop.xlane.xlu0 %3762
      %v3764 = vsel %vm962, %v3697, 0.0
      %3765 = vadd.xlane.f32.xlu0 %v3764
      %v3766 = vpop.xlane.xlu0 %3765
      %v3767 = vsel %vm962, %v3698, 0.0
      %3768 = vadd.xlane.f32.xlu0 %v3767
      %v3769 = vpop.xlane.xlu0 %3768
      %v3770 = vsel %vm962, %v3699, 0.0
      %3771 = vadd.xlane.f32.xlu0 %v3770
      %v3772 = vpop.xlane.xlu0 %3771
      %v3773 = vsel %vm962, %v3700, 0.0
      %3774 = vadd.xlane.f32.xlu0 %v3773
      %v3775 = vpop.xlane.xlu0 %3774
      %v3776 = vsel %vm962, %v3701, 0.0
      %3777 = vadd.xlane.f32.xlu0 %v3776
      %v3778 = vpop.xlane.xlu0 %3777
      %v3779 = vsel %vm962, %v3702, 0.0
      %3780 = vadd.xlane.f32.xlu0 %v3779
      %v3781 = vpop.xlane.xlu0 %3780
      %v3782 = vsel %vm962, %v3703, 0.0
      %3783 = vadd.xlane.f32.xlu0 %v3782
      %v3784 = vpop.xlane.xlu0 %3783
      %v3785 = vsel %vm962, %v3704, 0.0
      %3786 = vadd.xlane.f32.xlu0 %v3785
      %v3787 = vpop.xlane.xlu0 %3786
      %v3788 = vsel %vm962, %v3705, 0.0
      %3789 = vadd.xlane.f32.xlu0 %v3788
      %v3790 = vpop.xlane.xlu0 %3789
      %v3791 = vsel %vm962, %v3706, 0.0
      %3792 = vadd.xlane.f32.xlu0 %v3791
      %v3793 = vpop.xlane.xlu0 %3792
      %v3794 = vsel %vm962, %v3707, 0.0
      %3795 = vadd.xlane.f32.xlu0 %v3794
      %v3796 = vpop.xlane.xlu0 %3795
      %v3797 = vsel %vm962, %v3708, 0.0
      %3798 = vadd.xlane.f32.xlu0 %v3797
      %v3799 = vpop.xlane.xlu0 %3798
      %v3800 = vsel %vm962, %v3709, 0.0
      %3801 = vadd.xlane.f32.xlu0 %v3800
      %v3802 = vpop.xlane.xlu0 %3801
      %v3803 = vsel %vm962, %v3710, 0.0
      %3804 = vadd.xlane.f32.xlu0 %v3803
      %v3805 = vpop.xlane.xlu0 %3804
      %v3806 = vsel %vm962, %v3711, 0.0
      %3807 = vadd.xlane.f32.xlu0 %v3806
      %v3808 = vpop.xlane.xlu0 %3807
      %v3809 = vsel %vm962, %v3712, 0.0
      %3810 = vadd.xlane.f32.xlu0 %v3809
      %v3811 = vpop.xlane.xlu0 %3810
      %v3812 = vsel %vm962, %v3713, 0.0
      %3813 = vadd.xlane.f32.xlu0 %v3812
      %v3814 = vpop.xlane.xlu0 %3813
      %v3815 = vrcp.pop 46.0
      %v3816 = vmul.f32 %v3718, %v3815
      %v3817 = vmul.f32 %v3721, %v3815
      %v3818 = vmul.f32 %v3724, %v3815
      %v3819 = vmul.f32 %v3727, %v3815
      %v3820 = vmul.f32 %v3730, %v3815
      %v3821 = vmul.f32 %v3733, %v3815
      %v3822 = vmul.f32 %v3736, %v3815
      %v3823 = vmul.f32 %v3739, %v3815
      %v3824 = vmul.f32 %v3742, %v3815
      %v3825 = vmul.f32 %v3745, %v3815
      %v3826 = vmul.f32 %v3748, %v3815
      %v3827 = vmul.f32 %v3751, %v3815
      %v3828 = vmul.f32 %v3754, %v3815
      %v3829 = vmul.f32 %v3757, %v3815
      %v3830 = vmul.f32 %v3760, %v3815
      %v3831 = vmul.f32 %v3763, %v3815
      %v3832 = vmul.f32 %v3766, %v3815
      %v3833 = vmul.f32 %v3769, %v3815
      %v3834 = vmul.f32 %v3772, %v3815
      %v3835 = vmul.f32 %v3775, %v3815
      %v3836 = vmul.f32 %v3778, %v3815
      %v3837 = vmul.f32 %v3781, %v3815
      %v3838 = vmul.f32 %v3784, %v3815
      %v3839 = vmul.f32 %v3787, %v3815
      %v3840 = vmul.f32 %v3790, %v3815
      %v3841 = vmul.f32 %v3793, %v3815
      %v3842 = vmul.f32 %v3796, %v3815
      %v3843 = vmul.f32 %v3799, %v3815
      %v3844 = vmul.f32 %v3802, %v3815
      %v3845 = vmul.f32 %v3805, %v3815
      %v3846 = vmul.f32 %v3808, %v3815
      %v3847 = vmul.f32 %v3811, %v3815
      %v3848 = vmul.f32 %v3814, %v3815
      %v3849 = vsub.f32 %v3681, %v3816
      %v3850 = vsub.f32 %v3682, %v3817
      %v3851 = vsub.f32 %v3683, %v3818
      %v3852 = vsub.f32 %v3684, %v3819
      %v3853 = vsub.f32 %v3685, %v3820
      %v3854 = vsub.f32 %v3686, %v3821
      %v3855 = vsub.f32 %v3687, %v3822
      %v3856 = vsub.f32 %v3688, %v3823
      %v3857 = vsub.f32 %v3689, %v3824
      %v3858 = vsub.f32 %v3690, %v3825
      %v3859 = vsub.f32 %v3691, %v3826
      %v3860 = vsub.f32 %v3692, %v3827
      %v3861 = vsub.f32 %v3693, %v3828
      %v3862 = vsub.f32 %v3694, %v3829
      %v3863 = vsub.f32 %v3695, %v3830
      %v3864 = vsub.f32 %v3696, %v3831
      %v3865 = vsub.f32 %v3697, %v3832
      %v3866 = vsub.f32 %v3698, %v3833
      %v3867 = vsub.f32 %v3699, %v3834
      %v3868 = vsub.f32 %v3700, %v3835
      %v3869 = vsub.f32 %v3701, %v3836
      %v3870 = vsub.f32 %v3702, %v3837
      %v3871 = vsub.f32 %v3703, %v3838
      %v3872 = vsub.f32 %v3704, %v3839
      %v3873 = vsub.f32 %v3705, %v3840
      %v3874 = vsub.f32 %v3706, %v3841
      %v3875 = vsub.f32 %v3707, %v3842
      %v3876 = vsub.f32 %v3708, %v3843
      %v3877 = vsub.f32 %v3709, %v3844
      %v3878 = vsub.f32 %v3710, %v3845
      %v3879 = vsub.f32 %v3711, %v3846
      %v3880 = vsub.f32 %v3712, %v3847
      %v3881 = vsub.f32 %v3713, %v3848
      %v3882 = vmul.f32 %v3849, %v3849
      %v3883 = vmul.f32 %v3850, %v3850
      %v3884 = vmul.f32 %v3851, %v3851
      %v3885 = vmul.f32 %v3852, %v3852
      %v3886 = vmul.f32 %v3853, %v3853
      %v3887 = vmul.f32 %v3854, %v3854
      %v3888 = vmul.f32 %v3855, %v3855
      %v3889 = vmul.f32 %v3856, %v3856
      %v3890 = vmul.f32 %v3857, %v3857
      %v3891 = vmul.f32 %v3858, %v3858
      %v3892 = vmul.f32 %v3859, %v3859
      %v3893 = vmul.f32 %v3860, %v3860
      %v3894 = vmul.f32 %v3861, %v3861
      %v3895 = vmul.f32 %v3862, %v3862
      %v3896 = vmul.f32 %v3863, %v3863
      %v3897 = vmul.f32 %v3864, %v3864
      %v3898 = vmul.f32 %v3865, %v3865
      %v3899 = vmul.f32 %v3866, %v3866
      %v3900 = vmul.f32 %v3867, %v3867
      %v3901 = vmul.f32 %v3868, %v3868
      %v3902 = vmul.f32 %v3869, %v3869
      %v3903 = vmul.f32 %v3870, %v3870
      %v3904 = vmul.f32 %v3871, %v3871
      %v3905 = vmul.f32 %v3872, %v3872
      %v3906 = vmul.f32 %v3873, %v3873
      %v3907 = vmul.f32 %v3874, %v3874
      %v3908 = vmul.f32 %v3875, %v3875
      %v3909 = vmul.f32 %v3876, %v3876
      %v3910 = vmul.f32 %v3877, %v3877
      %v3911 = vmul.f32 %v3878, %v3878
      %v3912 = vmul.f32 %v3879, %v3879
      %v3913 = vmul.f32 %v3880, %v3880
      %v3914 = vmul.f32 %v3881, %v3881
      %v3915 = vsel %vm962, %v3882, 0.0
      %3916 = vadd.xlane.f32.xlu0 %v3915
      %v3917 = vpop.xlane.xlu0 %3916
      %v3918 = vsel %vm962, %v3883, 0.0
      %3919 = vadd.xlane.f32.xlu0 %v3918
      %v3920 = vpop.xlane.xlu0 %3919
      %v3921 = vsel %vm962, %v3884, 0.0
      %3922 = vadd.xlane.f32.xlu0 %v3921
      %v3923 = vpop.xlane.xlu0 %3922
      %v3924 = vsel %vm962, %v3885, 0.0
      %3925 = vadd.xlane.f32.xlu0 %v3924
      %v3926 = vpop.xlane.xlu0 %3925
      %v3927 = vsel %vm962, %v3886, 0.0
      %3928 = vadd.xlane.f32.xlu0 %v3927
      %v3929 = vpop.xlane.xlu0 %3928
      %v3930 = vsel %vm962, %v3887, 0.0
      %3931 = vadd.xlane.f32.xlu0 %v3930
      %v3932 = vpop.xlane.xlu0 %3931
      %v3933 = vsel %vm962, %v3888, 0.0
      %3934 = vadd.xlane.f32.xlu0 %v3933
      %v3935 = vpop.xlane.xlu0 %3934
      %v3936 = vsel %vm962, %v3889, 0.0
      %3937 = vadd.xlane.f32.xlu0 %v3936
      %v3938 = vpop.xlane.xlu0 %3937
      %v3939 = vsel %vm962, %v3890, 0.0
      %3940 = vadd.xlane.f32.xlu0 %v3939
      %v3941 = vpop.xlane.xlu0 %3940
      %v3942 = vsel %vm962, %v3891, 0.0
      %3943 = vadd.xlane.f32.xlu0 %v3942
      %v3944 = vpop.xlane.xlu0 %3943
      %v3945 = vsel %vm962, %v3892, 0.0
      %3946 = vadd.xlane.f32.xlu0 %v3945
      %v3947 = vpop.xlane.xlu0 %3946
      %v3948 = vsel %vm962, %v3893, 0.0
      %3949 = vadd.xlane.f32.xlu0 %v3948
      %v3950 = vpop.xlane.xlu0 %3949
      %v3951 = vsel %vm962, %v3894, 0.0
      %3952 = vadd.xlane.f32.xlu0 %v3951
      %v3953 = vpop.xlane.xlu0 %3952
      %v3954 = vsel %vm962, %v3895, 0.0
      %3955 = vadd.xlane.f32.xlu0 %v3954
      %v3956 = vpop.xlane.xlu0 %3955
      %v3957 = vsel %vm962, %v3896, 0.0
      %3958 = vadd.xlane.f32.xlu0 %v3957
      %v3959 = vpop.xlane.xlu0 %3958
      %v3960 = vsel %vm962, %v3897, 0.0
      %3961 = vadd.xlane.f32.xlu0 %v3960
      %v3962 = vpop.xlane.xlu0 %3961
      %v3963 = vsel %vm962, %v3898, 0.0
      %3964 = vadd.xlane.f32.xlu0 %v3963
      %v3965 = vpop.xlane.xlu0 %3964
      %v3966 = vsel %vm962, %v3899, 0.0
      %3967 = vadd.xlane.f32.xlu0 %v3966
      %v3968 = vpop.xlane.xlu0 %3967
      %v3969 = vsel %vm962, %v3900, 0.0
      %3970 = vadd.xlane.f32.xlu0 %v3969
      %v3971 = vpop.xlane.xlu0 %3970
      %v3972 = vsel %vm962, %v3901, 0.0
      %3973 = vadd.xlane.f32.xlu0 %v3972
      %v3974 = vpop.xlane.xlu0 %3973
      %v3975 = vsel %vm962, %v3902, 0.0
      %3976 = vadd.xlane.f32.xlu0 %v3975
      %v3977 = vpop.xlane.xlu0 %3976
      %v3978 = vsel %vm962, %v3903, 0.0
      %3979 = vadd.xlane.f32.xlu0 %v3978
      %v3980 = vpop.xlane.xlu0 %3979
      %v3981 = vsel %vm962, %v3904, 0.0
      %3982 = vadd.xlane.f32.xlu0 %v3981
      %v3983 = vpop.xlane.xlu0 %3982
      %v3984 = vsel %vm962, %v3905, 0.0
      %3985 = vadd.xlane.f32.xlu0 %v3984
      %v3986 = vpop.xlane.xlu0 %3985
      %v3987 = vsel %vm962, %v3906, 0.0
      %3988 = vadd.xlane.f32.xlu0 %v3987
      %v3989 = vpop.xlane.xlu0 %3988
      %v3990 = vsel %vm962, %v3907, 0.0
      %3991 = vadd.xlane.f32.xlu0 %v3990
      %v3992 = vpop.xlane.xlu0 %3991
      %v3993 = vsel %vm962, %v3908, 0.0
      %3994 = vadd.xlane.f32.xlu0 %v3993
      %v3995 = vpop.xlane.xlu0 %3994
      %v3996 = vsel %vm962, %v3909, 0.0
      %3997 = vadd.xlane.f32.xlu0 %v3996
      %v3998 = vpop.xlane.xlu0 %3997
      %v3999 = vsel %vm962, %v3910, 0.0
      %4000 = vadd.xlane.f32.xlu0 %v3999
      %v4001 = vpop.xlane.xlu0 %4000
      %v4002 = vsel %vm962, %v3911, 0.0
      %4003 = vadd.xlane.f32.xlu0 %v4002
      %v4004 = vpop.xlane.xlu0 %4003
      %v4005 = vsel %vm962, %v3912, 0.0
      %4006 = vadd.xlane.f32.xlu0 %v4005
      %v4007 = vpop.xlane.xlu0 %4006
      %v4008 = vsel %vm962, %v3913, 0.0
      %4009 = vadd.xlane.f32.xlu0 %v4008
      %v4010 = vpop.xlane.xlu0 %4009
      %v4011 = vsel %vm962, %v3914, 0.0
      %4012 = vadd.xlane.f32.xlu0 %v4011
      %v4013 = vpop.xlane.xlu0 %4012
      %v4014 = vmul.f32 %v3917, %v3815
      %v4015 = vmul.f32 %v3920, %v3815
      %v4016 = vmul.f32 %v3923, %v3815
      %v4017 = vmul.f32 %v3926, %v3815
      %v4018 = vmul.f32 %v3929, %v3815
      %v4019 = vmul.f32 %v3932, %v3815
      %v4020 = vmul.f32 %v3935, %v3815
      %v4021 = vmul.f32 %v3938, %v3815
      %v4022 = vmul.f32 %v3941, %v3815
      %v4023 = vmul.f32 %v3944, %v3815
      %v4024 = vmul.f32 %v3947, %v3815
      %v4025 = vmul.f32 %v3950, %v3815
      %v4026 = vmul.f32 %v3953, %v3815
      %v4027 = vmul.f32 %v3956, %v3815
      %v4028 = vmul.f32 %v3959, %v3815
      %v4029 = vmul.f32 %v3962, %v3815
      %v4030 = vmul.f32 %v3965, %v3815
      %v4031 = vmul.f32 %v3968, %v3815
      %v4032 = vmul.f32 %v3971, %v3815
      %v4033 = vmul.f32 %v3974, %v3815
      %v4034 = vmul.f32 %v3977, %v3815
      %v4035 = vmul.f32 %v3980, %v3815
      %v4036 = vmul.f32 %v3983, %v3815
      %v4037 = vmul.f32 %v3986, %v3815
      %v4038 = vmul.f32 %v3989, %v3815
      %v4039 = vmul.f32 %v3992, %v3815
      %v4040 = vmul.f32 %v3995, %v3815
      %v4041 = vmul.f32 %v3998, %v3815
      %v4042 = vmul.f32 %v4001, %v3815
      %v4043 = vmul.f32 %v4004, %v3815
      %v4044 = vmul.f32 %v4007, %v3815
      %v4045 = vmul.f32 %v4010, %v3815
      %v4046 = vmul.f32 %v4013, %v3815
      %v4047 = vadd.f32 %v4014, 1e-05
      %v4048 = vadd.f32 %v4015, 1e-05
      %v4049 = vadd.f32 %v4016, 1e-05
      %v4050 = vadd.f32 %v4017, 1e-05
      %v4051 = vadd.f32 %v4018, 1e-05
      %v4052 = vadd.f32 %v4019, 1e-05
      %v4053 = vadd.f32 %v4020, 1e-05
      %v4054 = vadd.f32 %v4021, 1e-05
      %v4055 = vadd.f32 %v4022, 1e-05
      %v4056 = vadd.f32 %v4023, 1e-05
      %v4057 = vadd.f32 %v4024, 1e-05
      %v4058 = vadd.f32 %v4025, 1e-05
      %v4059 = vadd.f32 %v4026, 1e-05
      %v4060 = vadd.f32 %v4027, 1e-05
      %v4061 = vadd.f32 %v4028, 1e-05
      %v4062 = vadd.f32 %v4029, 1e-05
      %v4063 = vadd.f32 %v4030, 1e-05
      %v4064 = vadd.f32 %v4031, 1e-05
      %v4065 = vadd.f32 %v4032, 1e-05
      %v4066 = vadd.f32 %v4033, 1e-05
      %v4067 = vadd.f32 %v4034, 1e-05
      %v4068 = vadd.f32 %v4035, 1e-05
      %v4069 = vadd.f32 %v4036, 1e-05
      %v4070 = vadd.f32 %v4037, 1e-05
      %v4071 = vadd.f32 %v4038, 1e-05
      %v4072 = vadd.f32 %v4039, 1e-05
      %v4073 = vadd.f32 %v4040, 1e-05
      %v4074 = vadd.f32 %v4041, 1e-05
      %v4075 = vadd.f32 %v4042, 1e-05
      %v4076 = vadd.f32 %v4043, 1e-05
      %v4077 = vadd.f32 %v4044, 1e-05
      %v4078 = vadd.f32 %v4045, 1e-05
      %v4079 = vadd.f32 %v4046, 1e-05
      %v4080 = vrsqrt.pop %v4047
      %v4081 = vrsqrt.pop %v4048
      %v4082 = vrsqrt.pop %v4049
      %v4083 = vrsqrt.pop %v4050
      %v4084 = vrsqrt.pop %v4051
      %v4085 = vrsqrt.pop %v4052
      %v4086 = vrsqrt.pop %v4053
      %v4087 = vrsqrt.pop %v4054
      %v4088 = vrsqrt.pop %v4055
      %v4089 = vrsqrt.pop %v4056
      %v4090 = vrsqrt.pop %v4057
      %v4091 = vrsqrt.pop %v4058
      %v4092 = vrsqrt.pop %v4059
      %v4093 = vrsqrt.pop %v4060
      %v4094 = vrsqrt.pop %v4061
      %v4095 = vrsqrt.pop %v4062
      %v4096 = vrsqrt.pop %v4063
      %v4097 = vrsqrt.pop %v4064
      %v4098 = vrsqrt.pop %v4065
      %v4099 = vrsqrt.pop %v4066
      %v4100 = vrsqrt.pop %v4067
      %v4101 = vrsqrt.pop %v4068
      %v4102 = vrsqrt.pop %v4069
      %v4103 = vrsqrt.pop %v4070
      %v4104 = vrsqrt.pop %v4071
      %v4105 = vrsqrt.pop %v4072
      %v4106 = vrsqrt.pop %v4073
      %v4107 = vrsqrt.pop %v4074
      %v4108 = vrsqrt.pop %v4075
      %v4109 = vrsqrt.pop %v4076
      %v4110 = vrsqrt.pop %v4077
      %v4111 = vrsqrt.pop %v4078
      %v4112 = vrsqrt.pop %v4079
      %v4113 = vmul.f32 %v3849, %v4080
      %v4114 = vmul.f32 %v3850, %v4081
      %v4115 = vmul.f32 %v3851, %v4082
      %v4116 = vmul.f32 %v3852, %v4083
      %v4117 = vmul.f32 %v3853, %v4084
      %v4118 = vmul.f32 %v3854, %v4085
      %v4119 = vmul.f32 %v3855, %v4086
      %v4120 = vmul.f32 %v3856, %v4087
      %v4121 = vmul.f32 %v3857, %v4088
      %v4122 = vmul.f32 %v3858, %v4089
      %v4123 = vmul.f32 %v3859, %v4090
      %v4124 = vmul.f32 %v3860, %v4091
      %v4125 = vmul.f32 %v3861, %v4092
      %v4126 = vmul.f32 %v3862, %v4093
      %v4127 = vmul.f32 %v3863, %v4094
      %v4128 = vmul.f32 %v3864, %v4095
      %v4129 = vmul.f32 %v3865, %v4096
      %v4130 = vmul.f32 %v3866, %v4097
      %v4131 = vmul.f32 %v3867, %v4098
      %v4132 = vmul.f32 %v3868, %v4099
      %v4133 = vmul.f32 %v3869, %v4100
      %v4134 = vmul.f32 %v3870, %v4101
      %v4135 = vmul.f32 %v3871, %v4102
      %v4136 = vmul.f32 %v3872, %v4103
      %v4137 = vmul.f32 %v3873, %v4104
      %v4138 = vmul.f32 %v3874, %v4105
      %v4139 = vmul.f32 %v3875, %v4106
      %v4140 = vmul.f32 %v3876, %v4107
      %v4141 = vmul.f32 %v3877, %v4108
      %v4142 = vmul.f32 %v3878, %v4109
      %v4143 = vmul.f32 %v3879, %v4110
      %v4144 = vmul.f32 %v3880, %v4111
      %v4145 = vmul.f32 %v3881, %v4112
      %v4147 = vlaneseq
      %v4148 = vshrl.u32 %v4147, 7
      %v4149 = vsub.s32 0, %v4148
      %v4150 = vrot.slane %v3714, %v4149
      %v4152 = vmul.f32 %v4113, %v4150
      %v4153 = vmul.f32 %v4114, %v4150
      %v4154 = vmul.f32 %v4115, %v4150
      %v4155 = vmul.f32 %v4116, %v4150
      %v4156 = vmul.f32 %v4117, %v4150
      %v4157 = vmul.f32 %v4118, %v4150
      %v4158 = vmul.f32 %v4119, %v4150
      %v4159 = vmul.f32 %v4120, %v4150
      %v4160 = vmul.f32 %v4121, %v4150
      %v4161 = vmul.f32 %v4122, %v4150
      %v4162 = vmul.f32 %v4123, %v4150
      %v4163 = vmul.f32 %v4124, %v4150
      %v4164 = vmul.f32 %v4125, %v4150
      %v4165 = vmul.f32 %v4126, %v4150
      %v4166 = vmul.f32 %v4127, %v4150
      %v4167 = vmul.f32 %v4128, %v4150
      %v4168 = vmul.f32 %v4129, %v4150
      %v4169 = vmul.f32 %v4130, %v4150
      %v4170 = vmul.f32 %v4131, %v4150
      %v4171 = vmul.f32 %v4132, %v4150
      %v4172 = vmul.f32 %v4133, %v4150
      %v4173 = vmul.f32 %v4134, %v4150
      %v4174 = vmul.f32 %v4135, %v4150
      %v4175 = vmul.f32 %v4136, %v4150
      %v4176 = vmul.f32 %v4137, %v4150
      %v4177 = vmul.f32 %v4138, %v4150
      %v4178 = vmul.f32 %v4139, %v4150
      %v4179 = vmul.f32 %v4140, %v4150
      %v4180 = vmul.f32 %v4141, %v4150
      %v4181 = vmul.f32 %v4142, %v4150
      %v4182 = vmul.f32 %v4143, %v4150
      %v4183 = vmul.f32 %v4144, %v4150
      %v4184 = vmul.f32 %v4145, %v4150
      %v4186 = vlaneseq
      %v4187 = vshrl.u32 %v4186, 7
      %v4188 = vsub.s32 0, %v4187
      %v4189 = vrot.slane %v3715, %v4188
      %v4191 = vadd.f32 %v4152, %v4189
      %v4192 = vadd.f32 %v4153, %v4189
      %v4193 = vadd.f32 %v4154, %v4189
      %v4194 = vadd.f32 %v4155, %v4189
      %v4195 = vadd.f32 %v4156, %v4189
      %v4196 = vadd.f32 %v4157, %v4189
      %v4197 = vadd.f32 %v4158, %v4189
      %v4198 = vadd.f32 %v4159, %v4189
      %v4199 = vadd.f32 %v4160, %v4189
      %v4200 = vadd.f32 %v4161, %v4189
      %v4201 = vadd.f32 %v4162, %v4189
      %v4202 = vadd.f32 %v4163, %v4189
      %v4203 = vadd.f32 %v4164, %v4189
      %v4204 = vadd.f32 %v4165, %v4189
      %v4205 = vadd.f32 %v4166, %v4189
      %v4206 = vadd.f32 %v4167, %v4189
      %v4207 = vadd.f32 %v4168, %v4189
      %v4208 = vadd.f32 %v4169, %v4189
      %v4209 = vadd.f32 %v4170, %v4189
      %v4210 = vadd.f32 %v4171, %v4189
      %v4211 = vadd.f32 %v4172, %v4189
      %v4212 = vadd.f32 %v4173, %v4189
      %v4213 = vadd.f32 %v4174, %v4189
      %v4214 = vadd.f32 %v4175, %v4189
      %v4215 = vadd.f32 %v4176, %v4189
      %v4216 = vadd.f32 %v4177, %v4189
      %v4217 = vadd.f32 %v4178, %v4189
      %v4218 = vadd.f32 %v4179, %v4189
      %v4219 = vadd.f32 %v4180, %v4189
      %v4220 = vadd.f32 %v4181, %v4189
      %v4221 = vadd.f32 %v4182, %v4189
      %v4222 = vadd.f32 %v4183, %v4189
      %v4223 = vadd.f32 %v4184, %v4189
      %v4224 = vpack.c.bf16 %v4192, %v4191
      %v4225 = vpack.c.bf16 %v4194, %v4193
      %v4226 = vpack.c.bf16 %v4196, %v4195
      %v4227 = vpack.c.bf16 %v4198, %v4197
      %v4228 = vpack.c.bf16 %v4200, %v4199
      %v4229 = vpack.c.bf16 %v4202, %v4201
      %v4230 = vpack.c.bf16 %v4204, %v4203
      %v4231 = vpack.c.bf16 %v4206, %v4205
      %v4232 = vpack.c.bf16 %v4208, %v4207
      %v4233 = vpack.c.bf16 %v4210, %v4209
      %v4234 = vpack.c.bf16 %v4212, %v4211
      %v4235 = vpack.c.bf16 %v4214, %v4213
      %v4236 = vpack.c.bf16 %v4216, %v4215
      %v4237 = vpack.c.bf16 %v4218, %v4217
      %v4238 = vpack.c.bf16 %v4220, %v4219
      %v4239 = vpack.c.bf16 %v4222, %v4221
      %v4240 = vpack.c.bf16 %v4223, %v4223
      %v4241 = vld [vmem:[%s11] sm:$0xff]
      %v4242 = vld [vmem:[%s11 + $0x8] sm:$0xff]
      %v4243 = vld [vmem:[%s11 + $0x10] sm:$0xff]
      %v4244 = vld [vmem:[%s11 + $0x18] sm:$0xff]
      %v4245 = vld [vmem:[%s11 + $0x20] sm:$0xff]
      %v4246 = vld [vmem:[%s11 + $0x28] sm:$0xff]
      %v4247 = vld [vmem:[%s11 + $0x30] sm:$0xff]
      %v4248 = vld [vmem:[%s11 + $0x38] sm:$0xff]
      %v4249 = vld [vmem:[%s11 + $0x40] sm:$0xff]
      %v4250 = vld [vmem:[%s11 + $0x48] sm:$0xff]
      %v4251 = vld [vmem:[%s11 + $0x50] sm:$0xff]
      %v4252 = vld [vmem:[%s11 + $0x58] sm:$0xff]
      %v4253 = vld [vmem:[%s11 + $0x60] sm:$0xff]
      %v4254 = vld [vmem:[%s11 + $0x68] sm:$0xff]
      %v4255 = vld [vmem:[%s11 + $0x70] sm:$0xff]
      %v4256 = vld [vmem:[%s11 + $0x78] sm:$0xff]
      %v4257 = vld [vmem:[%s11 + $0x80] sm:$0xff]
      %v4258 = vld [vmem:[%s11 + $0x88] sm:$0xff]
      %v4259 = vld [vmem:[%s11 + $0x90] sm:$0xff]
      %v4260 = vld [vmem:[%s11 + $0x98] sm:$0xff]
      %v4261 = vld [vmem:[%s11 + $0xa0] sm:$0xff]
      %v4262 = vld [vmem:[%s11 + $0xa8] sm:$0xff]
      %v4263 = vld [vmem:[%s11 + $0xb0] sm:$0xff]
      %v4264 = vld [vmem:[%s11 + $0xb8] sm:$0xff]
      %v4265 = vld [vmem:[%s11 + $0xc0] sm:$0xff]
      %v4266 = vld [vmem:[%s11 + $0xc8] sm:$0xff]
      %v4267 = vld [vmem:[%s11 + $0xd0] sm:$0xff]
      %v4268 = vld [vmem:[%s11 + $0xd8] sm:$0xff]
      %v4269 = vld [vmem:[%s11 + $0xe0] sm:$0xff]
      %v4270 = vld [vmem:[%s11 + $0xe8] sm:$0xff]
      %v4271 = vld [vmem:[%s11 + $0xf0] sm:$0xff]
      %v4272 = vld [vmem:[%s11 + $0xf8] sm:$0xff]
      %v4273 = vld [vmem:[%s11 + $0x100] sm:$0xff]
      %v4274 = vld [vmem:[%s11 + $0x108] sm:$0xff]
      %v4275 = vld [vmem:[%s11 + $0x110] sm:$0xff]
      %v4276 = vld [vmem:[%s11 + $0x118] sm:$0xff]
      %v4277 = vld [vmem:[%s11 + $0x120] sm:$0xff]
      %v4278 = vld [vmem:[%s11 + $0x128] sm:$0xff]
      %v4279 = vld [vmem:[%s11 + $0x130] sm:$0xff]
      %v4280 = vld [vmem:[%s11 + $0x138] sm:$0xff]
      %v4281 = vld [vmem:[%s11 + $0x140] sm:$0x77]
      %v4282 = vld [vmem:[%s11 + $0x148] sm:$0x77]
      %v4283 = vld [vmem:[%s11 + $0x150] sm:$0x77]
      %v4284 = vld [vmem:[%s11 + $0x158] sm:$0x77]
      %v4285 = vld [vmem:[%s11 + $0x160] sm:$0x77]
      %v4286 = vld [vmem:[%s11 + $0x168] sm:$0x77]
      %v4287 = vld [vmem:[%s11 + $0x170] sm:$0x77]
      %v4288 = vld [vmem:[%s11 + $0x178] sm:$0x77]
      %v4289 = vld [vmem:[%s12] sm:$0xff]
      %v4290 = vld [vmem:[%s12 + $0x8] sm:$0xff]
      %v4293 = vlaneseq
      %v4294 = vshrl.u32 %v4293, 7
      %v4295 = vsub.s32 0, %v4294
      %v4296 = vrot.slane %v4289, %v4295
      %v4297 = vlaneseq
      %v4298 = vshrl.u32 %v4297, 7
      %v4299 = vsub.s32 1, %v4298
      %v4300 = vrot.slane %v4289, %v4299
      %v4301 = vlaneseq
      %v4302 = vshrl.u32 %v4301, 7
      %v4303 = vsub.s32 2, %v4302
      %v4304 = vrot.slane %v4289, %v4303
      %v4305 = vlaneseq
      %v4306 = vshrl.u32 %v4305, 7
      %v4307 = vsub.s32 3, %v4306
      %v4308 = vrot.slane %v4289, %v4307
      %v4309 = vlaneseq
      %v4310 = vshrl.u32 %v4309, 7
      %v4311 = vsub.s32 4, %v4310
      %v4312 = vrot.slane %v4289, %v4311
      %v4313 = vlaneseq
      %v4314 = vshrl.u32 %v4313, 7
      %v4315 = vsub.s32 5, %v4314
      %v4316 = vrot.slane %v4289, %v4315
      %v4317 = vlaneseq
      %v4318 = vshrl.u32 %v4317, 7
      %v4319 = vsub.s32 6, %v4318
      %v4320 = vrot.slane %v4289, %v4319
      %v4321 = vlaneseq
      %v4322 = vshrl.u32 %v4321, 7
      %v4323 = vsub.s32 7, %v4322
      %v4324 = vrot.slane %v4289, %v4323
      %v4325 = vlaneseq
      %v4326 = vshrl.u32 %v4325, 7
      %v4327 = vsub.s32 0, %v4326
      %v4328 = vrot.slane %v4290, %v4327
      %v4329 = vlaneseq
      %v4330 = vshrl.u32 %v4329, 7
      %v4331 = vsub.s32 1, %v4330
      %v4332 = vrot.slane %v4290, %v4331
      %v4333 = vlaneseq
      %v4334 = vshrl.u32 %v4333, 7
      %v4335 = vsub.s32 2, %v4334
      %v4336 = vrot.slane %v4290, %v4335
      %v4337 = vlaneseq
      %v4338 = vshrl.u32 %v4337, 7
      %v4339 = vsub.s32 3, %v4338
      %v4340 = vrot.slane %v4290, %v4339
      %v4341 = vlaneseq
      %v4342 = vshrl.u32 %v4341, 7
      %v4343 = vsub.s32 4, %v4342
      %v4344 = vrot.slane %v4290, %v4343
      %v4345 = vlaneseq
      %v4346 = vshrl.u32 %v4345, 7
      %v4347 = vsub.s32 5, %v4346
      %v4348 = vrot.slane %v4290, %v4347
      %v4349 = vlaneseq
      %v4350 = vshrl.u32 %v4349, 7
      %v4351 = vsub.s32 6, %v4350
      %v4352 = vrot.slane %v4290, %v4351
      %v4353 = vlaneseq
      %v4354 = vshrl.u32 %v4353, 7
      %v4355 = vsub.s32 7, %v4354
      %v4356 = vrot.slane %v4290, %v4355
      %v4421 = vunpack.c.l.b16 %v4241
      %v4422 = vunpack.c.h.b16 %v4241
      %v4423 = vunpack.c.l.b16 %v4242
      %v4424 = vunpack.c.h.b16 %v4242
      %v4425 = vunpack.c.l.b16 %v4243
      %v4426 = vunpack.c.h.b16 %v4243
      %v4427 = vunpack.c.l.b16 %v4244
      %v4428 = vunpack.c.h.b16 %v4244
      %v4429 = vunpack.c.l.b16 %v4245
      %v4430 = vunpack.c.h.b16 %v4245
      %v4431 = vunpack.c.l.b16 %v4246
      %v4432 = vunpack.c.h.b16 %v4246
      %v4433 = vunpack.c.l.b16 %v4247
      %v4434 = vunpack.c.h.b16 %v4247
      %v4435 = vunpack.c.l.b16 %v4248
      %v4436 = vunpack.c.h.b16 %v4248
      %v4437 = vunpack.c.l.b16 %v4249
      %v4438 = vunpack.c.h.b16 %v4249
      %v4439 = vunpack.c.l.b16 %v4250
      %v4440 = vunpack.c.h.b16 %v4250
      %v4441 = vunpack.c.l.b16 %v4251
      %v4442 = vunpack.c.h.b16 %v4251
      %v4443 = vunpack.c.l.b16 %v4252
      %v4444 = vunpack.c.h.b16 %v4252
      %v4445 = vunpack.c.l.b16 %v4253
      %v4446 = vunpack.c.h.b16 %v4253
      %v4447 = vunpack.c.l.b16 %v4254
      %v4448 = vunpack.c.h.b16 %v4254
      %v4449 = vunpack.c.l.b16 %v4255
      %v4450 = vunpack.c.h.b16 %v4255
      %v4451 = vunpack.c.l.b16 %v4256
      %v4452 = vunpack.c.h.b16 %v4256
      %v4453 = vunpack.c.l.b16 %v4257
      %v4454 = vunpack.c.h.b16 %v4257
      %v4455 = vunpack.c.l.b16 %v4258
      %v4456 = vunpack.c.h.b16 %v4258
      %v4457 = vunpack.c.l.b16 %v4259
      %v4458 = vunpack.c.h.b16 %v4259
      %v4459 = vunpack.c.l.b16 %v4260
      %v4460 = vunpack.c.h.b16 %v4260
      %v4461 = vunpack.c.l.b16 %v4261
      %v4462 = vunpack.c.h.b16 %v4261
      %v4463 = vunpack.c.l.b16 %v4262
      %v4464 = vunpack.c.h.b16 %v4262
      %v4465 = vunpack.c.l.b16 %v4263
      %v4466 = vunpack.c.h.b16 %v4263
      %v4467 = vunpack.c.l.b16 %v4264
      %v4468 = vunpack.c.h.b16 %v4264
      %v4469 = vunpack.c.l.b16 %v4265
      %v4470 = vunpack.c.h.b16 %v4265
      %v4471 = vunpack.c.l.b16 %v4266
      %v4472 = vunpack.c.h.b16 %v4266
      %v4473 = vunpack.c.l.b16 %v4267
      %v4474 = vunpack.c.h.b16 %v4267
      %v4475 = vunpack.c.l.b16 %v4268
      %v4476 = vunpack.c.h.b16 %v4268
      %v4477 = vunpack.c.l.b16 %v4269
      %v4478 = vunpack.c.h.b16 %v4269
      %v4479 = vunpack.c.l.b16 %v4270
      %v4480 = vunpack.c.h.b16 %v4270
      %v4481 = vunpack.c.l.b16 %v4271
      %v4482 = vunpack.c.h.b16 %v4271
      %v4483 = vunpack.c.l.b16 %v4272
      %v4484 = vunpack.c.h.b16 %v4272
      %v4485 = vunpack.c.l.b16 %v4273
      %v4486 = vunpack.c.h.b16 %v4273
      %v4487 = vunpack.c.l.b16 %v4274
      %v4488 = vunpack.c.h.b16 %v4274
      %v4489 = vunpack.c.l.b16 %v4275
      %v4490 = vunpack.c.h.b16 %v4275
      %v4491 = vunpack.c.l.b16 %v4276
      %v4492 = vunpack.c.h.b16 %v4276
      %v4493 = vunpack.c.l.b16 %v4277
      %v4494 = vunpack.c.h.b16 %v4277
      %v4495 = vunpack.c.l.b16 %v4278
      %v4496 = vunpack.c.h.b16 %v4278
      %v4497 = vunpack.c.l.b16 %v4279
      %v4498 = vunpack.c.h.b16 %v4279
      %v4499 = vunpack.c.l.b16 %v4280
      %v4500 = vunpack.c.h.b16 %v4280
      %v4501 = vunpack.c.l.b16 %v4281
      %v4502 = vunpack.c.h.b16 %v4281
      %v4503 = vunpack.c.l.b16 %v4282
      %v4504 = vunpack.c.h.b16 %v4282
      %v4505 = vunpack.c.l.b16 %v4283
      %v4506 = vunpack.c.h.b16 %v4283
      %v4507 = vunpack.c.l.b16 %v4284
      %v4508 = vunpack.c.h.b16 %v4284
      %v4509 = vunpack.c.l.b16 %v4285
      %v4510 = vunpack.c.h.b16 %v4285
      %v4511 = vunpack.c.l.b16 %v4286
      %v4512 = vunpack.c.h.b16 %v4286
      %v4513 = vunpack.c.l.b16 %v4287
      %v4514 = vunpack.c.h.b16 %v4287
      %v4515 = vunpack.c.l.b16 %v4288
      %v4516 = vunpack.c.h.b16 %v4288
      %v4517 = vpack.c.b16 %v4437, %v4421
      %v4518 = vpack.c.b16 %v4438, %v4422
      %v4519 = vpack.c.b16 %v4439, %v4423
      %v4520 = vpack.c.b16 %v4440, %v4424
      %v4521 = vpack.c.b16 %v4441, %v4425
      %v4522 = vpack.c.b16 %v4442, %v4426
      %v4523 = vpack.c.b16 %v4443, %v4427
      %v4524 = vpack.c.b16 %v4444, %v4428
      %v4525 = vpack.c.b16 %v4445, %v4429
      %v4526 = vpack.c.b16 %v4446, %v4430
      %v4527 = vpack.c.b16 %v4447, %v4431
      %v4528 = vpack.c.b16 %v4448, %v4432
      %v4529 = vpack.c.b16 %v4449, %v4433
      %v4530 = vpack.c.b16 %v4450, %v4434
      %v4531 = vpack.c.b16 %v4451, %v4435
      %v4532 = vpack.c.b16 %v4452, %v4436
      %v4533 = vpack.c.b16 %v4469, %v4453
      %v4534 = vpack.c.b16 %v4470, %v4454
      %v4535 = vpack.c.b16 %v4471, %v4455
      %v4536 = vpack.c.b16 %v4472, %v4456
      %v4537 = vpack.c.b16 %v4473, %v4457
      %v4538 = vpack.c.b16 %v4474, %v4458
      %v4539 = vpack.c.b16 %v4475, %v4459
      %v4540 = vpack.c.b16 %v4476, %v4460
      %v4541 = vpack.c.b16 %v4477, %v4461
      %v4542 = vpack.c.b16 %v4478, %v4462
      %v4543 = vpack.c.b16 %v4479, %v4463
      %v4544 = vpack.c.b16 %v4480, %v4464
      %v4545 = vpack.c.b16 %v4481, %v4465
      %v4546 = vpack.c.b16 %v4482, %v4466
      %v4547 = vpack.c.b16 %v4483, %v4467
      %v4548 = vpack.c.b16 %v4484, %v4468
      %v4549 = vpack.c.b16 %v4501, %v4485
      %v4550 = vpack.c.b16 %v4502, %v4486
      %v4551 = vpack.c.b16 %v4503, %v4487
      %v4552 = vpack.c.b16 %v4504, %v4488
      %v4553 = vpack.c.b16 %v4505, %v4489
      %v4554 = vpack.c.b16 %v4506, %v4490
      %v4555 = vpack.c.b16 %v4507, %v4491
      %v4556 = vpack.c.b16 %v4508, %v4492
      %v4557 = vpack.c.b16 %v4509, %v4493
      %v4558 = vpack.c.b16 %v4510, %v4494
      %v4559 = vpack.c.b16 %v4511, %v4495
      %v4560 = vpack.c.b16 %v4512, %v4496
      %v4561 = vpack.c.b16 %v4513, %v4497
      %v4562 = vpack.c.b16 %v4514, %v4498
      %v4563 = vpack.c.b16 %v4515, %v4499
      %v4564 = vpack.c.b16 %v4516, %v4500
      %v4598 = vsel %vm962, %v4224, 0
      %v4601 = vsel %vm962, %v4225, 0
      %v4604 = vsel %vm962, %v4226, 0
      %v4607 = vsel %vm962, %v4227, 0
      %v4610 = vsel %vm962, %v4228, 0
      %v4613 = vsel %vm962, %v4229, 0
      %v4616 = vsel %vm962, %v4230, 0
      %v4619 = vsel %vm962, %v4231, 0
      %v4622 = vsel %vm962, %v4232, 0
      %v4625 = vsel %vm962, %v4233, 0
      %v4628 = vsel %vm962, %v4234, 0
      %v4631 = vsel %vm962, %v4235, 0
      %v4634 = vsel %vm962, %v4236, 0
      %v4637 = vsel %vm962, %v4237, 0
      %v4640 = vsel %vm962, %v4238, 0
      %v4643 = vsel %vm962, %v4239, 0
      %v4646 = vsel %vm962, %v4240, 0
      %v4649 = vsel %vm1014, %v4549, 0
      %v4652 = vsel %vm1014, %v4550, 0
      %v4655 = vsel %vm1014, %v4551, 0
      %v4658 = vsel %vm1014, %v4552, 0
      %v4661 = vsel %vm1014, %v4553, 0
      %v4664 = vsel %vm1014, %v4554, 0
      %v4667 = vsel %vm1014, %v4555, 0
      %v4670 = vsel %vm1014, %v4556, 0
      %v4673 = vsel %vm1014, %v4557, 0
      %v4676 = vsel %vm1014, %v4558, 0
      %v4679 = vsel %vm1014, %v4559, 0
      %v4682 = vsel %vm1014, %v4560, 0
      %v4685 = vsel %vm1014, %v4561, 0
      %v4688 = vsel %vm1014, %v4562, 0
      %v4691 = vsel %vm1014, %v4563, 0
      %v4694 = vsel %vm1014, %v4564, 0
      %4696 = vmatprep.subr.bf16.mxu0 %v4518
      %4697 = vmatpush1.bf16.msra.mxu0 %v4517
      %4698 = vmatprep.subr.bf16.mxu0 %v4534
      %4699 = vmatpush1.bf16.msra.mxu0 %v4533
      %4700 = vmatprep.subr.bf16.mxu0 %v4652
      %4701 = vmatpush1.bf16.msra.mxu0 %v4649
      %4702 = vmatprep.subr.bf16.mxu0 0
      %4703 = vmatpush1.bf16.msra.mxu0 0
      %4704 = vmatprep.subr.bf16.mxu0 0
      %4705 = vmatpush1.bf16.msra.mxu0 0
      %4706 = vmatprep.subr.bf16.mxu0 0
      %4707 = vmatpush1.bf16.msra.mxu0 0
      %4708 = vmatprep.subr.bf16.mxu0 0
      %4709 = vmatpush1.bf16.msra.mxu0 0
      %4710 = vmatprep.subr.bf16.mxu0 0
      %4711 = vmatpush1.bf16.msra.mxu0 0
      %4712 = vmatprep.subr.bf16.mxu0 0
      %4713 = vmatpush1.bf16.msra.mxu0 0
      %4714 = vmatprep.subr.bf16.mxu0 0
      %4715 = vmatpush1.bf16.msra.mxu0 0
      %4716 = vmatprep.subr.bf16.mxu0 0
      %4717 = vmatpush1.bf16.msra.mxu0 0
      %4718 = vmatprep.subr.bf16.mxu0 0
      %4719 = vmatpush1.bf16.msra.mxu0 0
      %4720 = vmatprep.subr.bf16.mxu0 0
      %4721 = vmatpush1.bf16.msra.mxu0 0
      %4722 = vmatprep.subr.bf16.mxu0 0
      %4723 = vmatpush1.bf16.msra.mxu0 0
      %4724 = vmatprep.subr.bf16.mxu0 0
      %4725 = vmatpush1.bf16.msra.mxu0 0
      %4726 = vmatprep.subr.bf16.mxu0 0
      %4727 = vmatpush1.bf16.msra.mxu0 0
      %4728 = vmatprep.mubr.bf16.mxu0 0
      %4729 = vmatmul.mubr.bf16.gmra.mrb[0].mxu0 %v4598
      %v4730 = vpop.f32.mrb[0].mxu0
      %v4731 = vadd.f32 %v4296, %v4730
      %v4732 = vpop.f32.mrb[0].mxu0
      %v4733 = vadd.f32 %v4300, %v4732
      %v4734 = vpop.f32.mrb[0].mxu0
      %v4735 = vadd.f32 %v4296, %v4734
      %v4736 = vpop.f32.mrb[0].mxu0
      %v4737 = vadd.f32 %v4300, %v4736
      %4738 = vmatprep.mubr.bf16.mxu0 0
      %4739 = vmatmul.mubr.bf16.gmra.mrb[0].mxu0 %v4601
      %v4740 = vpop.f32.mrb[0].mxu0
      %v4741 = vadd.f32 %v4296, %v4740
      %v4742 = vpop.f32.mrb[0].mxu0
      %v4743 = vadd.f32 %v4300, %v4742
      %v4744 = vpop.f32.mrb[0].mxu0
      %v4745 = vadd.f32 %v4296, %v4744
      %v4746 = vpop.f32.mrb[0].mxu0
      %v4747 = vadd.f32 %v4300, %v4746
      %4748 = vmatprep.mubr.bf16.mxu0 0
      %4749 = vmatmul.mubr.bf16.gmra.mrb[0].mxu0 %v4604
      %v4750 = vpop.f32.mrb[0].mxu0
      %v4751 = vadd.f32 %v4296, %v4750
      %v4752 = vpop.f32.mrb[0].mxu0
      %v4753 = vadd.f32 %v4300, %v4752
      %v4754 = vpop.f32.mrb[0].mxu0
      %v4755 = vadd.f32 %v4296, %v4754
      %v4756 = vpop.f32.mrb[0].mxu0
      %v4757 = vadd.f32 %v4300, %v4756
      %4758 = vmatprep.mubr.bf16.mxu0 0
      %4759 = vmatmul.mubr.bf16.gmra.mrb[0].mxu0 %v4607
      %v4760 = vpop.f32.mrb[0].mxu0
      %v4761 = vadd.f32 %v4296, %v4760
      %v4762 = vpop.f32.mrb[0].mxu0
      %v4763 = vadd.f32 %v4300, %v4762
      %v4764 = vpop.f32.mrb[0].mxu0
      %v4765 = vadd.f32 %v4296, %v4764
      %v4766 = vpop.f32.mrb[0].mxu0
      %v4767 = vadd.f32 %v4300, %v4766
      %4768 = vmatprep.mubr.bf16.mxu0 0
      %4769 = vmatmul.mubr.bf16.gmra.mrb[0].mxu0 %v4610
      %v4770 = vpop.f32.mrb[0].mxu0
      %v4771 = vadd.f32 %v4296, %v4770
      %v4772 = vpop.f32.mrb[0].mxu0
      %v4773 = vadd.f32 %v4300, %v4772
      %v4774 = vpop.f32.mrb[0].mxu0
      %v4775 = vadd.f32 %v4296, %v4774
      %v4776 = vpop.f32.mrb[0].mxu0
      %v4777 = vadd.f32 %v4300, %v4776
      %4778 = vmatprep.mubr.bf16.mxu0 0
      %4779 = vmatmul.mubr.bf16.gmra.mrb[0].mxu0 %v4613
      %v4780 = vpop.f32.mrb[0].mxu0
      %v4781 = vadd.f32 %v4296, %v4780
      %v4782 = vpop.f32.mrb[0].mxu0
      %v4783 = vadd.f32 %v4300, %v4782
      %v4784 = vpop.f32.mrb[0].mxu0
      %v4785 = vadd.f32 %v4296, %v4784
      %v4786 = vpop.f32.mrb[0].mxu0
      %v4787 = vadd.f32 %v4300, %v4786
      %4788 = vmatprep.mubr.bf16.mxu0 0
      %4789 = vmatmul.mubr.bf16.gmra.mrb[0].mxu0 %v4616
      %v4790 = vpop.f32.mrb[0].mxu0
      %v4791 = vadd.f32 %v4296, %v4790
      %v4792 = vpop.f32.mrb[0].mxu0
      %v4793 = vadd.f32 %v4300, %v4792
      %v4794 = vpop.f32.mrb[0].mxu0
      %v4795 = vadd.f32 %v4296, %v4794
      %v4796 = vpop.f32.mrb[0].mxu0
      %v4797 = vadd.f32 %v4300, %v4796
      %4798 = vmatprep.mubr.bf16.mxu0 0
      %4799 = vmatmul.mubr.bf16.gmra.mrb[0].mxu0 %v4619
      %v4800 = vpop.f32.mrb[0].mxu0
      %v4801 = vadd.f32 %v4296, %v4800
      %v4802 = vpop.f32.mrb[0].mxu0
      %v4803 = vadd.f32 %v4300, %v4802
      %v4804 = vpop.f32.mrb[0].mxu0
      %v4805 = vadd.f32 %v4296, %v4804
      %v4806 = vpop.f32.mrb[0].mxu0
      %v4807 = vadd.f32 %v4300, %v4806
      %4808 = vmatprep.mubr.bf16.mxu0 0
      %4809 = vmatmul.mubr.bf16.gmra.mrb[0].mxu0 %v4622
      %v4810 = vpop.f32.mrb[0].mxu0
      %v4811 = vadd.f32 %v4296, %v4810
      %v4812 = vpop.f32.mrb[0].mxu0
      %v4813 = vadd.f32 %v4300, %v4812
      %v4814 = vpop.f32.mrb[0].mxu0
      %v4815 = vadd.f32 %v4296, %v4814
      %v4816 = vpop.f32.mrb[0].mxu0
      %v4817 = vadd.f32 %v4300, %v4816
      %4818 = vmatprep.mubr.bf16.mxu0 0
      %4819 = vmatmul.mubr.bf16.gmra.mrb[0].mxu0 %v4625
      %v4820 = vpop.f32.mrb[0].mxu0
      %v4821 = vadd.f32 %v4296, %v4820
      %v4822 = vpop.f32.mrb[0].mxu0
      %v4823 = vadd.f32 %v4300, %v4822
      %v4824 = vpop.f32.mrb[0].mxu0
      %v4825 = vadd.f32 %v4296, %v4824
      %v4826 = vpop.f32.mrb[0].mxu0
      %v4827 = vadd.f32 %v4300, %v4826
      %4828 = vmatprep.mubr.bf16.mxu0 0
      %4829 = vmatmul.mubr.bf16.gmra.mrb[0].mxu0 %v4628
      %v4830 = vpop.f32.mrb[0].mxu0
      %v4831 = vadd.f32 %v4296, %v4830
      %v4832 = vpop.f32.mrb[0].mxu0
      %v4833 = vadd.f32 %v4300, %v4832
      %v4834 = vpop.f32.mrb[0].mxu0
      %v4835 = vadd.f32 %v4296, %v4834
      %v4836 = vpop.f32.mrb[0].mxu0
      %v4837 = vadd.f32 %v4300, %v4836
      %4838 = vmatprep.mubr.bf16.mxu0 0
      %4839 = vmatmul.mubr.bf16.gmra.mrb[0].mxu0 %v4631
      %v4840 = vpop.f32.mrb[0].mxu0
      %v4841 = vadd.f32 %v4296, %v4840
      %v4842 = vpop.f32.mrb[0].mxu0
      %v4843 = vadd.f32 %v4300, %v4842
      %v4844 = vpop.f32.mrb[0].mxu0
      %v4845 = vadd.f32 %v4296, %v4844
      %v4846 = vpop.f32.mrb[0].mxu0
      %v4847 = vadd.f32 %v4300, %v4846
      %4848 = vmatprep.mubr.bf16.mxu0 0
      %4849 = vmatmul.mubr.bf16.gmra.mrb[0].mxu0 %v4634
      %v4850 = vpop.f32.mrb[0].mxu0
      %v4851 = vadd.f32 %v4296, %v4850
      %v4852 = vpop.f32.mrb[0].mxu0
      %v4853 = vadd.f32 %v4300, %v4852
      %v4854 = vpop.f32.mrb[0].mxu0
      %v4855 = vadd.f32 %v4296, %v4854
      %v4856 = vpop.f32.mrb[0].mxu0
      %v4857 = vadd.f32 %v4300, %v4856
      %4858 = vmatprep.mubr.bf16.mxu0 0
      %4859 = vmatmul.mubr.bf16.gmra.mrb[0].mxu0 %v4637
      %v4860 = vpop.f32.mrb[0].mxu0
      %v4861 = vadd.f32 %v4296, %v4860
      %v4862 = vpop.f32.mrb[0].mxu0
      %v4863 = vadd.f32 %v4300, %v4862
      %v4864 = vpop.f32.mrb[0].mxu0
      %v4865 = vadd.f32 %v4296, %v4864
      %v4866 = vpop.f32.mrb[0].mxu0
      %v4867 = vadd.f32 %v4300, %v4866
      %4868 = vmatprep.mubr.bf16.mxu0 0
      %4869 = vmatmul.mubr.bf16.gmra.mrb[0].mxu0 %v4640
      %v4870 = vpop.f32.mrb[0].mxu0
      %v4871 = vadd.f32 %v4296, %v4870
      %v4872 = vpop.f32.mrb[0].mxu0
      %v4873 = vadd.f32 %v4300, %v4872
      %v4874 = vpop.f32.mrb[0].mxu0
      %v4875 = vadd.f32 %v4296, %v4874
      %v4876 = vpop.f32.mrb[0].mxu0
      %v4877 = vadd.f32 %v4300, %v4876
      %4878 = vmatprep.mubr.bf16.mxu0 0
      %4879 = vmatmul.mubr.bf16.gmra.mrb[0].mxu0 %v4643
      %v4880 = vpop.f32.mrb[0].mxu0
      %v4881 = vadd.f32 %v4296, %v4880
      %v4882 = vpop.f32.mrb[0].mxu0
      %v4883 = vadd.f32 %v4300, %v4882
      %v4884 = vpop.f32.mrb[0].mxu0
      %v4885 = vadd.f32 %v4296, %v4884
      %v4886 = vpop.f32.mrb[0].mxu0
      %v4887 = vadd.f32 %v4300, %v4886
      %4888 = vmatprep.mubr.bf16.mxu0 0
      %4889 = vmatmul.mubr.bf16.gmra.mrb[0].mxu0 %v4646
      %v4890 = vpop.f32.mrb[0].mxu0
      %v4891 = vadd.f32 %v4296, %v4890
      %v4892 = vpop.f32.mrb[0].mxu0
      %v4893 = vadd.f32 %v4300, %v4892
      %v4894 = vpop.f32.mrb[0].mxu0
      %v4895 = vpop.f32.mrb[0].mxu0
      %4896 = vdwg.mxu0
      %4897 = vmatprep.subr.bf16.mxu0 %v4520
      %4898 = vmatpush1.bf16.msra.mxu0 %v4519
      %4899 = vmatprep.subr.bf16.mxu0 %v4536
      %4900 = vmatpush1.bf16.msra.mxu0 %v4535
      %4901 = vmatprep.subr.bf16.mxu0 %v4658
      %4902 = vmatpush1.bf16.msra.mxu0 %v4655
      %4903 = vmatprep.subr.bf16.mxu0 0
      %4904 = vmatpush1.bf16.msra.mxu0 0
      %4905 = vmatprep.subr.bf16.mxu0 0
      %4906 = vmatpush1.bf16.msra.mxu0 0
      %4907 = vmatprep.subr.bf16.mxu0 0
      %4908 = vmatpush1.bf16.msra.mxu0 0
      %4909 = vmatprep.subr.bf16.mxu0 0
      %4910 = vmatpush1.bf16.msra.mxu0 0
      %4911 = vmatprep.subr.bf16.mxu0 0
      %4912 = vmatpush1.bf16.msra.mxu0 0
      %4913 = vmatprep.subr.bf16.mxu0 0
      %4914 = vmatpush1.bf16.msra.mxu0 0
      %4915 = vmatprep.subr.bf16.mxu0 0
      %4916 = vmatpush1.bf16.msra.mxu0 0
      %4917 = vmatprep.subr.bf16.mxu0 0
      %4918 = vmatpush1.bf16.msra.mxu0 0
      %4919 = vmatprep.subr.bf16.mxu0 0
      %4920 = vmatpush1.bf16.msra.mxu0 0
      %4921 = vmatprep.subr.bf16.mxu0 0
      %4922 = vmatpush1.bf16.msra.mxu0 0
      %4923 = vmatprep.subr.bf16.mxu0 0
      %4924 = vmatpush1.bf16.msra.mxu0 0
      %4925 = vmatprep.subr.bf16.mxu0 0
      %4926 = vmatpush1.bf16.msra.mxu0 0
      %4927 = vmatprep.subr.bf16.mxu0 0
      %4928 = vmatpush1.bf16.msra.mxu0 0
      %4929 = vmatprep.mubr.bf16.mxu0 0
      %4930 = vmatmul.mubr.bf16.gmra.mrb[0].mxu0 %v4598
      %v4931 = vpop.f32.mrb[0].mxu0
      %v4932 = vadd.f32 %v4304, %v4931
      %v4933 = vpop.f32.mrb[0].mxu0
      %v4934 = vadd.f32 %v4308, %v4933
      %v4935 = vpop.f32.mrb[0].mxu0
      %v4936 = vadd.f32 %v4304, %v4935
      %v4937 = vpop.f32.mrb[0].mxu0
      %v4938 = vadd.f32 %v4308, %v4937
      %4939 = vmatprep.mubr.bf16.mxu0 0
      %4940 = vmatmul.mubr.bf16.gmra.mrb[0].mxu0 %v4601
      %v4941 = vpop.f32.mrb[0].mxu0
      %v4942 = vadd.f32 %v4304, %v4941
      %v4943 = vpop.f32.mrb[0].mxu0
      %v4944 = vadd.f32 %v4308, %v4943
      %v4945 = vpop.f32.mrb[0].mxu0
      %v4946 = vadd.f32 %v4304, %v4945
      %v4947 = vpop.f32.mrb[0].mxu0
      %v4948 = vadd.f32 %v4308, %v4947
      %4949 = vmatprep.mubr.bf16.mxu0 0
      %4950 = vmatmul.mubr.bf16.gmra.mrb[0].mxu0 %v4604
      %v4951 = vpop.f32.mrb[0].mxu0
      %v4952 = vadd.f32 %v4304, %v4951
      %v4953 = vpop.f32.mrb[0].mxu0
      %v4954 = vadd.f32 %v4308, %v4953
      %v4955 = vpop.f32.mrb[0].mxu0
      %v4956 = vadd.f32 %v4304, %v4955
      %v4957 = vpop.f32.mrb[0].mxu0
      %v4958 = vadd.f32 %v4308, %v4957
      %4959 = vmatprep.mubr.bf16.mxu0 0
      %4960 = vmatmul.mubr.bf16.gmra.mrb[0].mxu0 %v4607
      %v4961 = vpop.f32.mrb[0].mxu0
      %v4962 = vadd.f32 %v4304, %v4961
      %v4963 = vpop.f32.mrb[0].mxu0
      %v4964 = vadd.f32 %v4308, %v4963
      %v4965 = vpop.f32.mrb[0].mxu0
      %v4966 = vadd.f32 %v4304, %v4965
      %v4967 = vpop.f32.mrb[0].mxu0
      %v4968 = vadd.f32 %v4308, %v4967
      %4969 = vmatprep.mubr.bf16.mxu0 0
      %4970 = vmatmul.mubr.bf16.gmra.mrb[0].mxu0 %v4610
      %v4971 = vpop.f32.mrb[0].mxu0
      %v4972 = vadd.f32 %v4304, %v4971
      %v4973 = vpop.f32.mrb[0].mxu0
      %v4974 = vadd.f32 %v4308, %v4973
      %v4975 = vpop.f32.mrb[0].mxu0
      %v4976 = vadd.f32 %v4304, %v4975
      %v4977 = vpop.f32.mrb[0].mxu0
      %v4978 = vadd.f32 %v4308, %v4977
      %4979 = vmatprep.mubr.bf16.mxu0 0
      %4980 = vmatmul.mubr.bf16.gmra.mrb[0].mxu0 %v4613
      %v4981 = vpop.f32.mrb[0].mxu0
      %v4982 = vadd.f32 %v4304, %v4981
      %v4983 = vpop.f32.mrb[0].mxu0
      %v4984 = vadd.f32 %v4308, %v4983
      %v4985 = vpop.f32.mrb[0].mxu0
      %v4986 = vadd.f32 %v4304, %v4985
      %v4987 = vpop.f32.mrb[0].mxu0
      %v4988 = vadd.f32 %v4308, %v4987
      %4989 = vmatprep.mubr.bf16.mxu0 0
      %4990 = vmatmul.mubr.bf16.gmra.mrb[0].mxu0 %v4616
      %v4991 = vpop.f32.mrb[0].mxu0
      %v4992 = vadd.f32 %v4304, %v4991
      %v4993 = vpop.f32.mrb[0].mxu0
      %v4994 = vadd.f32 %v4308, %v4993
      %v4995 = vpop.f32.mrb[0].mxu0
      %v4996 = vadd.f32 %v4304, %v4995
      %v4997 = vpop.f32.mrb[0].mxu0
      %v4998 = vadd.f32 %v4308, %v4997
      %4999 = vmatprep.mubr.bf16.mxu0 0
      %5000 = vmatmul.mubr.bf16.gmra.mrb[0].mxu0 %v4619
      %v5001 = vpop.f32.mrb[0].mxu0
      %v5002 = vadd.f32 %v4304, %v5001
      %v5003 = vpop.f32.mrb[0].mxu0
      %v5004 = vadd.f32 %v4308, %v5003
      %v5005 = vpop.f32.mrb[0].mxu0
      %v5006 = vadd.f32 %v4304, %v5005
      %v5007 = vpop.f32.mrb[0].mxu0
      %v5008 = vadd.f32 %v4308, %v5007
      %5009 = vmatprep.mubr.bf16.mxu0 0
      %5010 = vmatmul.mubr.bf16.gmra.mrb[0].mxu0 %v4622
      %v5011 = vpop.f32.mrb[0].mxu0
      %v5012 = vadd.f32 %v4304, %v5011
      %v5013 = vpop.f32.mrb[0].mxu0
      %v5014 = vadd.f32 %v4308, %v5013
      %v5015 = vpop.f32.mrb[0].mxu0
      %v5016 = vadd.f32 %v4304, %v5015
      %v5017 = vpop.f32.mrb[0].mxu0
      %v5018 = vadd.f32 %v4308, %v5017
      %5019 = vmatprep.mubr.bf16.mxu0 0
      %5020 = vmatmul.mubr.bf16.gmra.mrb[0].mxu0 %v4625
      %v5021 = vpop.f32.mrb[0].mxu0
      %v5022 = vadd.f32 %v4304, %v5021
      %v5023 = vpop.f32.mrb[0].mxu0
      %v5024 = vadd.f32 %v4308, %v5023
      %v5025 = vpop.f32.mrb[0].mxu0
      %v5026 = vadd.f32 %v4304, %v5025
      %v5027 = vpop.f32.mrb[0].mxu0
      %v5028 = vadd.f32 %v4308, %v5027
      %5029 = vmatprep.mubr.bf16.mxu0 0
      %5030 = vmatmul.mubr.bf16.gmra.mrb[0].mxu0 %v4628
      %v5031 = vpop.f32.mrb[0].mxu0
      %v5032 = vadd.f32 %v4304, %v5031
      %v5033 = vpop.f32.mrb[0].mxu0
      %v5034 = vadd.f32 %v4308, %v5033
      %v5035 = vpop.f32.mrb[0].mxu0
      %v5036 = vadd.f32 %v4304, %v5035
      %v5037 = vpop.f32.mrb[0].mxu0
      %v5038 = vadd.f32 %v4308, %v5037
      %5039 = vmatprep.mubr.bf16.mxu0 0
      %5040 = vmatmul.mubr.bf16.gmra.mrb[0].mxu0 %v4631
      %v5041 = vpop.f32.mrb[0].mxu0
      %v5042 = vadd.f32 %v4304, %v5041
      %v5043 = vpop.f32.mrb[0].mxu0
      %v5044 = vadd.f32 %v4308, %v5043
      %v5045 = vpop.f32.mrb[0].mxu0
      %v5046 = vadd.f32 %v4304, %v5045
      %v5047 = vpop.f32.mrb[0].mxu0
      %v5048 = vadd.f32 %v4308, %v5047
      %5049 = vmatprep.mubr.bf16.mxu0 0
      %5050 = vmatmul.mubr.bf16.gmra.mrb[0].mxu0 %v4634
      %v5051 = vpop.f32.mrb[0].mxu0
      %v5052 = vadd.f32 %v4304, %v5051
      %v5053 = vpop.f32.mrb[0].mxu0
      %v5054 = vadd.f32 %v4308, %v5053
      %v5055 = vpop.f32.mrb[0].mxu0
      %v5056 = vadd.f32 %v4304, %v5055
      %v5057 = vpop.f32.mrb[0].mxu0
      %v5058 = vadd.f32 %v4308, %v5057
      %5059 = vmatprep.mubr.bf16.mxu0 0
      %5060 = vmatmul.mubr.bf16.gmra.mrb[0].mxu0 %v4637
      %v5061 = vpop.f32.mrb[0].mxu0
      %v5062 = vadd.f32 %v4304, %v5061
      %v5063 = vpop.f32.mrb[0].mxu0
      %v5064 = vadd.f32 %v4308, %v5063
      %v5065 = vpop.f32.mrb[0].mxu0
      %v5066 = vadd.f32 %v4304, %v5065
      %v5067 = vpop.f32.mrb[0].mxu0
      %v5068 = vadd.f32 %v4308, %v5067
      %5069 = vmatprep.mubr.bf16.mxu0 0
      %5070 = vmatmul.mubr.bf16.gmra.mrb[0].mxu0 %v4640
      %v5071 = vpop.f32.mrb[0].mxu0
      %v5072 = vadd.f32 %v4304, %v5071
      %v5073 = vpop.f32.mrb[0].mxu0
      %v5074 = vadd.f32 %v4308, %v5073
      %v5075 = vpop.f32.mrb[0].mxu0
      %v5076 = vadd.f32 %v4304, %v5075
      %v5077 = vpop.f32.mrb[0].mxu0
      %v5078 = vadd.f32 %v4308, %v5077
      %5079 = vmatprep.mubr.bf16.mxu0 0
      %5080 = vmatmul.mubr.bf16.gmra.mrb[0].mxu0 %v4643
      %v5081 = vpop.f32.mrb[0].mxu0
      %v5082 = vadd.f32 %v4304, %v5081
      %v5083 = vpop.f32.mrb[0].mxu0
      %v5084 = vadd.f32 %v4308, %v5083
      %v5085 = vpop.f32.mrb[0].mxu0
      %v5086 = vadd.f32 %v4304, %v5085
      %v5087 = vpop.f32.mrb[0].mxu0
      %v5088 = vadd.f32 %v4308, %v5087
      %5089 = vmatprep.mubr.bf16.mxu0 0
      %5090 = vmatmul.mubr.bf16.gmra.mrb[0].mxu0 %v4646
      %v5091 = vpop.f32.mrb[0].mxu0
      %v5092 = vadd.f32 %v4304, %v5091
      %v5093 = vpop.f32.mrb[0].mxu0
      %v5094 = vadd.f32 %v4308, %v5093
      %v5095 = vpop.f32.mrb[0].mxu0
      %v5096 = vpop.f32.mrb[0].mxu0
      %5097 = vdwg.mxu0
      %5098 = vmatprep.subr.bf16.mxu0 %v4522
      %5099 = vmatpush1.bf16.msra.mxu0 %v4521
      %5100 = vmatprep.subr.bf16.mxu0 %v4538
      %5101 = vmatpush1.bf16.msra.mxu0 %v4537
      %5102 = vmatprep.subr.bf16.mxu0 %v4664
      %5103 = vmatpush1.bf16.msra.mxu0 %v4661
      %5104 = vmatprep.subr.bf16.mxu0 0
      %5105 = vmatpush1.bf16.msra.mxu0 0
      %5106 = vmatprep.subr.bf16.mxu0 0
      %5107 = vmatpush1.bf16.msra.mxu0 0
      %5108 = vmatprep.subr.bf16.mxu0 0
      %5109 = vmatpush1.bf16.msra.mxu0 0
      %5110 = vmatprep.subr.bf16.mxu0 0
      %5111 = vmatpush1.bf16.msra.mxu0 0
      %5112 = vmatprep.subr.bf16.mxu0 0
      %5113 = vmatpush1.bf16.msra.mxu0 0
      %5114 = vmatprep.subr.bf16.mxu0 0
      %5115 = vmatpush1.bf16.msra.mxu0 0
      %5116 = vmatprep.subr.bf16.mxu0 0
      %5117 = vmatpush1.bf16.msra.mxu0 0
      %5118 = vmatprep.subr.bf16.mxu0 0
      %5119 = vmatpush1.bf16.msra.mxu0 0
      %5120 = vmatprep.subr.bf16.mxu0 0
      %5121 = vmatpush1.bf16.msra.mxu0 0
      %5122 = vmatprep.subr.bf16.mxu0 0
      %5123 = vmatpush1.bf16.msra.mxu0 0
      %5124 = vmatprep.subr.bf16.mxu0 0
      %5125 = vmatpush1.bf16.msra.mxu0 0
      %5126 = vmatprep.subr.bf16.mxu0 0
      %5127 = vmatpush1.bf16.msra.mxu0 0
      %5128 = vmatprep.subr.bf16.mxu0 0
      %5129 = vmatpush1.bf16.msra.mxu0 0
      %5130 = vmatprep.mubr.bf16.mxu0 0
      %5131 = vmatmul.mubr.bf16.gmra.mrb[0].mxu0 %v4598
      %v5132 = vpop.f32.mrb[0].mxu0
      %v5133 = vadd.f32 %v4312, %v5132
      %v5134 = vpop.f32.mrb[0].mxu0
      %v5135 = vadd.f32 %v4316, %v5134
      %v5136 = vpop.f32.mrb[0].mxu0
      %v5137 = vadd.f32 %v4312, %v5136
      %v5138 = vpop.f32.mrb[0].mxu0
      %v5139 = vadd.f32 %v4316, %v5138
      %5140 = vmatprep.mubr.bf16.mxu0 0
      %5141 = vmatmul.mubr.bf16.gmra.mrb[0].mxu0 %v4601
      %v5142 = vpop.f32.mrb[0].mxu0
      %v5143 = vadd.f32 %v4312, %v5142
      %v5144 = vpop.f32.mrb[0].mxu0
      %v5145 = vadd.f32 %v4316, %v5144
      %v5146 = vpop.f32.mrb[0].mxu0
      %v5147 = vadd.f32 %v4312, %v5146
      %v5148 = vpop.f32.mrb[0].mxu0
      %v5149 = vadd.f32 %v4316, %v5148
      %5150 = vmatprep.mubr.bf16.mxu0 0
      %5151 = vmatmul.mubr.bf16.gmra.mrb[0].mxu0 %v4604
      %v5152 = vpop.f32.mrb[0].mxu0
      %v5153 = vadd.f32 %v4312, %v5152
      %v5154 = vpop.f32.mrb[0].mxu0
      %v5155 = vadd.f32 %v4316, %v5154
      %v5156 = vpop.f32.mrb[0].mxu0
      %v5157 = vadd.f32 %v4312, %v5156
      %v5158 = vpop.f32.mrb[0].mxu0
      %v5159 = vadd.f32 %v4316, %v5158
      %5160 = vmatprep.mubr.bf16.mxu0 0
      %5161 = vmatmul.mubr.bf16.gmra.mrb[0].mxu0 %v4607
      %v5162 = vpop.f32.mrb[0].mxu0
      %v5163 = vadd.f32 %v4312, %v5162
      %v5164 = vpop.f32.mrb[0].mxu0
      %v5165 = vadd.f32 %v4316, %v5164
      %v5166 = vpop.f32.mrb[0].mxu0
      %v5167 = vadd.f32 %v4312, %v5166
      %v5168 = vpop.f32.mrb[0].mxu0
      %v5169 = vadd.f32 %v4316, %v5168
      %5170 = vmatprep.mubr.bf16.mxu0 0
      %5171 = vmatmul.mubr.bf16.gmra.mrb[0].mxu0 %v4610
      %v5172 = vpop.f32.mrb[0].mxu0
      %v5173 = vadd.f32 %v4312, %v5172
      %v5174 = vpop.f32.mrb[0].mxu0
      %v5175 = vadd.f32 %v4316, %v5174
      %v5176 = vpop.f32.mrb[0].mxu0
      %v5177 = vadd.f32 %v4312, %v5176
      %v5178 = vpop.f32.mrb[0].mxu0
      %v5179 = vadd.f32 %v4316, %v5178
      %5180 = vmatprep.mubr.bf16.mxu0 0
      %5181 = vmatmul.mubr.bf16.gmra.mrb[0].mxu0 %v4613
      %v5182 = vpop.f32.mrb[0].mxu0
      %v5183 = vadd.f32 %v4312, %v5182
      %v5184 = vpop.f32.mrb[0].mxu0
      %v5185 = vadd.f32 %v4316, %v5184
      %v5186 = vpop.f32.mrb[0].mxu0
      %v5187 = vadd.f32 %v4312, %v5186
      %v5188 = vpop.f32.mrb[0].mxu0
      %v5189 = vadd.f32 %v4316, %v5188
      %5190 = vmatprep.mubr.bf16.mxu0 0
      %5191 = vmatmul.mubr.bf16.gmra.mrb[0].mxu0 %v4616
      %v5192 = vpop.f32.mrb[0].mxu0
      %v5193 = vadd.f32 %v4312, %v5192
      %v5194 = vpop.f32.mrb[0].mxu0
      %v5195 = vadd.f32 %v4316, %v5194
      %v5196 = vpop.f32.mrb[0].mxu0
      %v5197 = vadd.f32 %v4312, %v5196
      %v5198 = vpop.f32.mrb[0].mxu0
      %v5199 = vadd.f32 %v4316, %v5198
      %5200 = vmatprep.mubr.bf16.mxu0 0
      %5201 = vmatmul.mubr.bf16.gmra.mrb[0].mxu0 %v4619
      %v5202 = vpop.f32.mrb[0].mxu0
      %v5203 = vadd.f32 %v4312, %v5202
      %v5204 = vpop.f32.mrb[0].mxu0
      %v5205 = vadd.f32 %v4316, %v5204
      %v5206 = vpop.f32.mrb[0].mxu0
      %v5207 = vadd.f32 %v4312, %v5206
      %v5208 = vpop.f32.mrb[0].mxu0
      %v5209 = vadd.f32 %v4316, %v5208
      %5210 = vmatprep.mubr.bf16.mxu0 0
      %5211 = vmatmul.mubr.bf16.gmra.mrb[0].mxu0 %v4622
      %v5212 = vpop.f32.mrb[0].mxu0
      %v5213 = vadd.f32 %v4312, %v5212
      %v5214 = vpop.f32.mrb[0].mxu0
      %v5215 = vadd.f32 %v4316, %v5214
      %v5216 = vpop.f32.mrb[0].mxu0
      %v5217 = vadd.f32 %v4312, %v5216
      %v5218 = vpop.f32.mrb[0].mxu0
      %v5219 = vadd.f32 %v4316, %v5218
      %5220 = vmatprep.mubr.bf16.mxu0 0
      %5221 = vmatmul.mubr.bf16.gmra.mrb[0].mxu0 %v4625
      %v5222 = vpop.f32.mrb[0].mxu0
      %v5223 = vadd.f32 %v4312, %v5222
      %v5224 = vpop.f32.mrb[0].mxu0
      %v5225 = vadd.f32 %v4316, %v5224
      %v5226 = vpop.f32.mrb[0].mxu0
      %v5227 = vadd.f32 %v4312, %v5226
      %v5228 = vpop.f32.mrb[0].mxu0
      %v5229 = vadd.f32 %v4316, %v5228
      %5230 = vmatprep.mubr.bf16.mxu0 0
      %5231 = vmatmul.mubr.bf16.gmra.mrb[0].mxu0 %v4628
      %v5232 = vpop.f32.mrb[0].mxu0
      %v5233 = vadd.f32 %v4312, %v5232
      %v5234 = vpop.f32.mrb[0].mxu0
      %v5235 = vadd.f32 %v4316, %v5234
      %v5236 = vpop.f32.mrb[0].mxu0
      %v5237 = vadd.f32 %v4312, %v5236
      %v5238 = vpop.f32.mrb[0].mxu0
      %v5239 = vadd.f32 %v4316, %v5238
      %5240 = vmatprep.mubr.bf16.mxu0 0
      %5241 = vmatmul.mubr.bf16.gmra.mrb[0].mxu0 %v4631
      %v5242 = vpop.f32.mrb[0].mxu0
      %v5243 = vadd.f32 %v4312, %v5242
      %v5244 = vpop.f32.mrb[0].mxu0
      %v5245 = vadd.f32 %v4316, %v5244
      %v5246 = vpop.f32.mrb[0].mxu0
      %v5247 = vadd.f32 %v4312, %v5246
      %v5248 = vpop.f32.mrb[0].mxu0
      %v5249 = vadd.f32 %v4316, %v5248
      %5250 = vmatprep.mubr.bf16.mxu0 0
      %5251 = vmatmul.mubr.bf16.gmra.mrb[0].mxu0 %v4634
      %v5252 = vpop.f32.mrb[0].mxu0
      %v5253 = vadd.f32 %v4312, %v5252
      %v5254 = vpop.f32.mrb[0].mxu0
      %v5255 = vadd.f32 %v4316, %v5254
      %v5256 = vpop.f32.mrb[0].mxu0
      %v5257 = vadd.f32 %v4312, %v5256
      %v5258 = vpop.f32.mrb[0].mxu0
      %v5259 = vadd.f32 %v4316, %v5258
      %5260 = vmatprep.mubr.bf16.mxu0 0
      %5261 = vmatmul.mubr.bf16.gmra.mrb[0].mxu0 %v4637
      %v5262 = vpop.f32.mrb[0].mxu0
      %v5263 = vadd.f32 %v4312, %v5262
      %v5264 = vpop.f32.mrb[0].mxu0
      %v5265 = vadd.f32 %v4316, %v5264
      %v5266 = vpop.f32.mrb[0].mxu0
      %v5267 = vadd.f32 %v4312, %v5266
      %v5268 = vpop.f32.mrb[0].mxu0
      %v5269 = vadd.f32 %v4316, %v5268
      %5270 = vmatprep.mubr.bf16.mxu0 0
      %5271 = vmatmul.mubr.bf16.gmra.mrb[0].mxu0 %v4640
      %v5272 = vpop.f32.mrb[0].mxu0
      %v5273 = vadd.f32 %v4312, %v5272
      %v5274 = vpop.f32.mrb[0].mxu0
      %v5275 = vadd.f32 %v4316, %v5274
      %v5276 = vpop.f32.mrb[0].mxu0
      %v5277 = vadd.f32 %v4312, %v5276
      %v5278 = vpop.f32.mrb[0].mxu0
      %v5279 = vadd.f32 %v4316, %v5278
      %5280 = vmatprep.mubr.bf16.mxu0 0
      %5281 = vmatmul.mubr.bf16.gmra.mrb[0].mxu0 %v4643
      %v5282 = vpop.f32.mrb[0].mxu0
      %v5283 = vadd.f32 %v4312, %v5282
      %v5284 = vpop.f32.mrb[0].mxu0
      %v5285 = vadd.f32 %v4316, %v5284
      %v5286 = vpop.f32.mrb[0].mxu0
      %v5287 = vadd.f32 %v4312, %v5286
      %v5288 = vpop.f32.mrb[0].mxu0
      %v5289 = vadd.f32 %v4316, %v5288
      %5290 = vmatprep.mubr.bf16.mxu0 0
      %5291 = vmatmul.mubr.bf16.gmra.mrb[0].mxu0 %v4646
      %v5292 = vpop.f32.mrb[0].mxu0
      %v5293 = vadd.f32 %v4312, %v5292
      %v5294 = vpop.f32.mrb[0].mxu0
      %v5295 = vadd.f32 %v4316, %v5294
      %v5296 = vpop.f32.mrb[0].mxu0
      %v5297 = vpop.f32.mrb[0].mxu0
      %5298 = vdwg.mxu0
      %5299 = vmatprep.subr.bf16.mxu0 %v4524
      %5300 = vmatpush1.bf16.msra.mxu0 %v4523
      %5301 = vmatprep.subr.bf16.mxu0 %v4540
      %5302 = vmatpush1.bf16.msra.mxu0 %v4539
      %5303 = vmatprep.subr.bf16.mxu0 %v4670
      %5304 = vmatpush1.bf16.msra.mxu0 %v4667
      %5305 = vmatprep.subr.bf16.mxu0 0
      %5306 = vmatpush1.bf16.msra.mxu0 0
      %5307 = vmatprep.subr.bf16.mxu0 0
      %5308 = vmatpush1.bf16.msra.mxu0 0
      %5309 = vmatprep.subr.bf16.mxu0 0
      %5310 = vmatpush1.bf16.msra.mxu0 0
      %5311 = vmatprep.subr.bf16.mxu0 0
      %5312 = vmatpush1.bf16.msra.mxu0 0
      %5313 = vmatprep.subr.bf16.mxu0 0
      %5314 = vmatpush1.bf16.msra.mxu0 0
      %5315 = vmatprep.subr.bf16.mxu0 0
      %5316 = vmatpush1.bf16.msra.mxu0 0
      %5317 = vmatprep.subr.bf16.mxu0 0
      %5318 = vmatpush1.bf16.msra.mxu0 0
      %5319 = vmatprep.subr.bf16.mxu0 0
      %5320 = vmatpush1.bf16.msra.mxu0 0
      %5321 = vmatprep.subr.bf16.mxu0 0
      %5322 = vmatpush1.bf16.msra.mxu0 0
      %5323 = vmatprep.subr.bf16.mxu0 0
      %5324 = vmatpush1.bf16.msra.mxu0 0
      %5325 = vmatprep.subr.bf16.mxu0 0
      %5326 = vmatpush1.bf16.msra.mxu0 0
      %5327 = vmatprep.subr.bf16.mxu0 0
      %5328 = vmatpush1.bf16.msra.mxu0 0
      %5329 = vmatprep.subr.bf16.mxu0 0
      %5330 = vmatpush1.bf16.msra.mxu0 0
      %5331 = vmatprep.mubr.bf16.mxu0 0
      %5332 = vmatmul.mubr.bf16.gmra.mrb[0].mxu0 %v4598
      %v5333 = vpop.f32.mrb[0].mxu0
      %v5334 = vadd.f32 %v4320, %v5333
      %v5335 = vpop.f32.mrb[0].mxu0
      %v5336 = vadd.f32 %v4324, %v5335
      %v5337 = vpop.f32.mrb[0].mxu0
      %v5338 = vadd.f32 %v4320, %v5337
      %v5339 = vpop.f32.mrb[0].mxu0
      %v5340 = vadd.f32 %v4324, %v5339
      %5341 = vmatprep.mubr.bf16.mxu0 0
      %5342 = vmatmul.mubr.bf16.gmra.mrb[0].mxu0 %v4601
      %v5343 = vpop.f32.mrb[0].mxu0
      %v5344 = vadd.f32 %v4320, %v5343
      %v5345 = vpop.f32.mrb[0].mxu0
      %v5346 = vadd.f32 %v4324, %v5345
      %v5347 = vpop.f32.mrb[0].mxu0
      %v5348 = vadd.f32 %v4320, %v5347
      %v5349 = vpop.f32.mrb[0].mxu0
      %v5350 = vadd.f32 %v4324, %v5349
      %5351 = vmatprep.mubr.bf16.mxu0 0
      %5352 = vmatmul.mubr.bf16.gmra.mrb[0].mxu0 %v4604
      %v5353 = vpop.f32.mrb[0].mxu0
      %v5354 = vadd.f32 %v4320, %v5353
      %v5355 = vpop.f32.mrb[0].mxu0
      %v5356 = vadd.f32 %v4324, %v5355
      %v5357 = vpop.f32.mrb[0].mxu0
      %v5358 = vadd.f32 %v4320, %v5357
      %v5359 = vpop.f32.mrb[0].mxu0
      %v5360 = vadd.f32 %v4324, %v5359
      %5361 = vmatprep.mubr.bf16.mxu0 0
      %5362 = vmatmul.mubr.bf16.gmra.mrb[0].mxu0 %v4607
      %v5363 = vpop.f32.mrb[0].mxu0
      %v5364 = vadd.f32 %v4320, %v5363
      %v5365 = vpop.f32.mrb[0].mxu0
      %v5366 = vadd.f32 %v4324, %v5365
      %v5367 = vpop.f32.mrb[0].mxu0
      %v5368 = vadd.f32 %v4320, %v5367
      %v5369 = vpop.f32.mrb[0].mxu0
      %v5370 = vadd.f32 %v4324, %v5369
      %5371 = vmatprep.mubr.bf16.mxu0 0
      %5372 = vmatmul.mubr.bf16.gmra.mrb[0].mxu0 %v4610
      %v5373 = vpop.f32.mrb[0].mxu0
      %v5374 = vadd.f32 %v4320, %v5373
      %v5375 = vpop.f32.mrb[0].mxu0
      %v5376 = vadd.f32 %v4324, %v5375
      %v5377 = vpop.f32.mrb[0].mxu0
      %v5378 = vadd.f32 %v4320, %v5377
      %v5379 = vpop.f32.mrb[0].mxu0
      %v5380 = vadd.f32 %v4324, %v5379
      %5381 = vmatprep.mubr.bf16.mxu0 0
      %5382 = vmatmul.mubr.bf16.gmra.mrb[0].mxu0 %v4613
      %v5383 = vpop.f32.mrb[0].mxu0
      %v5384 = vadd.f32 %v4320, %v5383
      %v5385 = vpop.f32.mrb[0].mxu0
      %v5386 = vadd.f32 %v4324, %v5385
      %v5387 = vpop.f32.mrb[0].mxu0
      %v5388 = vadd.f32 %v4320, %v5387
      %v5389 = vpop.f32.mrb[0].mxu0
      %v5390 = vadd.f32 %v4324, %v5389
      %5391 = vmatprep.mubr.bf16.mxu0 0
      %5392 = vmatmul.mubr.bf16.gmra.mrb[0].mxu0 %v4616
      %v5393 = vpop.f32.mrb[0].mxu0
      %v5394 = vadd.f32 %v4320, %v5393
      %v5395 = vpop.f32.mrb[0].mxu0
      %v5396 = vadd.f32 %v4324, %v5395
      %v5397 = vpop.f32.mrb[0].mxu0
      %v5398 = vadd.f32 %v4320, %v5397
      %v5399 = vpop.f32.mrb[0].mxu0
      %v5400 = vadd.f32 %v4324, %v5399
      %5401 = vmatprep.mubr.bf16.mxu0 0
      %5402 = vmatmul.mubr.bf16.gmra.mrb[0].mxu0 %v4619
      %v5403 = vpop.f32.mrb[0].mxu0
      %v5404 = vadd.f32 %v4320, %v5403
      %v5405 = vpop.f32.mrb[0].mxu0
      %v5406 = vadd.f32 %v4324, %v5405
      %v5407 = vpop.f32.mrb[0].mxu0
      %v5408 = vadd.f32 %v4320, %v5407
      %v5409 = vpop.f32.mrb[0].mxu0
      %v5410 = vadd.f32 %v4324, %v5409
      %5411 = vmatprep.mubr.bf16.mxu0 0
      %5412 = vmatmul.mubr.bf16.gmra.mrb[0].mxu0 %v4622
      %v5413 = vpop.f32.mrb[0].mxu0
      %v5414 = vadd.f32 %v4320, %v5413
      %v5415 = vpop.f32.mrb[0].mxu0
      %v5416 = vadd.f32 %v4324, %v5415
      %v5417 = vpop.f32.mrb[0].mxu0
      %v5418 = vadd.f32 %v4320, %v5417
      %v5419 = vpop.f32.mrb[0].mxu0
      %v5420 = vadd.f32 %v4324, %v5419
      %5421 = vmatprep.mubr.bf16.mxu0 0
      %5422 = vmatmul.mubr.bf16.gmra.mrb[0].mxu0 %v4625
      %v5423 = vpop.f32.mrb[0].mxu0
      %v5424 = vadd.f32 %v4320, %v5423
      %v5425 = vpop.f32.mrb[0].mxu0
      %v5426 = vadd.f32 %v4324, %v5425
      %v5427 = vpop.f32.mrb[0].mxu0
      %v5428 = vadd.f32 %v4320, %v5427
      %v5429 = vpop.f32.mrb[0].mxu0
      %v5430 = vadd.f32 %v4324, %v5429
      %5431 = vmatprep.mubr.bf16.mxu0 0
      %5432 = vmatmul.mubr.bf16.gmra.mrb[0].mxu0 %v4628
      %v5433 = vpop.f32.mrb[0].mxu0
      %v5434 = vadd.f32 %v4320, %v5433
      %v5435 = vpop.f32.mrb[0].mxu0
      %v5436 = vadd.f32 %v4324, %v5435
      %v5437 = vpop.f32.mrb[0].mxu0
      %v5438 = vadd.f32 %v4320, %v5437
      %v5439 = vpop.f32.mrb[0].mxu0
      %v5440 = vadd.f32 %v4324, %v5439
      %5441 = vmatprep.mubr.bf16.mxu0 0
      %5442 = vmatmul.mubr.bf16.gmra.mrb[0].mxu0 %v4631
      %v5443 = vpop.f32.mrb[0].mxu0
      %v5444 = vadd.f32 %v4320, %v5443
      %v5445 = vpop.f32.mrb[0].mxu0
      %v5446 = vadd.f32 %v4324, %v5445
      %v5447 = vpop.f32.mrb[0].mxu0
      %v5448 = vadd.f32 %v4320, %v5447
      %v5449 = vpop.f32.mrb[0].mxu0
      %v5450 = vadd.f32 %v4324, %v5449
      %5451 = vmatprep.mubr.bf16.mxu0 0
      %5452 = vmatmul.mubr.bf16.gmra.mrb[0].mxu0 %v4634
      %v5453 = vpop.f32.mrb[0].mxu0
      %v5454 = vadd.f32 %v4320, %v5453
      %v5455 = vpop.f32.mrb[0].mxu0
      %v5456 = vadd.f32 %v4324, %v5455
      %v5457 = vpop.f32.mrb[0].mxu0
      %v5458 = vadd.f32 %v4320, %v5457
      %v5459 = vpop.f32.mrb[0].mxu0
      %v5460 = vadd.f32 %v4324, %v5459
      %5461 = vmatprep.mubr.bf16.mxu0 0
      %5462 = vmatmul.mubr.bf16.gmra.mrb[0].mxu0 %v4637
      %v5463 = vpop.f32.mrb[0].mxu0
      %v5464 = vadd.f32 %v4320, %v5463
      %v5465 = vpop.f32.mrb[0].mxu0
      %v5466 = vadd.f32 %v4324, %v5465
      %v5467 = vpop.f32.mrb[0].mxu0
      %v5468 = vadd.f32 %v4320, %v5467
      %v5469 = vpop.f32.mrb[0].mxu0
      %v5470 = vadd.f32 %v4324, %v5469
      %5471 = vmatprep.mubr.bf16.mxu0 0
      %5472 = vmatmul.mubr.bf16.gmra.mrb[0].mxu0 %v4640
      %v5473 = vpop.f32.mrb[0].mxu0
      %v5474 = vadd.f32 %v4320, %v5473
      %v5475 = vpop.f32.mrb[0].mxu0
      %v5476 = vadd.f32 %v4324, %v5475
      %v5477 = vpop.f32.mrb[0].mxu0
      %v5478 = vadd.f32 %v4320, %v5477
      %v5479 = vpop.f32.mrb[0].mxu0
      %v5480 = vadd.f32 %v4324, %v5479
      %5481 = vmatprep.mubr.bf16.mxu0 0
      %5482 = vmatmul.mubr.bf16.gmra.mrb[0].mxu0 %v4643
      %v5483 = vpop.f32.mrb[0].mxu0
      %v5484 = vadd.f32 %v4320, %v5483
      %v5485 = vpop.f32.mrb[0].mxu0
      %v5486 = vadd.f32 %v4324, %v5485
      %v5487 = vpop.f32.mrb[0].mxu0
      %v5488 = vadd.f32 %v4320, %v5487
      %v5489 = vpop.f32.mrb[0].mxu0
      %v5490 = vadd.f32 %v4324, %v5489
      %5491 = vmatprep.mubr.bf16.mxu0 0
      %5492 = vmatmul.mubr.bf16.gmra.mrb[0].mxu0 %v4646
      %v5493 = vpop.f32.mrb[0].mxu0
      %v5494 = vadd.f32 %v4320, %v5493
      %v5495 = vpop.f32.mrb[0].mxu0
      %v5496 = vadd.f32 %v4324, %v5495
      %v5497 = vpop.f32.mrb[0].mxu0
      %v5498 = vpop.f32.mrb[0].mxu0
      %5499 = vdwg.mxu0
      %5500 = vmatprep.subr.bf16.mxu0 %v4526
      %5501 = vmatpush1.bf16.msra.mxu0 %v4525
      %5502 = vmatprep.subr.bf16.mxu0 %v4542
      %5503 = vmatpush1.bf16.msra.mxu0 %v4541
      %5504 = vmatprep.subr.bf16.mxu0 %v4676
      %5505 = vmatpush1.bf16.msra.mxu0 %v4673
      %5506 = vmatprep.subr.bf16.mxu0 0
      %5507 = vmatpush1.bf16.msra.mxu0 0
      %5508 = vmatprep.subr.bf16.mxu0 0
      %5509 = vmatpush1.bf16.msra.mxu0 0
      %5510 = vmatprep.subr.bf16.mxu0 0
      %5511 = vmatpush1.bf16.msra.mxu0 0
      %5512 = vmatprep.subr.bf16.mxu0 0
      %5513 = vmatpush1.bf16.msra.mxu0 0
      %5514 = vmatprep.subr.bf16.mxu0 0
      %5515 = vmatpush1.bf16.msra.mxu0 0
      %5516 = vmatprep.subr.bf16.mxu0 0
      %5517 = vmatpush1.bf16.msra.mxu0 0
      %5518 = vmatprep.subr.bf16.mxu0 0
      %5519 = vmatpush1.bf16.msra.mxu0 0
      %5520 = vmatprep.subr.bf16.mxu0 0
      %5521 = vmatpush1.bf16.msra.mxu0 0
      %5522 = vmatprep.subr.bf16.mxu0 0
      %5523 = vmatpush1.bf16.msra.mxu0 0
      %5524 = vmatprep.subr.bf16.mxu0 0
      %5525 = vmatpush1.bf16.msra.mxu0 0
      %5526 = vmatprep.subr.bf16.mxu0 0
      %5527 = vmatpush1.bf16.msra.mxu0 0
      %5528 = vmatprep.subr.bf16.mxu0 0
      %5529 = vmatpush1.bf16.msra.mxu0 0
      %5530 = vmatprep.subr.bf16.mxu0 0
      %5531 = vmatpush1.bf16.msra.mxu0 0
      %5532 = vmatprep.mubr.bf16.mxu0 0
      %5533 = vmatmul.mubr.bf16.gmra.mrb[0].mxu0 %v4598
      %v5534 = vpop.f32.mrb[0].mxu0
      %v5535 = vadd.f32 %v4328, %v5534
      %v5536 = vpop.f32.mrb[0].mxu0
      %v5537 = vadd.f32 %v4332, %v5536
      %v5538 = vpop.f32.mrb[0].mxu0
      %v5539 = vadd.f32 %v4328, %v5538
      %v5540 = vpop.f32.mrb[0].mxu0
      %v5541 = vadd.f32 %v4332, %v5540
      %5542 = vmatprep.mubr.bf16.mxu0 0
      %5543 = vmatmul.mubr.bf16.gmra.mrb[0].mxu0 %v4601
      %v5544 = vpop.f32.mrb[0].mxu0
      %v5545 = vadd.f32 %v4328, %v5544
      %v5546 = vpop.f32.mrb[0].mxu0
      %v5547 = vadd.f32 %v4332, %v5546
      %v5548 = vpop.f32.mrb[0].mxu0
      %v5549 = vadd.f32 %v4328, %v5548
      %v5550 = vpop.f32.mrb[0].mxu0
      %v5551 = vadd.f32 %v4332, %v5550
      %5552 = vmatprep.mubr.bf16.mxu0 0
      %5553 = vmatmul.mubr.bf16.gmra.mrb[0].mxu0 %v4604
      %v5554 = vpop.f32.mrb[0].mxu0
      %v5555 = vadd.f32 %v4328, %v5554
      %v5556 = vpop.f32.mrb[0].mxu0
      %v5557 = vadd.f32 %v4332, %v5556
      %v5558 = vpop.f32.mrb[0].mxu0
      %v5559 = vadd.f32 %v4328, %v5558
      %v5560 = vpop.f32.mrb[0].mxu0
      %v5561 = vadd.f32 %v4332, %v5560
      %5562 = vmatprep.mubr.bf16.mxu0 0
      %5563 = vmatmul.mubr.bf16.gmra.mrb[0].mxu0 %v4607
      %v5564 = vpop.f32.mrb[0].mxu0
      %v5565 = vadd.f32 %v4328, %v5564
      %v5566 = vpop.f32.mrb[0].mxu0
      %v5567 = vadd.f32 %v4332, %v5566
      %v5568 = vpop.f32.mrb[0].mxu0
      %v5569 = vadd.f32 %v4328, %v5568
      %v5570 = vpop.f32.mrb[0].mxu0
      %v5571 = vadd.f32 %v4332, %v5570
      %5572 = vmatprep.mubr.bf16.mxu0 0
      %5573 = vmatmul.mubr.bf16.gmra.mrb[0].mxu0 %v4610
      %v5574 = vpop.f32.mrb[0].mxu0
      %v5575 = vadd.f32 %v4328, %v5574
      %v5576 = vpop.f32.mrb[0].mxu0
      %v5577 = vadd.f32 %v4332, %v5576
      %v5578 = vpop.f32.mrb[0].mxu0
      %v5579 = vadd.f32 %v4328, %v5578
      %v5580 = vpop.f32.mrb[0].mxu0
      %v5581 = vadd.f32 %v4332, %v5580
      %5582 = vmatprep.mubr.bf16.mxu0 0
      %5583 = vmatmul.mubr.bf16.gmra.mrb[0].mxu0 %v4613
      %v5584 = vpop.f32.mrb[0].mxu0
      %v5585 = vadd.f32 %v4328, %v5584
      %v5586 = vpop.f32.mrb[0].mxu0
      %v5587 = vadd.f32 %v4332, %v5586
      %v5588 = vpop.f32.mrb[0].mxu0
      %v5589 = vadd.f32 %v4328, %v5588
      %v5590 = vpop.f32.mrb[0].mxu0
      %v5591 = vadd.f32 %v4332, %v5590
      %5592 = vmatprep.mubr.bf16.mxu0 0
      %5593 = vmatmul.mubr.bf16.gmra.mrb[0].mxu0 %v4616
      %v5594 = vpop.f32.mrb[0].mxu0
      %v5595 = vadd.f32 %v4328, %v5594
      %v5596 = vpop.f32.mrb[0].mxu0
      %v5597 = vadd.f32 %v4332, %v5596
      %v5598 = vpop.f32.mrb[0].mxu0
      %v5599 = vadd.f32 %v4328, %v5598
      %v5600 = vpop.f32.mrb[0].mxu0
      %v5601 = vadd.f32 %v4332, %v5600
      %5602 = vmatprep.mubr.bf16.mxu0 0
      %5603 = vmatmul.mubr.bf16.gmra.mrb[0].mxu0 %v4619
      %v5604 = vpop.f32.mrb[0].mxu0
      %v5605 = vadd.f32 %v4328, %v5604
      %v5606 = vpop.f32.mrb[0].mxu0
      %v5607 = vadd.f32 %v4332, %v5606
      %v5608 = vpop.f32.mrb[0].mxu0
      %v5609 = vadd.f32 %v4328, %v5608
      %v5610 = vpop.f32.mrb[0].mxu0
      %v5611 = vadd.f32 %v4332, %v5610
      %5612 = vmatprep.mubr.bf16.mxu0 0
      %5613 = vmatmul.mubr.bf16.gmra.mrb[0].mxu0 %v4622
      %v5614 = vpop.f32.mrb[0].mxu0
      %v5615 = vadd.f32 %v4328, %v5614
      %v5616 = vpop.f32.mrb[0].mxu0
      %v5617 = vadd.f32 %v4332, %v5616
      %v5618 = vpop.f32.mrb[0].mxu0
      %v5619 = vadd.f32 %v4328, %v5618
      %v5620 = vpop.f32.mrb[0].mxu0
      %v5621 = vadd.f32 %v4332, %v5620
      %5622 = vmatprep.mubr.bf16.mxu0 0
      %5623 = vmatmul.mubr.bf16.gmra.mrb[0].mxu0 %v4625
      %v5624 = vpop.f32.mrb[0].mxu0
      %v5625 = vadd.f32 %v4328, %v5624
      %v5626 = vpop.f32.mrb[0].mxu0
      %v5627 = vadd.f32 %v4332, %v5626
      %v5628 = vpop.f32.mrb[0].mxu0
      %v5629 = vadd.f32 %v4328, %v5628
      %v5630 = vpop.f32.mrb[0].mxu0
      %v5631 = vadd.f32 %v4332, %v5630
      %5632 = vmatprep.mubr.bf16.mxu0 0
      %5633 = vmatmul.mubr.bf16.gmra.mrb[0].mxu0 %v4628
      %v5634 = vpop.f32.mrb[0].mxu0
      %v5635 = vadd.f32 %v4328, %v5634
      %v5636 = vpop.f32.mrb[0].mxu0
      %v5637 = vadd.f32 %v4332, %v5636
      %v5638 = vpop.f32.mrb[0].mxu0
      %v5639 = vadd.f32 %v4328, %v5638
      %v5640 = vpop.f32.mrb[0].mxu0
      %v5641 = vadd.f32 %v4332, %v5640
      %5642 = vmatprep.mubr.bf16.mxu0 0
      %5643 = vmatmul.mubr.bf16.gmra.mrb[0].mxu0 %v4631
      %v5644 = vpop.f32.mrb[0].mxu0
      %v5645 = vadd.f32 %v4328, %v5644
      %v5646 = vpop.f32.mrb[0].mxu0
      %v5647 = vadd.f32 %v4332, %v5646
      %v5648 = vpop.f32.mrb[0].mxu0
      %v5649 = vadd.f32 %v4328, %v5648
      %v5650 = vpop.f32.mrb[0].mxu0
      %v5651 = vadd.f32 %v4332, %v5650
      %5652 = vmatprep.mubr.bf16.mxu0 0
      %5653 = vmatmul.mubr.bf16.gmra.mrb[0].mxu0 %v4634
      %v5654 = vpop.f32.mrb[0].mxu0
      %v5655 = vadd.f32 %v4328, %v5654
      %v5656 = vpop.f32.mrb[0].mxu0
      %v5657 = vadd.f32 %v4332, %v5656
      %v5658 = vpop.f32.mrb[0].mxu0
      %v5659 = vadd.f32 %v4328, %v5658
      %v5660 = vpop.f32.mrb[0].mxu0
      %v5661 = vadd.f32 %v4332, %v5660
      %5662 = vmatprep.mubr.bf16.mxu0 0
      %5663 = vmatmul.mubr.bf16.gmra.mrb[0].mxu0 %v4637
      %v5664 = vpop.f32.mrb[0].mxu0
      %v5665 = vadd.f32 %v4328, %v5664
      %v5666 = vpop.f32.mrb[0].mxu0
      %v5667 = vadd.f32 %v4332, %v5666
      %v5668 = vpop.f32.mrb[0].mxu0
      %v5669 = vadd.f32 %v4328, %v5668
      %v5670 = vpop.f32.mrb[0].mxu0
      %v5671 = vadd.f32 %v4332, %v5670
      %5672 = vmatprep.mubr.bf16.mxu0 0
      %5673 = vmatmul.mubr.bf16.gmra.mrb[0].mxu0 %v4640
      %v5674 = vpop.f32.mrb[0].mxu0
      %v5675 = vadd.f32 %v4328, %v5674
      %v5676 = vpop.f32.mrb[0].mxu0
      %v5677 = vadd.f32 %v4332, %v5676
      %v5678 = vpop.f32.mrb[0].mxu0
      %v5679 = vadd.f32 %v4328, %v5678
      %v5680 = vpop.f32.mrb[0].mxu0
      %v5681 = vadd.f32 %v4332, %v5680
      %5682 = vmatprep.mubr.bf16.mxu0 0
      %5683 = vmatmul.mubr.bf16.gmra.mrb[0].mxu0 %v4643
      %v5684 = vpop.f32.mrb[0].mxu0
      %v5685 = vadd.f32 %v4328, %v5684
      %v5686 = vpop.f32.mrb[0].mxu0
      %v5687 = vadd.f32 %v4332, %v5686
      %v5688 = vpop.f32.mrb[0].mxu0
      %v5689 = vadd.f32 %v4328, %v5688
      %v5690 = vpop.f32.mrb[0].mxu0
      %v5691 = vadd.f32 %v4332, %v5690
      %5692 = vmatprep.mubr.bf16.mxu0 0
      %5693 = vmatmul.mubr.bf16.gmra.mrb[0].mxu0 %v4646
      %v5694 = vpop.f32.mrb[0].mxu0
      %v5695 = vadd.f32 %v4328, %v5694
      %v5696 = vpop.f32.mrb[0].mxu0
      %v5697 = vadd.f32 %v4332, %v5696
      %v5698 = vpop.f32.mrb[0].mxu0
      %v5699 = vpop.f32.mrb[0].mxu0
      %5700 = vdwg.mxu0
      %5701 = vmatprep.subr.bf16.mxu0 %v4528
      %5702 = vmatpush1.bf16.msra.mxu0 %v4527
      %5703 = vmatprep.subr.bf16.mxu0 %v4544
      %5704 = vmatpush1.bf16.msra.mxu0 %v4543
      %5705 = vmatprep.subr.bf16.mxu0 %v4682
      %5706 = vmatpush1.bf16.msra.mxu0 %v4679
      %5707 = vmatprep.subr.bf16.mxu0 0
      %5708 = vmatpush1.bf16.msra.mxu0 0
      %5709 = vmatprep.subr.bf16.mxu0 0
      %5710 = vmatpush1.bf16.msra.mxu0 0
      %5711 = vmatprep.subr.bf16.mxu0 0
      %5712 = vmatpush1.bf16.msra.mxu0 0
      %5713 = vmatprep.subr.bf16.mxu0 0
      %5714 = vmatpush1.bf16.msra.mxu0 0
      %5715 = vmatprep.subr.bf16.mxu0 0
      %5716 = vmatpush1.bf16.msra.mxu0 0
      %5717 = vmatprep.subr.bf16.mxu0 0
      %5718 = vmatpush1.bf16.msra.mxu0 0
      %5719 = vmatprep.subr.bf16.mxu0 0
      %5720 = vmatpush1.bf16.msra.mxu0 0
      %5721 = vmatprep.subr.bf16.mxu0 0
      %5722 = vmatpush1.bf16.msra.mxu0 0
      %5723 = vmatprep.subr.bf16.mxu0 0
      %5724 = vmatpush1.bf16.msra.mxu0 0
      %5725 = vmatprep.subr.bf16.mxu0 0
      %5726 = vmatpush1.bf16.msra.mxu0 0
      %5727 = vmatprep.subr.bf16.mxu0 0
      %5728 = vmatpush1.bf16.msra.mxu0 0
      %5729 = vmatprep.subr.bf16.mxu0 0
      %5730 = vmatpush1.bf16.msra.mxu0 0
      %5731 = vmatprep.subr.bf16.mxu0 0
      %5732 = vmatpush1.bf16.msra.mxu0 0
      %5733 = vmatprep.mubr.bf16.mxu0 0
      %5734 = vmatmul.mubr.bf16.gmra.mrb[0].mxu0 %v4598
      %v5735 = vpop.f32.mrb[0].mxu0
      %v5736 = vadd.f32 %v4336, %v5735
      %v5737 = vpop.f32.mrb[0].mxu0
      %v5738 = vadd.f32 %v4340, %v5737
      %v5739 = vpop.f32.mrb[0].mxu0
      %v5740 = vadd.f32 %v4336, %v5739
      %v5741 = vpop.f32.mrb[0].mxu0
      %v5742 = vadd.f32 %v4340, %v5741
      %5743 = vmatprep.mubr.bf16.mxu0 0
      %5744 = vmatmul.mubr.bf16.gmra.mrb[0].mxu0 %v4601
      %v5745 = vpop.f32.mrb[0].mxu0
      %v5746 = vadd.f32 %v4336, %v5745
      %v5747 = vpop.f32.mrb[0].mxu0
      %v5748 = vadd.f32 %v4340, %v5747
      %v5749 = vpop.f32.mrb[0].mxu0
      %v5750 = vadd.f32 %v4336, %v5749
      %v5751 = vpop.f32.mrb[0].mxu0
      %v5752 = vadd.f32 %v4340, %v5751
      %5753 = vmatprep.mubr.bf16.mxu0 0
      %5754 = vmatmul.mubr.bf16.gmra.mrb[0].mxu0 %v4604
      %v5755 = vpop.f32.mrb[0].mxu0
      %v5756 = vadd.f32 %v4336, %v5755
      %v5757 = vpop.f32.mrb[0].mxu0
      %v5758 = vadd.f32 %v4340, %v5757
      %v5759 = vpop.f32.mrb[0].mxu0
      %v5760 = vadd.f32 %v4336, %v5759
      %v5761 = vpop.f32.mrb[0].mxu0
      %v5762 = vadd.f32 %v4340, %v5761
      %5763 = vmatprep.mubr.bf16.mxu0 0
      %5764 = vmatmul.mubr.bf16.gmra.mrb[0].mxu0 %v4607
      %v5765 = vpop.f32.mrb[0].mxu0
      %v5766 = vadd.f32 %v4336, %v5765
      %v5767 = vpop.f32.mrb[0].mxu0
      %v5768 = vadd.f32 %v4340, %v5767
      %v5769 = vpop.f32.mrb[0].mxu0
      %v5770 = vadd.f32 %v4336, %v5769
      %v5771 = vpop.f32.mrb[0].mxu0
      %v5772 = vadd.f32 %v4340, %v5771
      %5773 = vmatprep.mubr.bf16.mxu0 0
      %5774 = vmatmul.mubr.bf16.gmra.mrb[0].mxu0 %v4610
      %v5775 = vpop.f32.mrb[0].mxu0
      %v5776 = vadd.f32 %v4336, %v5775
      %v5777 = vpop.f32.mrb[0].mxu0
      %v5778 = vadd.f32 %v4340, %v5777
      %v5779 = vpop.f32.mrb[0].mxu0
      %v5780 = vadd.f32 %v4336, %v5779
      %v5781 = vpop.f32.mrb[0].mxu0
      %v5782 = vadd.f32 %v4340, %v5781
      %5783 = vmatprep.mubr.bf16.mxu0 0
      %5784 = vmatmul.mubr.bf16.gmra.mrb[0].mxu0 %v4613
      %v5785 = vpop.f32.mrb[0].mxu0
      %v5786 = vadd.f32 %v4336, %v5785
      %v5787 = vpop.f32.mrb[0].mxu0
      %v5788 = vadd.f32 %v4340, %v5787
      %v5789 = vpop.f32.mrb[0].mxu0
      %v5790 = vadd.f32 %v4336, %v5789
      %v5791 = vpop.f32.mrb[0].mxu0
      %v5792 = vadd.f32 %v4340, %v5791
      %5793 = vmatprep.mubr.bf16.mxu0 0
      %5794 = vmatmul.mubr.bf16.gmra.mrb[0].mxu0 %v4616
      %v5795 = vpop.f32.mrb[0].mxu0
      %v5796 = vadd.f32 %v4336, %v5795
      %v5797 = vpop.f32.mrb[0].mxu0
      %v5798 = vadd.f32 %v4340, %v5797
      %v5799 = vpop.f32.mrb[0].mxu0
      %v5800 = vadd.f32 %v4336, %v5799
      %v5801 = vpop.f32.mrb[0].mxu0
      %v5802 = vadd.f32 %v4340, %v5801
      %5803 = vmatprep.mubr.bf16.mxu0 0
      %5804 = vmatmul.mubr.bf16.gmra.mrb[0].mxu0 %v4619
      %v5805 = vpop.f32.mrb[0].mxu0
      %v5806 = vadd.f32 %v4336, %v5805
      %v5807 = vpop.f32.mrb[0].mxu0
      %v5808 = vadd.f32 %v4340, %v5807
      %v5809 = vpop.f32.mrb[0].mxu0
      %v5810 = vadd.f32 %v4336, %v5809
      %v5811 = vpop.f32.mrb[0].mxu0
      %v5812 = vadd.f32 %v4340, %v5811
      %5813 = vmatprep.mubr.bf16.mxu0 0
      %5814 = vmatmul.mubr.bf16.gmra.mrb[0].mxu0 %v4622
      %v5815 = vpop.f32.mrb[0].mxu0
      %v5816 = vadd.f32 %v4336, %v5815
      %v5817 = vpop.f32.mrb[0].mxu0
      %v5818 = vadd.f32 %v4340, %v5817
      %v5819 = vpop.f32.mrb[0].mxu0
      %v5820 = vadd.f32 %v4336, %v5819
      %v5821 = vpop.f32.mrb[0].mxu0
      %v5822 = vadd.f32 %v4340, %v5821
      %5823 = vmatprep.mubr.bf16.mxu0 0
      %5824 = vmatmul.mubr.bf16.gmra.mrb[0].mxu0 %v4625
      %v5825 = vpop.f32.mrb[0].mxu0
      %v5826 = vadd.f32 %v4336, %v5825
      %v5827 = vpop.f32.mrb[0].mxu0
      %v5828 = vadd.f32 %v4340, %v5827
      %v5829 = vpop.f32.mrb[0].mxu0
      %v5830 = vadd.f32 %v4336, %v5829
      %v5831 = vpop.f32.mrb[0].mxu0
      %v5832 = vadd.f32 %v4340, %v5831
      %5833 = vmatprep.mubr.bf16.mxu0 0
      %5834 = vmatmul.mubr.bf16.gmra.mrb[0].mxu0 %v4628
      %v5835 = vpop.f32.mrb[0].mxu0
      %v5836 = vadd.f32 %v4336, %v5835
      %v5837 = vpop.f32.mrb[0].mxu0
      %v5838 = vadd.f32 %v4340, %v5837
      %v5839 = vpop.f32.mrb[0].mxu0
      %v5840 = vadd.f32 %v4336, %v5839
      %v5841 = vpop.f32.mrb[0].mxu0
      %v5842 = vadd.f32 %v4340, %v5841
      %5843 = vmatprep.mubr.bf16.mxu0 0
      %5844 = vmatmul.mubr.bf16.gmra.mrb[0].mxu0 %v4631
      %v5845 = vpop.f32.mrb[0].mxu0
      %v5846 = vadd.f32 %v4336, %v5845
      %v5847 = vpop.f32.mrb[0].mxu0
      %v5848 = vadd.f32 %v4340, %v5847
      %v5849 = vpop.f32.mrb[0].mxu0
      %v5850 = vadd.f32 %v4336, %v5849
      %v5851 = vpop.f32.mrb[0].mxu0
      %v5852 = vadd.f32 %v4340, %v5851
      %5853 = vmatprep.mubr.bf16.mxu0 0
      %5854 = vmatmul.mubr.bf16.gmra.mrb[0].mxu0 %v4634
      %v5855 = vpop.f32.mrb[0].mxu0
      %v5856 = vadd.f32 %v4336, %v5855
      %v5857 = vpop.f32.mrb[0].mxu0
      %v5858 = vadd.f32 %v4340, %v5857
      %v5859 = vpop.f32.mrb[0].mxu0
      %v5860 = vadd.f32 %v4336, %v5859
      %v5861 = vpop.f32.mrb[0].mxu0
      %v5862 = vadd.f32 %v4340, %v5861
      %5863 = vmatprep.mubr.bf16.mxu0 0
      %5864 = vmatmul.mubr.bf16.gmra.mrb[0].mxu0 %v4637
      %v5865 = vpop.f32.mrb[0].mxu0
      %v5866 = vadd.f32 %v4336, %v5865
      %v5867 = vpop.f32.mrb[0].mxu0
      %v5868 = vadd.f32 %v4340, %v5867
      %v5869 = vpop.f32.mrb[0].mxu0
      %v5870 = vadd.f32 %v4336, %v5869
      %v5871 = vpop.f32.mrb[0].mxu0
      %v5872 = vadd.f32 %v4340, %v5871
      %5873 = vmatprep.mubr.bf16.mxu0 0
      %5874 = vmatmul.mubr.bf16.gmra.mrb[0].mxu0 %v4640
      %v5875 = vpop.f32.mrb[0].mxu0
      %v5876 = vadd.f32 %v4336, %v5875
      %v5877 = vpop.f32.mrb[0].mxu0
      %v5878 = vadd.f32 %v4340, %v5877
      %v5879 = vpop.f32.mrb[0].mxu0
      %v5880 = vadd.f32 %v4336, %v5879
      %v5881 = vpop.f32.mrb[0].mxu0
      %v5882 = vadd.f32 %v4340, %v5881
      %5883 = vmatprep.mubr.bf16.mxu0 0
      %5884 = vmatmul.mubr.bf16.gmra.mrb[0].mxu0 %v4643
      %v5885 = vpop.f32.mrb[0].mxu0
      %v5886 = vadd.f32 %v4336, %v5885
      %v5887 = vpop.f32.mrb[0].mxu0
      %v5888 = vadd.f32 %v4340, %v5887
      %v5889 = vpop.f32.mrb[0].mxu0
      %v5890 = vadd.f32 %v4336, %v5889
      %v5891 = vpop.f32.mrb[0].mxu0
      %v5892 = vadd.f32 %v4340, %v5891
      %5893 = vmatprep.mubr.bf16.mxu0 0
      %5894 = vmatmul.mubr.bf16.gmra.mrb[0].mxu0 %v4646
      %v5895 = vpop.f32.mrb[0].mxu0
      %v5896 = vadd.f32 %v4336, %v5895
      %v5897 = vpop.f32.mrb[0].mxu0
      %v5898 = vadd.f32 %v4340, %v5897
      %v5899 = vpop.f32.mrb[0].mxu0
      %v5900 = vpop.f32.mrb[0].mxu0
      %5901 = vdwg.mxu0
      %5902 = vmatprep.subr.bf16.mxu0 %v4530
      %5903 = vmatpush1.bf16.msra.mxu0 %v4529
      %5904 = vmatprep.subr.bf16.mxu0 %v4546
      %5905 = vmatpush1.bf16.msra.mxu0 %v4545
      %5906 = vmatprep.subr.bf16.mxu0 %v4688
      %5907 = vmatpush1.bf16.msra.mxu0 %v4685
      %5908 = vmatprep.subr.bf16.mxu0 0
      %5909 = vmatpush1.bf16.msra.mxu0 0
      %5910 = vmatprep.subr.bf16.mxu0 0
      %5911 = vmatpush1.bf16.msra.mxu0 0
      %5912 = vmatprep.subr.bf16.mxu0 0
      %5913 = vmatpush1.bf16.msra.mxu0 0
      %5914 = vmatprep.subr.bf16.mxu0 0
      %5915 = vmatpush1.bf16.msra.mxu0 0
      %5916 = vmatprep.subr.bf16.mxu0 0
      %5917 = vmatpush1.bf16.msra.mxu0 0
      %5918 = vmatprep.subr.bf16.mxu0 0
      %5919 = vmatpush1.bf16.msra.mxu0 0
      %5920 = vmatprep.subr.bf16.mxu0 0
      %5921 = vmatpush1.bf16.msra.mxu0 0
      %5922 = vmatprep.subr.bf16.mxu0 0
      %5923 = vmatpush1.bf16.msra.mxu0 0
      %5924 = vmatprep.subr.bf16.mxu0 0
      %5925 = vmatpush1.bf16.msra.mxu0 0
      %5926 = vmatprep.subr.bf16.mxu0 0
      %5927 = vmatpush1.bf16.msra.mxu0 0
      %5928 = vmatprep.subr.bf16.mxu0 0
      %5929 = vmatpush1.bf16.msra.mxu0 0
      %5930 = vmatprep.subr.bf16.mxu0 0
      %5931 = vmatpush1.bf16.msra.mxu0 0
      %5932 = vmatprep.subr.bf16.mxu0 0
      %5933 = vmatpush1.bf16.msra.mxu0 0
      %5934 = vmatprep.mubr.bf16.mxu0 0
      %5935 = vmatmul.mubr.bf16.gmra.mrb[0].mxu0 %v4598
      %v5936 = vpop.f32.mrb[0].mxu0
      %v5937 = vadd.f32 %v4344, %v5936
      %v5938 = vpop.f32.mrb[0].mxu0
      %v5939 = vadd.f32 %v4348, %v5938
      %v5940 = vpop.f32.mrb[0].mxu0
      %v5941 = vadd.f32 %v4344, %v5940
      %v5942 = vpop.f32.mrb[0].mxu0
      %v5943 = vadd.f32 %v4348, %v5942
      %5944 = vmatprep.mubr.bf16.mxu0 0
      %5945 = vmatmul.mubr.bf16.gmra.mrb[0].mxu0 %v4601
      %v5946 = vpop.f32.mrb[0].mxu0
      %v5947 = vadd.f32 %v4344, %v5946
      %v5948 = vpop.f32.mrb[0].mxu0
      %v5949 = vadd.f32 %v4348, %v5948
      %v5950 = vpop.f32.mrb[0].mxu0
      %v5951 = vadd.f32 %v4344, %v5950
      %v5952 = vpop.f32.mrb[0].mxu0
      %v5953 = vadd.f32 %v4348, %v5952
      %5954 = vmatprep.mubr.bf16.mxu0 0
      %5955 = vmatmul.mubr.bf16.gmra.mrb[0].mxu0 %v4604
      %v5956 = vpop.f32.mrb[0].mxu0
      %v5957 = vadd.f32 %v4344, %v5956
      %v5958 = vpop.f32.mrb[0].mxu0
      %v5959 = vadd.f32 %v4348, %v5958
      %v5960 = vpop.f32.mrb[0].mxu0
      %v5961 = vadd.f32 %v4344, %v5960
      %v5962 = vpop.f32.mrb[0].mxu0
      %v5963 = vadd.f32 %v4348, %v5962
      %5964 = vmatprep.mubr.bf16.mxu0 0
      %5965 = vmatmul.mubr.bf16.gmra.mrb[0].mxu0 %v4607
      %v5966 = vpop.f32.mrb[0].mxu0
      %v5967 = vadd.f32 %v4344, %v5966
      %v5968 = vpop.f32.mrb[0].mxu0
      %v5969 = vadd.f32 %v4348, %v5968
      %v5970 = vpop.f32.mrb[0].mxu0
      %v5971 = vadd.f32 %v4344, %v5970
      %v5972 = vpop.f32.mrb[0].mxu0
      %v5973 = vadd.f32 %v4348, %v5972
      %5974 = vmatprep.mubr.bf16.mxu0 0
      %5975 = vmatmul.mubr.bf16.gmra.mrb[0].mxu0 %v4610
      %v5976 = vpop.f32.mrb[0].mxu0
      %v5977 = vadd.f32 %v4344, %v5976
      %v5978 = vpop.f32.mrb[0].mxu0
      %v5979 = vadd.f32 %v4348, %v5978
      %v5980 = vpop.f32.mrb[0].mxu0
      %v5981 = vadd.f32 %v4344, %v5980
      %v5982 = vpop.f32.mrb[0].mxu0
      %v5983 = vadd.f32 %v4348, %v5982
      %5984 = vmatprep.mubr.bf16.mxu0 0
      %5985 = vmatmul.mubr.bf16.gmra.mrb[0].mxu0 %v4613
      %v5986 = vpop.f32.mrb[0].mxu0
      %v5987 = vadd.f32 %v4344, %v5986
      %v5988 = vpop.f32.mrb[0].mxu0
      %v5989 = vadd.f32 %v4348, %v5988
      %v5990 = vpop.f32.mrb[0].mxu0
      %v5991 = vadd.f32 %v4344, %v5990
      %v5992 = vpop.f32.mrb[0].mxu0
      %v5993 = vadd.f32 %v4348, %v5992
      %5994 = vmatprep.mubr.bf16.mxu0 0
      %5995 = vmatmul.mubr.bf16.gmra.mrb[0].mxu0 %v4616
      %v5996 = vpop.f32.mrb[0].mxu0
      %v5997 = vadd.f32 %v4344, %v5996
      %v5998 = vpop.f32.mrb[0].mxu0
      %v5999 = vadd.f32 %v4348, %v5998
      %v6000 = vpop.f32.mrb[0].mxu0
      %v6001 = vadd.f32 %v4344, %v6000
      %v6002 = vpop.f32.mrb[0].mxu0
      %v6003 = vadd.f32 %v4348, %v6002
      %6004 = vmatprep.mubr.bf16.mxu0 0
      %6005 = vmatmul.mubr.bf16.gmra.mrb[0].mxu0 %v4619
      %v6006 = vpop.f32.mrb[0].mxu0
      %v6007 = vadd.f32 %v4344, %v6006
      %v6008 = vpop.f32.mrb[0].mxu0
      %v6009 = vadd.f32 %v4348, %v6008
      %v6010 = vpop.f32.mrb[0].mxu0
      %v6011 = vadd.f32 %v4344, %v6010
      %v6012 = vpop.f32.mrb[0].mxu0
      %v6013 = vadd.f32 %v4348, %v6012
      %6014 = vmatprep.mubr.bf16.mxu0 0
      %6015 = vmatmul.mubr.bf16.gmra.mrb[0].mxu0 %v4622
      %v6016 = vpop.f32.mrb[0].mxu0
      %v6017 = vadd.f32 %v4344, %v6016
      %v6018 = vpop.f32.mrb[0].mxu0
      %v6019 = vadd.f32 %v4348, %v6018
      %v6020 = vpop.f32.mrb[0].mxu0
      %v6021 = vadd.f32 %v4344, %v6020
      %v6022 = vpop.f32.mrb[0].mxu0
      %v6023 = vadd.f32 %v4348, %v6022
      %6024 = vmatprep.mubr.bf16.mxu0 0
      %6025 = vmatmul.mubr.bf16.gmra.mrb[0].mxu0 %v4625
      %v6026 = vpop.f32.mrb[0].mxu0
      %v6027 = vadd.f32 %v4344, %v6026
      %v6028 = vpop.f32.mrb[0].mxu0
      %v6029 = vadd.f32 %v4348, %v6028
      %v6030 = vpop.f32.mrb[0].mxu0
      %v6031 = vadd.f32 %v4344, %v6030
      %v6032 = vpop.f32.mrb[0].mxu0
      %v6033 = vadd.f32 %v4348, %v6032
      %6034 = vmatprep.mubr.bf16.mxu0 0
      %6035 = vmatmul.mubr.bf16.gmra.mrb[0].mxu0 %v4628
      %v6036 = vpop.f32.mrb[0].mxu0
      %v6037 = vadd.f32 %v4344, %v6036
      %v6038 = vpop.f32.mrb[0].mxu0
      %v6039 = vadd.f32 %v4348, %v6038
      %v6040 = vpop.f32.mrb[0].mxu0
      %v6041 = vadd.f32 %v4344, %v6040
      %v6042 = vpop.f32.mrb[0].mxu0
      %v6043 = vadd.f32 %v4348, %v6042
      %6044 = vmatprep.mubr.bf16.mxu0 0
      %6045 = vmatmul.mubr.bf16.gmra.mrb[0].mxu0 %v4631
      %v6046 = vpop.f32.mrb[0].mxu0
      %v6047 = vadd.f32 %v4344, %v6046
      %v6048 = vpop.f32.mrb[0].mxu0
      %v6049 = vadd.f32 %v4348, %v6048
      %v6050 = vpop.f32.mrb[0].mxu0
      %v6051 = vadd.f32 %v4344, %v6050
      %v6052 = vpop.f32.mrb[0].mxu0
      %v6053 = vadd.f32 %v4348, %v6052
      %6054 = vmatprep.mubr.bf16.mxu0 0
      %6055 = vmatmul.mubr.bf16.gmra.mrb[0].mxu0 %v4634
      %v6056 = vpop.f32.mrb[0].mxu0
      %v6057 = vadd.f32 %v4344, %v6056
      %v6058 = vpop.f32.mrb[0].mxu0
      %v6059 = vadd.f32 %v4348, %v6058
      %v6060 = vpop.f32.mrb[0].mxu0
      %v6061 = vadd.f32 %v4344, %v6060
      %v6062 = vpop.f32.mrb[0].mxu0
      %v6063 = vadd.f32 %v4348, %v6062
      %6064 = vmatprep.mubr.bf16.mxu0 0
      %6065 = vmatmul.mubr.bf16.gmra.mrb[0].mxu0 %v4637
      %v6066 = vpop.f32.mrb[0].mxu0
      %v6067 = vadd.f32 %v4344, %v6066
      %v6068 = vpop.f32.mrb[0].mxu0
      %v6069 = vadd.f32 %v4348, %v6068
      %v6070 = vpop.f32.mrb[0].mxu0
      %v6071 = vadd.f32 %v4344, %v6070
      %v6072 = vpop.f32.mrb[0].mxu0
      %v6073 = vadd.f32 %v4348, %v6072
      %6074 = vmatprep.mubr.bf16.mxu0 0
      %6075 = vmatmul.mubr.bf16.gmra.mrb[0].mxu0 %v4640
      %v6076 = vpop.f32.mrb[0].mxu0
      %v6077 = vadd.f32 %v4344, %v6076
      %v6078 = vpop.f32.mrb[0].mxu0
      %v6079 = vadd.f32 %v4348, %v6078
      %v6080 = vpop.f32.mrb[0].mxu0
      %v6081 = vadd.f32 %v4344, %v6080
      %v6082 = vpop.f32.mrb[0].mxu0
      %v6083 = vadd.f32 %v4348, %v6082
      %6084 = vmatprep.mubr.bf16.mxu0 0
      %6085 = vmatmul.mubr.bf16.gmra.mrb[0].mxu0 %v4643
      %v6086 = vpop.f32.mrb[0].mxu0
      %v6087 = vadd.f32 %v4344, %v6086
      %v6088 = vpop.f32.mrb[0].mxu0
      %v6089 = vadd.f32 %v4348, %v6088
      %v6090 = vpop.f32.mrb[0].mxu0
      %v6091 = vadd.f32 %v4344, %v6090
      %v6092 = vpop.f32.mrb[0].mxu0
      %v6093 = vadd.f32 %v4348, %v6092
      %6094 = vmatprep.mubr.bf16.mxu0 0
      %6095 = vmatmul.mubr.bf16.gmra.mrb[0].mxu0 %v4646
      %v6096 = vpop.f32.mrb[0].mxu0
      %v6097 = vadd.f32 %v4344, %v6096
      %v6098 = vpop.f32.mrb[0].mxu0
      %v6099 = vadd.f32 %v4348, %v6098
      %v6100 = vpop.f32.mrb[0].mxu0
      %v6101 = vpop.f32.mrb[0].mxu0
      %6102 = vdwg.mxu0
      %6103 = vmatprep.subr.bf16.mxu0 %v4532
      %6104 = vmatpush1.bf16.msra.mxu0 %v4531
      %6105 = vmatprep.subr.bf16.mxu0 %v4548
      %6106 = vmatpush1.bf16.msra.mxu0 %v4547
      %6107 = vmatprep.subr.bf16.mxu0 %v4694
      %6108 = vmatpush1.bf16.msra.mxu0 %v4691
      %6109 = vmatprep.subr.bf16.mxu0 0
      %6110 = vmatpush1.bf16.msra.mxu0 0
      %6111 = vmatprep.subr.bf16.mxu0 0
      %6112 = vmatpush1.bf16.msra.mxu0 0
      %6113 = vmatprep.subr.bf16.mxu0 0
      %6114 = vmatpush1.bf16.msra.mxu0 0
      %6115 = vmatprep.subr.bf16.mxu0 0
      %6116 = vmatpush1.bf16.msra.mxu0 0
      %6117 = vmatprep.subr.bf16.mxu0 0
      %6118 = vmatpush1.bf16.msra.mxu0 0
      %6119 = vmatprep.subr.bf16.mxu0 0
      %6120 = vmatpush1.bf16.msra.mxu0 0
      %6121 = vmatprep.subr.bf16.mxu0 0
      %6122 = vmatpush1.bf16.msra.mxu0 0
      %6123 = vmatprep.subr.bf16.mxu0 0
      %6124 = vmatpush1.bf16.msra.mxu0 0
      %6125 = vmatprep.subr.bf16.mxu0 0
      %6126 = vmatpush1.bf16.msra.mxu0 0
      %6127 = vmatprep.subr.bf16.mxu0 0
      %6128 = vmatpush1.bf16.msra.mxu0 0
      %6129 = vmatprep.subr.bf16.mxu0 0
      %6130 = vmatpush1.bf16.msra.mxu0 0
      %6131 = vmatprep.subr.bf16.mxu0 0
      %6132 = vmatpush1.bf16.msra.mxu0 0
      %6133 = vmatprep.subr.bf16.mxu0 0
      %6134 = vmatpush1.bf16.msra.mxu0 0
      %6135 = vmatprep.mubr.bf16.mxu0 0
      %6136 = vmatmul.mubr.bf16.gmra.mrb[0].mxu0 %v4598
      %v6137 = vpop.f32.mrb[0].mxu0
      %v6138 = vadd.f32 %v4352, %v6137
      %v6139 = vpop.f32.mrb[0].mxu0
      %v6140 = vadd.f32 %v4356, %v6139
      %v6141 = vpop.f32.mrb[0].mxu0
      %v6142 = vadd.f32 %v4352, %v6141
      %v6143 = vpop.f32.mrb[0].mxu0
      %v6144 = vadd.f32 %v4356, %v6143
      %6145 = vmatprep.mubr.bf16.mxu0 0
      %6146 = vmatmul.mubr.bf16.gmra.mrb[0].mxu0 %v4601
      %v6147 = vpop.f32.mrb[0].mxu0
      %v6148 = vadd.f32 %v4352, %v6147
      %v6149 = vpop.f32.mrb[0].mxu0
      %v6150 = vadd.f32 %v4356, %v6149
      %v6151 = vpop.f32.mrb[0].mxu0
      %v6152 = vadd.f32 %v4352, %v6151
      %v6153 = vpop.f32.mrb[0].mxu0
      %v6154 = vadd.f32 %v4356, %v6153
      %6155 = vmatprep.mubr.bf16.mxu0 0
      %6156 = vmatmul.mubr.bf16.gmra.mrb[0].mxu0 %v4604
      %v6157 = vpop.f32.mrb[0].mxu0
      %v6158 = vadd.f32 %v4352, %v6157
      %v6159 = vpop.f32.mrb[0].mxu0
      %v6160 = vadd.f32 %v4356, %v6159
      %v6161 = vpop.f32.mrb[0].mxu0
      %v6162 = vadd.f32 %v4352, %v6161
      %v6163 = vpop.f32.mrb[0].mxu0
      %v6164 = vadd.f32 %v4356, %v6163
      %6165 = vmatprep.mubr.bf16.mxu0 0
      %6166 = vmatmul.mubr.bf16.gmra.mrb[0].mxu0 %v4607
      %v6167 = vpop.f32.mrb[0].mxu0
      %v6168 = vadd.f32 %v4352, %v6167
      %v6169 = vpop.f32.mrb[0].mxu0
      %v6170 = vadd.f32 %v4356, %v6169
      %v6171 = vpop.f32.mrb[0].mxu0
      %v6172 = vadd.f32 %v4352, %v6171
      %v6173 = vpop.f32.mrb[0].mxu0
      %v6174 = vadd.f32 %v4356, %v6173
      %6175 = vmatprep.mubr.bf16.mxu0 0
      %6176 = vmatmul.mubr.bf16.gmra.mrb[0].mxu0 %v4610
      %v6177 = vpop.f32.mrb[0].mxu0
      %v6178 = vadd.f32 %v4352, %v6177
      %v6179 = vpop.f32.mrb[0].mxu0
      %v6180 = vadd.f32 %v4356, %v6179
      %v6181 = vpop.f32.mrb[0].mxu0
      %v6182 = vadd.f32 %v4352, %v6181
      %v6183 = vpop.f32.mrb[0].mxu0
      %v6184 = vadd.f32 %v4356, %v6183
      %6185 = vmatprep.mubr.bf16.mxu0 0
      %6186 = vmatmul.mubr.bf16.gmra.mrb[0].mxu0 %v4613
      %v6187 = vpop.f32.mrb[0].mxu0
      %v6188 = vadd.f32 %v4352, %v6187
      %v6189 = vpop.f32.mrb[0].mxu0
      %v6190 = vadd.f32 %v4356, %v6189
      %v6191 = vpop.f32.mrb[0].mxu0
      %v6192 = vadd.f32 %v4352, %v6191
      %v6193 = vpop.f32.mrb[0].mxu0
      %v6194 = vadd.f32 %v4356, %v6193
      %6195 = vmatprep.mubr.bf16.mxu0 0
      %6196 = vmatmul.mubr.bf16.gmra.mrb[0].mxu0 %v4616
      %v6197 = vpop.f32.mrb[0].mxu0
      %v6198 = vadd.f32 %v4352, %v6197
      %v6199 = vpop.f32.mrb[0].mxu0
      %v6200 = vadd.f32 %v4356, %v6199
      %v6201 = vpop.f32.mrb[0].mxu0
      %v6202 = vadd.f32 %v4352, %v6201
      %v6203 = vpop.f32.mrb[0].mxu0
      %v6204 = vadd.f32 %v4356, %v6203
      %6205 = vmatprep.mubr.bf16.mxu0 0
      %6206 = vmatmul.mubr.bf16.gmra.mrb[0].mxu0 %v4619
      %v6207 = vpop.f32.mrb[0].mxu0
      %v6208 = vadd.f32 %v4352, %v6207
      %v6209 = vpop.f32.mrb[0].mxu0
      %v6210 = vadd.f32 %v4356, %v6209
      %v6211 = vpop.f32.mrb[0].mxu0
      %v6212 = vadd.f32 %v4352, %v6211
      %v6213 = vpop.f32.mrb[0].mxu0
      %v6214 = vadd.f32 %v4356, %v6213
      %6215 = vmatprep.mubr.bf16.mxu0 0
      %6216 = vmatmul.mubr.bf16.gmra.mrb[0].mxu0 %v4622
      %v6217 = vpop.f32.mrb[0].mxu0
      %v6218 = vadd.f32 %v4352, %v6217
      %v6219 = vpop.f32.mrb[0].mxu0
      %v6220 = vadd.f32 %v4356, %v6219
      %v6221 = vpop.f32.mrb[0].mxu0
      %v6222 = vadd.f32 %v4352, %v6221
      %v6223 = vpop.f32.mrb[0].mxu0
      %v6224 = vadd.f32 %v4356, %v6223
      %6225 = vmatprep.mubr.bf16.mxu0 0
      %6226 = vmatmul.mubr.bf16.gmra.mrb[0].mxu0 %v4625
      %v6227 = vpop.f32.mrb[0].mxu0
      %v6228 = vadd.f32 %v4352, %v6227
      %v6229 = vpop.f32.mrb[0].mxu0
      %v6230 = vadd.f32 %v4356, %v6229
      %v6231 = vpop.f32.mrb[0].mxu0
      %v6232 = vadd.f32 %v4352, %v6231
      %v6233 = vpop.f32.mrb[0].mxu0
      %v6234 = vadd.f32 %v4356, %v6233
      %6235 = vmatprep.mubr.bf16.mxu0 0
      %6236 = vmatmul.mubr.bf16.gmra.mrb[0].mxu0 %v4628
      %v6237 = vpop.f32.mrb[0].mxu0
      %v6238 = vadd.f32 %v4352, %v6237
      %v6239 = vpop.f32.mrb[0].mxu0
      %v6240 = vadd.f32 %v4356, %v6239
      %v6241 = vpop.f32.mrb[0].mxu0
      %v6242 = vadd.f32 %v4352, %v6241
      %v6243 = vpop.f32.mrb[0].mxu0
      %v6244 = vadd.f32 %v4356, %v6243
      %6245 = vmatprep.mubr.bf16.mxu0 0
      %6246 = vmatmul.mubr.bf16.gmra.mrb[0].mxu0 %v4631
      %v6247 = vpop.f32.mrb[0].mxu0
      %v6248 = vadd.f32 %v4352, %v6247
      %v6249 = vpop.f32.mrb[0].mxu0
      %v6250 = vadd.f32 %v4356, %v6249
      %v6251 = vpop.f32.mrb[0].mxu0
      %v6252 = vadd.f32 %v4352, %v6251
      %v6253 = vpop.f32.mrb[0].mxu0
      %v6254 = vadd.f32 %v4356, %v6253
      %6255 = vmatprep.mubr.bf16.mxu0 0
      %6256 = vmatmul.mubr.bf16.gmra.mrb[0].mxu0 %v4634
      %v6257 = vpop.f32.mrb[0].mxu0
      %v6258 = vadd.f32 %v4352, %v6257
      %v6259 = vpop.f32.mrb[0].mxu0
      %v6260 = vadd.f32 %v4356, %v6259
      %v6261 = vpop.f32.mrb[0].mxu0
      %v6262 = vadd.f32 %v4352, %v6261
      %v6263 = vpop.f32.mrb[0].mxu0
      %v6264 = vadd.f32 %v4356, %v6263
      %6265 = vmatprep.mubr.bf16.mxu0 0
      %6266 = vmatmul.mubr.bf16.gmra.mrb[0].mxu0 %v4637
      %v6267 = vpop.f32.mrb[0].mxu0
      %v6268 = vadd.f32 %v4352, %v6267
      %v6269 = vpop.f32.mrb[0].mxu0
      %v6270 = vadd.f32 %v4356, %v6269
      %v6271 = vpop.f32.mrb[0].mxu0
      %v6272 = vadd.f32 %v4352, %v6271
      %v6273 = vpop.f32.mrb[0].mxu0
      %v6274 = vadd.f32 %v4356, %v6273
      %6275 = vmatprep.mubr.bf16.mxu0 0
      %6276 = vmatmul.mubr.bf16.gmra.mrb[0].mxu0 %v4640
      %v6277 = vpop.f32.mrb[0].mxu0
      %v6278 = vadd.f32 %v4352, %v6277
      %v6279 = vpop.f32.mrb[0].mxu0
      %v6280 = vadd.f32 %v4356, %v6279
      %v6281 = vpop.f32.mrb[0].mxu0
      %v6282 = vadd.f32 %v4352, %v6281
      %v6283 = vpop.f32.mrb[0].mxu0
      %v6284 = vadd.f32 %v4356, %v6283
      %6285 = vmatprep.mubr.bf16.mxu0 0
      %6286 = vmatmul.mubr.bf16.gmra.mrb[0].mxu0 %v4643
      %v6287 = vpop.f32.mrb[0].mxu0
      %v6288 = vadd.f32 %v4352, %v6287
      %v6289 = vpop.f32.mrb[0].mxu0
      %v6290 = vadd.f32 %v4356, %v6289
      %v6291 = vpop.f32.mrb[0].mxu0
      %v6292 = vadd.f32 %v4352, %v6291
      %v6293 = vpop.f32.mrb[0].mxu0
      %v6294 = vadd.f32 %v4356, %v6293
      %6295 = vmatprep.mubr.bf16.mxu0 0
      %6296 = vmatmul.mubr.bf16.gmra.mrb[0].mxu0 %v4646
      %v6297 = vpop.f32.mrb[0].mxu0
      %v6298 = vadd.f32 %v4352, %v6297
      %v6299 = vpop.f32.mrb[0].mxu0
      %v6300 = vadd.f32 %v4356, %v6299
      %v6301 = vpop.f32.mrb[0].mxu0
      %v6302 = vpop.f32.mrb[0].mxu0
      %6303 = vdwg.mxu0
      %v6304 = vmax.f32 %v4731, 0.0
      %v6305 = vmax.f32 %v4733, 0.0
      %v6306 = vmax.f32 %v4932, 0.0
      %v6307 = vmax.f32 %v4934, 0.0
      %v6308 = vmax.f32 %v5133, 0.0
      %v6309 = vmax.f32 %v5135, 0.0
      %v6310 = vmax.f32 %v5334, 0.0
      %v6311 = vmax.f32 %v5336, 0.0
      %v6312 = vmax.f32 %v5535, 0.0
      %v6313 = vmax.f32 %v5537, 0.0
      %v6314 = vmax.f32 %v5736, 0.0
      %v6315 = vmax.f32 %v5738, 0.0
      %v6316 = vmax.f32 %v5937, 0.0
      %v6317 = vmax.f32 %v5939, 0.0
      %v6318 = vmax.f32 %v6138, 0.0
      %v6319 = vmax.f32 %v6140, 0.0
      %v6320 = vmax.f32 %v4735, 0.0
      %v6321 = vmax.f32 %v4737, 0.0
      %v6322 = vmax.f32 %v4936, 0.0
      %v6323 = vmax.f32 %v4938, 0.0
      %v6324 = vmax.f32 %v5137, 0.0
      %v6325 = vmax.f32 %v5139, 0.0
      %v6326 = vmax.f32 %v5338, 0.0
      %v6327 = vmax.f32 %v5340, 0.0
      %v6328 = vmax.f32 %v5539, 0.0
      %v6329 = vmax.f32 %v5541, 0.0
      %v6330 = vmax.f32 %v5740, 0.0
      %v6331 = vmax.f32 %v5742, 0.0
      %v6332 = vmax.f32 %v5941, 0.0
      %v6333 = vmax.f32 %v5943, 0.0
      %v6334 = vmax.f32 %v6142, 0.0
      %v6335 = vmax.f32 %v6144, 0.0
      %v6336 = vmax.f32 %v4741, 0.0
      %v6337 = vmax.f32 %v4743, 0.0
      %v6338 = vmax.f32 %v4942, 0.0
      %v6339 = vmax.f32 %v4944, 0.0
      %v6340 = vmax.f32 %v5143, 0.0
      %v6341 = vmax.f32 %v5145, 0.0
      %v6342 = vmax.f32 %v5344, 0.0
      %v6343 = vmax.f32 %v5346, 0.0
      %v6344 = vmax.f32 %v5545, 0.0
      %v6345 = vmax.f32 %v5547, 0.0
      %v6346 = vmax.f32 %v5746, 0.0
      %v6347 = vmax.f32 %v5748, 0.0
      %v6348 = vmax.f32 %v5947, 0.0
      %v6349 = vmax.f32 %v5949, 0.0
      %v6350 = vmax.f32 %v6148, 0.0
      %v6351 = vmax.f32 %v6150, 0.0
      %v6352 = vmax.f32 %v4745, 0.0
      %v6353 = vmax.f32 %v4747, 0.0
      %v6354 = vmax.f32 %v4946, 0.0
      %v6355 = vmax.f32 %v4948, 0.0
      %v6356 = vmax.f32 %v5147, 0.0
      %v6357 = vmax.f32 %v5149, 0.0
      %v6358 = vmax.f32 %v5348, 0.0
      %v6359 = vmax.f32 %v5350, 0.0
      %v6360 = vmax.f32 %v5549, 0.0
      %v6361 = vmax.f32 %v5551, 0.0
      %v6362 = vmax.f32 %v5750, 0.0
      %v6363 = vmax.f32 %v5752, 0.0
      %v6364 = vmax.f32 %v5951, 0.0
      %v6365 = vmax.f32 %v5953, 0.0
      %v6366 = vmax.f32 %v6152, 0.0
      %v6367 = vmax.f32 %v6154, 0.0
      %v6368 = vmax.f32 %v4751, 0.0
      %v6369 = vmax.f32 %v4753, 0.0
      %v6370 = vmax.f32 %v4952, 0.0
      %v6371 = vmax.f32 %v4954, 0.0
      %v6372 = vmax.f32 %v5153, 0.0
      %v6373 = vmax.f32 %v5155, 0.0
      %v6374 = vmax.f32 %v5354, 0.0
      %v6375 = vmax.f32 %v5356, 0.0
      %v6376 = vmax.f32 %v5555, 0.0
      %v6377 = vmax.f32 %v5557, 0.0
      %v6378 = vmax.f32 %v5756, 0.0
      %v6379 = vmax.f32 %v5758, 0.0
      %v6380 = vmax.f32 %v5957, 0.0
      %v6381 = vmax.f32 %v5959, 0.0
      %v6382 = vmax.f32 %v6158, 0.0
      %v6383 = vmax.f32 %v6160, 0.0
      %v6384 = vmax.f32 %v4755, 0.0
      %v6385 = vmax.f32 %v4757, 0.0
      %v6386 = vmax.f32 %v4956, 0.0
      %v6387 = vmax.f32 %v4958, 0.0
      %v6388 = vmax.f32 %v5157, 0.0
      %v6389 = vmax.f32 %v5159, 0.0
      %v6390 = vmax.f32 %v5358, 0.0
      %v6391 = vmax.f32 %v5360, 0.0
      %v6392 = vmax.f32 %v5559, 0.0
      %v6393 = vmax.f32 %v5561, 0.0
      %v6394 = vmax.f32 %v5760, 0.0
      %v6395 = vmax.f32 %v5762, 0.0
      %v6396 = vmax.f32 %v5961, 0.0
      %v6397 = vmax.f32 %v5963, 0.0
      %v6398 = vmax.f32 %v6162, 0.0
      %v6399 = vmax.f32 %v6164, 0.0
      %v6400 = vmax.f32 %v4761, 0.0
      %v6401 = vmax.f32 %v4763, 0.0
      %v6402 = vmax.f32 %v4962, 0.0
      %v6403 = vmax.f32 %v4964, 0.0
      %v6404 = vmax.f32 %v5163, 0.0
      %v6405 = vmax.f32 %v5165, 0.0
      %v6406 = vmax.f32 %v5364, 0.0
      %v6407 = vmax.f32 %v5366, 0.0
      %v6408 = vmax.f32 %v5565, 0.0
      %v6409 = vmax.f32 %v5567, 0.0
      %v6410 = vmax.f32 %v5766, 0.0
      %v6411 = vmax.f32 %v5768, 0.0
      %v6412 = vmax.f32 %v5967, 0.0
      %v6413 = vmax.f32 %v5969, 0.0
      %v6414 = vmax.f32 %v6168, 0.0
      %v6415 = vmax.f32 %v6170, 0.0
      %v6416 = vmax.f32 %v4765, 0.0
      %v6417 = vmax.f32 %v4767, 0.0
      %v6418 = vmax.f32 %v4966, 0.0
      %v6419 = vmax.f32 %v4968, 0.0
      %v6420 = vmax.f32 %v5167, 0.0
      %v6421 = vmax.f32 %v5169, 0.0
      %v6422 = vmax.f32 %v5368, 0.0
      %v6423 = vmax.f32 %v5370, 0.0
      %v6424 = vmax.f32 %v5569, 0.0
      %v6425 = vmax.f32 %v5571, 0.0
      %v6426 = vmax.f32 %v5770, 0.0
      %v6427 = vmax.f32 %v5772, 0.0
      %v6428 = vmax.f32 %v5971, 0.0
      %v6429 = vmax.f32 %v5973, 0.0
      %v6430 = vmax.f32 %v6172, 0.0
      %v6431 = vmax.f32 %v6174, 0.0
      %v6432 = vmax.f32 %v4771, 0.0
      %v6433 = vmax.f32 %v4773, 0.0
      %v6434 = vmax.f32 %v4972, 0.0
      %v6435 = vmax.f32 %v4974, 0.0
      %v6436 = vmax.f32 %v5173, 0.0
      %v6437 = vmax.f32 %v5175, 0.0
      %v6438 = vmax.f32 %v5374, 0.0
      %v6439 = vmax.f32 %v5376, 0.0
      %v6440 = vmax.f32 %v5575, 0.0
      %v6441 = vmax.f32 %v5577, 0.0
      %v6442 = vmax.f32 %v5776, 0.0
      %v6443 = vmax.f32 %v5778, 0.0
      %v6444 = vmax.f32 %v5977, 0.0
      %v6445 = vmax.f32 %v5979, 0.0
      %v6446 = vmax.f32 %v6178, 0.0
      %v6447 = vmax.f32 %v6180, 0.0
      %v6448 = vmax.f32 %v4775, 0.0
      %v6449 = vmax.f32 %v4777, 0.0
      %v6450 = vmax.f32 %v4976, 0.0
      %v6451 = vmax.f32 %v4978, 0.0
      %v6452 = vmax.f32 %v5177, 0.0
      %v6453 = vmax.f32 %v5179, 0.0
      %v6454 = vmax.f32 %v5378, 0.0
      %v6455 = vmax.f32 %v5380, 0.0
      %v6456 = vmax.f32 %v5579, 0.0
      %v6457 = vmax.f32 %v5581, 0.0
      %v6458 = vmax.f32 %v5780, 0.0
      %v6459 = vmax.f32 %v5782, 0.0
      %v6460 = vmax.f32 %v5981, 0.0
      %v6461 = vmax.f32 %v5983, 0.0
      %v6462 = vmax.f32 %v6182, 0.0
      %v6463 = vmax.f32 %v6184, 0.0
      %v6464 = vmax.f32 %v4781, 0.0
      %v6465 = vmax.f32 %v4783, 0.0
      %v6466 = vmax.f32 %v4982, 0.0
      %v6467 = vmax.f32 %v4984, 0.0
      %v6468 = vmax.f32 %v5183, 0.0
      %v6469 = vmax.f32 %v5185, 0.0
      %v6470 = vmax.f32 %v5384, 0.0
      %v6471 = vmax.f32 %v5386, 0.0
      %v6472 = vmax.f32 %v5585, 0.0
      %v6473 = vmax.f32 %v5587, 0.0
      %v6474 = vmax.f32 %v5786, 0.0
      %v6475 = vmax.f32 %v5788, 0.0
      %v6476 = vmax.f32 %v5987, 0.0
      %v6477 = vmax.f32 %v5989, 0.0
      %v6478 = vmax.f32 %v6188, 0.0
      %v6479 = vmax.f32 %v6190, 0.0
      %v6480 = vmax.f32 %v4785, 0.0
      %v6481 = vmax.f32 %v4787, 0.0
      %v6482 = vmax.f32 %v4986, 0.0
      %v6483 = vmax.f32 %v4988, 0.0
      %v6484 = vmax.f32 %v5187, 0.0
      %v6485 = vmax.f32 %v5189, 0.0
      %v6486 = vmax.f32 %v5388, 0.0
      %v6487 = vmax.f32 %v5390, 0.0
      %v6488 = vmax.f32 %v5589, 0.0
      %v6489 = vmax.f32 %v5591, 0.0
      %v6490 = vmax.f32 %v5790, 0.0
      %v6491 = vmax.f32 %v5792, 0.0
      %v6492 = vmax.f32 %v5991, 0.0
      %v6493 = vmax.f32 %v5993, 0.0
      %v6494 = vmax.f32 %v6192, 0.0
      %v6495 = vmax.f32 %v6194, 0.0
      %v6496 = vmax.f32 %v4791, 0.0
      %v6497 = vmax.f32 %v4793, 0.0
      %v6498 = vmax.f32 %v4992, 0.0
      %v6499 = vmax.f32 %v4994, 0.0
      %v6500 = vmax.f32 %v5193, 0.0
      %v6501 = vmax.f32 %v5195, 0.0
      %v6502 = vmax.f32 %v5394, 0.0
      %v6503 = vmax.f32 %v5396, 0.0
      %v6504 = vmax.f32 %v5595, 0.0
      %v6505 = vmax.f32 %v5597, 0.0
      %v6506 = vmax.f32 %v5796, 0.0
      %v6507 = vmax.f32 %v5798, 0.0
      %v6508 = vmax.f32 %v5997, 0.0
      %v6509 = vmax.f32 %v5999, 0.0
      %v6510 = vmax.f32 %v6198, 0.0
      %v6511 = vmax.f32 %v6200, 0.0
      %v6512 = vmax.f32 %v4795, 0.0
      %v6513 = vmax.f32 %v4797, 0.0
      %v6514 = vmax.f32 %v4996, 0.0
      %v6515 = vmax.f32 %v4998, 0.0
      %v6516 = vmax.f32 %v5197, 0.0
      %v6517 = vmax.f32 %v5199, 0.0
      %v6518 = vmax.f32 %v5398, 0.0
      %v6519 = vmax.f32 %v5400, 0.0
      %v6520 = vmax.f32 %v5599, 0.0
      %v6521 = vmax.f32 %v5601, 0.0
      %v6522 = vmax.f32 %v5800, 0.0
      %v6523 = vmax.f32 %v5802, 0.0
      %v6524 = vmax.f32 %v6001, 0.0
      %v6525 = vmax.f32 %v6003, 0.0
      %v6526 = vmax.f32 %v6202, 0.0
      %v6527 = vmax.f32 %v6204, 0.0
      %v6528 = vmax.f32 %v4801, 0.0
      %v6529 = vmax.f32 %v4803, 0.0
      %v6530 = vmax.f32 %v5002, 0.0
      %v6531 = vmax.f32 %v5004, 0.0
      %v6532 = vmax.f32 %v5203, 0.0
      %v6533 = vmax.f32 %v5205, 0.0
      %v6534 = vmax.f32 %v5404, 0.0
      %v6535 = vmax.f32 %v5406, 0.0
      %v6536 = vmax.f32 %v5605, 0.0
      %v6537 = vmax.f32 %v5607, 0.0
      %v6538 = vmax.f32 %v5806, 0.0
      %v6539 = vmax.f32 %v5808, 0.0
      %v6540 = vmax.f32 %v6007, 0.0
      %v6541 = vmax.f32 %v6009, 0.0
      %v6542 = vmax.f32 %v6208, 0.0
      %v6543 = vmax.f32 %v6210, 0.0
      %v6544 = vmax.f32 %v4805, 0.0
      %v6545 = vmax.f32 %v4807, 0.0
      %v6546 = vmax.f32 %v5006, 0.0
      %v6547 = vmax.f32 %v5008, 0.0
      %v6548 = vmax.f32 %v5207, 0.0
      %v6549 = vmax.f32 %v5209, 0.0
      %v6550 = vmax.f32 %v5408, 0.0
      %v6551 = vmax.f32 %v5410, 0.0
      %v6552 = vmax.f32 %v5609, 0.0
      %v6553 = vmax.f32 %v5611, 0.0
      %v6554 = vmax.f32 %v5810, 0.0
      %v6555 = vmax.f32 %v5812, 0.0
      %v6556 = vmax.f32 %v6011, 0.0
      %v6557 = vmax.f32 %v6013, 0.0
      %v6558 = vmax.f32 %v6212, 0.0
      %v6559 = vmax.f32 %v6214, 0.0
      %v6560 = vmax.f32 %v4811, 0.0
      %v6561 = vmax.f32 %v4813, 0.0
      %v6562 = vmax.f32 %v5012, 0.0
      %v6563 = vmax.f32 %v5014, 0.0
      %v6564 = vmax.f32 %v5213, 0.0
      %v6565 = vmax.f32 %v5215, 0.0
      %v6566 = vmax.f32 %v5414, 0.0
      %v6567 = vmax.f32 %v5416, 0.0
      %v6568 = vmax.f32 %v5615, 0.0
      %v6569 = vmax.f32 %v5617, 0.0
      %v6570 = vmax.f32 %v5816, 0.0
      %v6571 = vmax.f32 %v5818, 0.0
      %v6572 = vmax.f32 %v6017, 0.0
      %v6573 = vmax.f32 %v6019, 0.0
      %v6574 = vmax.f32 %v6218, 0.0
      %v6575 = vmax.f32 %v6220, 0.0
      %v6576 = vmax.f32 %v4815, 0.0
      %v6577 = vmax.f32 %v4817, 0.0
      %v6578 = vmax.f32 %v5016, 0.0
      %v6579 = vmax.f32 %v5018, 0.0
      %v6580 = vmax.f32 %v5217, 0.0
      %v6581 = vmax.f32 %v5219, 0.0
      %v6582 = vmax.f32 %v5418, 0.0
      %v6583 = vmax.f32 %v5420, 0.0
      %v6584 = vmax.f32 %v5619, 0.0
      %v6585 = vmax.f32 %v5621, 0.0
      %v6586 = vmax.f32 %v5820, 0.0
      %v6587 = vmax.f32 %v5822, 0.0
      %v6588 = vmax.f32 %v6021, 0.0
      %v6589 = vmax.f32 %v6023, 0.0
      %v6590 = vmax.f32 %v6222, 0.0
      %v6591 = vmax.f32 %v6224, 0.0
      %v6592 = vmax.f32 %v4821, 0.0
      %v6593 = vmax.f32 %v4823, 0.0
      %v6594 = vmax.f32 %v5022, 0.0
      %v6595 = vmax.f32 %v5024, 0.0
      %v6596 = vmax.f32 %v5223, 0.0
      %v6597 = vmax.f32 %v5225, 0.0
      %v6598 = vmax.f32 %v5424, 0.0
      %v6599 = vmax.f32 %v5426, 0.0
      %v6600 = vmax.f32 %v5625, 0.0
      %v6601 = vmax.f32 %v5627, 0.0
      %v6602 = vmax.f32 %v5826, 0.0
      %v6603 = vmax.f32 %v5828, 0.0
      %v6604 = vmax.f32 %v6027, 0.0
      %v6605 = vmax.f32 %v6029, 0.0
      %v6606 = vmax.f32 %v6228, 0.0
      %v6607 = vmax.f32 %v6230, 0.0
      %v6608 = vmax.f32 %v4825, 0.0
      %v6609 = vmax.f32 %v4827, 0.0
      %v6610 = vmax.f32 %v5026, 0.0
      %v6611 = vmax.f32 %v5028, 0.0
      %v6612 = vmax.f32 %v5227, 0.0
      %v6613 = vmax.f32 %v5229, 0.0
      %v6614 = vmax.f32 %v5428, 0.0
      %v6615 = vmax.f32 %v5430, 0.0
      %v6616 = vmax.f32 %v5629, 0.0
      %v6617 = vmax.f32 %v5631, 0.0
      %v6618 = vmax.f32 %v5830, 0.0
      %v6619 = vmax.f32 %v5832, 0.0
      %v6620 = vmax.f32 %v6031, 0.0
      %v6621 = vmax.f32 %v6033, 0.0
      %v6622 = vmax.f32 %v6232, 0.0
      %v6623 = vmax.f32 %v6234, 0.0
      %v6624 = vmax.f32 %v4831, 0.0
      %v6625 = vmax.f32 %v4833, 0.0
      %v6626 = vmax.f32 %v5032, 0.0
      %v6627 = vmax.f32 %v5034, 0.0
      %v6628 = vmax.f32 %v5233, 0.0
      %v6629 = vmax.f32 %v5235, 0.0
      %v6630 = vmax.f32 %v5434, 0.0
      %v6631 = vmax.f32 %v5436, 0.0
      %v6632 = vmax.f32 %v5635, 0.0
      %v6633 = vmax.f32 %v5637, 0.0
      %v6634 = vmax.f32 %v5836, 0.0
      %v6635 = vmax.f32 %v5838, 0.0
      %v6636 = vmax.f32 %v6037, 0.0
      %v6637 = vmax.f32 %v6039, 0.0
      %v6638 = vmax.f32 %v6238, 0.0
      %v6639 = vmax.f32 %v6240, 0.0
      %v6640 = vmax.f32 %v4835, 0.0
      %v6641 = vmax.f32 %v4837, 0.0
      %v6642 = vmax.f32 %v5036, 0.0
      %v6643 = vmax.f32 %v5038, 0.0
      %v6644 = vmax.f32 %v5237, 0.0
      %v6645 = vmax.f32 %v5239, 0.0
      %v6646 = vmax.f32 %v5438, 0.0
      %v6647 = vmax.f32 %v5440, 0.0
      %v6648 = vmax.f32 %v5639, 0.0
      %v6649 = vmax.f32 %v5641, 0.0
      %v6650 = vmax.f32 %v5840, 0.0
      %v6651 = vmax.f32 %v5842, 0.0
      %v6652 = vmax.f32 %v6041, 0.0
      %v6653 = vmax.f32 %v6043, 0.0
      %v6654 = vmax.f32 %v6242, 0.0
      %v6655 = vmax.f32 %v6244, 0.0
      %v6656 = vmax.f32 %v4841, 0.0
      %v6657 = vmax.f32 %v4843, 0.0
      %v6658 = vmax.f32 %v5042, 0.0
      %v6659 = vmax.f32 %v5044, 0.0
      %v6660 = vmax.f32 %v5243, 0.0
      %v6661 = vmax.f32 %v5245, 0.0
      %v6662 = vmax.f32 %v5444, 0.0
      %v6663 = vmax.f32 %v5446, 0.0
      %v6664 = vmax.f32 %v5645, 0.0
      %v6665 = vmax.f32 %v5647, 0.0
      %v6666 = vmax.f32 %v5846, 0.0
      %v6667 = vmax.f32 %v5848, 0.0
      %v6668 = vmax.f32 %v6047, 0.0
      %v6669 = vmax.f32 %v6049, 0.0
      %v6670 = vmax.f32 %v6248, 0.0
      %v6671 = vmax.f32 %v6250, 0.0
      %v6672 = vmax.f32 %v4845, 0.0
      %v6673 = vmax.f32 %v4847, 0.0
      %v6674 = vmax.f32 %v5046, 0.0
      %v6675 = vmax.f32 %v5048, 0.0
      %v6676 = vmax.f32 %v5247, 0.0
      %v6677 = vmax.f32 %v5249, 0.0
      %v6678 = vmax.f32 %v5448, 0.0
      %v6679 = vmax.f32 %v5450, 0.0
      %v6680 = vmax.f32 %v5649, 0.0
      %v6681 = vmax.f32 %v5651, 0.0
      %v6682 = vmax.f32 %v5850, 0.0
      %v6683 = vmax.f32 %v5852, 0.0
      %v6684 = vmax.f32 %v6051, 0.0
      %v6685 = vmax.f32 %v6053, 0.0
      %v6686 = vmax.f32 %v6252, 0.0
      %v6687 = vmax.f32 %v6254, 0.0
      %v6688 = vmax.f32 %v4851, 0.0
      %v6689 = vmax.f32 %v4853, 0.0
      %v6690 = vmax.f32 %v5052, 0.0
      %v6691 = vmax.f32 %v5054, 0.0
      %v6692 = vmax.f32 %v5253, 0.0
      %v6693 = vmax.f32 %v5255, 0.0
      %v6694 = vmax.f32 %v5454, 0.0
      %v6695 = vmax.f32 %v5456, 0.0
      %v6696 = vmax.f32 %v5655, 0.0
      %v6697 = vmax.f32 %v5657, 0.0
      %v6698 = vmax.f32 %v5856, 0.0
      %v6699 = vmax.f32 %v5858, 0.0
      %v6700 = vmax.f32 %v6057, 0.0
      %v6701 = vmax.f32 %v6059, 0.0
      %v6702 = vmax.f32 %v6258, 0.0
      %v6703 = vmax.f32 %v6260, 0.0
      %v6704 = vmax.f32 %v4855, 0.0
      %v6705 = vmax.f32 %v4857, 0.0
      %v6706 = vmax.f32 %v5056, 0.0
      %v6707 = vmax.f32 %v5058, 0.0
      %v6708 = vmax.f32 %v5257, 0.0
      %v6709 = vmax.f32 %v5259, 0.0
      %v6710 = vmax.f32 %v5458, 0.0
      %v6711 = vmax.f32 %v5460, 0.0
      %v6712 = vmax.f32 %v5659, 0.0
      %v6713 = vmax.f32 %v5661, 0.0
      %v6714 = vmax.f32 %v5860, 0.0
      %v6715 = vmax.f32 %v5862, 0.0
      %v6716 = vmax.f32 %v6061, 0.0
      %v6717 = vmax.f32 %v6063, 0.0
      %v6718 = vmax.f32 %v6262, 0.0
      %v6719 = vmax.f32 %v6264, 0.0
      %v6720 = vmax.f32 %v4861, 0.0
      %v6721 = vmax.f32 %v4863, 0.0
      %v6722 = vmax.f32 %v5062, 0.0
      %v6723 = vmax.f32 %v5064, 0.0
      %v6724 = vmax.f32 %v5263, 0.0
      %v6725 = vmax.f32 %v5265, 0.0
      %v6726 = vmax.f32 %v5464, 0.0
      %v6727 = vmax.f32 %v5466, 0.0
      %v6728 = vmax.f32 %v5665, 0.0
      %v6729 = vmax.f32 %v5667, 0.0
      %v6730 = vmax.f32 %v5866, 0.0
      %v6731 = vmax.f32 %v5868, 0.0
      %v6732 = vmax.f32 %v6067, 0.0
      %v6733 = vmax.f32 %v6069, 0.0
      %v6734 = vmax.f32 %v6268, 0.0
      %v6735 = vmax.f32 %v6270, 0.0
      %v6736 = vmax.f32 %v4865, 0.0
      %v6737 = vmax.f32 %v4867, 0.0
      %v6738 = vmax.f32 %v5066, 0.0
      %v6739 = vmax.f32 %v5068, 0.0
      %v6740 = vmax.f32 %v5267, 0.0
      %v6741 = vmax.f32 %v5269, 0.0
      %v6742 = vmax.f32 %v5468, 0.0
      %v6743 = vmax.f32 %v5470, 0.0
      %v6744 = vmax.f32 %v5669, 0.0
      %v6745 = vmax.f32 %v5671, 0.0
      %v6746 = vmax.f32 %v5870, 0.0
      %v6747 = vmax.f32 %v5872, 0.0
      %v6748 = vmax.f32 %v6071, 0.0
      %v6749 = vmax.f32 %v6073, 0.0
      %v6750 = vmax.f32 %v6272, 0.0
      %v6751 = vmax.f32 %v6274, 0.0
      %v6752 = vmax.f32 %v4871, 0.0
      %v6753 = vmax.f32 %v4873, 0.0
      %v6754 = vmax.f32 %v5072, 0.0
      %v6755 = vmax.f32 %v5074, 0.0
      %v6756 = vmax.f32 %v5273, 0.0
      %v6757 = vmax.f32 %v5275, 0.0
      %v6758 = vmax.f32 %v5474, 0.0
      %v6759 = vmax.f32 %v5476, 0.0
      %v6760 = vmax.f32 %v5675, 0.0
      %v6761 = vmax.f32 %v5677, 0.0
      %v6762 = vmax.f32 %v5876, 0.0
      %v6763 = vmax.f32 %v5878, 0.0
      %v6764 = vmax.f32 %v6077, 0.0
      %v6765 = vmax.f32 %v6079, 0.0
      %v6766 = vmax.f32 %v6278, 0.0
      %v6767 = vmax.f32 %v6280, 0.0
      %v6768 = vmax.f32 %v4875, 0.0
      %v6769 = vmax.f32 %v4877, 0.0
      %v6770 = vmax.f32 %v5076, 0.0
      %v6771 = vmax.f32 %v5078, 0.0
      %v6772 = vmax.f32 %v5277, 0.0
      %v6773 = vmax.f32 %v5279, 0.0
      %v6774 = vmax.f32 %v5478, 0.0
      %v6775 = vmax.f32 %v5480, 0.0
      %v6776 = vmax.f32 %v5679, 0.0
      %v6777 = vmax.f32 %v5681, 0.0
      %v6778 = vmax.f32 %v5880, 0.0
      %v6779 = vmax.f32 %v5882, 0.0
      %v6780 = vmax.f32 %v6081, 0.0
      %v6781 = vmax.f32 %v6083, 0.0
      %v6782 = vmax.f32 %v6282, 0.0
      %v6783 = vmax.f32 %v6284, 0.0
      %v6784 = vmax.f32 %v4881, 0.0
      %v6785 = vmax.f32 %v4883, 0.0
      %v6786 = vmax.f32 %v5082, 0.0
      %v6787 = vmax.f32 %v5084, 0.0
      %v6788 = vmax.f32 %v5283, 0.0
      %v6789 = vmax.f32 %v5285, 0.0
      %v6790 = vmax.f32 %v5484, 0.0
      %v6791 = vmax.f32 %v5486, 0.0
      %v6792 = vmax.f32 %v5685, 0.0
      %v6793 = vmax.f32 %v5687, 0.0
      %v6794 = vmax.f32 %v5886, 0.0
      %v6795 = vmax.f32 %v5888, 0.0
      %v6796 = vmax.f32 %v6087, 0.0
      %v6797 = vmax.f32 %v6089, 0.0
      %v6798 = vmax.f32 %v6288, 0.0
      %v6799 = vmax.f32 %v6290, 0.0
      %v6800 = vmax.f32 %v4885, 0.0
      %v6801 = vmax.f32 %v4887, 0.0
      %v6802 = vmax.f32 %v5086, 0.0
      %v6803 = vmax.f32 %v5088, 0.0
      %v6804 = vmax.f32 %v5287, 0.0
      %v6805 = vmax.f32 %v5289, 0.0
      %v6806 = vmax.f32 %v5488, 0.0
      %v6807 = vmax.f32 %v5490, 0.0
      %v6808 = vmax.f32 %v5689, 0.0
      %v6809 = vmax.f32 %v5691, 0.0
      %v6810 = vmax.f32 %v5890, 0.0
      %v6811 = vmax.f32 %v5892, 0.0
      %v6812 = vmax.f32 %v6091, 0.0
      %v6813 = vmax.f32 %v6093, 0.0
      %v6814 = vmax.f32 %v6292, 0.0
      %v6815 = vmax.f32 %v6294, 0.0
      %v6816 = vmax.f32 %v4891, 0.0
      %v6817 = vmax.f32 %v4893, 0.0
      %v6818 = vmax.f32 %v5092, 0.0
      %v6819 = vmax.f32 %v5094, 0.0
      %v6820 = vmax.f32 %v5293, 0.0
      %v6821 = vmax.f32 %v5295, 0.0
      %v6822 = vmax.f32 %v5494, 0.0
      %v6823 = vmax.f32 %v5496, 0.0
      %v6824 = vmax.f32 %v5695, 0.0
      %v6825 = vmax.f32 %v5697, 0.0
      %v6826 = vmax.f32 %v5896, 0.0
      %v6827 = vmax.f32 %v5898, 0.0
      %v6828 = vmax.f32 %v6097, 0.0
      %v6829 = vmax.f32 %v6099, 0.0
      %v6830 = vmax.f32 %v6298, 0.0
      %v6831 = vmax.f32 %v6300, 0.0
      %v6832 = vpack.c.bf16 %v6320, %v6304
      %v6833 = vpack.c.bf16 %v6321, %v6305
      %v6834 = vpack.c.bf16 %v6322, %v6306
      %v6835 = vpack.c.bf16 %v6323, %v6307
      %v6836 = vpack.c.bf16 %v6324, %v6308
      %v6837 = vpack.c.bf16 %v6325, %v6309
      %v6838 = vpack.c.bf16 %v6326, %v6310
      %v6839 = vpack.c.bf16 %v6327, %v6311
      %v6840 = vpack.c.bf16 %v6328, %v6312
      %v6841 = vpack.c.bf16 %v6329, %v6313
      %v6842 = vpack.c.bf16 %v6330, %v6314
      %v6843 = vpack.c.bf16 %v6331, %v6315
      %v6844 = vpack.c.bf16 %v6332, %v6316
      %v6845 = vpack.c.bf16 %v6333, %v6317
      %v6846 = vpack.c.bf16 %v6334, %v6318
      %v6847 = vpack.c.bf16 %v6335, %v6319
      %v6848 = vpack.c.bf16 %v6352, %v6336
      %v6849 = vpack.c.bf16 %v6353, %v6337
      %v6850 = vpack.c.bf16 %v6354, %v6338
      %v6851 = vpack.c.bf16 %v6355, %v6339
      %v6852 = vpack.c.bf16 %v6356, %v6340
      %v6853 = vpack.c.bf16 %v6357, %v6341
      %v6854 = vpack.c.bf16 %v6358, %v6342
      %v6855 = vpack.c.bf16 %v6359, %v6343
      %v6856 = vpack.c.bf16 %v6360, %v6344
      %v6857 = vpack.c.bf16 %v6361, %v6345
      %v6858 = vpack.c.bf16 %v6362, %v6346
      %v6859 = vpack.c.bf16 %v6363, %v6347
      %v6860 = vpack.c.bf16 %v6364, %v6348
      %v6861 = vpack.c.bf16 %v6365, %v6349
      %v6862 = vpack.c.bf16 %v6366, %v6350
      %v6863 = vpack.c.bf16 %v6367, %v6351
      %v6864 = vpack.c.bf16 %v6384, %v6368
      %v6865 = vpack.c.bf16 %v6385, %v6369
      %v6866 = vpack.c.bf16 %v6386, %v6370
      %v6867 = vpack.c.bf16 %v6387, %v6371
      %v6868 = vpack.c.bf16 %v6388, %v6372
      %v6869 = vpack.c.bf16 %v6389, %v6373
      %v6870 = vpack.c.bf16 %v6390, %v6374
      %v6871 = vpack.c.bf16 %v6391, %v6375
      %v6872 = vpack.c.bf16 %v6392, %v6376
      %v6873 = vpack.c.bf16 %v6393, %v6377
      %v6874 = vpack.c.bf16 %v6394, %v6378
      %v6875 = vpack.c.bf16 %v6395, %v6379
      %v6876 = vpack.c.bf16 %v6396, %v6380
      %v6877 = vpack.c.bf16 %v6397, %v6381
      %v6878 = vpack.c.bf16 %v6398, %v6382
      %v6879 = vpack.c.bf16 %v6399, %v6383
      %v6880 = vpack.c.bf16 %v6416, %v6400
      %v6881 = vpack.c.bf16 %v6417, %v6401
      %v6882 = vpack.c.bf16 %v6418, %v6402
      %v6883 = vpack.c.bf16 %v6419, %v6403
      %v6884 = vpack.c.bf16 %v6420, %v6404
      %v6885 = vpack.c.bf16 %v6421, %v6405
      %v6886 = vpack.c.bf16 %v6422, %v6406
      %v6887 = vpack.c.bf16 %v6423, %v6407
      %v6888 = vpack.c.bf16 %v6424, %v6408
      %v6889 = vpack.c.bf16 %v6425, %v6409
      %v6890 = vpack.c.bf16 %v6426, %v6410
      %v6891 = vpack.c.bf16 %v6427, %v6411
      %v6892 = vpack.c.bf16 %v6428, %v6412
      %v6893 = vpack.c.bf16 %v6429, %v6413
      %v6894 = vpack.c.bf16 %v6430, %v6414
      %v6895 = vpack.c.bf16 %v6431, %v6415
      %v6896 = vpack.c.bf16 %v6448, %v6432
      %v6897 = vpack.c.bf16 %v6449, %v6433
      %v6898 = vpack.c.bf16 %v6450, %v6434
      %v6899 = vpack.c.bf16 %v6451, %v6435
      %v6900 = vpack.c.bf16 %v6452, %v6436
      %v6901 = vpack.c.bf16 %v6453, %v6437
      %v6902 = vpack.c.bf16 %v6454, %v6438
      %v6903 = vpack.c.bf16 %v6455, %v6439
      %v6904 = vpack.c.bf16 %v6456, %v6440
      %v6905 = vpack.c.bf16 %v6457, %v6441
      %v6906 = vpack.c.bf16 %v6458, %v6442
      %v6907 = vpack.c.bf16 %v6459, %v6443
      %v6908 = vpack.c.bf16 %v6460, %v6444
      %v6909 = vpack.c.bf16 %v6461, %v6445
      %v6910 = vpack.c.bf16 %v6462, %v6446
      %v6911 = vpack.c.bf16 %v6463, %v6447
      %v6912 = vpack.c.bf16 %v6480, %v6464
      %v6913 = vpack.c.bf16 %v6481, %v6465
      %v6914 = vpack.c.bf16 %v6482, %v6466
      %v6915 = vpack.c.bf16 %v6483, %v6467
      %v6916 = vpack.c.bf16 %v6484, %v6468
      %v6917 = vpack.c.bf16 %v6485, %v6469
      %v6918 = vpack.c.bf16 %v6486, %v6470
      %v6919 = vpack.c.bf16 %v6487, %v6471
      %v6920 = vpack.c.bf16 %v6488, %v6472
      %v6921 = vpack.c.bf16 %v6489, %v6473
      %v6922 = vpack.c.bf16 %v6490, %v6474
      %v6923 = vpack.c.bf16 %v6491, %v6475
      %v6924 = vpack.c.bf16 %v6492, %v6476
      %v6925 = vpack.c.bf16 %v6493, %v6477
      %v6926 = vpack.c.bf16 %v6494, %v6478
      %v6927 = vpack.c.bf16 %v6495, %v6479
      %v6928 = vpack.c.bf16 %v6512, %v6496
      %v6929 = vpack.c.bf16 %v6513, %v6497
      %v6930 = vpack.c.bf16 %v6514, %v6498
      %v6931 = vpack.c.bf16 %v6515, %v6499
      %v6932 = vpack.c.bf16 %v6516, %v6500
      %v6933 = vpack.c.bf16 %v6517, %v6501
      %v6934 = vpack.c.bf16 %v6518, %v6502
      %v6935 = vpack.c.bf16 %v6519, %v6503
      %v6936 = vpack.c.bf16 %v6520, %v6504
      %v6937 = vpack.c.bf16 %v6521, %v6505
      %v6938 = vpack.c.bf16 %v6522, %v6506
      %v6939 = vpack.c.bf16 %v6523, %v6507
      %v6940 = vpack.c.bf16 %v6524, %v6508
      %v6941 = vpack.c.bf16 %v6525, %v6509
      %v6942 = vpack.c.bf16 %v6526, %v6510
      %v6943 = vpack.c.bf16 %v6527, %v6511
      %v6944 = vpack.c.bf16 %v6544, %v6528
      %v6945 = vpack.c.bf16 %v6545, %v6529
      %v6946 = vpack.c.bf16 %v6546, %v6530
      %v6947 = vpack.c.bf16 %v6547, %v6531
      %v6948 = vpack.c.bf16 %v6548, %v6532
      %v6949 = vpack.c.bf16 %v6549, %v6533
      %v6950 = vpack.c.bf16 %v6550, %v6534
      %v6951 = vpack.c.bf16 %v6551, %v6535
      %v6952 = vpack.c.bf16 %v6552, %v6536
      %v6953 = vpack.c.bf16 %v6553, %v6537
      %v6954 = vpack.c.bf16 %v6554, %v6538
      %v6955 = vpack.c.bf16 %v6555, %v6539
      %v6956 = vpack.c.bf16 %v6556, %v6540
      %v6957 = vpack.c.bf16 %v6557, %v6541
      %v6958 = vpack.c.bf16 %v6558, %v6542
      %v6959 = vpack.c.bf16 %v6559, %v6543
      %v6960 = vpack.c.bf16 %v6576, %v6560
      %v6961 = vpack.c.bf16 %v6577, %v6561
      %v6962 = vpack.c.bf16 %v6578, %v6562
      %v6963 = vpack.c.bf16 %v6579, %v6563
      %v6964 = vpack.c.bf16 %v6580, %v6564
      %v6965 = vpack.c.bf16 %v6581, %v6565
      %v6966 = vpack.c.bf16 %v6582, %v6566
      %v6967 = vpack.c.bf16 %v6583, %v6567
      %v6968 = vpack.c.bf16 %v6584, %v6568
      %v6969 = vpack.c.bf16 %v6585, %v6569
      %v6970 = vpack.c.bf16 %v6586, %v6570
      %v6971 = vpack.c.bf16 %v6587, %v6571
      %v6972 = vpack.c.bf16 %v6588, %v6572
      %v6973 = vpack.c.bf16 %v6589, %v6573
      %v6974 = vpack.c.bf16 %v6590, %v6574
      %v6975 = vpack.c.bf16 %v6591, %v6575
      %v6976 = vpack.c.bf16 %v6608, %v6592
      %v6977 = vpack.c.bf16 %v6609, %v6593
      %v6978 = vpack.c.bf16 %v6610, %v6594
      %v6979 = vpack.c.bf16 %v6611, %v6595
      %v6980 = vpack.c.bf16 %v6612, %v6596
      %v6981 = vpack.c.bf16 %v6613, %v6597
      %v6982 = vpack.c.bf16 %v6614, %v6598
      %v6983 = vpack.c.bf16 %v6615, %v6599
      %v6984 = vpack.c.bf16 %v6616, %v6600
      %v6985 = vpack.c.bf16 %v6617, %v6601
      %v6986 = vpack.c.bf16 %v6618, %v6602
      %v6987 = vpack.c.bf16 %v6619, %v6603
      %v6988 = vpack.c.bf16 %v6620, %v6604
      %v6989 = vpack.c.bf16 %v6621, %v6605
      %v6990 = vpack.c.bf16 %v6622, %v6606
      %v6991 = vpack.c.bf16 %v6623, %v6607
      %v6992 = vpack.c.bf16 %v6640, %v6624
      %v6993 = vpack.c.bf16 %v6641, %v6625
      %v6994 = vpack.c.bf16 %v6642, %v6626
      %v6995 = vpack.c.bf16 %v6643, %v6627
      %v6996 = vpack.c.bf16 %v6644, %v6628
      %v6997 = vpack.c.bf16 %v6645, %v6629
      %v6998 = vpack.c.bf16 %v6646, %v6630
      %v6999 = vpack.c.bf16 %v6647, %v6631
      %v7000 = vpack.c.bf16 %v6648, %v6632
      %v7001 = vpack.c.bf16 %v6649, %v6633
      %v7002 = vpack.c.bf16 %v6650, %v6634
      %v7003 = vpack.c.bf16 %v6651, %v6635
      %v7004 = vpack.c.bf16 %v6652, %v6636
      %v7005 = vpack.c.bf16 %v6653, %v6637
      %v7006 = vpack.c.bf16 %v6654, %v6638
      %v7007 = vpack.c.bf16 %v6655, %v6639
      %v7008 = vpack.c.bf16 %v6672, %v6656
      %v7009 = vpack.c.bf16 %v6673, %v6657
      %v7010 = vpack.c.bf16 %v6674, %v6658
      %v7011 = vpack.c.bf16 %v6675, %v6659
      %v7012 = vpack.c.bf16 %v6676, %v6660
      %v7013 = vpack.c.bf16 %v6677, %v6661
      %v7014 = vpack.c.bf16 %v6678, %v6662
      %v7015 = vpack.c.bf16 %v6679, %v6663
      %v7016 = vpack.c.bf16 %v6680, %v6664
      %v7017 = vpack.c.bf16 %v6681, %v6665
      %v7018 = vpack.c.bf16 %v6682, %v6666
      %v7019 = vpack.c.bf16 %v6683, %v6667
      %v7020 = vpack.c.bf16 %v6684, %v6668
      %v7021 = vpack.c.bf16 %v6685, %v6669
      %v7022 = vpack.c.bf16 %v6686, %v6670
      %v7023 = vpack.c.bf16 %v6687, %v6671
      %v7024 = vpack.c.bf16 %v6704, %v6688
      %v7025 = vpack.c.bf16 %v6705, %v6689
      %v7026 = vpack.c.bf16 %v6706, %v6690
      %v7027 = vpack.c.bf16 %v6707, %v6691
      %v7028 = vpack.c.bf16 %v6708, %v6692
      %v7029 = vpack.c.bf16 %v6709, %v6693
      %v7030 = vpack.c.bf16 %v6710, %v6694
      %v7031 = vpack.c.bf16 %v6711, %v6695
      %v7032 = vpack.c.bf16 %v6712, %v6696
      %v7033 = vpack.c.bf16 %v6713, %v6697
      %v7034 = vpack.c.bf16 %v6714, %v6698
      %v7035 = vpack.c.bf16 %v6715, %v6699
      %v7036 = vpack.c.bf16 %v6716, %v6700
      %v7037 = vpack.c.bf16 %v6717, %v6701
      %v7038 = vpack.c.bf16 %v6718, %v6702
      %v7039 = vpack.c.bf16 %v6719, %v6703
      %v7040 = vpack.c.bf16 %v6736, %v6720
      %v7041 = vpack.c.bf16 %v6737, %v6721
      %v7042 = vpack.c.bf16 %v6738, %v6722
      %v7043 = vpack.c.bf16 %v6739, %v6723
      %v7044 = vpack.c.bf16 %v6740, %v6724
      %v7045 = vpack.c.bf16 %v6741, %v6725
      %v7046 = vpack.c.bf16 %v6742, %v6726
      %v7047 = vpack.c.bf16 %v6743, %v6727
      %v7048 = vpack.c.bf16 %v6744, %v6728
      %v7049 = vpack.c.bf16 %v6745, %v6729
      %v7050 = vpack.c.bf16 %v6746, %v6730
      %v7051 = vpack.c.bf16 %v6747, %v6731
      %v7052 = vpack.c.bf16 %v6748, %v6732
      %v7053 = vpack.c.bf16 %v6749, %v6733
      %v7054 = vpack.c.bf16 %v6750, %v6734
      %v7055 = vpack.c.bf16 %v6751, %v6735
      %v7056 = vpack.c.bf16 %v6768, %v6752
      %v7057 = vpack.c.bf16 %v6769, %v6753
      %v7058 = vpack.c.bf16 %v6770, %v6754
      %v7059 = vpack.c.bf16 %v6771, %v6755
      %v7060 = vpack.c.bf16 %v6772, %v6756
      %v7061 = vpack.c.bf16 %v6773, %v6757
      %v7062 = vpack.c.bf16 %v6774, %v6758
      %v7063 = vpack.c.bf16 %v6775, %v6759
      %v7064 = vpack.c.bf16 %v6776, %v6760
      %v7065 = vpack.c.bf16 %v6777, %v6761
      %v7066 = vpack.c.bf16 %v6778, %v6762
      %v7067 = vpack.c.bf16 %v6779, %v6763
      %v7068 = vpack.c.bf16 %v6780, %v6764
      %v7069 = vpack.c.bf16 %v6781, %v6765
      %v7070 = vpack.c.bf16 %v6782, %v6766
      %v7071 = vpack.c.bf16 %v6783, %v6767
      %v7072 = vpack.c.bf16 %v6800, %v6784
      %v7073 = vpack.c.bf16 %v6801, %v6785
      %v7074 = vpack.c.bf16 %v6802, %v6786
      %v7075 = vpack.c.bf16 %v6803, %v6787
      %v7076 = vpack.c.bf16 %v6804, %v6788
      %v7077 = vpack.c.bf16 %v6805, %v6789
      %v7078 = vpack.c.bf16 %v6806, %v6790
      %v7079 = vpack.c.bf16 %v6807, %v6791
      %v7080 = vpack.c.bf16 %v6808, %v6792
      %v7081 = vpack.c.bf16 %v6809, %v6793
      %v7082 = vpack.c.bf16 %v6810, %v6794
      %v7083 = vpack.c.bf16 %v6811, %v6795
      %v7084 = vpack.c.bf16 %v6812, %v6796
      %v7085 = vpack.c.bf16 %v6813, %v6797
      %v7086 = vpack.c.bf16 %v6814, %v6798
      %v7087 = vpack.c.bf16 %v6815, %v6799
      %v7088 = vpack.c.bf16 %v6816, %v6816
      %v7089 = vpack.c.bf16 %v6817, %v6817
      %v7090 = vpack.c.bf16 %v6818, %v6818
      %v7091 = vpack.c.bf16 %v6819, %v6819
      %v7092 = vpack.c.bf16 %v6820, %v6820
      %v7093 = vpack.c.bf16 %v6821, %v6821
      %v7094 = vpack.c.bf16 %v6822, %v6822
      %v7095 = vpack.c.bf16 %v6823, %v6823
      %v7096 = vpack.c.bf16 %v6824, %v6824
      %v7097 = vpack.c.bf16 %v6825, %v6825
      %v7098 = vpack.c.bf16 %v6826, %v6826
      %v7099 = vpack.c.bf16 %v6827, %v6827
      %v7100 = vpack.c.bf16 %v6828, %v6828
      %v7101 = vpack.c.bf16 %v6829, %v6829
      %v7102 = vpack.c.bf16 %v6830, %v6830
      %v7103 = vpack.c.bf16 %v6831, %v6831
      %v7104 = vld [vmem:[%s13] sm:$0xf]
      %v7105 = vld [vmem:[%s13 + $0x4] sm:$0xf]
      %v7106 = vld [vmem:[%s13 + $0x8] sm:$0xf]
      %v7107 = vld [vmem:[%s13 + $0xc] sm:$0xf]
      %v7108 = vld [vmem:[%s13 + $0x10] sm:$0xf]
      %v7109 = vld [vmem:[%s13 + $0x14] sm:$0xf]
      %v7110 = vld [vmem:[%s13 + $0x18] sm:$0xf]
      %v7111 = vld [vmem:[%s13 + $0x1c] sm:$0xf]
      %v7112 = vld [vmem:[%s13 + $0x20] sm:$0xf]
      %v7113 = vld [vmem:[%s13 + $0x24] sm:$0xf]
      %v7114 = vld [vmem:[%s13 + $0x28] sm:$0xf]
      %v7115 = vld [vmem:[%s13 + $0x2c] sm:$0xf]
      %v7116 = vld [vmem:[%s13 + $0x30] sm:$0xf]
      %v7117 = vld [vmem:[%s13 + $0x34] sm:$0xf]
      %v7118 = vld [vmem:[%s13 + $0x38] sm:$0xf]
      %v7119 = vld [vmem:[%s13 + $0x3c] sm:$0xf]
      %v7120 = vld [vmem:[%s13 + $0x40] sm:$0xf]
      %v7121 = vld [vmem:[%s13 + $0x44] sm:$0xf]
      %v7122 = vld [vmem:[%s13 + $0x48] sm:$0xf]
      %v7123 = vld [vmem:[%s13 + $0x4c] sm:$0xf]
      %v7124 = vld [vmem:[%s13 + $0x50] sm:$0xf]
      %v7125 = vld [vmem:[%s13 + $0x54] sm:$0xf]
      %v7126 = vld [vmem:[%s13 + $0x58] sm:$0xf]
      %v7127 = vld [vmem:[%s13 + $0x5c] sm:$0xf]
      %v7128 = vld [vmem:[%s13 + $0x60] sm:$0xf]
      %v7129 = vld [vmem:[%s13 + $0x64] sm:$0xf]
      %v7130 = vld [vmem:[%s13 + $0x68] sm:$0xf]
      %v7131 = vld [vmem:[%s13 + $0x6c] sm:$0xf]
      %v7132 = vld [vmem:[%s13 + $0x70] sm:$0xf]
      %v7133 = vld [vmem:[%s13 + $0x74] sm:$0xf]
      %v7134 = vld [vmem:[%s13 + $0x78] sm:$0xf]
      %v7135 = vld [vmem:[%s13 + $0x7c] sm:$0xf]
      %v7136 = vld [vmem:[%s13 + $0x80] sm:$0xf]
      %v7137 = vld [vmem:[%s13 + $0x84] sm:$0xf]
      %v7138 = vld [vmem:[%s13 + $0x88] sm:$0xf]
      %v7139 = vld [vmem:[%s13 + $0x8c] sm:$0xf]
      %v7140 = vld [vmem:[%s13 + $0x90] sm:$0xf]
      %v7141 = vld [vmem:[%s13 + $0x94] sm:$0xf]
      %v7142 = vld [vmem:[%s13 + $0x98] sm:$0xf]
      %v7143 = vld [vmem:[%s13 + $0x9c] sm:$0xf]
      %v7144 = vld [vmem:[%s13 + $0xa0] sm:$0xf]
      %v7145 = vld [vmem:[%s13 + $0xa4] sm:$0xf]
      %v7146 = vld [vmem:[%s13 + $0xa8] sm:$0xf]
      %v7147 = vld [vmem:[%s13 + $0xac] sm:$0xf]
      %v7148 = vld [vmem:[%s13 + $0xb0] sm:$0xf]
      %v7149 = vld [vmem:[%s13 + $0xb4] sm:$0xf]
      %v7150 = vld [vmem:[%s13 + $0xb8] sm:$0xf]
      %v7151 = vld [vmem:[%s13 + $0xbc] sm:$0xf]
      %v7152 = vld [vmem:[%s13 + $0xc0] sm:$0xf]
      %v7153 = vld [vmem:[%s13 + $0xc4] sm:$0xf]
      %v7154 = vld [vmem:[%s13 + $0xc8] sm:$0xf]
      %v7155 = vld [vmem:[%s13 + $0xcc] sm:$0xf]
      %v7156 = vld [vmem:[%s13 + $0xd0] sm:$0xf]
      %v7157 = vld [vmem:[%s13 + $0xd4] sm:$0xf]
      %v7158 = vld [vmem:[%s13 + $0xd8] sm:$0xf]
      %v7159 = vld [vmem:[%s13 + $0xdc] sm:$0xf]
      %v7160 = vld [vmem:[%s13 + $0xe0] sm:$0xf]
      %v7161 = vld [vmem:[%s13 + $0xe4] sm:$0xf]
      %v7162 = vld [vmem:[%s13 + $0xe8] sm:$0xf]
      %v7163 = vld [vmem:[%s13 + $0xec] sm:$0xf]
      %v7164 = vld [vmem:[%s13 + $0xf0] sm:$0xf]
      %v7165 = vld [vmem:[%s13 + $0xf4] sm:$0xf]
      %v7166 = vld [vmem:[%s13 + $0xf8] sm:$0xf]
      %v7167 = vld [vmem:[%s13 + $0xfc] sm:$0xf]
      %v7168 = vld [vmem:[%s13 + $0x100] sm:$0xf]
      %v7169 = vld [vmem:[%s13 + $0x104] sm:$0xf]
      %v7170 = vld [vmem:[%s13 + $0x108] sm:$0xf]
      %v7171 = vld [vmem:[%s13 + $0x10c] sm:$0xf]
      %v7172 = vld [vmem:[%s13 + $0x110] sm:$0xf]
      %v7173 = vld [vmem:[%s13 + $0x114] sm:$0xf]
      %v7174 = vld [vmem:[%s13 + $0x118] sm:$0xf]
      %v7175 = vld [vmem:[%s13 + $0x11c] sm:$0xf]
      %v7176 = vld [vmem:[%s13 + $0x120] sm:$0xf]
      %v7177 = vld [vmem:[%s13 + $0x124] sm:$0xf]
      %v7178 = vld [vmem:[%s13 + $0x128] sm:$0xf]
      %v7179 = vld [vmem:[%s13 + $0x12c] sm:$0xf]
      %v7180 = vld [vmem:[%s13 + $0x130] sm:$0xf]
      %v7181 = vld [vmem:[%s13 + $0x134] sm:$0xf]
      %v7182 = vld [vmem:[%s13 + $0x138] sm:$0xf]
      %v7183 = vld [vmem:[%s13 + $0x13c] sm:$0xf]
      %v7184 = vld [vmem:[%s13 + $0x140] sm:$0xf]
      %v7185 = vld [vmem:[%s13 + $0x144] sm:$0xf]
      %v7186 = vld [vmem:[%s13 + $0x148] sm:$0xf]
      %v7187 = vld [vmem:[%s13 + $0x14c] sm:$0xf]
      %v7188 = vld [vmem:[%s13 + $0x150] sm:$0xf]
      %v7189 = vld [vmem:[%s13 + $0x154] sm:$0xf]
      %v7190 = vld [vmem:[%s13 + $0x158] sm:$0xf]
      %v7191 = vld [vmem:[%s13 + $0x15c] sm:$0xf]
      %v7192 = vld [vmem:[%s13 + $0x160] sm:$0xf]
      %v7193 = vld [vmem:[%s13 + $0x164] sm:$0xf]
      %v7194 = vld [vmem:[%s13 + $0x168] sm:$0xf]
      %v7195 = vld [vmem:[%s13 + $0x16c] sm:$0xf]
      %v7196 = vld [vmem:[%s13 + $0x170] sm:$0xf]
      %v7197 = vld [vmem:[%s13 + $0x174] sm:$0xf]
      %v7198 = vld [vmem:[%s13 + $0x178] sm:$0xf]
      %v7199 = vld [vmem:[%s13 + $0x17c] sm:$0xf]
      %v7200 = vld [vmem:[%s13 + $0x180] sm:$0xf]
      %v7201 = vld [vmem:[%s13 + $0x184] sm:$0xf]
      %v7202 = vld [vmem:[%s13 + $0x188] sm:$0xf]
      %v7203 = vld [vmem:[%s13 + $0x18c] sm:$0xf]
      %v7204 = vld [vmem:[%s13 + $0x190] sm:$0xf]
      %v7205 = vld [vmem:[%s13 + $0x194] sm:$0xf]
      %v7206 = vld [vmem:[%s13 + $0x198] sm:$0xf]
      %v7207 = vld [vmem:[%s13 + $0x19c] sm:$0xf]
      %v7208 = vld [vmem:[%s13 + $0x1a0] sm:$0xf]
      %v7209 = vld [vmem:[%s13 + $0x1a4] sm:$0xf]
      %v7210 = vld [vmem:[%s13 + $0x1a8] sm:$0xf]
      %v7211 = vld [vmem:[%s13 + $0x1ac] sm:$0xf]
      %v7212 = vld [vmem:[%s13 + $0x1b0] sm:$0xf]
      %v7213 = vld [vmem:[%s13 + $0x1b4] sm:$0xf]
      %v7214 = vld [vmem:[%s13 + $0x1b8] sm:$0xf]
      %v7215 = vld [vmem:[%s13 + $0x1bc] sm:$0xf]
      %v7216 = vld [vmem:[%s13 + $0x1c0] sm:$0xf]
      %v7217 = vld [vmem:[%s13 + $0x1c4] sm:$0xf]
      %v7218 = vld [vmem:[%s13 + $0x1c8] sm:$0xf]
      %v7219 = vld [vmem:[%s13 + $0x1cc] sm:$0xf]
      %v7220 = vld [vmem:[%s13 + $0x1d0] sm:$0xf]
      %v7221 = vld [vmem:[%s13 + $0x1d4] sm:$0xf]
      %v7222 = vld [vmem:[%s13 + $0x1d8] sm:$0xf]
      %v7223 = vld [vmem:[%s13 + $0x1dc] sm:$0xf]
      %v7224 = vld [vmem:[%s13 + $0x1e0] sm:$0xf]
      %v7225 = vld [vmem:[%s13 + $0x1e4] sm:$0xf]
      %v7226 = vld [vmem:[%s13 + $0x1e8] sm:$0xf]
      %v7227 = vld [vmem:[%s13 + $0x1ec] sm:$0xf]
      %v7228 = vld [vmem:[%s13 + $0x1f0] sm:$0xf]
      %v7229 = vld [vmem:[%s13 + $0x1f4] sm:$0xf]
      %v7230 = vld [vmem:[%s13 + $0x1f8] sm:$0xf]
      %v7231 = vld [vmem:[%s13 + $0x1fc] sm:$0xf]
      %v7232 = vld [vmem:[%s13 + $0x200] sm:$0xf]
      %v7233 = vld [vmem:[%s13 + $0x204] sm:$0xf]
      %v7234 = vld [vmem:[%s13 + $0x208] sm:$0xf]
      %v7235 = vld [vmem:[%s13 + $0x20c] sm:$0xf]
      %v7236 = vld [vmem:[%s13 + $0x210] sm:$0xf]
      %v7237 = vld [vmem:[%s13 + $0x214] sm:$0xf]
      %v7238 = vld [vmem:[%s13 + $0x218] sm:$0xf]
      %v7239 = vld [vmem:[%s13 + $0x21c] sm:$0xf]
      %v7240 = vld [vmem:[%s13 + $0x220] sm:$0xf]
      %v7241 = vld [vmem:[%s13 + $0x224] sm:$0xf]
      %v7242 = vld [vmem:[%s13 + $0x228] sm:$0xf]
      %v7243 = vld [vmem:[%s13 + $0x22c] sm:$0xf]
      %v7244 = vld [vmem:[%s13 + $0x230] sm:$0xf]
      %v7245 = vld [vmem:[%s13 + $0x234] sm:$0xf]
      %v7246 = vld [vmem:[%s13 + $0x238] sm:$0xf]
      %v7247 = vld [vmem:[%s13 + $0x23c] sm:$0xf]
      %v7248 = vld [vmem:[%s13 + $0x240] sm:$0xf]
      %v7249 = vld [vmem:[%s13 + $0x244] sm:$0xf]
      %v7250 = vld [vmem:[%s13 + $0x248] sm:$0xf]
      %v7251 = vld [vmem:[%s13 + $0x24c] sm:$0xf]
      %v7252 = vld [vmem:[%s13 + $0x250] sm:$0xf]
      %v7253 = vld [vmem:[%s13 + $0x254] sm:$0xf]
      %v7254 = vld [vmem:[%s13 + $0x258] sm:$0xf]
      %v7255 = vld [vmem:[%s13 + $0x25c] sm:$0xf]
      %v7256 = vld [vmem:[%s13 + $0x260] sm:$0xf]
      %v7257 = vld [vmem:[%s13 + $0x264] sm:$0xf]
      %v7258 = vld [vmem:[%s13 + $0x268] sm:$0xf]
      %v7259 = vld [vmem:[%s13 + $0x26c] sm:$0xf]
      %v7260 = vld [vmem:[%s13 + $0x270] sm:$0xf]
      %v7261 = vld [vmem:[%s13 + $0x274] sm:$0xf]
      %v7262 = vld [vmem:[%s13 + $0x278] sm:$0xf]
      %v7263 = vld [vmem:[%s13 + $0x27c] sm:$0xf]
      %v7264 = vld [vmem:[%s13 + $0x280] sm:$0xf]
      %v7265 = vld [vmem:[%s13 + $0x284] sm:$0xf]
      %v7266 = vld [vmem:[%s13 + $0x288] sm:$0xf]
      %v7267 = vld [vmem:[%s13 + $0x28c] sm:$0xf]
      %v7268 = vld [vmem:[%s13 + $0x290] sm:$0xf]
      %v7269 = vld [vmem:[%s13 + $0x294] sm:$0xf]
      %v7270 = vld [vmem:[%s13 + $0x298] sm:$0xf]
      %v7271 = vld [vmem:[%s13 + $0x29c] sm:$0xf]
      %v7272 = vld [vmem:[%s13 + $0x2a0] sm:$0xf]
      %v7273 = vld [vmem:[%s13 + $0x2a4] sm:$0xf]
      %v7274 = vld [vmem:[%s13 + $0x2a8] sm:$0xf]
      %v7275 = vld [vmem:[%s13 + $0x2ac] sm:$0xf]
      %v7276 = vld [vmem:[%s13 + $0x2b0] sm:$0xf]
      %v7277 = vld [vmem:[%s13 + $0x2b4] sm:$0xf]
      %v7278 = vld [vmem:[%s13 + $0x2b8] sm:$0xf]
      %v7279 = vld [vmem:[%s13 + $0x2bc] sm:$0xf]
      %v7280 = vld [vmem:[%s13 + $0x2c0] sm:$0xf]
      %v7281 = vld [vmem:[%s13 + $0x2c4] sm:$0xf]
      %v7282 = vld [vmem:[%s13 + $0x2c8] sm:$0xf]
      %v7283 = vld [vmem:[%s13 + $0x2cc] sm:$0xf]
      %v7284 = vld [vmem:[%s13 + $0x2d0] sm:$0xf]
      %v7285 = vld [vmem:[%s13 + $0x2d4] sm:$0xf]
      %v7286 = vld [vmem:[%s13 + $0x2d8] sm:$0xf]
      %v7287 = vld [vmem:[%s13 + $0x2dc] sm:$0xf]
      %v7288 = vld [vmem:[%s13 + $0x2e0] sm:$0xf]
      %v7289 = vld [vmem:[%s13 + $0x2e4] sm:$0xf]
      %v7290 = vld [vmem:[%s13 + $0x2e8] sm:$0xf]
      %v7291 = vld [vmem:[%s13 + $0x2ec] sm:$0xf]
      %v7292 = vld [vmem:[%s13 + $0x2f0] sm:$0xf]
      %v7293 = vld [vmem:[%s13 + $0x2f4] sm:$0xf]
      %v7294 = vld [vmem:[%s13 + $0x2f8] sm:$0xf]
      %v7295 = vld [vmem:[%s13 + $0x2fc] sm:$0xf]
      %v7296 = vld [vmem:[%s13 + $0x300] sm:$0xf]
      %v7297 = vld [vmem:[%s13 + $0x304] sm:$0xf]
      %v7298 = vld [vmem:[%s13 + $0x308] sm:$0xf]
      %v7299 = vld [vmem:[%s13 + $0x30c] sm:$0xf]
      %v7300 = vld [vmem:[%s13 + $0x310] sm:$0xf]
      %v7301 = vld [vmem:[%s13 + $0x314] sm:$0xf]
      %v7302 = vld [vmem:[%s13 + $0x318] sm:$0xf]
      %v7303 = vld [vmem:[%s13 + $0x31c] sm:$0xf]
      %v7304 = vld [vmem:[%s13 + $0x320] sm:$0xf]
      %v7305 = vld [vmem:[%s13 + $0x324] sm:$0xf]
      %v7306 = vld [vmem:[%s13 + $0x328] sm:$0xf]
      %v7307 = vld [vmem:[%s13 + $0x32c] sm:$0xf]
      %v7308 = vld [vmem:[%s13 + $0x330] sm:$0xf]
      %v7309 = vld [vmem:[%s13 + $0x334] sm:$0xf]
      %v7310 = vld [vmem:[%s13 + $0x338] sm:$0xf]
      %v7311 = vld [vmem:[%s13 + $0x33c] sm:$0xf]
      %v7312 = vld [vmem:[%s13 + $0x340] sm:$0xf]
      %v7313 = vld [vmem:[%s13 + $0x344] sm:$0xf]
      %v7314 = vld [vmem:[%s13 + $0x348] sm:$0xf]
      %v7315 = vld [vmem:[%s13 + $0x34c] sm:$0xf]
      %v7316 = vld [vmem:[%s13 + $0x350] sm:$0xf]
      %v7317 = vld [vmem:[%s13 + $0x354] sm:$0xf]
      %v7318 = vld [vmem:[%s13 + $0x358] sm:$0xf]
      %v7319 = vld [vmem:[%s13 + $0x35c] sm:$0xf]
      %v7320 = vld [vmem:[%s13 + $0x360] sm:$0xf]
      %v7321 = vld [vmem:[%s13 + $0x364] sm:$0xf]
      %v7322 = vld [vmem:[%s13 + $0x368] sm:$0xf]
      %v7323 = vld [vmem:[%s13 + $0x36c] sm:$0xf]
      %v7324 = vld [vmem:[%s13 + $0x370] sm:$0xf]
      %v7325 = vld [vmem:[%s13 + $0x374] sm:$0xf]
      %v7326 = vld [vmem:[%s13 + $0x378] sm:$0xf]
      %v7327 = vld [vmem:[%s13 + $0x37c] sm:$0xf]
      %v7328 = vld [vmem:[%s13 + $0x380] sm:$0xf]
      %v7329 = vld [vmem:[%s13 + $0x384] sm:$0xf]
      %v7330 = vld [vmem:[%s13 + $0x388] sm:$0xf]
      %v7331 = vld [vmem:[%s13 + $0x38c] sm:$0xf]
      %v7332 = vld [vmem:[%s13 + $0x390] sm:$0xf]
      %v7333 = vld [vmem:[%s13 + $0x394] sm:$0xf]
      %v7334 = vld [vmem:[%s13 + $0x398] sm:$0xf]
      %v7335 = vld [vmem:[%s13 + $0x39c] sm:$0xf]
      %v7336 = vld [vmem:[%s13 + $0x3a0] sm:$0xf]
      %v7337 = vld [vmem:[%s13 + $0x3a4] sm:$0xf]
      %v7338 = vld [vmem:[%s13 + $0x3a8] sm:$0xf]
      %v7339 = vld [vmem:[%s13 + $0x3ac] sm:$0xf]
      %v7340 = vld [vmem:[%s13 + $0x3b0] sm:$0xf]
      %v7341 = vld [vmem:[%s13 + $0x3b4] sm:$0xf]
      %v7342 = vld [vmem:[%s13 + $0x3b8] sm:$0xf]
      %v7343 = vld [vmem:[%s13 + $0x3bc] sm:$0xf]
      %v7344 = vld [vmem:[%s13 + $0x3c0] sm:$0xf]
      %v7345 = vld [vmem:[%s13 + $0x3c4] sm:$0xf]
      %v7346 = vld [vmem:[%s13 + $0x3c8] sm:$0xf]
      %v7347 = vld [vmem:[%s13 + $0x3cc] sm:$0xf]
      %v7348 = vld [vmem:[%s13 + $0x3d0] sm:$0xf]
      %v7349 = vld [vmem:[%s13 + $0x3d4] sm:$0xf]
      %v7350 = vld [vmem:[%s13 + $0x3d8] sm:$0xf]
      %v7351 = vld [vmem:[%s13 + $0x3dc] sm:$0xf]
      %v7352 = vld [vmem:[%s13 + $0x3e0] sm:$0xf]
      %v7353 = vld [vmem:[%s13 + $0x3e4] sm:$0xf]
      %v7354 = vld [vmem:[%s13 + $0x3e8] sm:$0xf]
      %v7355 = vld [vmem:[%s13 + $0x3ec] sm:$0xf]
      %v7356 = vld [vmem:[%s13 + $0x3f0] sm:$0xf]
      %v7357 = vld [vmem:[%s13 + $0x3f4] sm:$0xf]
      %v7358 = vld [vmem:[%s13 + $0x3f8] sm:$0xf]
      %v7359 = vld [vmem:[%s13 + $0x3fc] sm:$0xf]
      %v7360 = vld [vmem:[%s14] sm:$0x1]
      %v7362 = vlaneseq
      %v7363 = vshrl.u32 %v7362, 7
      %v7364 = vsub.s32 0, %v7363
      %v7365 = vrot.slane %v7360, %v7364
      %v7623 = vunpack.c.l.b16 %v7104
      %v7624 = vunpack.c.l.b16 %v7105
      %v7625 = vunpack.c.l.b16 %v7106
      %v7626 = vunpack.c.l.b16 %v7107
      %v7627 = vunpack.c.l.b16 %v7108
      %v7628 = vunpack.c.l.b16 %v7109
      %v7629 = vunpack.c.l.b16 %v7110
      %v7630 = vunpack.c.l.b16 %v7111
      %v7631 = vunpack.c.l.b16 %v7112
      %v7632 = vunpack.c.l.b16 %v7113
      %v7633 = vunpack.c.l.b16 %v7114
      %v7634 = vunpack.c.l.b16 %v7115
      %v7635 = vunpack.c.l.b16 %v7116
      %v7636 = vunpack.c.l.b16 %v7117
      %v7637 = vunpack.c.l.b16 %v7118
      %v7638 = vunpack.c.l.b16 %v7119
      %v7639 = vunpack.c.l.b16 %v7120
      %v7640 = vunpack.c.l.b16 %v7121
      %v7641 = vunpack.c.l.b16 %v7122
      %v7642 = vunpack.c.l.b16 %v7123
      %v7643 = vunpack.c.l.b16 %v7124
      %v7644 = vunpack.c.l.b16 %v7125
      %v7645 = vunpack.c.l.b16 %v7126
      %v7646 = vunpack.c.l.b16 %v7127
      %v7647 = vunpack.c.l.b16 %v7128
      %v7648 = vunpack.c.l.b16 %v7129
      %v7649 = vunpack.c.l.b16 %v7130
      %v7650 = vunpack.c.l.b16 %v7131
      %v7651 = vunpack.c.l.b16 %v7132
      %v7652 = vunpack.c.l.b16 %v7133
      %v7653 = vunpack.c.l.b16 %v7134
      %v7654 = vunpack.c.l.b16 %v7135
      %v7655 = vunpack.c.l.b16 %v7136
      %v7656 = vunpack.c.l.b16 %v7137
      %v7657 = vunpack.c.l.b16 %v7138
      %v7658 = vunpack.c.l.b16 %v7139
      %v7659 = vunpack.c.l.b16 %v7140
      %v7660 = vunpack.c.l.b16 %v7141
      %v7661 = vunpack.c.l.b16 %v7142
      %v7662 = vunpack.c.l.b16 %v7143
      %v7663 = vunpack.c.l.b16 %v7144
      %v7664 = vunpack.c.l.b16 %v7145
      %v7665 = vunpack.c.l.b16 %v7146
      %v7666 = vunpack.c.l.b16 %v7147
      %v7667 = vunpack.c.l.b16 %v7148
      %v7668 = vunpack.c.l.b16 %v7149
      %v7669 = vunpack.c.l.b16 %v7150
      %v7670 = vunpack.c.l.b16 %v7151
      %v7671 = vunpack.c.l.b16 %v7152
      %v7672 = vunpack.c.l.b16 %v7153
      %v7673 = vunpack.c.l.b16 %v7154
      %v7674 = vunpack.c.l.b16 %v7155
      %v7675 = vunpack.c.l.b16 %v7156
      %v7676 = vunpack.c.l.b16 %v7157
      %v7677 = vunpack.c.l.b16 %v7158
      %v7678 = vunpack.c.l.b16 %v7159
      %v7679 = vunpack.c.l.b16 %v7160
      %v7680 = vunpack.c.l.b16 %v7161
      %v7681 = vunpack.c.l.b16 %v7162
      %v7682 = vunpack.c.l.b16 %v7163
      %v7683 = vunpack.c.l.b16 %v7164
      %v7684 = vunpack.c.l.b16 %v7165
      %v7685 = vunpack.c.l.b16 %v7166
      %v7686 = vunpack.c.l.b16 %v7167
      %v7687 = vunpack.c.l.b16 %v7168
      %v7688 = vunpack.c.l.b16 %v7169
      %v7689 = vunpack.c.l.b16 %v7170
      %v7690 = vunpack.c.l.b16 %v7171
      %v7691 = vunpack.c.l.b16 %v7172
      %v7692 = vunpack.c.l.b16 %v7173
      %v7693 = vunpack.c.l.b16 %v7174
      %v7694 = vunpack.c.l.b16 %v7175
      %v7695 = vunpack.c.l.b16 %v7176
      %v7696 = vunpack.c.l.b16 %v7177
      %v7697 = vunpack.c.l.b16 %v7178
      %v7698 = vunpack.c.l.b16 %v7179
      %v7699 = vunpack.c.l.b16 %v7180
      %v7700 = vunpack.c.l.b16 %v7181
      %v7701 = vunpack.c.l.b16 %v7182
      %v7702 = vunpack.c.l.b16 %v7183
      %v7703 = vunpack.c.l.b16 %v7184
      %v7704 = vunpack.c.l.b16 %v7185
      %v7705 = vunpack.c.l.b16 %v7186
      %v7706 = vunpack.c.l.b16 %v7187
      %v7707 = vunpack.c.l.b16 %v7188
      %v7708 = vunpack.c.l.b16 %v7189
      %v7709 = vunpack.c.l.b16 %v7190
      %v7710 = vunpack.c.l.b16 %v7191
      %v7711 = vunpack.c.l.b16 %v7192
      %v7712 = vunpack.c.l.b16 %v7193
      %v7713 = vunpack.c.l.b16 %v7194
      %v7714 = vunpack.c.l.b16 %v7195
      %v7715 = vunpack.c.l.b16 %v7196
      %v7716 = vunpack.c.l.b16 %v7197
      %v7717 = vunpack.c.l.b16 %v7198
      %v7718 = vunpack.c.l.b16 %v7199
      %v7719 = vunpack.c.l.b16 %v7200
      %v7720 = vunpack.c.l.b16 %v7201
      %v7721 = vunpack.c.l.b16 %v7202
      %v7722 = vunpack.c.l.b16 %v7203
      %v7723 = vunpack.c.l.b16 %v7204
      %v7724 = vunpack.c.l.b16 %v7205
      %v7725 = vunpack.c.l.b16 %v7206
      %v7726 = vunpack.c.l.b16 %v7207
      %v7727 = vunpack.c.l.b16 %v7208
      %v7728 = vunpack.c.l.b16 %v7209
      %v7729 = vunpack.c.l.b16 %v7210
      %v7730 = vunpack.c.l.b16 %v7211
      %v7731 = vunpack.c.l.b16 %v7212
      %v7732 = vunpack.c.l.b16 %v7213
      %v7733 = vunpack.c.l.b16 %v7214
      %v7734 = vunpack.c.l.b16 %v7215
      %v7735 = vunpack.c.l.b16 %v7216
      %v7736 = vunpack.c.l.b16 %v7217
      %v7737 = vunpack.c.l.b16 %v7218
      %v7738 = vunpack.c.l.b16 %v7219
      %v7739 = vunpack.c.l.b16 %v7220
      %v7740 = vunpack.c.l.b16 %v7221
      %v7741 = vunpack.c.l.b16 %v7222
      %v7742 = vunpack.c.l.b16 %v7223
      %v7743 = vunpack.c.l.b16 %v7224
      %v7744 = vunpack.c.l.b16 %v7225
      %v7745 = vunpack.c.l.b16 %v7226
      %v7746 = vunpack.c.l.b16 %v7227
      %v7747 = vunpack.c.l.b16 %v7228
      %v7748 = vunpack.c.l.b16 %v7229
      %v7749 = vunpack.c.l.b16 %v7230
      %v7750 = vunpack.c.l.b16 %v7231
      %v7751 = vunpack.c.l.b16 %v7232
      %v7752 = vunpack.c.l.b16 %v7233
      %v7753 = vunpack.c.l.b16 %v7234
      %v7754 = vunpack.c.l.b16 %v7235
      %v7755 = vunpack.c.l.b16 %v7236
      %v7756 = vunpack.c.l.b16 %v7237
      %v7757 = vunpack.c.l.b16 %v7238
      %v7758 = vunpack.c.l.b16 %v7239
      %v7759 = vunpack.c.l.b16 %v7240
      %v7760 = vunpack.c.l.b16 %v7241
      %v7761 = vunpack.c.l.b16 %v7242
      %v7762 = vunpack.c.l.b16 %v7243
      %v7763 = vunpack.c.l.b16 %v7244
      %v7764 = vunpack.c.l.b16 %v7245
      %v7765 = vunpack.c.l.b16 %v7246
      %v7766 = vunpack.c.l.b16 %v7247
      %v7767 = vunpack.c.l.b16 %v7248
      %v7768 = vunpack.c.l.b16 %v7249
      %v7769 = vunpack.c.l.b16 %v7250
      %v7770 = vunpack.c.l.b16 %v7251
      %v7771 = vunpack.c.l.b16 %v7252
      %v7772 = vunpack.c.l.b16 %v7253
      %v7773 = vunpack.c.l.b16 %v7254
      %v7774 = vunpack.c.l.b16 %v7255
      %v7775 = vunpack.c.l.b16 %v7256
      %v7776 = vunpack.c.l.b16 %v7257
      %v7777 = vunpack.c.l.b16 %v7258
      %v7778 = vunpack.c.l.b16 %v7259
      %v7779 = vunpack.c.l.b16 %v7260
      %v7780 = vunpack.c.l.b16 %v7261
      %v7781 = vunpack.c.l.b16 %v7262
      %v7782 = vunpack.c.l.b16 %v7263
      %v7783 = vunpack.c.l.b16 %v7264
      %v7784 = vunpack.c.l.b16 %v7265
      %v7785 = vunpack.c.l.b16 %v7266
      %v7786 = vunpack.c.l.b16 %v7267
      %v7787 = vunpack.c.l.b16 %v7268
      %v7788 = vunpack.c.l.b16 %v7269
      %v7789 = vunpack.c.l.b16 %v7270
      %v7790 = vunpack.c.l.b16 %v7271
      %v7791 = vunpack.c.l.b16 %v7272
      %v7792 = vunpack.c.l.b16 %v7273
      %v7793 = vunpack.c.l.b16 %v7274
      %v7794 = vunpack.c.l.b16 %v7275
      %v7795 = vunpack.c.l.b16 %v7276
      %v7796 = vunpack.c.l.b16 %v7277
      %v7797 = vunpack.c.l.b16 %v7278
      %v7798 = vunpack.c.l.b16 %v7279
      %v7799 = vunpack.c.l.b16 %v7280
      %v7800 = vunpack.c.l.b16 %v7281
      %v7801 = vunpack.c.l.b16 %v7282
      %v7802 = vunpack.c.l.b16 %v7283
      %v7803 = vunpack.c.l.b16 %v7284
      %v7804 = vunpack.c.l.b16 %v7285
      %v7805 = vunpack.c.l.b16 %v7286
      %v7806 = vunpack.c.l.b16 %v7287
      %v7807 = vunpack.c.l.b16 %v7288
      %v7808 = vunpack.c.l.b16 %v7289
      %v7809 = vunpack.c.l.b16 %v7290
      %v7810 = vunpack.c.l.b16 %v7291
      %v7811 = vunpack.c.l.b16 %v7292
      %v7812 = vunpack.c.l.b16 %v7293
      %v7813 = vunpack.c.l.b16 %v7294
      %v7814 = vunpack.c.l.b16 %v7295
      %v7815 = vunpack.c.l.b16 %v7296
      %v7816 = vunpack.c.l.b16 %v7297
      %v7817 = vunpack.c.l.b16 %v7298
      %v7818 = vunpack.c.l.b16 %v7299
      %v7819 = vunpack.c.l.b16 %v7300
      %v7820 = vunpack.c.l.b16 %v7301
      %v7821 = vunpack.c.l.b16 %v7302
      %v7822 = vunpack.c.l.b16 %v7303
      %v7823 = vunpack.c.l.b16 %v7304
      %v7824 = vunpack.c.l.b16 %v7305
      %v7825 = vunpack.c.l.b16 %v7306
      %v7826 = vunpack.c.l.b16 %v7307
      %v7827 = vunpack.c.l.b16 %v7308
      %v7828 = vunpack.c.l.b16 %v7309
      %v7829 = vunpack.c.l.b16 %v7310
      %v7830 = vunpack.c.l.b16 %v7311
      %v7831 = vunpack.c.l.b16 %v7312
      %v7832 = vunpack.c.l.b16 %v7313
      %v7833 = vunpack.c.l.b16 %v7314
      %v7834 = vunpack.c.l.b16 %v7315
      %v7835 = vunpack.c.l.b16 %v7316
      %v7836 = vunpack.c.l.b16 %v7317
      %v7837 = vunpack.c.l.b16 %v7318
      %v7838 = vunpack.c.l.b16 %v7319
      %v7839 = vunpack.c.l.b16 %v7320
      %v7840 = vunpack.c.l.b16 %v7321
      %v7841 = vunpack.c.l.b16 %v7322
      %v7842 = vunpack.c.l.b16 %v7323
      %v7843 = vunpack.c.l.b16 %v7324
      %v7844 = vunpack.c.l.b16 %v7325
      %v7845 = vunpack.c.l.b16 %v7326
      %v7846 = vunpack.c.l.b16 %v7327
      %v7847 = vunpack.c.l.b16 %v7328
      %v7848 = vunpack.c.l.b16 %v7329
      %v7849 = vunpack.c.l.b16 %v7330
      %v7850 = vunpack.c.l.b16 %v7331
      %v7851 = vunpack.c.l.b16 %v7332
      %v7852 = vunpack.c.l.b16 %v7333
      %v7853 = vunpack.c.l.b16 %v7334
      %v7854 = vunpack.c.l.b16 %v7335
      %v7855 = vunpack.c.l.b16 %v7336
      %v7856 = vunpack.c.l.b16 %v7337
      %v7857 = vunpack.c.l.b16 %v7338
      %v7858 = vunpack.c.l.b16 %v7339
      %v7859 = vunpack.c.l.b16 %v7340
      %v7860 = vunpack.c.l.b16 %v7341
      %v7861 = vunpack.c.l.b16 %v7342
      %v7862 = vunpack.c.l.b16 %v7343
      %v7863 = vunpack.c.l.b16 %v7344
      %v7864 = vunpack.c.l.b16 %v7345
      %v7865 = vunpack.c.l.b16 %v7346
      %v7866 = vunpack.c.l.b16 %v7347
      %v7867 = vunpack.c.l.b16 %v7348
      %v7868 = vunpack.c.l.b16 %v7349
      %v7869 = vunpack.c.l.b16 %v7350
      %v7870 = vunpack.c.l.b16 %v7351
      %v7871 = vunpack.c.l.b16 %v7352
      %v7872 = vunpack.c.l.b16 %v7353
      %v7873 = vunpack.c.l.b16 %v7354
      %v7874 = vunpack.c.l.b16 %v7355
      %v7875 = vunpack.c.l.b16 %v7356
      %v7876 = vunpack.c.l.b16 %v7357
      %v7877 = vunpack.c.l.b16 %v7358
      %v7878 = vunpack.c.l.b16 %v7359
      %v7879 = vpack.c.b16 %v7624, %v7623
      %v7880 = vpack.c.b16 %v7626, %v7625
      %v7881 = vpack.c.b16 %v7628, %v7627
      %v7882 = vpack.c.b16 %v7630, %v7629
      %v7883 = vpack.c.b16 %v7632, %v7631
      %v7884 = vpack.c.b16 %v7634, %v7633
      %v7885 = vpack.c.b16 %v7636, %v7635
      %v7886 = vpack.c.b16 %v7638, %v7637
      %v7887 = vpack.c.b16 %v7640, %v7639
      %v7888 = vpack.c.b16 %v7642, %v7641
      %v7889 = vpack.c.b16 %v7644, %v7643
      %v7890 = vpack.c.b16 %v7646, %v7645
      %v7891 = vpack.c.b16 %v7648, %v7647
      %v7892 = vpack.c.b16 %v7650, %v7649
      %v7893 = vpack.c.b16 %v7652, %v7651
      %v7894 = vpack.c.b16 %v7654, %v7653
      %v7895 = vpack.c.b16 %v7656, %v7655
      %v7896 = vpack.c.b16 %v7658, %v7657
      %v7897 = vpack.c.b16 %v7660, %v7659
      %v7898 = vpack.c.b16 %v7662, %v7661
      %v7899 = vpack.c.b16 %v7664, %v7663
      %v7900 = vpack.c.b16 %v7666, %v7665
      %v7901 = vpack.c.b16 %v7668, %v7667
      %v7902 = vpack.c.b16 %v7670, %v7669
      %v7903 = vpack.c.b16 %v7672, %v7671
      %v7904 = vpack.c.b16 %v7674, %v7673
      %v7905 = vpack.c.b16 %v7676, %v7675
      %v7906 = vpack.c.b16 %v7678, %v7677
      %v7907 = vpack.c.b16 %v7680, %v7679
      %v7908 = vpack.c.b16 %v7682, %v7681
      %v7909 = vpack.c.b16 %v7684, %v7683
      %v7910 = vpack.c.b16 %v7686, %v7685
      %v7911 = vpack.c.b16 %v7688, %v7687
      %v7912 = vpack.c.b16 %v7690, %v7689
      %v7913 = vpack.c.b16 %v7692, %v7691
      %v7914 = vpack.c.b16 %v7694, %v7693
      %v7915 = vpack.c.b16 %v7696, %v7695
      %v7916 = vpack.c.b16 %v7698, %v7697
      %v7917 = vpack.c.b16 %v7700, %v7699
      %v7918 = vpack.c.b16 %v7702, %v7701
      %v7919 = vpack.c.b16 %v7704, %v7703
      %v7920 = vpack.c.b16 %v7706, %v7705
      %v7921 = vpack.c.b16 %v7708, %v7707
      %v7922 = vpack.c.b16 %v7710, %v7709
      %v7923 = vpack.c.b16 %v7712, %v7711
      %v7924 = vpack.c.b16 %v7714, %v7713
      %v7925 = vpack.c.b16 %v7716, %v7715
      %v7926 = vpack.c.b16 %v7718, %v7717
      %v7927 = vpack.c.b16 %v7720, %v7719
      %v7928 = vpack.c.b16 %v7722, %v7721
      %v7929 = vpack.c.b16 %v7724, %v7723
      %v7930 = vpack.c.b16 %v7726, %v7725
      %v7931 = vpack.c.b16 %v7728, %v7727
      %v7932 = vpack.c.b16 %v7730, %v7729
      %v7933 = vpack.c.b16 %v7732, %v7731
      %v7934 = vpack.c.b16 %v7734, %v7733
      %v7935 = vpack.c.b16 %v7736, %v7735
      %v7936 = vpack.c.b16 %v7738, %v7737
      %v7937 = vpack.c.b16 %v7740, %v7739
      %v7938 = vpack.c.b16 %v7742, %v7741
      %v7939 = vpack.c.b16 %v7744, %v7743
      %v7940 = vpack.c.b16 %v7746, %v7745
      %v7941 = vpack.c.b16 %v7748, %v7747
      %v7942 = vpack.c.b16 %v7750, %v7749
      %v7943 = vpack.c.b16 %v7752, %v7751
      %v7944 = vpack.c.b16 %v7754, %v7753
      %v7945 = vpack.c.b16 %v7756, %v7755
      %v7946 = vpack.c.b16 %v7758, %v7757
      %v7947 = vpack.c.b16 %v7760, %v7759
      %v7948 = vpack.c.b16 %v7762, %v7761
      %v7949 = vpack.c.b16 %v7764, %v7763
      %v7950 = vpack.c.b16 %v7766, %v7765
      %v7951 = vpack.c.b16 %v7768, %v7767
      %v7952 = vpack.c.b16 %v7770, %v7769
      %v7953 = vpack.c.b16 %v7772, %v7771
      %v7954 = vpack.c.b16 %v7774, %v7773
      %v7955 = vpack.c.b16 %v7776, %v7775
      %v7956 = vpack.c.b16 %v7778, %v7777
      %v7957 = vpack.c.b16 %v7780, %v7779
      %v7958 = vpack.c.b16 %v7782, %v7781
      %v7959 = vpack.c.b16 %v7784, %v7783
      %v7960 = vpack.c.b16 %v7786, %v7785
      %v7961 = vpack.c.b16 %v7788, %v7787
      %v7962 = vpack.c.b16 %v7790, %v7789
      %v7963 = vpack.c.b16 %v7792, %v7791
      %v7964 = vpack.c.b16 %v7794, %v7793
      %v7965 = vpack.c.b16 %v7796, %v7795
      %v7966 = vpack.c.b16 %v7798, %v7797
      %v7967 = vpack.c.b16 %v7800, %v7799
      %v7968 = vpack.c.b16 %v7802, %v7801
      %v7969 = vpack.c.b16 %v7804, %v7803
      %v7970 = vpack.c.b16 %v7806, %v7805
      %v7971 = vpack.c.b16 %v7808, %v7807
      %v7972 = vpack.c.b16 %v7810, %v7809
      %v7973 = vpack.c.b16 %v7812, %v7811
      %v7974 = vpack.c.b16 %v7814, %v7813
      %v7975 = vpack.c.b16 %v7816, %v7815
      %v7976 = vpack.c.b16 %v7818, %v7817
      %v7977 = vpack.c.b16 %v7820, %v7819
      %v7978 = vpack.c.b16 %v7822, %v7821
      %v7979 = vpack.c.b16 %v7824, %v7823
      %v7980 = vpack.c.b16 %v7826, %v7825
      %v7981 = vpack.c.b16 %v7828, %v7827
      %v7982 = vpack.c.b16 %v7830, %v7829
      %v7983 = vpack.c.b16 %v7832, %v7831
      %v7984 = vpack.c.b16 %v7834, %v7833
      %v7985 = vpack.c.b16 %v7836, %v7835
      %v7986 = vpack.c.b16 %v7838, %v7837
      %v7987 = vpack.c.b16 %v7840, %v7839
      %v7988 = vpack.c.b16 %v7842, %v7841
      %v7989 = vpack.c.b16 %v7844, %v7843
      %v7990 = vpack.c.b16 %v7846, %v7845
      %v7991 = vpack.c.b16 %v7848, %v7847
      %v7992 = vpack.c.b16 %v7850, %v7849
      %v7993 = vpack.c.b16 %v7852, %v7851
      %v7994 = vpack.c.b16 %v7854, %v7853
      %v7995 = vpack.c.b16 %v7856, %v7855
      %v7996 = vpack.c.b16 %v7858, %v7857
      %v7997 = vpack.c.b16 %v7860, %v7859
      %v7998 = vpack.c.b16 %v7862, %v7861
      %v7999 = vpack.c.b16 %v7864, %v7863
      %v8000 = vpack.c.b16 %v7866, %v7865
      %v8001 = vpack.c.b16 %v7868, %v7867
      %v8002 = vpack.c.b16 %v7870, %v7869
      %v8003 = vpack.c.b16 %v7872, %v7871
      %v8004 = vpack.c.b16 %v7874, %v7873
      %v8005 = vpack.c.b16 %v7876, %v7875
      %v8006 = vpack.c.b16 %v7878, %v7877
      %8135 = vmatprep.subr.bf16.mxu0 0
      %8136 = vmatpush1.bf16.msra.mxu0 %v7879
      %8137 = vmatprep.subr.bf16.mxu0 0
      %8138 = vmatpush1.bf16.msra.mxu0 %v7880
      %8139 = vmatprep.subr.bf16.mxu0 0
      %8140 = vmatpush1.bf16.msra.mxu0 %v7881
      %8141 = vmatprep.subr.bf16.mxu0 0
      %8142 = vmatpush1.bf16.msra.mxu0 %v7882
      %8143 = vmatprep.subr.bf16.mxu0 0
      %8144 = vmatpush1.bf16.msra.mxu0 %v7883
      %8145 = vmatprep.subr.bf16.mxu0 0
      %8146 = vmatpush1.bf16.msra.mxu0 %v7884
      %8147 = vmatprep.subr.bf16.mxu0 0
      %8148 = vmatpush1.bf16.msra.mxu0 %v7885
      %8149 = vmatprep.subr.bf16.mxu0 0
      %8150 = vmatpush1.bf16.msra.mxu0 %v7886
      %8151 = vmatprep.subr.bf16.mxu0 0
      %8152 = vmatpush1.bf16.msra.mxu0 %v7887
      %8153 = vmatprep.subr.bf16.mxu0 0
      %8154 = vmatpush1.bf16.msra.mxu0 %v7888
      %8155 = vmatprep.subr.bf16.mxu0 0
      %8156 = vmatpush1.bf16.msra.mxu0 %v7889
      %8157 = vmatprep.subr.bf16.mxu0 0
      %8158 = vmatpush1.bf16.msra.mxu0 %v7890
      %8159 = vmatprep.subr.bf16.mxu0 0
      %8160 = vmatpush1.bf16.msra.mxu0 %v7891
      %8161 = vmatprep.subr.bf16.mxu0 0
      %8162 = vmatpush1.bf16.msra.mxu0 %v7892
      %8163 = vmatprep.subr.bf16.mxu0 0
      %8164 = vmatpush1.bf16.msra.mxu0 %v7893
      %8165 = vmatprep.subr.bf16.mxu0 0
      %8166 = vmatpush1.bf16.msra.mxu0 %v7894
      %8167 = vmatprep.mubr.bf16.mxu0 %v6833
      %8168 = vmatmul.mubr.bf16.gmra.mrb[0].mxu0 %v6832
      %v8169 = vpop.f32.mrb[0].mxu0
      %v8170 = vadd.f32 %v7365, %v8169
      %v8171 = vpop.f32.mrb[0].mxu0
      %v8172 = vpop.f32.mrb[0].mxu0
      %v8173 = vadd.f32 %v7365, %v8172
      %v8174 = vpop.f32.mrb[0].mxu0
      %8175 = vmatprep.mubr.bf16.mxu0 %v6849
      %8176 = vmatmul.mubr.bf16.gmra.mrb[0].mxu0 %v6848
      %v8177 = vpop.f32.mrb[0].mxu0
      %v8178 = vadd.f32 %v7365, %v8177
      %v8179 = vpop.f32.mrb[0].mxu0
      %v8180 = vpop.f32.mrb[0].mxu0
      %v8181 = vadd.f32 %v7365, %v8180
      %v8182 = vpop.f32.mrb[0].mxu0
      %8183 = vmatprep.mubr.bf16.mxu0 %v6865
      %8184 = vmatmul.mubr.bf16.gmra.mrb[0].mxu0 %v6864
      %v8185 = vpop.f32.mrb[0].mxu0
      %v8186 = vadd.f32 %v7365, %v8185
      %v8187 = vpop.f32.mrb[0].mxu0
      %v8188 = vpop.f32.mrb[0].mxu0
      %v8189 = vadd.f32 %v7365, %v8188
      %v8190 = vpop.f32.mrb[0].mxu0
      %8191 = vmatprep.mubr.bf16.mxu0 %v6881
      %8192 = vmatmul.mubr.bf16.gmra.mrb[0].mxu0 %v6880
      %v8193 = vpop.f32.mrb[0].mxu0
      %v8194 = vadd.f32 %v7365, %v8193
      %v8195 = vpop.f32.mrb[0].mxu0
      %v8196 = vpop.f32.mrb[0].mxu0
      %v8197 = vadd.f32 %v7365, %v8196
      %v8198 = vpop.f32.mrb[0].mxu0
      %8199 = vmatprep.mubr.bf16.mxu0 %v6897
      %8200 = vmatmul.mubr.bf16.gmra.mrb[0].mxu0 %v6896
      %v8201 = vpop.f32.mrb[0].mxu0
      %v8202 = vadd.f32 %v7365, %v8201
      %v8203 = vpop.f32.mrb[0].mxu0
      %v8204 = vpop.f32.mrb[0].mxu0
      %v8205 = vadd.f32 %v7365, %v8204
      %v8206 = vpop.f32.mrb[0].mxu0
      %8207 = vmatprep.mubr.bf16.mxu0 %v6913
      %8208 = vmatmul.mubr.bf16.gmra.mrb[0].mxu0 %v6912
      %v8209 = vpop.f32.mrb[0].mxu0
      %v8210 = vadd.f32 %v7365, %v8209
      %v8211 = vpop.f32.mrb[0].mxu0
      %v8212 = vpop.f32.mrb[0].mxu0
      %v8213 = vadd.f32 %v7365, %v8212
      %v8214 = vpop.f32.mrb[0].mxu0
      %8215 = vmatprep.mubr.bf16.mxu0 %v6929
      %8216 = vmatmul.mubr.bf16.gmra.mrb[0].mxu0 %v6928
      %v8217 = vpop.f32.mrb[0].mxu0
      %v8218 = vadd.f32 %v7365, %v8217
      %v8219 = vpop.f32.mrb[0].mxu0
      %v8220 = vpop.f32.mrb[0].mxu0
      %v8221 = vadd.f32 %v7365, %v8220
      %v8222 = vpop.f32.mrb[0].mxu0
      %8223 = vmatprep.mubr.bf16.mxu0 %v6945
      %8224 = vmatmul.mubr.bf16.gmra.mrb[0].mxu0 %v6944
      %v8225 = vpop.f32.mrb[0].mxu0
      %v8226 = vadd.f32 %v7365, %v8225
      %v8227 = vpop.f32.mrb[0].mxu0
      %v8228 = vpop.f32.mrb[0].mxu0
      %v8229 = vadd.f32 %v7365, %v8228
      %v8230 = vpop.f32.mrb[0].mxu0
      %8231 = vmatprep.mubr.bf16.mxu0 %v6961
      %8232 = vmatmul.mubr.bf16.gmra.mrb[0].mxu0 %v6960
      %v8233 = vpop.f32.mrb[0].mxu0
      %v8234 = vadd.f32 %v7365, %v8233
      %v8235 = vpop.f32.mrb[0].mxu0
      %v8236 = vpop.f32.mrb[0].mxu0
      %v8237 = vadd.f32 %v7365, %v8236
      %v8238 = vpop.f32.mrb[0].mxu0
      %8239 = vmatprep.mubr.bf16.mxu0 %v6977
      %8240 = vmatmul.mubr.bf16.gmra.mrb[0].mxu0 %v6976
      %v8241 = vpop.f32.mrb[0].mxu0
      %v8242 = vadd.f32 %v7365, %v8241
      %v8243 = vpop.f32.mrb[0].mxu0
      %v8244 = vpop.f32.mrb[0].mxu0
      %v8245 = vadd.f32 %v7365, %v8244
      %v8246 = vpop.f32.mrb[0].mxu0
      %8247 = vmatprep.mubr.bf16.mxu0 %v6993
      %8248 = vmatmul.mubr.bf16.gmra.mrb[0].mxu0 %v6992
      %v8249 = vpop.f32.mrb[0].mxu0
      %v8250 = vadd.f32 %v7365, %v8249
      %v8251 = vpop.f32.mrb[0].mxu0
      %v8252 = vpop.f32.mrb[0].mxu0
      %v8253 = vadd.f32 %v7365, %v8252
      %v8254 = vpop.f32.mrb[0].mxu0
      %8255 = vmatprep.mubr.bf16.mxu0 %v7009
      %8256 = vmatmul.mubr.bf16.gmra.mrb[0].mxu0 %v7008
      %v8257 = vpop.f32.mrb[0].mxu0
      %v8258 = vadd.f32 %v7365, %v8257
      %v8259 = vpop.f32.mrb[0].mxu0
      %v8260 = vpop.f32.mrb[0].mxu0
      %v8261 = vadd.f32 %v7365, %v8260
      %v8262 = vpop.f32.mrb[0].mxu0
      %8263 = vmatprep.mubr.bf16.mxu0 %v7025
      %8264 = vmatmul.mubr.bf16.gmra.mrb[0].mxu0 %v7024
      %v8265 = vpop.f32.mrb[0].mxu0
      %v8266 = vadd.f32 %v7365, %v8265
      %v8267 = vpop.f32.mrb[0].mxu0
      %v8268 = vpop.f32.mrb[0].mxu0
      %v8269 = vadd.f32 %v7365, %v8268
      %v8270 = vpop.f32.mrb[0].mxu0
      %8271 = vmatprep.mubr.bf16.mxu0 %v7041
      %8272 = vmatmul.mubr.bf16.gmra.mrb[0].mxu0 %v7040
      %v8273 = vpop.f32.mrb[0].mxu0
      %v8274 = vadd.f32 %v7365, %v8273
      %v8275 = vpop.f32.mrb[0].mxu0
      %v8276 = vpop.f32.mrb[0].mxu0
      %v8277 = vadd.f32 %v7365, %v8276
      %v8278 = vpop.f32.mrb[0].mxu0
      %8279 = vmatprep.mubr.bf16.mxu0 %v7057
      %8280 = vmatmul.mubr.bf16.gmra.mrb[0].mxu0 %v7056
      %v8281 = vpop.f32.mrb[0].mxu0
      %v8282 = vadd.f32 %v7365, %v8281
      %v8283 = vpop.f32.mrb[0].mxu0
      %v8284 = vpop.f32.mrb[0].mxu0
      %v8285 = vadd.f32 %v7365, %v8284
      %v8286 = vpop.f32.mrb[0].mxu0
      %8287 = vmatprep.mubr.bf16.mxu0 %v7073
      %8288 = vmatmul.mubr.bf16.gmra.mrb[0].mxu0 %v7072
      %v8289 = vpop.f32.mrb[0].mxu0
      %v8290 = vadd.f32 %v7365, %v8289
      %v8291 = vpop.f32.mrb[0].mxu0
      %v8292 = vpop.f32.mrb[0].mxu0
      %v8293 = vadd.f32 %v7365, %v8292
      %v8294 = vpop.f32.mrb[0].mxu0
      %8295 = vmatprep.mubr.bf16.mxu0 %v7089
      %8296 = vmatmul.mubr.bf16.gmra.mrb[0].mxu0 %v7088
      %v8297 = vpop.f32.mrb[0].mxu0
      %v8298 = vadd.f32 %v7365, %v8297
      %v8299 = vpop.f32.mrb[0].mxu0
      %v8300 = vpop.f32.mrb[0].mxu0
      %v8301 = vpop.f32.mrb[0].mxu0
      %8302 = vdwg.mxu0
      %8303 = vmatprep.subr.bf16.mxu0 0
      %8304 = vmatpush1.bf16.msra.mxu0 %v7895
      %8305 = vmatprep.subr.bf16.mxu0 0
      %8306 = vmatpush1.bf16.msra.mxu0 %v7896
      %8307 = vmatprep.subr.bf16.mxu0 0
      %8308 = vmatpush1.bf16.msra.mxu0 %v7897
      %8309 = vmatprep.subr.bf16.mxu0 0
      %8310 = vmatpush1.bf16.msra.mxu0 %v7898
      %8311 = vmatprep.subr.bf16.mxu0 0
      %8312 = vmatpush1.bf16.msra.mxu0 %v7899
      %8313 = vmatprep.subr.bf16.mxu0 0
      %8314 = vmatpush1.bf16.msra.mxu0 %v7900
      %8315 = vmatprep.subr.bf16.mxu0 0
      %8316 = vmatpush1.bf16.msra.mxu0 %v7901
      %8317 = vmatprep.subr.bf16.mxu0 0
      %8318 = vmatpush1.bf16.msra.mxu0 %v7902
      %8319 = vmatprep.subr.bf16.mxu0 0
      %8320 = vmatpush1.bf16.msra.mxu0 %v7903
      %8321 = vmatprep.subr.bf16.mxu0 0
      %8322 = vmatpush1.bf16.msra.mxu0 %v7904
      %8323 = vmatprep.subr.bf16.mxu0 0
      %8324 = vmatpush1.bf16.msra.mxu0 %v7905
      %8325 = vmatprep.subr.bf16.mxu0 0
      %8326 = vmatpush1.bf16.msra.mxu0 %v7906
      %8327 = vmatprep.subr.bf16.mxu0 0
      %8328 = vmatpush1.bf16.msra.mxu0 %v7907
      %8329 = vmatprep.subr.bf16.mxu0 0
      %8330 = vmatpush1.bf16.msra.mxu0 %v7908
      %8331 = vmatprep.subr.bf16.mxu0 0
      %8332 = vmatpush1.bf16.msra.mxu0 %v7909
      %8333 = vmatprep.subr.bf16.mxu0 0
      %8334 = vmatpush1.bf16.msra.mxu0 %v7910
      %8335 = vmatprep.mubr.bf16.mxu0 %v6835
      %8336 = vmatmul.mubr.bf16.gmra.mrb[0].mxu0 %v6834
      %v8337 = vpop.f32.mrb[0].mxu0
      %v8338 = vadd.f32 %v8170, %v8337
      %v8339 = vpop.f32.mrb[0].mxu0
      %v8340 = vpop.f32.mrb[0].mxu0
      %v8341 = vadd.f32 %v8173, %v8340
      %v8342 = vpop.f32.mrb[0].mxu0
      %8343 = vmatprep.mubr.bf16.mxu0 %v6851
      %8344 = vmatmul.mubr.bf16.gmra.mrb[0].mxu0 %v6850
      %v8345 = vpop.f32.mrb[0].mxu0
      %v8346 = vadd.f32 %v8178, %v8345
      %v8347 = vpop.f32.mrb[0].mxu0
      %v8348 = vpop.f32.mrb[0].mxu0
      %v8349 = vadd.f32 %v8181, %v8348
      %v8350 = vpop.f32.mrb[0].mxu0
      %8351 = vmatprep.mubr.bf16.mxu0 %v6867
      %8352 = vmatmul.mubr.bf16.gmra.mrb[0].mxu0 %v6866
      %v8353 = vpop.f32.mrb[0].mxu0
      %v8354 = vadd.f32 %v8186, %v8353
      %v8355 = vpop.f32.mrb[0].mxu0
      %v8356 = vpop.f32.mrb[0].mxu0
      %v8357 = vadd.f32 %v8189, %v8356
      %v8358 = vpop.f32.mrb[0].mxu0
      %8359 = vmatprep.mubr.bf16.mxu0 %v6883
      %8360 = vmatmul.mubr.bf16.gmra.mrb[0].mxu0 %v6882
      %v8361 = vpop.f32.mrb[0].mxu0
      %v8362 = vadd.f32 %v8194, %v8361
      %v8363 = vpop.f32.mrb[0].mxu0
      %v8364 = vpop.f32.mrb[0].mxu0
      %v8365 = vadd.f32 %v8197, %v8364
      %v8366 = vpop.f32.mrb[0].mxu0
      %8367 = vmatprep.mubr.bf16.mxu0 %v6899
      %8368 = vmatmul.mubr.bf16.gmra.mrb[0].mxu0 %v6898
      %v8369 = vpop.f32.mrb[0].mxu0
      %v8370 = vadd.f32 %v8202, %v8369
      %v8371 = vpop.f32.mrb[0].mxu0
      %v8372 = vpop.f32.mrb[0].mxu0
      %v8373 = vadd.f32 %v8205, %v8372
      %v8374 = vpop.f32.mrb[0].mxu0
      %8375 = vmatprep.mubr.bf16.mxu0 %v6915
      %8376 = vmatmul.mubr.bf16.gmra.mrb[0].mxu0 %v6914
      %v8377 = vpop.f32.mrb[0].mxu0
      %v8378 = vadd.f32 %v8210, %v8377
      %v8379 = vpop.f32.mrb[0].mxu0
      %v8380 = vpop.f32.mrb[0].mxu0
      %v8381 = vadd.f32 %v8213, %v8380
      %v8382 = vpop.f32.mrb[0].mxu0
      %8383 = vmatprep.mubr.bf16.mxu0 %v6931
      %8384 = vmatmul.mubr.bf16.gmra.mrb[0].mxu0 %v6930
      %v8385 = vpop.f32.mrb[0].mxu0
      %v8386 = vadd.f32 %v8218, %v8385
      %v8387 = vpop.f32.mrb[0].mxu0
      %v8388 = vpop.f32.mrb[0].mxu0
      %v8389 = vadd.f32 %v8221, %v8388
      %v8390 = vpop.f32.mrb[0].mxu0
      %8391 = vmatprep.mubr.bf16.mxu0 %v6947
      %8392 = vmatmul.mubr.bf16.gmra.mrb[0].mxu0 %v6946
      %v8393 = vpop.f32.mrb[0].mxu0
      %v8394 = vadd.f32 %v8226, %v8393
      %v8395 = vpop.f32.mrb[0].mxu0
      %v8396 = vpop.f32.mrb[0].mxu0
      %v8397 = vadd.f32 %v8229, %v8396
      %v8398 = vpop.f32.mrb[0].mxu0
      %8399 = vmatprep.mubr.bf16.mxu0 %v6963
      %8400 = vmatmul.mubr.bf16.gmra.mrb[0].mxu0 %v6962
      %v8401 = vpop.f32.mrb[0].mxu0
      %v8402 = vadd.f32 %v8234, %v8401
      %v8403 = vpop.f32.mrb[0].mxu0
      %v8404 = vpop.f32.mrb[0].mxu0
      %v8405 = vadd.f32 %v8237, %v8404
      %v8406 = vpop.f32.mrb[0].mxu0
      %8407 = vmatprep.mubr.bf16.mxu0 %v6979
      %8408 = vmatmul.mubr.bf16.gmra.mrb[0].mxu0 %v6978
      %v8409 = vpop.f32.mrb[0].mxu0
      %v8410 = vadd.f32 %v8242, %v8409
      %v8411 = vpop.f32.mrb[0].mxu0
      %v8412 = vpop.f32.mrb[0].mxu0
      %v8413 = vadd.f32 %v8245, %v8412
      %v8414 = vpop.f32.mrb[0].mxu0
      %8415 = vmatprep.mubr.bf16.mxu0 %v6995
      %8416 = vmatmul.mubr.bf16.gmra.mrb[0].mxu0 %v6994
      %v8417 = vpop.f32.mrb[0].mxu0
      %v8418 = vadd.f32 %v8250, %v8417
      %v8419 = vpop.f32.mrb[0].mxu0
      %v8420 = vpop.f32.mrb[0].mxu0
      %v8421 = vadd.f32 %v8253, %v8420
      %v8422 = vpop.f32.mrb[0].mxu0
      %8423 = vmatprep.mubr.bf16.mxu0 %v7011
      %8424 = vmatmul.mubr.bf16.gmra.mrb[0].mxu0 %v7010
      %v8425 = vpop.f32.mrb[0].mxu0
      %v8426 = vadd.f32 %v8258, %v8425
      %v8427 = vpop.f32.mrb[0].mxu0
      %v8428 = vpop.f32.mrb[0].mxu0
      %v8429 = vadd.f32 %v8261, %v8428
      %v8430 = vpop.f32.mrb[0].mxu0
      %8431 = vmatprep.mubr.bf16.mxu0 %v7027
      %8432 = vmatmul.mubr.bf16.gmra.mrb[0].mxu0 %v7026
      %v8433 = vpop.f32.mrb[0].mxu0
      %v8434 = vadd.f32 %v8266, %v8433
      %v8435 = vpop.f32.mrb[0].mxu0
      %v8436 = vpop.f32.mrb[0].mxu0
      %v8437 = vadd.f32 %v8269, %v8436
      %v8438 = vpop.f32.mrb[0].mxu0
      %8439 = vmatprep.mubr.bf16.mxu0 %v7043
      %8440 = vmatmul.mubr.bf16.gmra.mrb[0].mxu0 %v7042
      %v8441 = vpop.f32.mrb[0].mxu0
      %v8442 = vadd.f32 %v8274, %v8441
      %v8443 = vpop.f32.mrb[0].mxu0
      %v8444 = vpop.f32.mrb[0].mxu0
      %v8445 = vadd.f32 %v8277, %v8444
      %v8446 = vpop.f32.mrb[0].mxu0
      %8447 = vmatprep.mubr.bf16.mxu0 %v7059
      %8448 = vmatmul.mubr.bf16.gmra.mrb[0].mxu0 %v7058
      %v8449 = vpop.f32.mrb[0].mxu0
      %v8450 = vadd.f32 %v8282, %v8449
      %v8451 = vpop.f32.mrb[0].mxu0
      %v8452 = vpop.f32.mrb[0].mxu0
      %v8453 = vadd.f32 %v8285, %v8452
      %v8454 = vpop.f32.mrb[0].mxu0
      %8455 = vmatprep.mubr.bf16.mxu0 %v7075
      %8456 = vmatmul.mubr.bf16.gmra.mrb[0].mxu0 %v7074
      %v8457 = vpop.f32.mrb[0].mxu0
      %v8458 = vadd.f32 %v8290, %v8457
      %v8459 = vpop.f32.mrb[0].mxu0
      %v8460 = vpop.f32.mrb[0].mxu0
      %v8461 = vadd.f32 %v8293, %v8460
      %v8462 = vpop.f32.mrb[0].mxu0
      %8463 = vmatprep.mubr.bf16.mxu0 %v7091
      %8464 = vmatmul.mubr.bf16.gmra.mrb[0].mxu0 %v7090
      %v8465 = vpop.f32.mrb[0].mxu0
      %v8466 = vadd.f32 %v8298, %v8465
      %v8467 = vpop.f32.mrb[0].mxu0
      %v8468 = vpop.f32.mrb[0].mxu0
      %v8469 = vpop.f32.mrb[0].mxu0
      %8470 = vdwg.mxu0
      %8471 = vmatprep.subr.bf16.mxu0 0
      %8472 = vmatpush1.bf16.msra.mxu0 %v7911
      %8473 = vmatprep.subr.bf16.mxu0 0
      %8474 = vmatpush1.bf16.msra.mxu0 %v7912
      %8475 = vmatprep.subr.bf16.mxu0 0
      %8476 = vmatpush1.bf16.msra.mxu0 %v7913
      %8477 = vmatprep.subr.bf16.mxu0 0
      %8478 = vmatpush1.bf16.msra.mxu0 %v7914
      %8479 = vmatprep.subr.bf16.mxu0 0
      %8480 = vmatpush1.bf16.msra.mxu0 %v7915
      %8481 = vmatprep.subr.bf16.mxu0 0
      %8482 = vmatpush1.bf16.msra.mxu0 %v7916
      %8483 = vmatprep.subr.bf16.mxu0 0
      %8484 = vmatpush1.bf16.msra.mxu0 %v7917
      %8485 = vmatprep.subr.bf16.mxu0 0
      %8486 = vmatpush1.bf16.msra.mxu0 %v7918
      %8487 = vmatprep.subr.bf16.mxu0 0
      %8488 = vmatpush1.bf16.msra.mxu0 %v7919
      %8489 = vmatprep.subr.bf16.mxu0 0
      %8490 = vmatpush1.bf16.msra.mxu0 %v7920
      %8491 = vmatprep.subr.bf16.mxu0 0
      %8492 = vmatpush1.bf16.msra.mxu0 %v7921
      %8493 = vmatprep.subr.bf16.mxu0 0
      %8494 = vmatpush1.bf16.msra.mxu0 %v7922
      %8495 = vmatprep.subr.bf16.mxu0 0
      %8496 = vmatpush1.bf16.msra.mxu0 %v7923
      %8497 = vmatprep.subr.bf16.mxu0 0
      %8498 = vmatpush1.bf16.msra.mxu0 %v7924
      %8499 = vmatprep.subr.bf16.mxu0 0
      %8500 = vmatpush1.bf16.msra.mxu0 %v7925
      %8501 = vmatprep.subr.bf16.mxu0 0
      %8502 = vmatpush1.bf16.msra.mxu0 %v7926
      %8503 = vmatprep.mubr.bf16.mxu0 %v6837
      %8504 = vmatmul.mubr.bf16.gmra.mrb[0].mxu0 %v6836
      %v8505 = vpop.f32.mrb[0].mxu0
      %v8506 = vadd.f32 %v8338, %v8505
      %v8507 = vpop.f32.mrb[0].mxu0
      %v8508 = vpop.f32.mrb[0].mxu0
      %v8509 = vadd.f32 %v8341, %v8508
      %v8510 = vpop.f32.mrb[0].mxu0
      %8511 = vmatprep.mubr.bf16.mxu0 %v6853
      %8512 = vmatmul.mubr.bf16.gmra.mrb[0].mxu0 %v6852
      %v8513 = vpop.f32.mrb[0].mxu0
      %v8514 = vadd.f32 %v8346, %v8513
      %v8515 = vpop.f32.mrb[0].mxu0
      %v8516 = vpop.f32.mrb[0].mxu0
      %v8517 = vadd.f32 %v8349, %v8516
      %v8518 = vpop.f32.mrb[0].mxu0
      %8519 = vmatprep.mubr.bf16.mxu0 %v6869
      %8520 = vmatmul.mubr.bf16.gmra.mrb[0].mxu0 %v6868
      %v8521 = vpop.f32.mrb[0].mxu0
      %v8522 = vadd.f32 %v8354, %v8521
      %v8523 = vpop.f32.mrb[0].mxu0
      %v8524 = vpop.f32.mrb[0].mxu0
      %v8525 = vadd.f32 %v8357, %v8524
      %v8526 = vpop.f32.mrb[0].mxu0
      %8527 = vmatprep.mubr.bf16.mxu0 %v6885
      %8528 = vmatmul.mubr.bf16.gmra.mrb[0].mxu0 %v6884
      %v8529 = vpop.f32.mrb[0].mxu0
      %v8530 = vadd.f32 %v8362, %v8529
      %v8531 = vpop.f32.mrb[0].mxu0
      %v8532 = vpop.f32.mrb[0].mxu0
      %v8533 = vadd.f32 %v8365, %v8532
      %v8534 = vpop.f32.mrb[0].mxu0
      %8535 = vmatprep.mubr.bf16.mxu0 %v6901
      %8536 = vmatmul.mubr.bf16.gmra.mrb[0].mxu0 %v6900
      %v8537 = vpop.f32.mrb[0].mxu0
      %v8538 = vadd.f32 %v8370, %v8537
      %v8539 = vpop.f32.mrb[0].mxu0
      %v8540 = vpop.f32.mrb[0].mxu0
      %v8541 = vadd.f32 %v8373, %v8540
      %v8542 = vpop.f32.mrb[0].mxu0
      %8543 = vmatprep.mubr.bf16.mxu0 %v6917
      %8544 = vmatmul.mubr.bf16.gmra.mrb[0].mxu0 %v6916
      %v8545 = vpop.f32.mrb[0].mxu0
      %v8546 = vadd.f32 %v8378, %v8545
      %v8547 = vpop.f32.mrb[0].mxu0
      %v8548 = vpop.f32.mrb[0].mxu0
      %v8549 = vadd.f32 %v8381, %v8548
      %v8550 = vpop.f32.mrb[0].mxu0
      %8551 = vmatprep.mubr.bf16.mxu0 %v6933
      %8552 = vmatmul.mubr.bf16.gmra.mrb[0].mxu0 %v6932
      %v8553 = vpop.f32.mrb[0].mxu0
      %v8554 = vadd.f32 %v8386, %v8553
      %v8555 = vpop.f32.mrb[0].mxu0
      %v8556 = vpop.f32.mrb[0].mxu0
      %v8557 = vadd.f32 %v8389, %v8556
      %v8558 = vpop.f32.mrb[0].mxu0
      %8559 = vmatprep.mubr.bf16.mxu0 %v6949
      %8560 = vmatmul.mubr.bf16.gmra.mrb[0].mxu0 %v6948
      %v8561 = vpop.f32.mrb[0].mxu0
      %v8562 = vadd.f32 %v8394, %v8561
      %v8563 = vpop.f32.mrb[0].mxu0
      %v8564 = vpop.f32.mrb[0].mxu0
      %v8565 = vadd.f32 %v8397, %v8564
      %v8566 = vpop.f32.mrb[0].mxu0
      %8567 = vmatprep.mubr.bf16.mxu0 %v6965
      %8568 = vmatmul.mubr.bf16.gmra.mrb[0].mxu0 %v6964
      %v8569 = vpop.f32.mrb[0].mxu0
      %v8570 = vadd.f32 %v8402, %v8569
      %v8571 = vpop.f32.mrb[0].mxu0
      %v8572 = vpop.f32.mrb[0].mxu0
      %v8573 = vadd.f32 %v8405, %v8572
      %v8574 = vpop.f32.mrb[0].mxu0
      %8575 = vmatprep.mubr.bf16.mxu0 %v6981
      %8576 = vmatmul.mubr.bf16.gmra.mrb[0].mxu0 %v6980
      %v8577 = vpop.f32.mrb[0].mxu0
      %v8578 = vadd.f32 %v8410, %v8577
      %v8579 = vpop.f32.mrb[0].mxu0
      %v8580 = vpop.f32.mrb[0].mxu0
      %v8581 = vadd.f32 %v8413, %v8580
      %v8582 = vpop.f32.mrb[0].mxu0
      %8583 = vmatprep.mubr.bf16.mxu0 %v6997
      %8584 = vmatmul.mubr.bf16.gmra.mrb[0].mxu0 %v6996
      %v8585 = vpop.f32.mrb[0].mxu0
      %v8586 = vadd.f32 %v8418, %v8585
      %v8587 = vpop.f32.mrb[0].mxu0
      %v8588 = vpop.f32.mrb[0].mxu0
      %v8589 = vadd.f32 %v8421, %v8588
      %v8590 = vpop.f32.mrb[0].mxu0
      %8591 = vmatprep.mubr.bf16.mxu0 %v7013
      %8592 = vmatmul.mubr.bf16.gmra.mrb[0].mxu0 %v7012
      %v8593 = vpop.f32.mrb[0].mxu0
      %v8594 = vadd.f32 %v8426, %v8593
      %v8595 = vpop.f32.mrb[0].mxu0
      %v8596 = vpop.f32.mrb[0].mxu0
      %v8597 = vadd.f32 %v8429, %v8596
      %v8598 = vpop.f32.mrb[0].mxu0
      %8599 = vmatprep.mubr.bf16.mxu0 %v7029
      %8600 = vmatmul.mubr.bf16.gmra.mrb[0].mxu0 %v7028
      %v8601 = vpop.f32.mrb[0].mxu0
      %v8602 = vadd.f32 %v8434, %v8601
      %v8603 = vpop.f32.mrb[0].mxu0
      %v8604 = vpop.f32.mrb[0].mxu0
      %v8605 = vadd.f32 %v8437, %v8604
      %v8606 = vpop.f32.mrb[0].mxu0
      %8607 = vmatprep.mubr.bf16.mxu0 %v7045
      %8608 = vmatmul.mubr.bf16.gmra.mrb[0].mxu0 %v7044
      %v8609 = vpop.f32.mrb[0].mxu0
      %v8610 = vadd.f32 %v8442, %v8609
      %v8611 = vpop.f32.mrb[0].mxu0
      %v8612 = vpop.f32.mrb[0].mxu0
      %v8613 = vadd.f32 %v8445, %v8612
      %v8614 = vpop.f32.mrb[0].mxu0
      %8615 = vmatprep.mubr.bf16.mxu0 %v7061
      %8616 = vmatmul.mubr.bf16.gmra.mrb[0].mxu0 %v7060
      %v8617 = vpop.f32.mrb[0].mxu0
      %v8618 = vadd.f32 %v8450, %v8617
      %v8619 = vpop.f32.mrb[0].mxu0
      %v8620 = vpop.f32.mrb[0].mxu0
      %v8621 = vadd.f32 %v8453, %v8620
      %v8622 = vpop.f32.mrb[0].mxu0
      %8623 = vmatprep.mubr.bf16.mxu0 %v7077
      %8624 = vmatmul.mubr.bf16.gmra.mrb[0].mxu0 %v7076
      %v8625 = vpop.f32.mrb[0].mxu0
      %v8626 = vadd.f32 %v8458, %v8625
      %v8627 = vpop.f32.mrb[0].mxu0
      %v8628 = vpop.f32.mrb[0].mxu0
      %v8629 = vadd.f32 %v8461, %v8628
      %v8630 = vpop.f32.mrb[0].mxu0
      %8631 = vmatprep.mubr.bf16.mxu0 %v7093
      %8632 = vmatmul.mubr.bf16.gmra.mrb[0].mxu0 %v7092
      %v8633 = vpop.f32.mrb[0].mxu0
      %v8634 = vadd.f32 %v8466, %v8633
      %v8635 = vpop.f32.mrb[0].mxu0
      %v8636 = vpop.f32.mrb[0].mxu0
      %v8637 = vpop.f32.mrb[0].mxu0
      %8638 = vdwg.mxu0
      %8639 = vmatprep.subr.bf16.mxu0 0
      %8640 = vmatpush1.bf16.msra.mxu0 %v7927
      %8641 = vmatprep.subr.bf16.mxu0 0
      %8642 = vmatpush1.bf16.msra.mxu0 %v7928
      %8643 = vmatprep.subr.bf16.mxu0 0
      %8644 = vmatpush1.bf16.msra.mxu0 %v7929
      %8645 = vmatprep.subr.bf16.mxu0 0
      %8646 = vmatpush1.bf16.msra.mxu0 %v7930
      %8647 = vmatprep.subr.bf16.mxu0 0
      %8648 = vmatpush1.bf16.msra.mxu0 %v7931
      %8649 = vmatprep.subr.bf16.mxu0 0
      %8650 = vmatpush1.bf16.msra.mxu0 %v7932
      %8651 = vmatprep.subr.bf16.mxu0 0
      %8652 = vmatpush1.bf16.msra.mxu0 %v7933
      %8653 = vmatprep.subr.bf16.mxu0 0
      %8654 = vmatpush1.bf16.msra.mxu0 %v7934
      %8655 = vmatprep.subr.bf16.mxu0 0
      %8656 = vmatpush1.bf16.msra.mxu0 %v7935
      %8657 = vmatprep.subr.bf16.mxu0 0
      %8658 = vmatpush1.bf16.msra.mxu0 %v7936
      %8659 = vmatprep.subr.bf16.mxu0 0
      %8660 = vmatpush1.bf16.msra.mxu0 %v7937
      %8661 = vmatprep.subr.bf16.mxu0 0
      %8662 = vmatpush1.bf16.msra.mxu0 %v7938
      %8663 = vmatprep.subr.bf16.mxu0 0
      %8664 = vmatpush1.bf16.msra.mxu0 %v7939
      %8665 = vmatprep.subr.bf16.mxu0 0
      %8666 = vmatpush1.bf16.msra.mxu0 %v7940
      %8667 = vmatprep.subr.bf16.mxu0 0
      %8668 = vmatpush1.bf16.msra.mxu0 %v7941
      %8669 = vmatprep.subr.bf16.mxu0 0
      %8670 = vmatpush1.bf16.msra.mxu0 %v7942
      %8671 = vmatprep.mubr.bf16.mxu0 %v6839
      %8672 = vmatmul.mubr.bf16.gmra.mrb[0].mxu0 %v6838
      %v8673 = vpop.f32.mrb[0].mxu0
      %v8674 = vadd.f32 %v8506, %v8673
      %v8675 = vpop.f32.mrb[0].mxu0
      %v8676 = vpop.f32.mrb[0].mxu0
      %v8677 = vadd.f32 %v8509, %v8676
      %v8678 = vpop.f32.mrb[0].mxu0
      %8679 = vmatprep.mubr.bf16.mxu0 %v6855
      %8680 = vmatmul.mubr.bf16.gmra.mrb[0].mxu0 %v6854
      %v8681 = vpop.f32.mrb[0].mxu0
      %v8682 = vadd.f32 %v8514, %v8681
      %v8683 = vpop.f32.mrb[0].mxu0
      %v8684 = vpop.f32.mrb[0].mxu0
      %v8685 = vadd.f32 %v8517, %v8684
      %v8686 = vpop.f32.mrb[0].mxu0
      %8687 = vmatprep.mubr.bf16.mxu0 %v6871
      %8688 = vmatmul.mubr.bf16.gmra.mrb[0].mxu0 %v6870
      %v8689 = vpop.f32.mrb[0].mxu0
      %v8690 = vadd.f32 %v8522, %v8689
      %v8691 = vpop.f32.mrb[0].mxu0
      %v8692 = vpop.f32.mrb[0].mxu0
      %v8693 = vadd.f32 %v8525, %v8692
      %v8694 = vpop.f32.mrb[0].mxu0
      %8695 = vmatprep.mubr.bf16.mxu0 %v6887
      %8696 = vmatmul.mubr.bf16.gmra.mrb[0].mxu0 %v6886
      %v8697 = vpop.f32.mrb[0].mxu0
      %v8698 = vadd.f32 %v8530, %v8697
      %v8699 = vpop.f32.mrb[0].mxu0
      %v8700 = vpop.f32.mrb[0].mxu0
      %v8701 = vadd.f32 %v8533, %v8700
      %v8702 = vpop.f32.mrb[0].mxu0
      %8703 = vmatprep.mubr.bf16.mxu0 %v6903
      %8704 = vmatmul.mubr.bf16.gmra.mrb[0].mxu0 %v6902
      %v8705 = vpop.f32.mrb[0].mxu0
      %v8706 = vadd.f32 %v8538, %v8705
      %v8707 = vpop.f32.mrb[0].mxu0
      %v8708 = vpop.f32.mrb[0].mxu0
      %v8709 = vadd.f32 %v8541, %v8708
      %v8710 = vpop.f32.mrb[0].mxu0
      %8711 = vmatprep.mubr.bf16.mxu0 %v6919
      %8712 = vmatmul.mubr.bf16.gmra.mrb[0].mxu0 %v6918
      %v8713 = vpop.f32.mrb[0].mxu0
      %v8714 = vadd.f32 %v8546, %v8713
      %v8715 = vpop.f32.mrb[0].mxu0
      %v8716 = vpop.f32.mrb[0].mxu0
      %v8717 = vadd.f32 %v8549, %v8716
      %v8718 = vpop.f32.mrb[0].mxu0
      %8719 = vmatprep.mubr.bf16.mxu0 %v6935
      %8720 = vmatmul.mubr.bf16.gmra.mrb[0].mxu0 %v6934
      %v8721 = vpop.f32.mrb[0].mxu0
      %v8722 = vadd.f32 %v8554, %v8721
      %v8723 = vpop.f32.mrb[0].mxu0
      %v8724 = vpop.f32.mrb[0].mxu0
      %v8725 = vadd.f32 %v8557, %v8724
      %v8726 = vpop.f32.mrb[0].mxu0
      %8727 = vmatprep.mubr.bf16.mxu0 %v6951
      %8728 = vmatmul.mubr.bf16.gmra.mrb[0].mxu0 %v6950
      %v8729 = vpop.f32.mrb[0].mxu0
      %v8730 = vadd.f32 %v8562, %v8729
      %v8731 = vpop.f32.mrb[0].mxu0
      %v8732 = vpop.f32.mrb[0].mxu0
      %v8733 = vadd.f32 %v8565, %v8732
      %v8734 = vpop.f32.mrb[0].mxu0
      %8735 = vmatprep.mubr.bf16.mxu0 %v6967
      %8736 = vmatmul.mubr.bf16.gmra.mrb[0].mxu0 %v6966
      %v8737 = vpop.f32.mrb[0].mxu0
      %v8738 = vadd.f32 %v8570, %v8737
      %v8739 = vpop.f32.mrb[0].mxu0
      %v8740 = vpop.f32.mrb[0].mxu0
      %v8741 = vadd.f32 %v8573, %v8740
      %v8742 = vpop.f32.mrb[0].mxu0
      %8743 = vmatprep.mubr.bf16.mxu0 %v6983
      %8744 = vmatmul.mubr.bf16.gmra.mrb[0].mxu0 %v6982
      %v8745 = vpop.f32.mrb[0].mxu0
      %v8746 = vadd.f32 %v8578, %v8745
      %v8747 = vpop.f32.mrb[0].mxu0
      %v8748 = vpop.f32.mrb[0].mxu0
      %v8749 = vadd.f32 %v8581, %v8748
      %v8750 = vpop.f32.mrb[0].mxu0
      %8751 = vmatprep.mubr.bf16.mxu0 %v6999
      %8752 = vmatmul.mubr.bf16.gmra.mrb[0].mxu0 %v6998
      %v8753 = vpop.f32.mrb[0].mxu0
      %v8754 = vadd.f32 %v8586, %v8753
      %v8755 = vpop.f32.mrb[0].mxu0
      %v8756 = vpop.f32.mrb[0].mxu0
      %v8757 = vadd.f32 %v8589, %v8756
      %v8758 = vpop.f32.mrb[0].mxu0
      %8759 = vmatprep.mubr.bf16.mxu0 %v7015
      %8760 = vmatmul.mubr.bf16.gmra.mrb[0].mxu0 %v7014
      %v8761 = vpop.f32.mrb[0].mxu0
      %v8762 = vadd.f32 %v8594, %v8761
      %v8763 = vpop.f32.mrb[0].mxu0
      %v8764 = vpop.f32.mrb[0].mxu0
      %v8765 = vadd.f32 %v8597, %v8764
      %v8766 = vpop.f32.mrb[0].mxu0
      %8767 = vmatprep.mubr.bf16.mxu0 %v7031
      %8768 = vmatmul.mubr.bf16.gmra.mrb[0].mxu0 %v7030
      %v8769 = vpop.f32.mrb[0].mxu0
      %v8770 = vadd.f32 %v8602, %v8769
      %v8771 = vpop.f32.mrb[0].mxu0
      %v8772 = vpop.f32.mrb[0].mxu0
      %v8773 = vadd.f32 %v8605, %v8772
      %v8774 = vpop.f32.mrb[0].mxu0
      %8775 = vmatprep.mubr.bf16.mxu0 %v7047
      %8776 = vmatmul.mubr.bf16.gmra.mrb[0].mxu0 %v7046
      %v8777 = vpop.f32.mrb[0].mxu0
      %v8778 = vadd.f32 %v8610, %v8777
      %v8779 = vpop.f32.mrb[0].mxu0
      %v8780 = vpop.f32.mrb[0].mxu0
      %v8781 = vadd.f32 %v8613, %v8780
      %v8782 = vpop.f32.mrb[0].mxu0
      %8783 = vmatprep.mubr.bf16.mxu0 %v7063
      %8784 = vmatmul.mubr.bf16.gmra.mrb[0].mxu0 %v7062
      %v8785 = vpop.f32.mrb[0].mxu0
      %v8786 = vadd.f32 %v8618, %v8785
      %v8787 = vpop.f32.mrb[0].mxu0
      %v8788 = vpop.f32.mrb[0].mxu0
      %v8789 = vadd.f32 %v8621, %v8788
      %v8790 = vpop.f32.mrb[0].mxu0
      %8791 = vmatprep.mubr.bf16.mxu0 %v7079
      %8792 = vmatmul.mubr.bf16.gmra.mrb[0].mxu0 %v7078
      %v8793 = vpop.f32.mrb[0].mxu0
      %v8794 = vadd.f32 %v8626, %v8793
      %v8795 = vpop.f32.mrb[0].mxu0
      %v8796 = vpop.f32.mrb[0].mxu0
      %v8797 = vadd.f32 %v8629, %v8796
      %v8798 = vpop.f32.mrb[0].mxu0
      %8799 = vmatprep.mubr.bf16.mxu0 %v7095
      %8800 = vmatmul.mubr.bf16.gmra.mrb[0].mxu0 %v7094
      %v8801 = vpop.f32.mrb[0].mxu0
      %v8802 = vadd.f32 %v8634, %v8801
      %v8803 = vpop.f32.mrb[0].mxu0
      %v8804 = vpop.f32.mrb[0].mxu0
      %v8805 = vpop.f32.mrb[0].mxu0
      %8806 = vdwg.mxu0
      %8807 = vmatprep.subr.bf16.mxu0 0
      %8808 = vmatpush1.bf16.msra.mxu0 %v7943
      %8809 = vmatprep.subr.bf16.mxu0 0
      %8810 = vmatpush1.bf16.msra.mxu0 %v7944
      %8811 = vmatprep.subr.bf16.mxu0 0
      %8812 = vmatpush1.bf16.msra.mxu0 %v7945
      %8813 = vmatprep.subr.bf16.mxu0 0
      %8814 = vmatpush1.bf16.msra.mxu0 %v7946
      %8815 = vmatprep.subr.bf16.mxu0 0
      %8816 = vmatpush1.bf16.msra.mxu0 %v7947
      %8817 = vmatprep.subr.bf16.mxu0 0
      %8818 = vmatpush1.bf16.msra.mxu0 %v7948
      %8819 = vmatprep.subr.bf16.mxu0 0
      %8820 = vmatpush1.bf16.msra.mxu0 %v7949
      %8821 = vmatprep.subr.bf16.mxu0 0
      %8822 = vmatpush1.bf16.msra.mxu0 %v7950
      %8823 = vmatprep.subr.bf16.mxu0 0
      %8824 = vmatpush1.bf16.msra.mxu0 %v7951
      %8825 = vmatprep.subr.bf16.mxu0 0
      %8826 = vmatpush1.bf16.msra.mxu0 %v7952
      %8827 = vmatprep.subr.bf16.mxu0 0
      %8828 = vmatpush1.bf16.msra.mxu0 %v7953
      %8829 = vmatprep.subr.bf16.mxu0 0
      %8830 = vmatpush1.bf16.msra.mxu0 %v7954
      %8831 = vmatprep.subr.bf16.mxu0 0
      %8832 = vmatpush1.bf16.msra.mxu0 %v7955
      %8833 = vmatprep.subr.bf16.mxu0 0
      %8834 = vmatpush1.bf16.msra.mxu0 %v7956
      %8835 = vmatprep.subr.bf16.mxu0 0
      %8836 = vmatpush1.bf16.msra.mxu0 %v7957
      %8837 = vmatprep.subr.bf16.mxu0 0
      %8838 = vmatpush1.bf16.msra.mxu0 %v7958
      %8839 = vmatprep.mubr.bf16.mxu0 %v6841
      %8840 = vmatmul.mubr.bf16.gmra.mrb[0].mxu0 %v6840
      %v8841 = vpop.f32.mrb[0].mxu0
      %v8842 = vadd.f32 %v8674, %v8841
      %v8843 = vpop.f32.mrb[0].mxu0
      %v8844 = vpop.f32.mrb[0].mxu0
      %v8845 = vadd.f32 %v8677, %v8844
      %v8846 = vpop.f32.mrb[0].mxu0
      %8847 = vmatprep.mubr.bf16.mxu0 %v6857
      %8848 = vmatmul.mubr.bf16.gmra.mrb[0].mxu0 %v6856
      %v8849 = vpop.f32.mrb[0].mxu0
      %v8850 = vadd.f32 %v8682, %v8849
      %v8851 = vpop.f32.mrb[0].mxu0
      %v8852 = vpop.f32.mrb[0].mxu0
      %v8853 = vadd.f32 %v8685, %v8852
      %v8854 = vpop.f32.mrb[0].mxu0
      %8855 = vmatprep.mubr.bf16.mxu0 %v6873
      %8856 = vmatmul.mubr.bf16.gmra.mrb[0].mxu0 %v6872
      %v8857 = vpop.f32.mrb[0].mxu0
      %v8858 = vadd.f32 %v8690, %v8857
      %v8859 = vpop.f32.mrb[0].mxu0
      %v8860 = vpop.f32.mrb[0].mxu0
      %v8861 = vadd.f32 %v8693, %v8860
      %v8862 = vpop.f32.mrb[0].mxu0
      %8863 = vmatprep.mubr.bf16.mxu0 %v6889
      %8864 = vmatmul.mubr.bf16.gmra.mrb[0].mxu0 %v6888
      %v8865 = vpop.f32.mrb[0].mxu0
      %v8866 = vadd.f32 %v8698, %v8865
      %v8867 = vpop.f32.mrb[0].mxu0
      %v8868 = vpop.f32.mrb[0].mxu0
      %v8869 = vadd.f32 %v8701, %v8868
      %v8870 = vpop.f32.mrb[0].mxu0
      %8871 = vmatprep.mubr.bf16.mxu0 %v6905
      %8872 = vmatmul.mubr.bf16.gmra.mrb[0].mxu0 %v6904
      %v8873 = vpop.f32.mrb[0].mxu0
      %v8874 = vadd.f32 %v8706, %v8873
      %v8875 = vpop.f32.mrb[0].mxu0
      %v8876 = vpop.f32.mrb[0].mxu0
      %v8877 = vadd.f32 %v8709, %v8876
      %v8878 = vpop.f32.mrb[0].mxu0
      %8879 = vmatprep.mubr.bf16.mxu0 %v6921
      %8880 = vmatmul.mubr.bf16.gmra.mrb[0].mxu0 %v6920
      %v8881 = vpop.f32.mrb[0].mxu0
      %v8882 = vadd.f32 %v8714, %v8881
      %v8883 = vpop.f32.mrb[0].mxu0
      %v8884 = vpop.f32.mrb[0].mxu0
      %v8885 = vadd.f32 %v8717, %v8884
      %v8886 = vpop.f32.mrb[0].mxu0
      %8887 = vmatprep.mubr.bf16.mxu0 %v6937
      %8888 = vmatmul.mubr.bf16.gmra.mrb[0].mxu0 %v6936
      %v8889 = vpop.f32.mrb[0].mxu0
      %v8890 = vadd.f32 %v8722, %v8889
      %v8891 = vpop.f32.mrb[0].mxu0
      %v8892 = vpop.f32.mrb[0].mxu0
      %v8893 = vadd.f32 %v8725, %v8892
      %v8894 = vpop.f32.mrb[0].mxu0
      %8895 = vmatprep.mubr.bf16.mxu0 %v6953
      %8896 = vmatmul.mubr.bf16.gmra.mrb[0].mxu0 %v6952
      %v8897 = vpop.f32.mrb[0].mxu0
      %v8898 = vadd.f32 %v8730, %v8897
      %v8899 = vpop.f32.mrb[0].mxu0
      %v8900 = vpop.f32.mrb[0].mxu0
      %v8901 = vadd.f32 %v8733, %v8900
      %v8902 = vpop.f32.mrb[0].mxu0
      %8903 = vmatprep.mubr.bf16.mxu0 %v6969
      %8904 = vmatmul.mubr.bf16.gmra.mrb[0].mxu0 %v6968
      %v8905 = vpop.f32.mrb[0].mxu0
      %v8906 = vadd.f32 %v8738, %v8905
      %v8907 = vpop.f32.mrb[0].mxu0
      %v8908 = vpop.f32.mrb[0].mxu0
      %v8909 = vadd.f32 %v8741, %v8908
      %v8910 = vpop.f32.mrb[0].mxu0
      %8911 = vmatprep.mubr.bf16.mxu0 %v6985
      %8912 = vmatmul.mubr.bf16.gmra.mrb[0].mxu0 %v6984
      %v8913 = vpop.f32.mrb[0].mxu0
      %v8914 = vadd.f32 %v8746, %v8913
      %v8915 = vpop.f32.mrb[0].mxu0
      %v8916 = vpop.f32.mrb[0].mxu0
      %v8917 = vadd.f32 %v8749, %v8916
      %v8918 = vpop.f32.mrb[0].mxu0
      %8919 = vmatprep.mubr.bf16.mxu0 %v7001
      %8920 = vmatmul.mubr.bf16.gmra.mrb[0].mxu0 %v7000
      %v8921 = vpop.f32.mrb[0].mxu0
      %v8922 = vadd.f32 %v8754, %v8921
      %v8923 = vpop.f32.mrb[0].mxu0
      %v8924 = vpop.f32.mrb[0].mxu0
      %v8925 = vadd.f32 %v8757, %v8924
      %v8926 = vpop.f32.mrb[0].mxu0
      %8927 = vmatprep.mubr.bf16.mxu0 %v7017
      %8928 = vmatmul.mubr.bf16.gmra.mrb[0].mxu0 %v7016
      %v8929 = vpop.f32.mrb[0].mxu0
      %v8930 = vadd.f32 %v8762, %v8929
      %v8931 = vpop.f32.mrb[0].mxu0
      %v8932 = vpop.f32.mrb[0].mxu0
      %v8933 = vadd.f32 %v8765, %v8932
      %v8934 = vpop.f32.mrb[0].mxu0
      %8935 = vmatprep.mubr.bf16.mxu0 %v7033
      %8936 = vmatmul.mubr.bf16.gmra.mrb[0].mxu0 %v7032
      %v8937 = vpop.f32.mrb[0].mxu0
      %v8938 = vadd.f32 %v8770, %v8937
      %v8939 = vpop.f32.mrb[0].mxu0
      %v8940 = vpop.f32.mrb[0].mxu0
      %v8941 = vadd.f32 %v8773, %v8940
      %v8942 = vpop.f32.mrb[0].mxu0
      %8943 = vmatprep.mubr.bf16.mxu0 %v7049
      %8944 = vmatmul.mubr.bf16.gmra.mrb[0].mxu0 %v7048
      %v8945 = vpop.f32.mrb[0].mxu0
      %v8946 = vadd.f32 %v8778, %v8945
      %v8947 = vpop.f32.mrb[0].mxu0
      %v8948 = vpop.f32.mrb[0].mxu0
      %v8949 = vadd.f32 %v8781, %v8948
      %v8950 = vpop.f32.mrb[0].mxu0
      %8951 = vmatprep.mubr.bf16.mxu0 %v7065
      %8952 = vmatmul.mubr.bf16.gmra.mrb[0].mxu0 %v7064
      %v8953 = vpop.f32.mrb[0].mxu0
      %v8954 = vadd.f32 %v8786, %v8953
      %v8955 = vpop.f32.mrb[0].mxu0
      %v8956 = vpop.f32.mrb[0].mxu0
      %v8957 = vadd.f32 %v8789, %v8956
      %v8958 = vpop.f32.mrb[0].mxu0
      %8959 = vmatprep.mubr.bf16.mxu0 %v7081
      %8960 = vmatmul.mubr.bf16.gmra.mrb[0].mxu0 %v7080
      %v8961 = vpop.f32.mrb[0].mxu0
      %v8962 = vadd.f32 %v8794, %v8961
      %v8963 = vpop.f32.mrb[0].mxu0
      %v8964 = vpop.f32.mrb[0].mxu0
      %v8965 = vadd.f32 %v8797, %v8964
      %v8966 = vpop.f32.mrb[0].mxu0
      %8967 = vmatprep.mubr.bf16.mxu0 %v7097
      %8968 = vmatmul.mubr.bf16.gmra.mrb[0].mxu0 %v7096
      %v8969 = vpop.f32.mrb[0].mxu0
      %v8970 = vadd.f32 %v8802, %v8969
      %v8971 = vpop.f32.mrb[0].mxu0
      %v8972 = vpop.f32.mrb[0].mxu0
      %v8973 = vpop.f32.mrb[0].mxu0
      %8974 = vdwg.mxu0
      %8975 = vmatprep.subr.bf16.mxu0 0
      %8976 = vmatpush1.bf16.msra.mxu0 %v7959
      %8977 = vmatprep.subr.bf16.mxu0 0
      %8978 = vmatpush1.bf16.msra.mxu0 %v7960
      %8979 = vmatprep.subr.bf16.mxu0 0
      %8980 = vmatpush1.bf16.msra.mxu0 %v7961
      %8981 = vmatprep.subr.bf16.mxu0 0
      %8982 = vmatpush1.bf16.msra.mxu0 %v7962
      %8983 = vmatprep.subr.bf16.mxu0 0
      %8984 = vmatpush1.bf16.msra.mxu0 %v7963
      %8985 = vmatprep.subr.bf16.mxu0 0
      %8986 = vmatpush1.bf16.msra.mxu0 %v7964
      %8987 = vmatprep.subr.bf16.mxu0 0
      %8988 = vmatpush1.bf16.msra.mxu0 %v7965
      %8989 = vmatprep.subr.bf16.mxu0 0
      %8990 = vmatpush1.bf16.msra.mxu0 %v7966
      %8991 = vmatprep.subr.bf16.mxu0 0
      %8992 = vmatpush1.bf16.msra.mxu0 %v7967
      %8993 = vmatprep.subr.bf16.mxu0 0
      %8994 = vmatpush1.bf16.msra.mxu0 %v7968
      %8995 = vmatprep.subr.bf16.mxu0 0
      %8996 = vmatpush1.bf16.msra.mxu0 %v7969
      %8997 = vmatprep.subr.bf16.mxu0 0
      %8998 = vmatpush1.bf16.msra.mxu0 %v7970
      %8999 = vmatprep.subr.bf16.mxu0 0
      %9000 = vmatpush1.bf16.msra.mxu0 %v7971
      %9001 = vmatprep.subr.bf16.mxu0 0
      %9002 = vmatpush1.bf16.msra.mxu0 %v7972
      %9003 = vmatprep.subr.bf16.mxu0 0
      %9004 = vmatpush1.bf16.msra.mxu0 %v7973
      %9005 = vmatprep.subr.bf16.mxu0 0
      %9006 = vmatpush1.bf16.msra.mxu0 %v7974
      %9007 = vmatprep.mubr.bf16.mxu0 %v6843
      %9008 = vmatmul.mubr.bf16.gmra.mrb[0].mxu0 %v6842
      %v9009 = vpop.f32.mrb[0].mxu0
      %v9010 = vadd.f32 %v8842, %v9009
      %v9011 = vpop.f32.mrb[0].mxu0
      %v9012 = vpop.f32.mrb[0].mxu0
      %v9013 = vadd.f32 %v8845, %v9012
      %v9014 = vpop.f32.mrb[0].mxu0
      %9015 = vmatprep.mubr.bf16.mxu0 %v6859
      %9016 = vmatmul.mubr.bf16.gmra.mrb[0].mxu0 %v6858
      %v9017 = vpop.f32.mrb[0].mxu0
      %v9018 = vadd.f32 %v8850, %v9017
      %v9019 = vpop.f32.mrb[0].mxu0
      %v9020 = vpop.f32.mrb[0].mxu0
      %v9021 = vadd.f32 %v8853, %v9020
      %v9022 = vpop.f32.mrb[0].mxu0
      %9023 = vmatprep.mubr.bf16.mxu0 %v6875
      %9024 = vmatmul.mubr.bf16.gmra.mrb[0].mxu0 %v6874
      %v9025 = vpop.f32.mrb[0].mxu0
      %v9026 = vadd.f32 %v8858, %v9025
      %v9027 = vpop.f32.mrb[0].mxu0
      %v9028 = vpop.f32.mrb[0].mxu0
      %v9029 = vadd.f32 %v8861, %v9028
      %v9030 = vpop.f32.mrb[0].mxu0
      %9031 = vmatprep.mubr.bf16.mxu0 %v6891
      %9032 = vmatmul.mubr.bf16.gmra.mrb[0].mxu0 %v6890
      %v9033 = vpop.f32.mrb[0].mxu0
      %v9034 = vadd.f32 %v8866, %v9033
      %v9035 = vpop.f32.mrb[0].mxu0
      %v9036 = vpop.f32.mrb[0].mxu0
      %v9037 = vadd.f32 %v8869, %v9036
      %v9038 = vpop.f32.mrb[0].mxu0
      %9039 = vmatprep.mubr.bf16.mxu0 %v6907
      %9040 = vmatmul.mubr.bf16.gmra.mrb[0].mxu0 %v6906
      %v9041 = vpop.f32.mrb[0].mxu0
      %v9042 = vadd.f32 %v8874, %v9041
      %v9043 = vpop.f32.mrb[0].mxu0
      %v9044 = vpop.f32.mrb[0].mxu0
      %v9045 = vadd.f32 %v8877, %v9044
      %v9046 = vpop.f32.mrb[0].mxu0
      %9047 = vmatprep.mubr.bf16.mxu0 %v6923
      %9048 = vmatmul.mubr.bf16.gmra.mrb[0].mxu0 %v6922
      %v9049 = vpop.f32.mrb[0].mxu0
      %v9050 = vadd.f32 %v8882, %v9049
      %v9051 = vpop.f32.mrb[0].mxu0
      %v9052 = vpop.f32.mrb[0].mxu0
      %v9053 = vadd.f32 %v8885, %v9052
      %v9054 = vpop.f32.mrb[0].mxu0
      %9055 = vmatprep.mubr.bf16.mxu0 %v6939
      %9056 = vmatmul.mubr.bf16.gmra.mrb[0].mxu0 %v6938
      %v9057 = vpop.f32.mrb[0].mxu0
      %v9058 = vadd.f32 %v8890, %v9057
      %v9059 = vpop.f32.mrb[0].mxu0
      %v9060 = vpop.f32.mrb[0].mxu0
      %v9061 = vadd.f32 %v8893, %v9060
      %v9062 = vpop.f32.mrb[0].mxu0
      %9063 = vmatprep.mubr.bf16.mxu0 %v6955
      %9064 = vmatmul.mubr.bf16.gmra.mrb[0].mxu0 %v6954
      %v9065 = vpop.f32.mrb[0].mxu0
      %v9066 = vadd.f32 %v8898, %v9065
      %v9067 = vpop.f32.mrb[0].mxu0
      %v9068 = vpop.f32.mrb[0].mxu0
      %v9069 = vadd.f32 %v8901, %v9068
      %v9070 = vpop.f32.mrb[0].mxu0
      %9071 = vmatprep.mubr.bf16.mxu0 %v6971
      %9072 = vmatmul.mubr.bf16.gmra.mrb[0].mxu0 %v6970
      %v9073 = vpop.f32.mrb[0].mxu0
      %v9074 = vadd.f32 %v8906, %v9073
      %v9075 = vpop.f32.mrb[0].mxu0
      %v9076 = vpop.f32.mrb[0].mxu0
      %v9077 = vadd.f32 %v8909, %v9076
      %v9078 = vpop.f32.mrb[0].mxu0
      %9079 = vmatprep.mubr.bf16.mxu0 %v6987
      %9080 = vmatmul.mubr.bf16.gmra.mrb[0].mxu0 %v6986
      %v9081 = vpop.f32.mrb[0].mxu0
      %v9082 = vadd.f32 %v8914, %v9081
      %v9083 = vpop.f32.mrb[0].mxu0
      %v9084 = vpop.f32.mrb[0].mxu0
      %v9085 = vadd.f32 %v8917, %v9084
      %v9086 = vpop.f32.mrb[0].mxu0
      %9087 = vmatprep.mubr.bf16.mxu0 %v7003
      %9088 = vmatmul.mubr.bf16.gmra.mrb[0].mxu0 %v7002
      %v9089 = vpop.f32.mrb[0].mxu0
      %v9090 = vadd.f32 %v8922, %v9089
      %v9091 = vpop.f32.mrb[0].mxu0
      %v9092 = vpop.f32.mrb[0].mxu0
      %v9093 = vadd.f32 %v8925, %v9092
      %v9094 = vpop.f32.mrb[0].mxu0
      %9095 = vmatprep.mubr.bf16.mxu0 %v7019
      %9096 = vmatmul.mubr.bf16.gmra.mrb[0].mxu0 %v7018
      %v9097 = vpop.f32.mrb[0].mxu0
      %v9098 = vadd.f32 %v8930, %v9097
      %v9099 = vpop.f32.mrb[0].mxu0
      %v9100 = vpop.f32.mrb[0].mxu0
      %v9101 = vadd.f32 %v8933, %v9100
      %v9102 = vpop.f32.mrb[0].mxu0
      %9103 = vmatprep.mubr.bf16.mxu0 %v7035
      %9104 = vmatmul.mubr.bf16.gmra.mrb[0].mxu0 %v7034
      %v9105 = vpop.f32.mrb[0].mxu0
      %v9106 = vadd.f32 %v8938, %v9105
      %v9107 = vpop.f32.mrb[0].mxu0
      %v9108 = vpop.f32.mrb[0].mxu0
      %v9109 = vadd.f32 %v8941, %v9108
      %v9110 = vpop.f32.mrb[0].mxu0
      %9111 = vmatprep.mubr.bf16.mxu0 %v7051
      %9112 = vmatmul.mubr.bf16.gmra.mrb[0].mxu0 %v7050
      %v9113 = vpop.f32.mrb[0].mxu0
      %v9114 = vadd.f32 %v8946, %v9113
      %v9115 = vpop.f32.mrb[0].mxu0
      %v9116 = vpop.f32.mrb[0].mxu0
      %v9117 = vadd.f32 %v8949, %v9116
      %v9118 = vpop.f32.mrb[0].mxu0
      %9119 = vmatprep.mubr.bf16.mxu0 %v7067
      %9120 = vmatmul.mubr.bf16.gmra.mrb[0].mxu0 %v7066
      %v9121 = vpop.f32.mrb[0].mxu0
      %v9122 = vadd.f32 %v8954, %v9121
      %v9123 = vpop.f32.mrb[0].mxu0
      %v9124 = vpop.f32.mrb[0].mxu0
      %v9125 = vadd.f32 %v8957, %v9124
      %v9126 = vpop.f32.mrb[0].mxu0
      %9127 = vmatprep.mubr.bf16.mxu0 %v7083
      %9128 = vmatmul.mubr.bf16.gmra.mrb[0].mxu0 %v7082
      %v9129 = vpop.f32.mrb[0].mxu0
      %v9130 = vadd.f32 %v8962, %v9129
      %v9131 = vpop.f32.mrb[0].mxu0
      %v9132 = vpop.f32.mrb[0].mxu0
      %v9133 = vadd.f32 %v8965, %v9132
      %v9134 = vpop.f32.mrb[0].mxu0
      %9135 = vmatprep.mubr.bf16.mxu0 %v7099
      %9136 = vmatmul.mubr.bf16.gmra.mrb[0].mxu0 %v7098
      %v9137 = vpop.f32.mrb[0].mxu0
      %v9138 = vadd.f32 %v8970, %v9137
      %v9139 = vpop.f32.mrb[0].mxu0
      %v9140 = vpop.f32.mrb[0].mxu0
      %v9141 = vpop.f32.mrb[0].mxu0
      %9142 = vdwg.mxu0
      %9143 = vmatprep.subr.bf16.mxu0 0
      %9144 = vmatpush1.bf16.msra.mxu0 %v7975
      %9145 = vmatprep.subr.bf16.mxu0 0
      %9146 = vmatpush1.bf16.msra.mxu0 %v7976
      %9147 = vmatprep.subr.bf16.mxu0 0
      %9148 = vmatpush1.bf16.msra.mxu0 %v7977
      %9149 = vmatprep.subr.bf16.mxu0 0
      %9150 = vmatpush1.bf16.msra.mxu0 %v7978
      %9151 = vmatprep.subr.bf16.mxu0 0
      %9152 = vmatpush1.bf16.msra.mxu0 %v7979
      %9153 = vmatprep.subr.bf16.mxu0 0
      %9154 = vmatpush1.bf16.msra.mxu0 %v7980
      %9155 = vmatprep.subr.bf16.mxu0 0
      %9156 = vmatpush1.bf16.msra.mxu0 %v7981
      %9157 = vmatprep.subr.bf16.mxu0 0
      %9158 = vmatpush1.bf16.msra.mxu0 %v7982
      %9159 = vmatprep.subr.bf16.mxu0 0
      %9160 = vmatpush1.bf16.msra.mxu0 %v7983
      %9161 = vmatprep.subr.bf16.mxu0 0
      %9162 = vmatpush1.bf16.msra.mxu0 %v7984
      %9163 = vmatprep.subr.bf16.mxu0 0
      %9164 = vmatpush1.bf16.msra.mxu0 %v7985
      %9165 = vmatprep.subr.bf16.mxu0 0
      %9166 = vmatpush1.bf16.msra.mxu0 %v7986
      %9167 = vmatprep.subr.bf16.mxu0 0
      %9168 = vmatpush1.bf16.msra.mxu0 %v7987
      %9169 = vmatprep.subr.bf16.mxu0 0
      %9170 = vmatpush1.bf16.msra.mxu0 %v7988
      %9171 = vmatprep.subr.bf16.mxu0 0
      %9172 = vmatpush1.bf16.msra.mxu0 %v7989
      %9173 = vmatprep.subr.bf16.mxu0 0
      %9174 = vmatpush1.bf16.msra.mxu0 %v7990
      %9175 = vmatprep.mubr.bf16.mxu0 %v6845
      %9176 = vmatmul.mubr.bf16.gmra.mrb[0].mxu0 %v6844
      %v9177 = vpop.f32.mrb[0].mxu0
      %v9178 = vadd.f32 %v9010, %v9177
      %v9179 = vpop.f32.mrb[0].mxu0
      %v9180 = vpop.f32.mrb[0].mxu0
      %v9181 = vadd.f32 %v9013, %v9180
      %v9182 = vpop.f32.mrb[0].mxu0
      %9183 = vmatprep.mubr.bf16.mxu0 %v6861
      %9184 = vmatmul.mubr.bf16.gmra.mrb[0].mxu0 %v6860
      %v9185 = vpop.f32.mrb[0].mxu0
      %v9186 = vadd.f32 %v9018, %v9185
      %v9187 = vpop.f32.mrb[0].mxu0
      %v9188 = vpop.f32.mrb[0].mxu0
      %v9189 = vadd.f32 %v9021, %v9188
      %v9190 = vpop.f32.mrb[0].mxu0
      %9191 = vmatprep.mubr.bf16.mxu0 %v6877
      %9192 = vmatmul.mubr.bf16.gmra.mrb[0].mxu0 %v6876
      %v9193 = vpop.f32.mrb[0].mxu0
      %v9194 = vadd.f32 %v9026, %v9193
      %v9195 = vpop.f32.mrb[0].mxu0
      %v9196 = vpop.f32.mrb[0].mxu0
      %v9197 = vadd.f32 %v9029, %v9196
      %v9198 = vpop.f32.mrb[0].mxu0
      %9199 = vmatprep.mubr.bf16.mxu0 %v6893
      %9200 = vmatmul.mubr.bf16.gmra.mrb[0].mxu0 %v6892
      %v9201 = vpop.f32.mrb[0].mxu0
      %v9202 = vadd.f32 %v9034, %v9201
      %v9203 = vpop.f32.mrb[0].mxu0
      %v9204 = vpop.f32.mrb[0].mxu0
      %v9205 = vadd.f32 %v9037, %v9204
      %v9206 = vpop.f32.mrb[0].mxu0
      %9207 = vmatprep.mubr.bf16.mxu0 %v6909
      %9208 = vmatmul.mubr.bf16.gmra.mrb[0].mxu0 %v6908
      %v9209 = vpop.f32.mrb[0].mxu0
      %v9210 = vadd.f32 %v9042, %v9209
      %v9211 = vpop.f32.mrb[0].mxu0
      %v9212 = vpop.f32.mrb[0].mxu0
      %v9213 = vadd.f32 %v9045, %v9212
      %v9214 = vpop.f32.mrb[0].mxu0
      %9215 = vmatprep.mubr.bf16.mxu0 %v6925
      %9216 = vmatmul.mubr.bf16.gmra.mrb[0].mxu0 %v6924
      %v9217 = vpop.f32.mrb[0].mxu0
      %v9218 = vadd.f32 %v9050, %v9217
      %v9219 = vpop.f32.mrb[0].mxu0
      %v9220 = vpop.f32.mrb[0].mxu0
      %v9221 = vadd.f32 %v9053, %v9220
      %v9222 = vpop.f32.mrb[0].mxu0
      %9223 = vmatprep.mubr.bf16.mxu0 %v6941
      %9224 = vmatmul.mubr.bf16.gmra.mrb[0].mxu0 %v6940
      %v9225 = vpop.f32.mrb[0].mxu0
      %v9226 = vadd.f32 %v9058, %v9225
      %v9227 = vpop.f32.mrb[0].mxu0
      %v9228 = vpop.f32.mrb[0].mxu0
      %v9229 = vadd.f32 %v9061, %v9228
      %v9230 = vpop.f32.mrb[0].mxu0
      %9231 = vmatprep.mubr.bf16.mxu0 %v6957
      %9232 = vmatmul.mubr.bf16.gmra.mrb[0].mxu0 %v6956
      %v9233 = vpop.f32.mrb[0].mxu0
      %v9234 = vadd.f32 %v9066, %v9233
      %v9235 = vpop.f32.mrb[0].mxu0
      %v9236 = vpop.f32.mrb[0].mxu0
      %v9237 = vadd.f32 %v9069, %v9236
      %v9238 = vpop.f32.mrb[0].mxu0
      %9239 = vmatprep.mubr.bf16.mxu0 %v6973
      %9240 = vmatmul.mubr.bf16.gmra.mrb[0].mxu0 %v6972
      %v9241 = vpop.f32.mrb[0].mxu0
      %v9242 = vadd.f32 %v9074, %v9241
      %v9243 = vpop.f32.mrb[0].mxu0
      %v9244 = vpop.f32.mrb[0].mxu0
      %v9245 = vadd.f32 %v9077, %v9244
      %v9246 = vpop.f32.mrb[0].mxu0
      %9247 = vmatprep.mubr.bf16.mxu0 %v6989
      %9248 = vmatmul.mubr.bf16.gmra.mrb[0].mxu0 %v6988
      %v9249 = vpop.f32.mrb[0].mxu0
      %v9250 = vadd.f32 %v9082, %v9249
      %v9251 = vpop.f32.mrb[0].mxu0
      %v9252 = vpop.f32.mrb[0].mxu0
      %v9253 = vadd.f32 %v9085, %v9252
      %v9254 = vpop.f32.mrb[0].mxu0
      %9255 = vmatprep.mubr.bf16.mxu0 %v7005
      %9256 = vmatmul.mubr.bf16.gmra.mrb[0].mxu0 %v7004
      %v9257 = vpop.f32.mrb[0].mxu0
      %v9258 = vadd.f32 %v9090, %v9257
      %v9259 = vpop.f32.mrb[0].mxu0
      %v9260 = vpop.f32.mrb[0].mxu0
      %v9261 = vadd.f32 %v9093, %v9260
      %v9262 = vpop.f32.mrb[0].mxu0
      %9263 = vmatprep.mubr.bf16.mxu0 %v7021
      %9264 = vmatmul.mubr.bf16.gmra.mrb[0].mxu0 %v7020
      %v9265 = vpop.f32.mrb[0].mxu0
      %v9266 = vadd.f32 %v9098, %v9265
      %v9267 = vpop.f32.mrb[0].mxu0
      %v9268 = vpop.f32.mrb[0].mxu0
      %v9269 = vadd.f32 %v9101, %v9268
      %v9270 = vpop.f32.mrb[0].mxu0
      %9271 = vmatprep.mubr.bf16.mxu0 %v7037
      %9272 = vmatmul.mubr.bf16.gmra.mrb[0].mxu0 %v7036
      %v9273 = vpop.f32.mrb[0].mxu0
      %v9274 = vadd.f32 %v9106, %v9273
      %v9275 = vpop.f32.mrb[0].mxu0
      %v9276 = vpop.f32.mrb[0].mxu0
      %v9277 = vadd.f32 %v9109, %v9276
      %v9278 = vpop.f32.mrb[0].mxu0
      %9279 = vmatprep.mubr.bf16.mxu0 %v7053
      %9280 = vmatmul.mubr.bf16.gmra.mrb[0].mxu0 %v7052
      %v9281 = vpop.f32.mrb[0].mxu0
      %v9282 = vadd.f32 %v9114, %v9281
      %v9283 = vpop.f32.mrb[0].mxu0
      %v9284 = vpop.f32.mrb[0].mxu0
      %v9285 = vadd.f32 %v9117, %v9284
      %v9286 = vpop.f32.mrb[0].mxu0
      %9287 = vmatprep.mubr.bf16.mxu0 %v7069
      %9288 = vmatmul.mubr.bf16.gmra.mrb[0].mxu0 %v7068
      %v9289 = vpop.f32.mrb[0].mxu0
      %v9290 = vadd.f32 %v9122, %v9289
      %v9291 = vpop.f32.mrb[0].mxu0
      %v9292 = vpop.f32.mrb[0].mxu0
      %v9293 = vadd.f32 %v9125, %v9292
      %v9294 = vpop.f32.mrb[0].mxu0
      %9295 = vmatprep.mubr.bf16.mxu0 %v7085
      %9296 = vmatmul.mubr.bf16.gmra.mrb[0].mxu0 %v7084
      %v9297 = vpop.f32.mrb[0].mxu0
      %v9298 = vadd.f32 %v9130, %v9297
      %v9299 = vpop.f32.mrb[0].mxu0
      %v9300 = vpop.f32.mrb[0].mxu0
      %v9301 = vadd.f32 %v9133, %v9300
      %v9302 = vpop.f32.mrb[0].mxu0
      %9303 = vmatprep.mubr.bf16.mxu0 %v7101
      %9304 = vmatmul.mubr.bf16.gmra.mrb[0].mxu0 %v7100
      %v9305 = vpop.f32.mrb[0].mxu0
      %v9306 = vadd.f32 %v9138, %v9305
      %v9307 = vpop.f32.mrb[0].mxu0
      %v9308 = vpop.f32.mrb[0].mxu0
      %v9309 = vpop.f32.mrb[0].mxu0
      %9310 = vdwg.mxu0
      %9311 = vmatprep.subr.bf16.mxu0 0
      %9312 = vmatpush1.bf16.msra.mxu0 %v7991
      %9313 = vmatprep.subr.bf16.mxu0 0
      %9314 = vmatpush1.bf16.msra.mxu0 %v7992
      %9315 = vmatprep.subr.bf16.mxu0 0
      %9316 = vmatpush1.bf16.msra.mxu0 %v7993
      %9317 = vmatprep.subr.bf16.mxu0 0
      %9318 = vmatpush1.bf16.msra.mxu0 %v7994
      %9319 = vmatprep.subr.bf16.mxu0 0
      %9320 = vmatpush1.bf16.msra.mxu0 %v7995
      %9321 = vmatprep.subr.bf16.mxu0 0
      %9322 = vmatpush1.bf16.msra.mxu0 %v7996
      %9323 = vmatprep.subr.bf16.mxu0 0
      %9324 = vmatpush1.bf16.msra.mxu0 %v7997
      %9325 = vmatprep.subr.bf16.mxu0 0
      %9326 = vmatpush1.bf16.msra.mxu0 %v7998
      %9327 = vmatprep.subr.bf16.mxu0 0
      %9328 = vmatpush1.bf16.msra.mxu0 %v7999
      %9329 = vmatprep.subr.bf16.mxu0 0
      %9330 = vmatpush1.bf16.msra.mxu0 %v8000
      %9331 = vmatprep.subr.bf16.mxu0 0
      %9332 = vmatpush1.bf16.msra.mxu0 %v8001
      %9333 = vmatprep.subr.bf16.mxu0 0
      %9334 = vmatpush1.bf16.msra.mxu0 %v8002
      %9335 = vmatprep.subr.bf16.mxu0 0
      %9336 = vmatpush1.bf16.msra.mxu0 %v8003
      %9337 = vmatprep.subr.bf16.mxu0 0
      %9338 = vmatpush1.bf16.msra.mxu0 %v8004
      %9339 = vmatprep.subr.bf16.mxu0 0
      %9340 = vmatpush1.bf16.msra.mxu0 %v8005
      %9341 = vmatprep.subr.bf16.mxu0 0
      %9342 = vmatpush1.bf16.msra.mxu0 %v8006
      %9343 = vmatprep.mubr.bf16.mxu0 %v6847
      %9344 = vmatmul.mubr.bf16.gmra.mrb[0].mxu0 %v6846
      %v9345 = vpop.f32.mrb[0].mxu0
      %v9346 = vadd.f32 %v9178, %v9345
      %v9347 = vpop.f32.mrb[0].mxu0
      %v9348 = vpop.f32.mrb[0].mxu0
      %v9349 = vadd.f32 %v9181, %v9348
      %v9350 = vpop.f32.mrb[0].mxu0
      %9351 = vmatprep.mubr.bf16.mxu0 %v6863
      %9352 = vmatmul.mubr.bf16.gmra.mrb[0].mxu0 %v6862
      %v9353 = vpop.f32.mrb[0].mxu0
      %v9354 = vadd.f32 %v9186, %v9353
      %v9355 = vpop.f32.mrb[0].mxu0
      %v9356 = vpop.f32.mrb[0].mxu0
      %v9357 = vadd.f32 %v9189, %v9356
      %v9358 = vpop.f32.mrb[0].mxu0
      %9359 = vmatprep.mubr.bf16.mxu0 %v6879
      %9360 = vmatmul.mubr.bf16.gmra.mrb[0].mxu0 %v6878
      %v9361 = vpop.f32.mrb[0].mxu0
      %v9362 = vadd.f32 %v9194, %v9361
      %v9363 = vpop.f32.mrb[0].mxu0
      %v9364 = vpop.f32.mrb[0].mxu0
      %v9365 = vadd.f32 %v9197, %v9364
      %v9366 = vpop.f32.mrb[0].mxu0
      %9367 = vmatprep.mubr.bf16.mxu0 %v6895
      %9368 = vmatmul.mubr.bf16.gmra.mrb[0].mxu0 %v6894
      %v9369 = vpop.f32.mrb[0].mxu0
      %v9370 = vadd.f32 %v9202, %v9369
      %v9371 = vpop.f32.mrb[0].mxu0
      %v9372 = vpop.f32.mrb[0].mxu0
      %v9373 = vadd.f32 %v9205, %v9372
      %v9374 = vpop.f32.mrb[0].mxu0
      %9375 = vmatprep.mubr.bf16.mxu0 %v6911
      %9376 = vmatmul.mubr.bf16.gmra.mrb[0].mxu0 %v6910
      %v9377 = vpop.f32.mrb[0].mxu0
      %v9378 = vadd.f32 %v9210, %v9377
      %v9379 = vpop.f32.mrb[0].mxu0
      %v9380 = vpop.f32.mrb[0].mxu0
      %v9381 = vadd.f32 %v9213, %v9380
      %v9382 = vpop.f32.mrb[0].mxu0
      %9383 = vmatprep.mubr.bf16.mxu0 %v6927
      %9384 = vmatmul.mubr.bf16.gmra.mrb[0].mxu0 %v6926
      %v9385 = vpop.f32.mrb[0].mxu0
      %v9386 = vadd.f32 %v9218, %v9385
      %v9387 = vpop.f32.mrb[0].mxu0
      %v9388 = vpop.f32.mrb[0].mxu0
      %v9389 = vadd.f32 %v9221, %v9388
      %v9390 = vpop.f32.mrb[0].mxu0
      %9391 = vmatprep.mubr.bf16.mxu0 %v6943
      %9392 = vmatmul.mubr.bf16.gmra.mrb[0].mxu0 %v6942
      %v9393 = vpop.f32.mrb[0].mxu0
      %v9394 = vadd.f32 %v9226, %v9393
      %v9395 = vpop.f32.mrb[0].mxu0
      %v9396 = vpop.f32.mrb[0].mxu0
      %v9397 = vadd.f32 %v9229, %v9396
      %v9398 = vpop.f32.mrb[0].mxu0
      %9399 = vmatprep.mubr.bf16.mxu0 %v6959
      %9400 = vmatmul.mubr.bf16.gmra.mrb[0].mxu0 %v6958
      %v9401 = vpop.f32.mrb[0].mxu0
      %v9402 = vadd.f32 %v9234, %v9401
      %v9403 = vpop.f32.mrb[0].mxu0
      %v9404 = vpop.f32.mrb[0].mxu0
      %v9405 = vadd.f32 %v9237, %v9404
      %v9406 = vpop.f32.mrb[0].mxu0
      %9407 = vmatprep.mubr.bf16.mxu0 %v6975
      %9408 = vmatmul.mubr.bf16.gmra.mrb[0].mxu0 %v6974
      %v9409 = vpop.f32.mrb[0].mxu0
      %v9410 = vadd.f32 %v9242, %v9409
      %v9411 = vpop.f32.mrb[0].mxu0
      %v9412 = vpop.f32.mrb[0].mxu0
      %v9413 = vadd.f32 %v9245, %v9412
      %v9414 = vpop.f32.mrb[0].mxu0
      %9415 = vmatprep.mubr.bf16.mxu0 %v6991
      %9416 = vmatmul.mubr.bf16.gmra.mrb[0].mxu0 %v6990
      %v9417 = vpop.f32.mrb[0].mxu0
      %v9418 = vadd.f32 %v9250, %v9417
      %v9419 = vpop.f32.mrb[0].mxu0
      %v9420 = vpop.f32.mrb[0].mxu0
      %v9421 = vadd.f32 %v9253, %v9420
      %v9422 = vpop.f32.mrb[0].mxu0
      %9423 = vmatprep.mubr.bf16.mxu0 %v7007
      %9424 = vmatmul.mubr.bf16.gmra.mrb[0].mxu0 %v7006
      %v9425 = vpop.f32.mrb[0].mxu0
      %v9426 = vadd.f32 %v9258, %v9425
      %v9427 = vpop.f32.mrb[0].mxu0
      %v9428 = vpop.f32.mrb[0].mxu0
      %v9429 = vadd.f32 %v9261, %v9428
      %v9430 = vpop.f32.mrb[0].mxu0
      %9431 = vmatprep.mubr.bf16.mxu0 %v7023
      %9432 = vmatmul.mubr.bf16.gmra.mrb[0].mxu0 %v7022
      %v9433 = vpop.f32.mrb[0].mxu0
      %v9434 = vadd.f32 %v9266, %v9433
      %v9435 = vpop.f32.mrb[0].mxu0
      %v9436 = vpop.f32.mrb[0].mxu0
      %v9437 = vadd.f32 %v9269, %v9436
      %v9438 = vpop.f32.mrb[0].mxu0
      %9439 = vmatprep.mubr.bf16.mxu0 %v7039
      %9440 = vmatmul.mubr.bf16.gmra.mrb[0].mxu0 %v7038
      %v9441 = vpop.f32.mrb[0].mxu0
      %v9442 = vadd.f32 %v9274, %v9441
      %v9443 = vpop.f32.mrb[0].mxu0
      %v9444 = vpop.f32.mrb[0].mxu0
      %v9445 = vadd.f32 %v9277, %v9444
      %v9446 = vpop.f32.mrb[0].mxu0
      %9447 = vmatprep.mubr.bf16.mxu0 %v7055
      %9448 = vmatmul.mubr.bf16.gmra.mrb[0].mxu0 %v7054
      %v9449 = vpop.f32.mrb[0].mxu0
      %v9450 = vadd.f32 %v9282, %v9449
      %v9451 = vpop.f32.mrb[0].mxu0
      %v9452 = vpop.f32.mrb[0].mxu0
      %v9453 = vadd.f32 %v9285, %v9452
      %v9454 = vpop.f32.mrb[0].mxu0
      %9455 = vmatprep.mubr.bf16.mxu0 %v7071
      %9456 = vmatmul.mubr.bf16.gmra.mrb[0].mxu0 %v7070
      %v9457 = vpop.f32.mrb[0].mxu0
      %v9458 = vadd.f32 %v9290, %v9457
      %v9459 = vpop.f32.mrb[0].mxu0
      %v9460 = vpop.f32.mrb[0].mxu0
      %v9461 = vadd.f32 %v9293, %v9460
      %v9462 = vpop.f32.mrb[0].mxu0
      %9463 = vmatprep.mubr.bf16.mxu0 %v7087
      %9464 = vmatmul.mubr.bf16.gmra.mrb[0].mxu0 %v7086
      %v9465 = vpop.f32.mrb[0].mxu0
      %v9466 = vadd.f32 %v9298, %v9465
      %v9467 = vpop.f32.mrb[0].mxu0
      %v9468 = vpop.f32.mrb[0].mxu0
      %v9469 = vadd.f32 %v9301, %v9468
      %v9470 = vpop.f32.mrb[0].mxu0
      %9471 = vmatprep.mubr.bf16.mxu0 %v7103
      %9472 = vmatmul.mubr.bf16.gmra.mrb[0].mxu0 %v7102
      %v9473 = vpop.f32.mrb[0].mxu0
      %v9474 = vadd.f32 %v9306, %v9473
      %v9475 = vpop.f32.mrb[0].mxu0
      %v9476 = vpop.f32.mrb[0].mxu0
      %v9477 = vpop.f32.mrb[0].mxu0
      %9478 = vdwg.mxu0
      %v9479 = vadd.f32 %v4191, %v9346
      %v9480 = vadd.f32 %v4192, %v9349
      %v9481 = vadd.f32 %v4193, %v9354
      %v9482 = vadd.f32 %v4194, %v9357
      %v9483 = vadd.f32 %v4195, %v9362
      %v9484 = vadd.f32 %v4196, %v9365
      %v9485 = vadd.f32 %v4197, %v9370
      %v9486 = vadd.f32 %v4198, %v9373
      %v9487 = vadd.f32 %v4199, %v9378
      %v9488 = vadd.f32 %v4200, %v9381
      %v9489 = vadd.f32 %v4201, %v9386
      %v9490 = vadd.f32 %v4202, %v9389
      %v9491 = vadd.f32 %v4203, %v9394
      %v9492 = vadd.f32 %v4204, %v9397
      %v9493 = vadd.f32 %v4205, %v9402
      %v9494 = vadd.f32 %v4206, %v9405
      %v9495 = vadd.f32 %v4207, %v9410
      %v9496 = vadd.f32 %v4208, %v9413
      %v9497 = vadd.f32 %v4209, %v9418
      %v9498 = vadd.f32 %v4210, %v9421
      %v9499 = vadd.f32 %v4211, %v9426
      %v9500 = vadd.f32 %v4212, %v9429
      %v9501 = vadd.f32 %v4213, %v9434
      %v9502 = vadd.f32 %v4214, %v9437
      %v9503 = vadd.f32 %v4215, %v9442
      %v9504 = vadd.f32 %v4216, %v9445
      %v9505 = vadd.f32 %v4217, %v9450
      %v9506 = vadd.f32 %v4218, %v9453
      %v9507 = vadd.f32 %v4219, %v9458
      %v9508 = vadd.f32 %v4220, %v9461
      %v9509 = vadd.f32 %v4221, %v9466
      %v9510 = vadd.f32 %v4222, %v9469
      %v9511 = vadd.f32 %v4223, %v9474
      %v9512 = vld [vmem:[%s15] sm:$0x1]
      %v9513 = vld [vmem:[%s16] sm:$0x1]
      %v9514 = vsel %vm962, %v9479, 0.0
      %9515 = vadd.xlane.f32.xlu0 %v9514
      %v9516 = vpop.xlane.xlu0 %9515
      %v9517 = vsel %vm962, %v9480, 0.0
      %9518 = vadd.xlane.f32.xlu0 %v9517
      %v9519 = vpop.xlane.xlu0 %9518
      %v9520 = vsel %vm962, %v9481, 0.0
      %9521 = vadd.xlane.f32.xlu0 %v9520
      %v9522 = vpop.xlane.xlu0 %9521
      %v9523 = vsel %vm962, %v9482, 0.0
      %9524 = vadd.xlane.f32.xlu0 %v9523
      %v9525 = vpop.xlane.xlu0 %9524
      %v9526 = vsel %vm962, %v9483, 0.0
      %9527 = vadd.xlane.f32.xlu0 %v9526
      %v9528 = vpop.xlane.xlu0 %9527
      %v9529 = vsel %vm962, %v9484, 0.0
      %9530 = vadd.xlane.f32.xlu0 %v9529
      %v9531 = vpop.xlane.xlu0 %9530
      %v9532 = vsel %vm962, %v9485, 0.0
      %9533 = vadd.xlane.f32.xlu0 %v9532
      %v9534 = vpop.xlane.xlu0 %9533
      %v9535 = vsel %vm962, %v9486, 0.0
      %9536 = vadd.xlane.f32.xlu0 %v9535
      %v9537 = vpop.xlane.xlu0 %9536
      %v9538 = vsel %vm962, %v9487, 0.0
      %9539 = vadd.xlane.f32.xlu0 %v9538
      %v9540 = vpop.xlane.xlu0 %9539
      %v9541 = vsel %vm962, %v9488, 0.0
      %9542 = vadd.xlane.f32.xlu0 %v9541
      %v9543 = vpop.xlane.xlu0 %9542
      %v9544 = vsel %vm962, %v9489, 0.0
      %9545 = vadd.xlane.f32.xlu0 %v9544
      %v9546 = vpop.xlane.xlu0 %9545
      %v9547 = vsel %vm962, %v9490, 0.0
      %9548 = vadd.xlane.f32.xlu0 %v9547
      %v9549 = vpop.xlane.xlu0 %9548
      %v9550 = vsel %vm962, %v9491, 0.0
      %9551 = vadd.xlane.f32.xlu0 %v9550
      %v9552 = vpop.xlane.xlu0 %9551
      %v9553 = vsel %vm962, %v9492, 0.0
      %9554 = vadd.xlane.f32.xlu0 %v9553
      %v9555 = vpop.xlane.xlu0 %9554
      %v9556 = vsel %vm962, %v9493, 0.0
      %9557 = vadd.xlane.f32.xlu0 %v9556
      %v9558 = vpop.xlane.xlu0 %9557
      %v9559 = vsel %vm962, %v9494, 0.0
      %9560 = vadd.xlane.f32.xlu0 %v9559
      %v9561 = vpop.xlane.xlu0 %9560
      %v9562 = vsel %vm962, %v9495, 0.0
      %9563 = vadd.xlane.f32.xlu0 %v9562
      %v9564 = vpop.xlane.xlu0 %9563
      %v9565 = vsel %vm962, %v9496, 0.0
      %9566 = vadd.xlane.f32.xlu0 %v9565
      %v9567 = vpop.xlane.xlu0 %9566
      %v9568 = vsel %vm962, %v9497, 0.0
      %9569 = vadd.xlane.f32.xlu0 %v9568
      %v9570 = vpop.xlane.xlu0 %9569
      %v9571 = vsel %vm962, %v9498, 0.0
      %9572 = vadd.xlane.f32.xlu0 %v9571
      %v9573 = vpop.xlane.xlu0 %9572
      %v9574 = vsel %vm962, %v9499, 0.0
      %9575 = vadd.xlane.f32.xlu0 %v9574
      %v9576 = vpop.xlane.xlu0 %9575
      %v9577 = vsel %vm962, %v9500, 0.0
      %9578 = vadd.xlane.f32.xlu0 %v9577
      %v9579 = vpop.xlane.xlu0 %9578
      %v9580 = vsel %vm962, %v9501, 0.0
      %9581 = vadd.xlane.f32.xlu0 %v9580
      %v9582 = vpop.xlane.xlu0 %9581
      %v9583 = vsel %vm962, %v9502, 0.0
      %9584 = vadd.xlane.f32.xlu0 %v9583
      %v9585 = vpop.xlane.xlu0 %9584
      %v9586 = vsel %vm962, %v9503, 0.0
      %9587 = vadd.xlane.f32.xlu0 %v9586
      %v9588 = vpop.xlane.xlu0 %9587
      %v9589 = vsel %vm962, %v9504, 0.0
      %9590 = vadd.xlane.f32.xlu0 %v9589
      %v9591 = vpop.xlane.xlu0 %9590
      %v9592 = vsel %vm962, %v9505, 0.0
      %9593 = vadd.xlane.f32.xlu0 %v9592
      %v9594 = vpop.xlane.xlu0 %9593
      %v9595 = vsel %vm962, %v9506, 0.0
      %9596 = vadd.xlane.f32.xlu0 %v9595
      %v9597 = vpop.xlane.xlu0 %9596
      %v9598 = vsel %vm962, %v9507, 0.0
      %9599 = vadd.xlane.f32.xlu0 %v9598
      %v9600 = vpop.xlane.xlu0 %9599
      %v9601 = vsel %vm962, %v9508, 0.0
      %9602 = vadd.xlane.f32.xlu0 %v9601
      %v9603 = vpop.xlane.xlu0 %9602
      %v9604 = vsel %vm962, %v9509, 0.0
      %9605 = vadd.xlane.f32.xlu0 %v9604
      %v9606 = vpop.xlane.xlu0 %9605
      %v9607 = vsel %vm962, %v9510, 0.0
      %9608 = vadd.xlane.f32.xlu0 %v9607
      %v9609 = vpop.xlane.xlu0 %9608
      %v9610 = vsel %vm962, %v9511, 0.0
      %9611 = vadd.xlane.f32.xlu0 %v9610
      %v9612 = vpop.xlane.xlu0 %9611
      %v9613 = vmul.f32 %v9516, %v3815
      %v9614 = vmul.f32 %v9519, %v3815
      %v9615 = vmul.f32 %v9522, %v3815
      %v9616 = vmul.f32 %v9525, %v3815
      %v9617 = vmul.f32 %v9528, %v3815
      %v9618 = vmul.f32 %v9531, %v3815
      %v9619 = vmul.f32 %v9534, %v3815
      %v9620 = vmul.f32 %v9537, %v3815
      %v9621 = vmul.f32 %v9540, %v3815
      %v9622 = vmul.f32 %v9543, %v3815
      %v9623 = vmul.f32 %v9546, %v3815
      %v9624 = vmul.f32 %v9549, %v3815
      %v9625 = vmul.f32 %v9552, %v3815
      %v9626 = vmul.f32 %v9555, %v3815
      %v9627 = vmul.f32 %v9558, %v3815
      %v9628 = vmul.f32 %v9561, %v3815
      %v9629 = vmul.f32 %v9564, %v3815
      %v9630 = vmul.f32 %v9567, %v3815
      %v9631 = vmul.f32 %v9570, %v3815
      %v9632 = vmul.f32 %v9573, %v3815
      %v9633 = vmul.f32 %v9576, %v3815
      %v9634 = vmul.f32 %v9579, %v3815
      %v9635 = vmul.f32 %v9582, %v3815
      %v9636 = vmul.f32 %v9585, %v3815
      %v9637 = vmul.f32 %v9588, %v3815
      %v9638 = vmul.f32 %v9591, %v3815
      %v9639 = vmul.f32 %v9594, %v3815
      %v9640 = vmul.f32 %v9597, %v3815
      %v9641 = vmul.f32 %v9600, %v3815
      %v9642 = vmul.f32 %v9603, %v3815
      %v9643 = vmul.f32 %v9606, %v3815
      %v9644 = vmul.f32 %v9609, %v3815
      %v9645 = vmul.f32 %v9612, %v3815
      %v9646 = vsub.f32 %v9479, %v9613
      %v9647 = vsub.f32 %v9480, %v9614
      %v9648 = vsub.f32 %v9481, %v9615
      %v9649 = vsub.f32 %v9482, %v9616
      %v9650 = vsub.f32 %v9483, %v9617
      %v9651 = vsub.f32 %v9484, %v9618
      %v9652 = vsub.f32 %v9485, %v9619
      %v9653 = vsub.f32 %v9486, %v9620
      %v9654 = vsub.f32 %v9487, %v9621
      %v9655 = vsub.f32 %v9488, %v9622
      %v9656 = vsub.f32 %v9489, %v9623
      %v9657 = vsub.f32 %v9490, %v9624
      %v9658 = vsub.f32 %v9491, %v9625
      %v9659 = vsub.f32 %v9492, %v9626
      %v9660 = vsub.f32 %v9493, %v9627
      %v9661 = vsub.f32 %v9494, %v9628
      %v9662 = vsub.f32 %v9495, %v9629
      %v9663 = vsub.f32 %v9496, %v9630
      %v9664 = vsub.f32 %v9497, %v9631
      %v9665 = vsub.f32 %v9498, %v9632
      %v9666 = vsub.f32 %v9499, %v9633
      %v9667 = vsub.f32 %v9500, %v9634
      %v9668 = vsub.f32 %v9501, %v9635
      %v9669 = vsub.f32 %v9502, %v9636
      %v9670 = vsub.f32 %v9503, %v9637
      %v9671 = vsub.f32 %v9504, %v9638
      %v9672 = vsub.f32 %v9505, %v9639
      %v9673 = vsub.f32 %v9506, %v9640
      %v9674 = vsub.f32 %v9507, %v9641
      %v9675 = vsub.f32 %v9508, %v9642
      %v9676 = vsub.f32 %v9509, %v9643
      %v9677 = vsub.f32 %v9510, %v9644
      %v9678 = vsub.f32 %v9511, %v9645
      %v9679 = vmul.f32 %v9646, %v9646
      %v9680 = vmul.f32 %v9647, %v9647
      %v9681 = vmul.f32 %v9648, %v9648
      %v9682 = vmul.f32 %v9649, %v9649
      %v9683 = vmul.f32 %v9650, %v9650
      %v9684 = vmul.f32 %v9651, %v9651
      %v9685 = vmul.f32 %v9652, %v9652
      %v9686 = vmul.f32 %v9653, %v9653
      %v9687 = vmul.f32 %v9654, %v9654
      %v9688 = vmul.f32 %v9655, %v9655
      %v9689 = vmul.f32 %v9656, %v9656
      %v9690 = vmul.f32 %v9657, %v9657
      %v9691 = vmul.f32 %v9658, %v9658
      %v9692 = vmul.f32 %v9659, %v9659
      %v9693 = vmul.f32 %v9660, %v9660
      %v9694 = vmul.f32 %v9661, %v9661
      %v9695 = vmul.f32 %v9662, %v9662
      %v9696 = vmul.f32 %v9663, %v9663
      %v9697 = vmul.f32 %v9664, %v9664
      %v9698 = vmul.f32 %v9665, %v9665
      %v9699 = vmul.f32 %v9666, %v9666
      %v9700 = vmul.f32 %v9667, %v9667
      %v9701 = vmul.f32 %v9668, %v9668
      %v9702 = vmul.f32 %v9669, %v9669
      %v9703 = vmul.f32 %v9670, %v9670
      %v9704 = vmul.f32 %v9671, %v9671
      %v9705 = vmul.f32 %v9672, %v9672
      %v9706 = vmul.f32 %v9673, %v9673
      %v9707 = vmul.f32 %v9674, %v9674
      %v9708 = vmul.f32 %v9675, %v9675
      %v9709 = vmul.f32 %v9676, %v9676
      %v9710 = vmul.f32 %v9677, %v9677
      %v9711 = vmul.f32 %v9678, %v9678
      %v9712 = vsel %vm962, %v9679, 0.0
      %9713 = vadd.xlane.f32.xlu0 %v9712
      %v9714 = vpop.xlane.xlu0 %9713
      %v9715 = vsel %vm962, %v9680, 0.0
      %9716 = vadd.xlane.f32.xlu0 %v9715
      %v9717 = vpop.xlane.xlu0 %9716
      %v9718 = vsel %vm962, %v9681, 0.0
      %9719 = vadd.xlane.f32.xlu0 %v9718
      %v9720 = vpop.xlane.xlu0 %9719
      %v9721 = vsel %vm962, %v9682, 0.0
      %9722 = vadd.xlane.f32.xlu0 %v9721
      %v9723 = vpop.xlane.xlu0 %9722
      %v9724 = vsel %vm962, %v9683, 0.0
      %9725 = vadd.xlane.f32.xlu0 %v9724
      %v9726 = vpop.xlane.xlu0 %9725
      %v9727 = vsel %vm962, %v9684, 0.0
      %9728 = vadd.xlane.f32.xlu0 %v9727
      %v9729 = vpop.xlane.xlu0 %9728
      %v9730 = vsel %vm962, %v9685, 0.0
      %9731 = vadd.xlane.f32.xlu0 %v9730
      %v9732 = vpop.xlane.xlu0 %9731
      %v9733 = vsel %vm962, %v9686, 0.0
      %9734 = vadd.xlane.f32.xlu0 %v9733
      %v9735 = vpop.xlane.xlu0 %9734
      %v9736 = vsel %vm962, %v9687, 0.0
      %9737 = vadd.xlane.f32.xlu0 %v9736
      %v9738 = vpop.xlane.xlu0 %9737
      %v9739 = vsel %vm962, %v9688, 0.0
      %9740 = vadd.xlane.f32.xlu0 %v9739
      %v9741 = vpop.xlane.xlu0 %9740
      %v9742 = vsel %vm962, %v9689, 0.0
      %9743 = vadd.xlane.f32.xlu0 %v9742
      %v9744 = vpop.xlane.xlu0 %9743
      %v9745 = vsel %vm962, %v9690, 0.0
      %9746 = vadd.xlane.f32.xlu0 %v9745
      %v9747 = vpop.xlane.xlu0 %9746
      %v9748 = vsel %vm962, %v9691, 0.0
      %9749 = vadd.xlane.f32.xlu0 %v9748
      %v9750 = vpop.xlane.xlu0 %9749
      %v9751 = vsel %vm962, %v9692, 0.0
      %9752 = vadd.xlane.f32.xlu0 %v9751
      %v9753 = vpop.xlane.xlu0 %9752
      %v9754 = vsel %vm962, %v9693, 0.0
      %9755 = vadd.xlane.f32.xlu0 %v9754
      %v9756 = vpop.xlane.xlu0 %9755
      %v9757 = vsel %vm962, %v9694, 0.0
      %9758 = vadd.xlane.f32.xlu0 %v9757
      %v9759 = vpop.xlane.xlu0 %9758
      %v9760 = vsel %vm962, %v9695, 0.0
      %9761 = vadd.xlane.f32.xlu0 %v9760
      %v9762 = vpop.xlane.xlu0 %9761
      %v9763 = vsel %vm962, %v9696, 0.0
      %9764 = vadd.xlane.f32.xlu0 %v9763
      %v9765 = vpop.xlane.xlu0 %9764
      %v9766 = vsel %vm962, %v9697, 0.0
      %9767 = vadd.xlane.f32.xlu0 %v9766
      %v9768 = vpop.xlane.xlu0 %9767
      %v9769 = vsel %vm962, %v9698, 0.0
      %9770 = vadd.xlane.f32.xlu0 %v9769
      %v9771 = vpop.xlane.xlu0 %9770
      %v9772 = vsel %vm962, %v9699, 0.0
      %9773 = vadd.xlane.f32.xlu0 %v9772
      %v9774 = vpop.xlane.xlu0 %9773
      %v9775 = vsel %vm962, %v9700, 0.0
      %9776 = vadd.xlane.f32.xlu0 %v9775
      %v9777 = vpop.xlane.xlu0 %9776
      %v9778 = vsel %vm962, %v9701, 0.0
      %9779 = vadd.xlane.f32.xlu0 %v9778
      %v9780 = vpop.xlane.xlu0 %9779
      %v9781 = vsel %vm962, %v9702, 0.0
      %9782 = vadd.xlane.f32.xlu0 %v9781
      %v9783 = vpop.xlane.xlu0 %9782
      %v9784 = vsel %vm962, %v9703, 0.0
      %9785 = vadd.xlane.f32.xlu0 %v9784
      %v9786 = vpop.xlane.xlu0 %9785
      %v9787 = vsel %vm962, %v9704, 0.0
      %9788 = vadd.xlane.f32.xlu0 %v9787
      %v9789 = vpop.xlane.xlu0 %9788
      %v9790 = vsel %vm962, %v9705, 0.0
      %9791 = vadd.xlane.f32.xlu0 %v9790
      %v9792 = vpop.xlane.xlu0 %9791
      %v9793 = vsel %vm962, %v9706, 0.0
      %9794 = vadd.xlane.f32.xlu0 %v9793
      %v9795 = vpop.xlane.xlu0 %9794
      %v9796 = vsel %vm962, %v9707, 0.0
      %9797 = vadd.xlane.f32.xlu0 %v9796
      %v9798 = vpop.xlane.xlu0 %9797
      %v9799 = vsel %vm962, %v9708, 0.0
      %9800 = vadd.xlane.f32.xlu0 %v9799
      %v9801 = vpop.xlane.xlu0 %9800
      %v9802 = vsel %vm962, %v9709, 0.0
      %9803 = vadd.xlane.f32.xlu0 %v9802
      %v9804 = vpop.xlane.xlu0 %9803
      %v9805 = vsel %vm962, %v9710, 0.0
      %9806 = vadd.xlane.f32.xlu0 %v9805
      %v9807 = vpop.xlane.xlu0 %9806
      %v9808 = vsel %vm962, %v9711, 0.0
      %9809 = vadd.xlane.f32.xlu0 %v9808
      %v9810 = vpop.xlane.xlu0 %9809
      %v9811 = vmul.f32 %v9714, %v3815
      %v9812 = vmul.f32 %v9717, %v3815
      %v9813 = vmul.f32 %v9720, %v3815
      %v9814 = vmul.f32 %v9723, %v3815
      %v9815 = vmul.f32 %v9726, %v3815
      %v9816 = vmul.f32 %v9729, %v3815
      %v9817 = vmul.f32 %v9732, %v3815
      %v9818 = vmul.f32 %v9735, %v3815
      %v9819 = vmul.f32 %v9738, %v3815
      %v9820 = vmul.f32 %v9741, %v3815
      %v9821 = vmul.f32 %v9744, %v3815
      %v9822 = vmul.f32 %v9747, %v3815
      %v9823 = vmul.f32 %v9750, %v3815
      %v9824 = vmul.f32 %v9753, %v3815
      %v9825 = vmul.f32 %v9756, %v3815
      %v9826 = vmul.f32 %v9759, %v3815
      %v9827 = vmul.f32 %v9762, %v3815
      %v9828 = vmul.f32 %v9765, %v3815
      %v9829 = vmul.f32 %v9768, %v3815
      %v9830 = vmul.f32 %v9771, %v3815
      %v9831 = vmul.f32 %v9774, %v3815
      %v9832 = vmul.f32 %v9777, %v3815
      %v9833 = vmul.f32 %v9780, %v3815
      %v9834 = vmul.f32 %v9783, %v3815
      %v9835 = vmul.f32 %v9786, %v3815
      %v9836 = vmul.f32 %v9789, %v3815
      %v9837 = vmul.f32 %v9792, %v3815
      %v9838 = vmul.f32 %v9795, %v3815
      %v9839 = vmul.f32 %v9798, %v3815
      %v9840 = vmul.f32 %v9801, %v3815
      %v9841 = vmul.f32 %v9804, %v3815
      %v9842 = vmul.f32 %v9807, %v3815
      %v9843 = vmul.f32 %v9810, %v3815
      %v9844 = vadd.f32 %v9811, 1e-05
      %v9845 = vadd.f32 %v9812, 1e-05
      %v9846 = vadd.f32 %v9813, 1e-05
      %v9847 = vadd.f32 %v9814, 1e-05
      %v9848 = vadd.f32 %v9815, 1e-05
      %v9849 = vadd.f32 %v9816, 1e-05
      %v9850 = vadd.f32 %v9817, 1e-05
      %v9851 = vadd.f32 %v9818, 1e-05
      %v9852 = vadd.f32 %v9819, 1e-05
      %v9853 = vadd.f32 %v9820, 1e-05
      %v9854 = vadd.f32 %v9821, 1e-05
      %v9855 = vadd.f32 %v9822, 1e-05
      %v9856 = vadd.f32 %v9823, 1e-05
      %v9857 = vadd.f32 %v9824, 1e-05
      %v9858 = vadd.f32 %v9825, 1e-05
      %v9859 = vadd.f32 %v9826, 1e-05
      %v9860 = vadd.f32 %v9827, 1e-05
      %v9861 = vadd.f32 %v9828, 1e-05
      %v9862 = vadd.f32 %v9829, 1e-05
      %v9863 = vadd.f32 %v9830, 1e-05
      %v9864 = vadd.f32 %v9831, 1e-05
      %v9865 = vadd.f32 %v9832, 1e-05
      %v9866 = vadd.f32 %v9833, 1e-05
      %v9867 = vadd.f32 %v9834, 1e-05
      %v9868 = vadd.f32 %v9835, 1e-05
      %v9869 = vadd.f32 %v9836, 1e-05
      %v9870 = vadd.f32 %v9837, 1e-05
      %v9871 = vadd.f32 %v9838, 1e-05
      %v9872 = vadd.f32 %v9839, 1e-05
      %v9873 = vadd.f32 %v9840, 1e-05
      %v9874 = vadd.f32 %v9841, 1e-05
      %v9875 = vadd.f32 %v9842, 1e-05
      %v9876 = vadd.f32 %v9843, 1e-05
      %v9877 = vrsqrt.pop %v9844
      %v9878 = vrsqrt.pop %v9845
      %v9879 = vrsqrt.pop %v9846
      %v9880 = vrsqrt.pop %v9847
      %v9881 = vrsqrt.pop %v9848
      %v9882 = vrsqrt.pop %v9849
      %v9883 = vrsqrt.pop %v9850
      %v9884 = vrsqrt.pop %v9851
      %v9885 = vrsqrt.pop %v9852
      %v9886 = vrsqrt.pop %v9853
      %v9887 = vrsqrt.pop %v9854
      %v9888 = vrsqrt.pop %v9855
      %v9889 = vrsqrt.pop %v9856
      %v9890 = vrsqrt.pop %v9857
      %v9891 = vrsqrt.pop %v9858
      %v9892 = vrsqrt.pop %v9859
      %v9893 = vrsqrt.pop %v9860
      %v9894 = vrsqrt.pop %v9861
      %v9895 = vrsqrt.pop %v9862
      %v9896 = vrsqrt.pop %v9863
      %v9897 = vrsqrt.pop %v9864
      %v9898 = vrsqrt.pop %v9865
      %v9899 = vrsqrt.pop %v9866
      %v9900 = vrsqrt.pop %v9867
      %v9901 = vrsqrt.pop %v9868
      %v9902 = vrsqrt.pop %v9869
      %v9903 = vrsqrt.pop %v9870
      %v9904 = vrsqrt.pop %v9871
      %v9905 = vrsqrt.pop %v9872
      %v9906 = vrsqrt.pop %v9873
      %v9907 = vrsqrt.pop %v9874
      %v9908 = vrsqrt.pop %v9875
      %v9909 = vrsqrt.pop %v9876
      %v9910 = vmul.f32 %v9646, %v9877
      %v9911 = vmul.f32 %v9647, %v9878
      %v9912 = vmul.f32 %v9648, %v9879
      %v9913 = vmul.f32 %v9649, %v9880
      %v9914 = vmul.f32 %v9650, %v9881
      %v9915 = vmul.f32 %v9651, %v9882
      %v9916 = vmul.f32 %v9652, %v9883
      %v9917 = vmul.f32 %v9653, %v9884
      %v9918 = vmul.f32 %v9654, %v9885
      %v9919 = vmul.f32 %v9655, %v9886
      %v9920 = vmul.f32 %v9656, %v9887
      %v9921 = vmul.f32 %v9657, %v9888
      %v9922 = vmul.f32 %v9658, %v9889
      %v9923 = vmul.f32 %v9659, %v9890
      %v9924 = vmul.f32 %v9660, %v9891
      %v9925 = vmul.f32 %v9661, %v9892
      %v9926 = vmul.f32 %v9662, %v9893
      %v9927 = vmul.f32 %v9663, %v9894
      %v9928 = vmul.f32 %v9664, %v9895
      %v9929 = vmul.f32 %v9665, %v9896
      %v9930 = vmul.f32 %v9666, %v9897
      %v9931 = vmul.f32 %v9667, %v9898
      %v9932 = vmul.f32 %v9668, %v9899
      %v9933 = vmul.f32 %v9669, %v9900
      %v9934 = vmul.f32 %v9670, %v9901
      %v9935 = vmul.f32 %v9671, %v9902
      %v9936 = vmul.f32 %v9672, %v9903
      %v9937 = vmul.f32 %v9673, %v9904
      %v9938 = vmul.f32 %v9674, %v9905
      %v9939 = vmul.f32 %v9675, %v9906
      %v9940 = vmul.f32 %v9676, %v9907
      %v9941 = vmul.f32 %v9677, %v9908
      %v9942 = vmul.f32 %v9678, %v9909
      %v9944 = vlaneseq
      %v9945 = vshrl.u32 %v9944, 7
      %v9946 = vsub.s32 0, %v9945
      %v9947 = vrot.slane %v9512, %v9946
      %v9949 = vmul.f32 %v9910, %v9947
      %v9950 = vmul.f32 %v9911, %v9947
      %v9951 = vmul.f32 %v9912, %v9947
      %v9952 = vmul.f32 %v9913, %v9947
      %v9953 = vmul.f32 %v9914, %v9947
      %v9954 = vmul.f32 %v9915, %v9947
      %v9955 = vmul.f32 %v9916, %v9947
      %v9956 = vmul.f32 %v9917, %v9947
      %v9957 = vmul.f32 %v9918, %v9947
      %v9958 = vmul.f32 %v9919, %v9947
      %v9959 = vmul.f32 %v9920, %v9947
      %v9960 = vmul.f32 %v9921, %v9947
      %v9961 = vmul.f32 %v9922, %v9947
      %v9962 = vmul.f32 %v9923, %v9947
      %v9963 = vmul.f32 %v9924, %v9947
      %v9964 = vmul.f32 %v9925, %v9947
      %v9965 = vmul.f32 %v9926, %v9947
      %v9966 = vmul.f32 %v9927, %v9947
      %v9967 = vmul.f32 %v9928, %v9947
      %v9968 = vmul.f32 %v9929, %v9947
      %v9969 = vmul.f32 %v9930, %v9947
      %v9970 = vmul.f32 %v9931, %v9947
      %v9971 = vmul.f32 %v9932, %v9947
      %v9972 = vmul.f32 %v9933, %v9947
      %v9973 = vmul.f32 %v9934, %v9947
      %v9974 = vmul.f32 %v9935, %v9947
      %v9975 = vmul.f32 %v9936, %v9947
      %v9976 = vmul.f32 %v9937, %v9947
      %v9977 = vmul.f32 %v9938, %v9947
      %v9978 = vmul.f32 %v9939, %v9947
      %v9979 = vmul.f32 %v9940, %v9947
      %v9980 = vmul.f32 %v9941, %v9947
      %v9981 = vmul.f32 %v9942, %v9947
      %v9983 = vlaneseq
      %v9984 = vshrl.u32 %v9983, 7
      %v9985 = vsub.s32 0, %v9984
      %v9986 = vrot.slane %v9513, %v9985
      %v9988 = vadd.f32 %v9949, %v9986
      %v9989 = vadd.f32 %v9950, %v9986
      %v9990 = vadd.f32 %v9951, %v9986
      %v9991 = vadd.f32 %v9952, %v9986
      %v9992 = vadd.f32 %v9953, %v9986
      %v9993 = vadd.f32 %v9954, %v9986
      %v9994 = vadd.f32 %v9955, %v9986
      %v9995 = vadd.f32 %v9956, %v9986
      %v9996 = vadd.f32 %v9957, %v9986
      %v9997 = vadd.f32 %v9958, %v9986
      %v9998 = vadd.f32 %v9959, %v9986
      %v9999 = vadd.f32 %v9960, %v9986
      %v10000 = vadd.f32 %v9961, %v9986
      %v10001 = vadd.f32 %v9962, %v9986
      %v10002 = vadd.f32 %v9963, %v9986
      %v10003 = vadd.f32 %v9964, %v9986
      %v10004 = vadd.f32 %v9965, %v9986
      %v10005 = vadd.f32 %v9966, %v9986
      %v10006 = vadd.f32 %v9967, %v9986
      %v10007 = vadd.f32 %v9968, %v9986
      %v10008 = vadd.f32 %v9969, %v9986
      %v10009 = vadd.f32 %v9970, %v9986
      %v10010 = vadd.f32 %v9971, %v9986
      %v10011 = vadd.f32 %v9972, %v9986
      %v10012 = vadd.f32 %v9973, %v9986
      %v10013 = vadd.f32 %v9974, %v9986
      %v10014 = vadd.f32 %v9975, %v9986
      %v10015 = vadd.f32 %v9976, %v9986
      %v10016 = vadd.f32 %v9977, %v9986
      %v10017 = vadd.f32 %v9978, %v9986
      %v10018 = vadd.f32 %v9979, %v9986
      %v10019 = vadd.f32 %v9980, %v9986
      %v10020 = vadd.f32 %v9981, %v9986
      %v10021 = vld [vmem:[%s4] sm:$0xff]
      %v10022 = vld [vmem:[%s4 + $0x8] sm:$0xff]
      %v10023 = vld [vmem:[%s4 + $0x10] sm:$0xff]
      %v10025 = vsel %vm2075, %v10023, 0
      %10027 = vmatprep.subr.mxu0 0.0
      %10028 = vmatpush1.msra.mxu0 %v9988
      %10029 = vmatprep.subr.mxu0 0.0
      %10030 = vmatpush1.msra.mxu0 %v9989
      %10031 = vmatprep.subr.mxu0 0.0
      %10032 = vmatpush1.msra.mxu0 %v9990
      %10033 = vmatprep.subr.mxu0 0.0
      %10034 = vmatpush1.msra.mxu0 %v9991
      %10035 = vmatprep.subr.mxu0 0.0
      %10036 = vmatpush1.msra.mxu0 %v9992
      %10037 = vmatprep.subr.mxu0 0.0
      %10038 = vmatpush1.msra.mxu0 %v9993
      %10039 = vmatprep.subr.mxu0 0.0
      %10040 = vmatpush1.msra.mxu0 %v9994
      %10041 = vmatprep.subr.mxu0 0.0
      %10042 = vmatpush1.msra.mxu0 %v9995
      %10043 = vmatprep.subr.mxu0 0.0
      %10044 = vmatpush1.msra.mxu0 %v9996
      %10045 = vmatprep.subr.mxu0 0.0
      %10046 = vmatpush1.msra.mxu0 %v9997
      %10047 = vmatprep.subr.mxu0 0.0
      %10048 = vmatpush1.msra.mxu0 %v9998
      %10049 = vmatprep.subr.mxu0 0.0
      %10050 = vmatpush1.msra.mxu0 %v9999
      %10051 = vmatprep.subr.mxu0 0.0
      %10052 = vmatpush1.msra.mxu0 %v10000
      %10053 = vmatprep.subr.mxu0 0.0
      %10054 = vmatpush1.msra.mxu0 %v10001
      %10055 = vmatprep.subr.mxu0 0.0
      %10056 = vmatpush1.msra.mxu0 %v10002
      %10057 = vmatprep.subr.mxu0 0.0
      %10058 = vmatpush1.msra.mxu0 %v10003
      %10059 = vmatprep.subr.mxu0 0.0
      %10060 = vmatpush1.msra.mxu0 %v10004
      %10061 = vmatprep.subr.mxu0 0.0
      %10062 = vmatpush1.msra.mxu0 %v10005
      %10063 = vmatprep.subr.mxu0 0.0
      %10064 = vmatpush1.msra.mxu0 %v10006
      %10065 = vmatprep.subr.mxu0 0.0
      %10066 = vmatpush1.msra.mxu0 %v10007
      %10067 = vmatprep.subr.mxu0 0.0
      %10068 = vmatpush1.msra.mxu0 %v10008
      %10069 = vmatprep.subr.mxu0 0.0
      %10070 = vmatpush1.msra.mxu0 %v10009
      %10071 = vmatprep.subr.mxu0 0.0
      %10072 = vmatpush1.msra.mxu0 %v10010
      %10073 = vmatprep.subr.mxu0 0.0
      %10074 = vmatpush1.msra.mxu0 %v10011
      %10075 = vmatprep.subr.mxu0 0.0
      %10076 = vmatpush1.msra.mxu0 %v10012
      %10077 = vmatprep.subr.mxu0 0.0
      %10078 = vmatpush1.msra.mxu0 %v10013
      %10079 = vmatprep.subr.mxu0 0.0
      %10080 = vmatpush1.msra.mxu0 %v10014
      %10081 = vmatprep.subr.mxu0 0.0
      %10082 = vmatpush1.msra.mxu0 %v10015
      %10083 = vmatprep.subr.mxu0 0.0
      %10084 = vmatpush1.msra.mxu0 %v10016
      %10085 = vmatprep.subr.mxu0 0.0
      %10086 = vmatpush1.msra.mxu0 %v10017
      %10087 = vmatprep.subr.mxu0 0.0
      %10088 = vmatpush1.msra.mxu0 %v10018
      %10089 = vmatprep.subr.mxu0 0.0
      %10090 = vmatpush1.msra.mxu0 %v10019
      %10091 = vmatprep.mubr.f32.mxu0 %v10022
      %10092 = vmatmul.mubr.f32.gmra.mrb[0].mxu0 %v10021
      %v10093 = vpop.f32.mrb[0].mxu0
      %v10094 = vadd.f32 0.0, %v10093
      %v10095 = vpop.f32.mrb[0].mxu0
      %10096 = vdwg.mxu0
      %10097 = vmatprep.subr.mxu0 0.0
      %10098 = vmatpush1.msra.mxu0 %v10020
      %10099 = vmatprep.subr.mxu0 0.0
      %10100 = vmatpush1.msra.mxu0 0.0
      %10101 = vmatprep.subr.mxu0 0.0
      %10102 = vmatpush1.msra.mxu0 0.0
      %10103 = vmatprep.subr.mxu0 0.0
      %10104 = vmatpush1.msra.mxu0 0.0
      %10105 = vmatprep.subr.mxu0 0.0
      %10106 = vmatpush1.msra.mxu0 0.0
      %10107 = vmatprep.subr.mxu0 0.0
      %10108 = vmatpush1.msra.mxu0 0.0
      %10109 = vmatprep.subr.mxu0 0.0
      %10110 = vmatpush1.msra.mxu0 0.0
      %10111 = vmatprep.subr.mxu0 0.0
      %10112 = vmatpush1.msra.mxu0 0.0
      %10113 = vmatprep.subr.mxu0 0.0
      %10114 = vmatpush1.msra.mxu0 0.0
      %10115 = vmatprep.subr.mxu0 0.0
      %10116 = vmatpush1.msra.mxu0 0.0
      %10117 = vmatprep.subr.mxu0 0.0
      %10118 = vmatpush1.msra.mxu0 0.0
      %10119 = vmatprep.subr.mxu0 0.0
      %10120 = vmatpush1.msra.mxu0 0.0
      %10121 = vmatprep.subr.mxu0 0.0
      %10122 = vmatpush1.msra.mxu0 0.0
      %10123 = vmatprep.subr.mxu0 0.0
      %10124 = vmatpush1.msra.mxu0 0.0
      %10125 = vmatprep.subr.mxu0 0.0
      %10126 = vmatpush1.msra.mxu0 0.0
      %10127 = vmatprep.subr.mxu0 0.0
      %10128 = vmatpush1.msra.mxu0 0.0
      %10129 = vmatprep.subr.mxu0 0.0
      %10130 = vmatpush1.msra.mxu0 0.0
      %10131 = vmatprep.subr.mxu0 0.0
      %10132 = vmatpush1.msra.mxu0 0.0
      %10133 = vmatprep.subr.mxu0 0.0
      %10134 = vmatpush1.msra.mxu0 0.0
      %10135 = vmatprep.subr.mxu0 0.0
      %10136 = vmatpush1.msra.mxu0 0.0
      %10137 = vmatprep.subr.mxu0 0.0
      %10138 = vmatpush1.msra.mxu0 0.0
      %10139 = vmatprep.subr.mxu0 0.0
      %10140 = vmatpush1.msra.mxu0 0.0
      %10141 = vmatprep.subr.mxu0 0.0
      %10142 = vmatpush1.msra.mxu0 0.0
      %10143 = vmatprep.subr.mxu0 0.0
      %10144 = vmatpush1.msra.mxu0 0.0
      %10145 = vmatprep.subr.mxu0 0.0
      %10146 = vmatpush1.msra.mxu0 0.0
      %10147 = vmatprep.subr.mxu0 0.0
      %10148 = vmatpush1.msra.mxu0 0.0
      %10149 = vmatprep.subr.mxu0 0.0
      %10150 = vmatpush1.msra.mxu0 0.0
      %10151 = vmatprep.subr.mxu0 0.0
      %10152 = vmatpush1.msra.mxu0 0.0
      %10153 = vmatprep.subr.mxu0 0.0
      %10154 = vmatpush1.msra.mxu0 0.0
      %10155 = vmatprep.subr.mxu0 0.0
      %10156 = vmatpush1.msra.mxu0 0.0
      %10157 = vmatprep.subr.mxu0 0.0
      %10158 = vmatpush1.msra.mxu0 0.0
      %10159 = vmatprep.subr.mxu0 0.0
      %10160 = vmatpush1.msra.mxu0 0.0
      %10161 = vmatprep.mubr.f32.mxu0 0.0
      %10162 = vmatmul.mubr.f32.gmra.mrb[0].mxu0 %v10025
      %v10163 = vpop.f32.mrb[0].mxu0
      %v10164 = vadd.f32 %v10094, %v10163
      %v10165 = vpop.f32.mrb[0].mxu0
      %10166 = vdwg.mxu0
      %v10167 = vld [vmem:[%s17] sm:$0xff]
      %v10168 = vld [vmem:[%s17 + $0x8] sm:$0xff]
      %v10169 = vld [vmem:[%s17 + $0x10] sm:$0xff]
      %v10170 = vld [vmem:[%s17 + $0x18] sm:$0xff]
      %v10171 = vld [vmem:[%s17 + $0x20] sm:$0xff]
      %v10172 = vld [vmem:[%s17 + $0x28] sm:$0x3f]
      %v10173 = vld [vmem:[%s18] sm:$0x1]
      %v10175 = vlaneseq
      %v10176 = vshrl.u32 %v10175, 7
      %v10177 = vsub.s32 0, %v10176
      %v10178 = vrot.slane %v10173, %v10177
      %v10181 = vsel %vm962, %v10164, 0
      %vm10183 = vcmask 1045504
      %v10185 = vsel %vm10183, %v10172, 0
      %10187 = vmatprep.subr.mxu0 0.0
      %10188 = vmatpush1.msra.mxu0 %v10167
      %10189 = vmatprep.subr.mxu0 0.0
      %10190 = vmatpush1.msra.mxu0 %v10168
      %10191 = vmatprep.subr.mxu0 0.0
      %10192 = vmatpush1.msra.mxu0 %v10169
      %10193 = vmatprep.subr.mxu0 0.0
      %10194 = vmatpush1.msra.mxu0 %v10170
      %10195 = vmatprep.subr.mxu0 0.0
      %10196 = vmatpush1.msra.mxu0 %v10171
      %10197 = vmatprep.subr.mxu0 0.0
      %10198 = vmatpush1.msra.mxu0 %v10185
      %10199 = vmatprep.subr.mxu0 0.0
      %10200 = vmatpush1.msra.mxu0 0.0
      %10201 = vmatprep.subr.mxu0 0.0
      %10202 = vmatpush1.msra.mxu0 0.0
      %10203 = vmatprep.subr.mxu0 0.0
      %10204 = vmatpush1.msra.mxu0 0.0
      %10205 = vmatprep.subr.mxu0 0.0
      %10206 = vmatpush1.msra.mxu0 0.0
      %10207 = vmatprep.subr.mxu0 0.0
      %10208 = vmatpush1.msra.mxu0 0.0
      %10209 = vmatprep.subr.mxu0 0.0
      %10210 = vmatpush1.msra.mxu0 0.0
      %10211 = vmatprep.subr.mxu0 0.0
      %10212 = vmatpush1.msra.mxu0 0.0
      %10213 = vmatprep.subr.mxu0 0.0
      %10214 = vmatpush1.msra.mxu0 0.0
      %10215 = vmatprep.subr.mxu0 0.0
      %10216 = vmatpush1.msra.mxu0 0.0
      %10217 = vmatprep.subr.mxu0 0.0
      %10218 = vmatpush1.msra.mxu0 0.0
      %10219 = vmatprep.subr.mxu0 0.0
      %10220 = vmatpush1.msra.mxu0 0.0
      %10221 = vmatprep.subr.mxu0 0.0
      %10222 = vmatpush1.msra.mxu0 0.0
      %10223 = vmatprep.subr.mxu0 0.0
      %10224 = vmatpush1.msra.mxu0 0.0
      %10225 = vmatprep.subr.mxu0 0.0
      %10226 = vmatpush1.msra.mxu0 0.0
      %10227 = vmatprep.subr.mxu0 0.0
      %10228 = vmatpush1.msra.mxu0 0.0
      %10229 = vmatprep.subr.mxu0 0.0
      %10230 = vmatpush1.msra.mxu0 0.0
      %10231 = vmatprep.subr.mxu0 0.0
      %10232 = vmatpush1.msra.mxu0 0.0
      %10233 = vmatprep.subr.mxu0 0.0
      %10234 = vmatpush1.msra.mxu0 0.0
      %10235 = vmatprep.subr.mxu0 0.0
      %10236 = vmatpush1.msra.mxu0 0.0
      %10237 = vmatprep.subr.mxu0 0.0
      %10238 = vmatpush1.msra.mxu0 0.0
      %10239 = vmatprep.subr.mxu0 0.0
      %10240 = vmatpush1.msra.mxu0 0.0
      %10241 = vmatprep.subr.mxu0 0.0
      %10242 = vmatpush1.msra.mxu0 0.0
      %10243 = vmatprep.subr.mxu0 0.0
      %10244 = vmatpush1.msra.mxu0 0.0
      %10245 = vmatprep.subr.mxu0 0.0
      %10246 = vmatpush1.msra.mxu0 0.0
      %10247 = vmatprep.subr.mxu0 0.0
      %10248 = vmatpush1.msra.mxu0 0.0
      %10249 = vmatprep.subr.mxu0 0.0
      %10250 = vmatpush1.msra.mxu0 0.0
      %10251 = vmatprep.mubr.f32.mxu0 0.0
      %10252 = vmatmul.mubr.f32.gmra.mrb[0].mxu0 %v10181
      %v10253 = vpop.f32.mrb[0].mxu0
      %v10254 = vadd.f32 %v10178, %v10253
      %v10255 = vpop.f32.mrb[0].mxu0
      %10256 = vdwg.mxu0
      %vm10257 = vcmask 31744
      %10258 = vst.msk [vmem:[%s619] sm:$0xff] %vm10257, %v10254
      %p10259 = scmp.lt.s32.totalorder %s30, 1
      %s10260 = scalar_select %p10259, %s30, 1
      %s10261 = smul.addr %s10260, 8
      %s10262 = scalar_lea.vmem %s19, %s10261
      // Predicated region
      $region97: #{tpu_custom_call.1} parent=95 // pred_check
        %p10263 = pneg %p457
      $region98: #{tpu_custom_call.1} parent=95 // pred_check_branch
        %10265 = sbr.rel (%p10263) target = $region100
      $region99: #{tpu_custom_call.1} parent=95 // pred_region
        _
      $region100: #{tpu_custom_call.1} parent=95 // pred_fallthru
        _
    $region96: #{tpu_custom_call.1} parent=5 // pred_fallthru
      _
    %p10266 = scmp.le.s32.totalorder 2, %s25
    // Predicated region
    $region101: #{tpu_custom_call.1} parent=5 // pred_check
      %p10267 = pneg %p10266
    $region102: #{tpu_custom_call.1} parent=5 // pred_check_branch
      %10269 = sbr.rel (%p10267) target = $region104
    $region103: #{tpu_custom_call.1} parent=5 // pred_region
      %s10270 = ssub.s32 %s25, 2
      // Predicated region
      $region105: #{tpu_custom_call.1} parent=103 // pred_check
        %p10271 = pneg %p463
      $region106: #{tpu_custom_call.1} parent=103 // pred_check_branch
        %10273 = sbr.rel (%p10271) target = $region108
      $region107: #{tpu_custom_call.1} parent=103 // pred_region
        %p10274 = scmp.lt.s32.totalorder %s31, 1
        %s10275 = scalar_select %p10274, %s31, 1
        %s10276 = smul.addr %s10275, 8
        %s10277 = scalar_lea.vmem %s19, %s10276
      $region108: #{tpu_custom_call.1} parent=103 // pred_fallthru
        _
    $region104: #{tpu_custom_call.1} parent=5 // pred_fallthru
      _
  $region6: #{tpu_custom_call.1} parent=0 // loop_footer
    %s29 = sadd.s32 1, %s25
  $region7: #{tpu_custom_call.1} parent=0 // loop_footer_branch
    %24 = sbr.rel target = $region3
  $region8: #{tpu_custom_call.1} parent=0 // loop_exit
    _

</llo_original>
